<compile_context>
chip_gen: v5e
topology: v5e:2x2
jax: 0.10.0
libtpu: 0.0.40
codegen_flags: <defaults>
</compile_context>

<pallas_src>
import jax
import jax.numpy as jnp
from jax.experimental import pallas as pl
from jax.experimental.pallas import tpu as pltpu

# Dimensions fixed by DRJointSpa.__init__ (dim1=256, num_joint=25, coords=3).
C_IN = 3            # input coordinate channels
NUM_JOINT = 25      # joints
JP = 32             # joints padded to a multiple of 8 (sublane friendly)
JPH = JP // 2       # joints per packed output row (2 joints / 128 lanes)
EMB = 64            # embed() output channels
FEAT = 2 * EMB      # 128 = dim1 // 2  (cat of dy and spa1)
GDIM = 256          # dim1, compute_g_spa projection channels (folded away)
OUT = 64            # dim1 // 4, gcn_spa output channels
NPROJ = 256         # fused projection width: [A | Ww_lo | Ww1_lo | U | pad]
BN_EPS = 1e-5
F32 = jnp.float32
BF16 = jnp.bfloat16
NEG_BIG = -1e30     # softmax mask value for padded key joints


def _drjoint_kernel(x_ref, d_ref, we1_ref, we2_ref, be_ref,
                    wbig_ref, add_ref, out_ref):
    relu = lambda v: jnp.maximum(v, 0.0)
    bf = lambda v: v.astype(BF16)
    dot = lambda a, b: jnp.dot(a, b, preferred_element_type=F32)

    tb = x_ref.shape[1]
    m = tb * JP

    xh = x_ref[0].reshape(m, C_IN)    # (M, 3) pre-normalized coordinates
    dh = d_ref[0].reshape(m, C_IN)    # (M, 3) pre-normalized temporal diff

    # joint_embed / dif_embed: cnn1x1 -> ReLU -> cnn1x1 -> ReLU over M rows.
    h = relu(dot(bf(xh), we1_ref[0]) + be_ref[0:1, :])
    pos = relu(dot(bf(h), we2_ref[0]) + be_ref[1:2, :])
    h = relu(dot(bf(dh), we1_ref[1]) + be_ref[2:3, :])
    dif = relu(dot(bf(h), we2_ref[1]) + be_ref[3:4, :])
    dy = pos + dif                    # (M, 64) f32

    # One fused (M,64)x(64,256) projection + per-joint additive table:
    #   cols   0: 64 -> Q   = dy@A      + g1s@Wg2_lo^T        (attn query term)
    #   cols  64:128 -> hm  = dy@Ww_lo  + spa@Ww_hi            (gcn "w"  input)
    #   cols 128:192 -> w1f = dy@Ww1_lo + spa@Ww1_hi + bw1     (gcn "w1" path)
    #   cols 192:224 -> t2c = dy@U + g1s@g2s^T + key_mask      (attn key terms)
    p = dot(bf(dy), wbig_ref[...]).reshape(tb, JP, NPROJ) + add_ref[...]
    q_s = p[:, :, 0:EMB]
    hm = p[:, :, EMB:2 * EMB]
    w1f = p[:, :, 2 * EMB:3 * EMB]
    t2c = p[:, :, 3 * EMB:3 * EMB + JP]

    dy3 = bf(dy.reshape(tb, JP, EMB))

    # g3[t,q,k] = <g1[t,q], g2[t,k]> (folded); softmax over real key joints
    # (the -1e30 mask for padded keys is baked into the additive table).
    g3 = jnp.einsum("tqd,tkd->tqk", bf(q_s), dy3,
                    preferred_element_type=F32) + t2c
    g3 = g3 - jnp.max(g3, axis=-1, keepdims=True)
    e = jnp.exp(g3)
    g = e * pl.reciprocal(jnp.sum(e, axis=-1, keepdims=True), approx=True)

    # gcn_spa: out = g @ hm + w1f   (bn / relu unused in the module forward).
    gh = jnp.einsum("tqk,tkd->tqd", bf(g), bf(hm), preferred_element_type=F32)
    res = gh + w1f                   # (tb, JP, 64)

    # Lane-dense pack: joints 0..15 -> lanes 0..63, joints 16..31 -> 64..127.
    out_ref[0] = jnp.concatenate([res[:, :JPH, :], res[:, JPH:, :]],
                                 axis=-1).astype(out_ref.dtype)


def init_params(key):
    """Deterministic synthetic parameters (shapes from DRJointSpa.__init__)."""
    ks = iter(jax.random.split(key, 32))

    def w(shape, scale=0.1):
        return (scale * jax.random.normal(next(ks), shape)).astype(F32)

    def bn_affine():
        gamma = 1.0 + 0.05 * jax.random.normal(next(ks), (C_IN, NUM_JOINT))
        beta = 0.05 * jax.random.normal(next(ks), (C_IN, NUM_JOINT))
        mean = 0.1 * jax.random.normal(next(ks), (C_IN, NUM_JOINT))
        var = 1.0 + 0.2 * jax.random.uniform(next(ks), (C_IN, NUM_JOINT))
        scale = gamma / jnp.sqrt(var + BN_EPS)
        shift = beta - mean * scale
        return scale.T.astype(F32), shift.T.astype(F32)     # channels-last (J, C)

    p = {}
    p["bnj_scale"], p["bnj_shift"] = bn_affine()             # joint_embed norm_data
    p["bnd_scale"], p["bnd_shift"] = bn_affine()             # dif_embed norm_data
    # Conv2d weights stored transposed: (in, out) so the kernel right-multiplies.
    p["wj1"], p["bj1"] = w((C_IN, EMB)), w((1, EMB), 0.05)
    p["wj2"], p["bj2"] = w((EMB, EMB)), w((1, EMB), 0.05)
    p["wd1"], p["bd1"] = w((C_IN, EMB)), w((1, EMB), 0.05)
    p["wd2"], p["bd2"] = w((EMB, EMB)), w((1, EMB), 0.05)
    p["ws1"], p["bs1"] = w((NUM_JOINT, EMB)), w((1, EMB), 0.05)
    p["ws2"], p["bs2"] = w((EMB, EMB)), w((1, EMB), 0.05)
    p["wg1"], p["bg1"] = w((FEAT, GDIM), 0.05), w((1, GDIM), 0.05)
    p["wg2"], p["bg2"] = w((FEAT, GDIM), 0.05), w((1, GDIM), 0.05)
    p["ww"] = w((FEAT, OUT))                                 # gcn.w  (bias=False)
    p["ww1"], p["bw1"] = w((FEAT, OUT)), w((1, OUT), 0.05)   # gcn.w1 (bias=True)
    return p


def _pad_joints(a):
    return jnp.pad(a, ((0, JP - NUM_JOINT), (0, 0)))


def _prepare_kernel_args(params):
    """Hoist every (b, t)-independent tensor out of the kernel and pack it."""
    relu = lambda v: jnp.maximum(v, 0.0)
    # spa_embed applied to the one-hot joint identity: eye(J) @ Ws1 == Ws1.
    spa = relu(relu(params["ws1"] + params["bs1"]) @ params["ws2"] + params["bs2"])
    g1s = _pad_joints(spa @ params["wg1"][EMB:] + params["bg1"])      # (32, 256)
    g2s = _pad_joints(spa @ params["wg2"][EMB:] + params["bg2"])      # (32, 256)
    sww = _pad_joints(spa @ params["ww"][EMB:])                       # (32, 64)
    w1s = _pad_joints(spa @ params["ww1"][EMB:] + params["bw1"])      # (32, 64)

    # Algebraic fold of the GDIM=256 attention projections.
    wg1_lo = params["wg1"][:EMB]                                      # (64, 256)
    wg2_lo = params["wg2"][:EMB]                                      # (64, 256)
    a_fold = wg1_lo @ wg2_lo.T                                        # (64, 64)
    u_fold = wg1_lo @ g2s.T                                           # (64, 32)
    b_fold = g1s @ wg2_lo.T                                           # (32, 64)
    c_fold = g1s @ g2s.T                                              # (32, 32)
    key_mask = jnp.where(jnp.arange(JP) < NUM_JOINT, 0.0, NEG_BIG)    # (32,)

    pad_n = NPROJ - 3 * EMB - JP                                      # 32
    w_big = jnp.concatenate(
        [a_fold, params["ww"][:EMB], params["ww1"][:EMB], u_fold,
         jnp.zeros((EMB, pad_n), F32)], axis=1)                       # (64, 256)
    add_big = jnp.concatenate(
        [b_fold, sww, w1s, c_fold + key_mask[None, :],
         jnp.zeros((JP, pad_n), F32)], axis=1)                        # (32, 256)

    w_emb1 = jnp.stack([params["wj1"], params["wd1"]])                # (2, 3, 64)
    w_emb2 = jnp.stack([params["wj2"], params["wd2"]])                # (2, 64, 64)
    b_emb = jnp.concatenate(
        [params["bj1"], params["bj2"], params["bd1"], params["bd2"]], axis=0)

    return [w_emb1.astype(BF16), w_emb2.astype(BF16), b_emb.astype(F32),
            w_big.astype(BF16), add_big.astype(F32)]


def drjoint_spa_forward(x_nchw, params, *, tb=128,
                        vmem_limit_bytes=48 * 1024 * 1024):
    """DRJointSpa.forward.  x_nchw: (bs, 3, 25, T) f32 (PyTorch NCHW).
    Returns (bs, 64, 25, T) f32, matching the PyTorch module output.
    tb=128 is a portable default (v7x cap ~128-256; v6e/v5e can go larger)."""
    bs, c, j, T = x_nchw.shape
    assert c == C_IN and j == NUM_JOINT

    # layout: NCHW -> (B, T, J, C) so channels sit on the lane axis in-kernel.
    x_cl = jnp.transpose(x_nchw, (0, 3, 2, 1)).astype(F32)
    dif = x_cl[:, 1:] - x_cl[:, :-1]
    dif = jnp.concatenate([jnp.zeros((bs, 1, j, c), F32), dif], axis=1)

    # norm_data: BatchNorm1d(3*25) as a per-(joint, channel) affine, applied in
    # the wrapper so it fuses into the transpose/pad XLA op.
    # TODO(synk): BatchNorm implemented in eval mode (running-stats affine);
    # training-mode batch statistics are not reproduced.
    x_cl = x_cl * params["bnj_scale"] + params["bnj_shift"]
    dif = dif * params["bnd_scale"] + params["bnd_shift"]

    # Time-block selection: as large as requested, but keep >= 2 grid steps
    # when possible so both v7x TensorCores get work.
    tb = max(1, min(tb, T))
    while bs * ((T + tb - 1) // tb) < 2 and tb > 8:
        tb //= 2
    t_pad = (-T) % tb
    pad_cfg = ((0, 0), (0, t_pad), (0, JP - NUM_JOINT), (0, 0))
    x_p = jnp.pad(x_cl, pad_cfg)
    d_p = jnp.pad(dif, pad_cfg)
    Tp = T + t_pad

    weights = _prepare_kernel_args(params)

    data_spec = pl.BlockSpec((1, tb, JP, C_IN), lambda b, t: (b, t, 0, 0))

    def const_spec(w):
        zeros = (0,) * w.ndim
        return pl.BlockSpec(w.shape, lambda b, t, _z=zeros: _z)

    out_pk = pl.pallas_call(
        _drjoint_kernel,
        out_shape=jax.ShapeDtypeStruct((bs, Tp, JPH, 2 * OUT), F32),
        grid=(bs, Tp // tb),
        in_specs=[data_spec, data_spec] + [const_spec(w) for w in weights],
        out_specs=pl.BlockSpec((1, tb, JPH, 2 * OUT), lambda b, t: (b, t, 0, 0)),
        compiler_params=pltpu.CompilerParams(
            dimension_semantics=("parallel", "parallel"),
            vmem_limit_bytes=vmem_limit_bytes),
    )(x_p, d_p, *weights)

    # Undo the lane packing (reshape + transpose that fuses with the final
    # NCHW transpose), drop padded joints / time, back to (bs, 64, 25, T).
    out_cl = out_pk.reshape(bs, Tp, JPH, 2, OUT).transpose(0, 1, 3, 2, 4)
    out_cl = out_cl.reshape(bs, Tp, JP, OUT)[:, :T, :NUM_JOINT, :]
    return jnp.transpose(out_cl, (0, 3, 2, 1))


if __name__ == "__main__":
    # coords=3, joints=25 are fixed by the architecture; batch and "seg"
    # (time steps) reduced for the example.
    bs, T = 2, 32
    x = jax.random.normal(jax.random.PRNGKey(0), (bs, C_IN, NUM_JOINT, T), dtype=F32)
    params = init_params(jax.random.PRNGKey(1))

    out = drjoint_spa_forward(x, params)
    out = jax.block_until_ready(out)
    assert out.shape == (bs, OUT, NUM_JOINT, T), out.shape
    assert bool(jnp.all(jnp.isfinite(out)))
    print("KERNEL_OK")
</pallas_src>

<mosaic_0001>
module attributes {stable_mosaic.version = 11 : i64} {
  func.func @_drjoint_kernel(%arg0: i32, %arg1: i32, %arg2: memref<1x32x32x3xf32, #tpu.memory_space<vmem>>, %arg3: memref<1x32x32x3xf32, #tpu.memory_space<vmem>>, %arg4: memref<2x3x64xbf16, #tpu.memory_space<vmem>>, %arg5: memref<2x64x64xbf16, #tpu.memory_space<vmem>>, %arg6: memref<4x64xf32, #tpu.memory_space<vmem>>, %arg7: memref<64x256xbf16, #tpu.memory_space<vmem>>, %arg8: memref<32x256xf32, #tpu.memory_space<vmem>>, %arg9: memref<1x32x16x128xf32, #tpu.memory_space<vmem>>) attributes {dimension_semantics = [#tpu.dimension_semantics<parallel>, #tpu.dimension_semantics<parallel>], iteration_bounds = array<i64: 2, 1>, scalar_prefetch = 0 : i64, scratch_operands = 0 : i64, tpu.core_type = #tpu.core_type<tc>, window_params = [{transform_indices = @transform_0, window_bounds = array<i64: 1, 32, 32, 3>}, {transform_indices = @transform_1, window_bounds = array<i64: 1, 32, 32, 3>}, {pipeline_mode = #tpu.pipeline_mode<synchronous>, transform_indices = @transform_2, window_bounds = array<i64: 2, 3, 64>}, {pipeline_mode = #tpu.pipeline_mode<synchronous>, transform_indices = @transform_3, window_bounds = array<i64: 2, 64, 64>}, {pipeline_mode = #tpu.pipeline_mode<synchronous>, transform_indices = @transform_4, window_bounds = array<i64: 4, 64>}, {pipeline_mode = #tpu.pipeline_mode<synchronous>, transform_indices = @transform_5, window_bounds = array<i64: 64, 256>}, {pipeline_mode = #tpu.pipeline_mode<synchronous>, transform_indices = @transform_6, window_bounds = array<i64: 32, 256>}, {transform_indices = @transform_7, window_bounds = array<i64: 1, 32, 16, 128>}]} {
    %c0 = arith.constant 0 : index
    %c0_0 = arith.constant 0 : index
    %c0_1 = arith.constant 0 : index
    %c0_2 = arith.constant 0 : index
    %0 = vector.load %arg2[%c0, %c0_0, %c0_1, %c0_2] : memref<1x32x32x3xf32, #tpu.memory_space<vmem>>, vector<1x32x32x3xf32>
    %1 = vector.shape_cast %0 : vector<1x32x32x3xf32> to vector<32x32x3xf32>
    %2 = vector.shape_cast %1 : vector<32x32x3xf32> to vector<1024x3xf32>
    %c0_3 = arith.constant 0 : index
    %c0_4 = arith.constant 0 : index
    %c0_5 = arith.constant 0 : index
    %c0_6 = arith.constant 0 : index
    %3 = vector.load %arg3[%c0_3, %c0_4, %c0_5, %c0_6] : memref<1x32x32x3xf32, #tpu.memory_space<vmem>>, vector<1x32x32x3xf32>
    %4 = vector.shape_cast %3 : vector<1x32x32x3xf32> to vector<32x32x3xf32>
    %5 = vector.shape_cast %4 : vector<32x32x3xf32> to vector<1024x3xf32>
    %6 = arith.truncf %2 : vector<1024x3xf32> to vector<1024x3xbf16>
    %c0_7 = arith.constant 0 : index
    %c0_8 = arith.constant 0 : index
    %c0_9 = arith.constant 0 : index
    %7 = vector.load %arg4[%c0_7, %c0_8, %c0_9] : memref<2x3x64xbf16, #tpu.memory_space<vmem>>, vector<1x3x64xbf16>
    %8 = vector.shape_cast %7 : vector<1x3x64xbf16> to vector<3x64xbf16>
    %cst = arith.constant dense<0.000000e+00> : vector<1024x64xf32>
    %9 = tpu.matmul %6, %8, %cst {dimension_numbers = #tpu.dot_dimension_numbers<[1], [0], [0], [1], [0, 0, 1, 1], [], []>} : vector<1024x3xbf16>, vector<3x64xbf16>, vector<1024x64xf32> -> vector<1024x64xf32>
    %c0_10 = arith.constant 0 : index
    %c0_11 = arith.constant 0 : index
    %10 = vector.load %arg6[%c0_10, %c0_11] : memref<4x64xf32, #tpu.memory_space<vmem>>, vector<1x64xf32>
    %11 = vector.broadcast %10 : vector<1x64xf32> to vector<1024x64xf32>
    %12 = arith.addf %9, %11 : vector<1024x64xf32>
    %cst_12 = arith.constant 0.000000e+00 : f32
    %13 = vector.broadcast %cst_12 : f32 to vector<1024x64xf32>
    %14 = arith.maximumf %12, %13 : vector<1024x64xf32>
    %15 = arith.truncf %14 : vector<1024x64xf32> to vector<1024x64xbf16>
    %c0_13 = arith.constant 0 : index
    %c0_14 = arith.constant 0 : index
    %c0_15 = arith.constant 0 : index
    %16 = vector.load %arg5[%c0_13, %c0_14, %c0_15] : memref<2x64x64xbf16, #tpu.memory_space<vmem>>, vector<1x64x64xbf16>
    %17 = vector.shape_cast %16 : vector<1x64x64xbf16> to vector<64x64xbf16>
    %cst_16 = arith.constant dense<0.000000e+00> : vector<1024x64xf32>
    %18 = tpu.matmul %15, %17, %cst_16 {dimension_numbers = #tpu.dot_dimension_numbers<[1], [0], [0], [1], [0, 0, 1, 1], [], []>} : vector<1024x64xbf16>, vector<64x64xbf16>, vector<1024x64xf32> -> vector<1024x64xf32>
    %c1 = arith.constant 1 : index
    %c0_17 = arith.constant 0 : index
    %19 = vector.load %arg6[%c1, %c0_17] : memref<4x64xf32, #tpu.memory_space<vmem>>, vector<1x64xf32>
    %20 = vector.broadcast %19 : vector<1x64xf32> to vector<1024x64xf32>
    %21 = arith.addf %18, %20 : vector<1024x64xf32>
    %cst_18 = arith.constant 0.000000e+00 : f32
    %22 = vector.broadcast %cst_18 : f32 to vector<1024x64xf32>
    %23 = arith.maximumf %21, %22 : vector<1024x64xf32>
    %24 = arith.truncf %5 : vector<1024x3xf32> to vector<1024x3xbf16>
    %c1_19 = arith.constant 1 : index
    %c0_20 = arith.constant 0 : index
    %c0_21 = arith.constant 0 : index
    %25 = vector.load %arg4[%c1_19, %c0_20, %c0_21] : memref<2x3x64xbf16, #tpu.memory_space<vmem>>, vector<1x3x64xbf16>
    %26 = vector.shape_cast %25 : vector<1x3x64xbf16> to vector<3x64xbf16>
    %cst_22 = arith.constant dense<0.000000e+00> : vector<1024x64xf32>
    %27 = tpu.matmul %24, %26, %cst_22 {dimension_numbers = #tpu.dot_dimension_numbers<[1], [0], [0], [1], [0, 0, 1, 1], [], []>} : vector<1024x3xbf16>, vector<3x64xbf16>, vector<1024x64xf32> -> vector<1024x64xf32>
    %c2 = arith.constant 2 : index
    %c0_23 = arith.constant 0 : index
    %28 = vector.load %arg6[%c2, %c0_23] : memref<4x64xf32, #tpu.memory_space<vmem>>, vector<1x64xf32>
    %29 = vector.broadcast %28 : vector<1x64xf32> to vector<1024x64xf32>
    %30 = arith.addf %27, %29 : vector<1024x64xf32>
    %cst_24 = arith.constant 0.000000e+00 : f32
    %31 = vector.broadcast %cst_24 : f32 to vector<1024x64xf32>
    %32 = arith.maximumf %30, %31 : vector<1024x64xf32>
    %33 = arith.truncf %32 : vector<1024x64xf32> to vector<1024x64xbf16>
    %c1_25 = arith.constant 1 : index
    %c0_26 = arith.constant 0 : index
    %c0_27 = arith.constant 0 : index
    %34 = vector.load %arg5[%c1_25, %c0_26, %c0_27] : memref<2x64x64xbf16, #tpu.memory_space<vmem>>, vector<1x64x64xbf16>
    %35 = vector.shape_cast %34 : vector<1x64x64xbf16> to vector<64x64xbf16>
    %cst_28 = arith.constant dense<0.000000e+00> : vector<1024x64xf32>
    %36 = tpu.matmul %33, %35, %cst_28 {dimension_numbers = #tpu.dot_dimension_numbers<[1], [0], [0], [1], [0, 0, 1, 1], [], []>} : vector<1024x64xbf16>, vector<64x64xbf16>, vector<1024x64xf32> -> vector<1024x64xf32>
    %c3 = arith.constant 3 : index
    %c0_29 = arith.constant 0 : index
    %37 = vector.load %arg6[%c3, %c0_29] : memref<4x64xf32, #tpu.memory_space<vmem>>, vector<1x64xf32>
    %38 = vector.broadcast %37 : vector<1x64xf32> to vector<1024x64xf32>
    %39 = arith.addf %36, %38 : vector<1024x64xf32>
    %cst_30 = arith.constant 0.000000e+00 : f32
    %40 = vector.broadcast %cst_30 : f32 to vector<1024x64xf32>
    %41 = arith.maximumf %39, %40 : vector<1024x64xf32>
    %42 = arith.addf %23, %41 : vector<1024x64xf32>
    %43 = arith.truncf %42 : vector<1024x64xf32> to vector<1024x64xbf16>
    %c0_31 = arith.constant 0 : index
    %c0_32 = arith.constant 0 : index
    %44 = vector.load %arg7[%c0_31, %c0_32] : memref<64x256xbf16, #tpu.memory_space<vmem>>, vector<64x256xbf16>
    %cst_33 = arith.constant dense<0.000000e+00> : vector<1024x256xf32>
    %45 = tpu.matmul %43, %44, %cst_33 {dimension_numbers = #tpu.dot_dimension_numbers<[1], [0], [0], [1], [0, 0, 1, 1], [], []>} : vector<1024x64xbf16>, vector<64x256xbf16>, vector<1024x256xf32> -> vector<1024x256xf32>
    %46 = vector.shape_cast %45 : vector<1024x256xf32> to vector<32x32x256xf32>
    %c0_34 = arith.constant 0 : index
    %c0_35 = arith.constant 0 : index
    %47 = vector.load %arg8[%c0_34, %c0_35] : memref<32x256xf32, #tpu.memory_space<vmem>>, vector<32x256xf32>
    %48 = vector.shape_cast %47 : vector<32x256xf32> to vector<1x32x256xf32>
    %49 = vector.broadcast %48 : vector<1x32x256xf32> to vector<32x32x256xf32>
    %50 = arith.addf %46, %49 : vector<32x32x256xf32>
    %51 = vector.extract_strided_slice %50 {offsets = [0, 0, 0], sizes = [32, 32, 64], strides = [1, 1, 1]} : vector<32x32x256xf32> to vector<32x32x64xf32>
    %52 = vector.extract_strided_slice %50 {offsets = [0, 0, 64], sizes = [32, 32, 64], strides = [1, 1, 1]} : vector<32x32x256xf32> to vector<32x32x64xf32>
    %53 = vector.extract_strided_slice %50 {offsets = [0, 0, 128], sizes = [32, 32, 64], strides = [1, 1, 1]} : vector<32x32x256xf32> to vector<32x32x64xf32>
    %54 = vector.extract_strided_slice %50 {offsets = [0, 0, 192], sizes = [32, 32, 32], strides = [1, 1, 1]} : vector<32x32x256xf32> to vector<32x32x32xf32>
    %55 = vector.shape_cast %42 : vector<1024x64xf32> to vector<32x32x64xf32>
    %56 = arith.truncf %55 : vector<32x32x64xf32> to vector<32x32x64xbf16>
    %57 = arith.truncf %51 : vector<32x32x64xf32> to vector<32x32x64xbf16>
    "tpu.trace_start"() <{level = 10 : i32, message = "tqd,tkd->tqk"}> : () -> ()
    %cst_36 = arith.constant dense<0.000000e+00> : vector<32x32x32xf32>
    %58 = tpu.matmul %57, %56, %cst_36 {dimension_numbers = #tpu.dot_dimension_numbers<[2], [2], [1], [1], [0, 0, 0, 1, 1, 1], [0], [0]>} : vector<32x32x64xbf16>, vector<32x32x64xbf16>, vector<32x32x32xf32> -> vector<32x32x32xf32>
    "tpu.trace_stop"() : () -> ()
    %59 = arith.addf %58, %54 : vector<32x32x32xf32>
    %cst_37 = arith.constant dense<0xFF800000> : vector<32x32xf32>
    %60 = vector.multi_reduction <maximumf>, %59, %cst_37 [2] : vector<32x32x32xf32> to vector<32x32xf32>
    %61 = vector.shape_cast %60 : vector<32x32xf32> to vector<32x32x1xf32>
    %62 = vector.broadcast %61 : vector<32x32x1xf32> to vector<32x32x32xf32>
    %63 = arith.subf %59, %62 : vector<32x32x32xf32>
    %64 = math.exp %63 : vector<32x32x32xf32>
    %cst_38 = arith.constant dense<0.000000e+00> : vector<32x32xf32>
    %65 = vector.multi_reduction <add>, %64, %cst_38 [2] : vector<32x32x32xf32> to vector<32x32xf32>
    %66 = vector.shape_cast %65 : vector<32x32xf32> to vector<32x32x1xf32>
    %67 = tpu.reciprocal %66 {approx = true} : vector<32x32x1xf32> -> vector<32x32x1xf32>
    %68 = vector.broadcast %67 : vector<32x32x1xf32> to vector<32x32x32xf32>
    %69 = arith.mulf %64, %68 : vector<32x32x32xf32>
    %70 = arith.truncf %69 : vector<32x32x32xf32> to vector<32x32x32xbf16>
    %71 = arith.truncf %52 : vector<32x32x64xf32> to vector<32x32x64xbf16>
    "tpu.trace_start"() <{level = 10 : i32, message = "tqk,tkd->tqd"}> : () -> ()
    %cst_39 = arith.constant dense<0.000000e+00> : vector<32x32x64xf32>
    %72 = tpu.matmul %70, %71, %cst_39 {dimension_numbers = #tpu.dot_dimension_numbers<[2], [1], [1], [2], [0, 0, 0, 1, 1, 2], [0], [0]>} : vector<32x32x32xbf16>, vector<32x32x64xbf16>, vector<32x32x64xf32> -> vector<32x32x64xf32>
    "tpu.trace_stop"() : () -> ()
    %73 = arith.addf %72, %53 : vector<32x32x64xf32>
    %74 = vector.extract_strided_slice %73 {offsets = [0, 0, 0], sizes = [32, 16, 64], strides = [1, 1, 1]} : vector<32x32x64xf32> to vector<32x16x64xf32>
    %75 = vector.extract_strided_slice %73 {offsets = [0, 16, 0], sizes = [32, 16, 64], strides = [1, 1, 1]} : vector<32x32x64xf32> to vector<32x16x64xf32>
    %76 = tpu.concatenate %74, %75 in 2 : vector<32x16x64xf32>, vector<32x16x64xf32> -> vector<32x16x128xf32>
    %c0_40 = arith.constant 0 : index
    %c0_41 = arith.constant 0 : index
    %c0_42 = arith.constant 0 : index
    %c0_43 = arith.constant 0 : index
    %77 = vector.load %arg9[%c0_40, %c0_41, %c0_42, %c0_43] : memref<1x32x16x128xf32, #tpu.memory_space<vmem>>, vector<1x32x16x128xf32>
    %78 = vector.shape_cast %77 : vector<1x32x16x128xf32> to vector<32x16x128xf32>
    %79 = vector.shape_cast %76 : vector<32x16x128xf32> to vector<1x32x16x128xf32>
    tpu.vector_store %arg9[%c0_40, %c0_41, %c0_42, %c0_43], %79 {strides = array<i32>} : memref<1x32x16x128xf32, #tpu.memory_space<vmem>>, vector<1x32x16x128xf32>,
    return
  }
  func.func @transform_0(%arg0: i32, %arg1: i32) -> (i32, i32, i32, i32) {
    %c0_i32 = arith.constant 0 : i32
    %c0_i32_0 = arith.constant 0 : i32
    %c0_i32_1 = arith.constant 0 : i32
    return %arg0, %arg1, %c0_i32, %c0_i32_0 : i32, i32, i32, i32
  }
  func.func @transform_1(%arg0: i32, %arg1: i32) -> (i32, i32, i32, i32) {
    %c0_i32 = arith.constant 0 : i32
    %c0_i32_0 = arith.constant 0 : i32
    %c0_i32_1 = arith.constant 0 : i32
    return %arg0, %arg1, %c0_i32, %c0_i32_0 : i32, i32, i32, i32
  }
  func.func @transform_2(%arg0: i32, %arg1: i32) -> (i32, i32, i32) {
    %c0_i32 = arith.constant 0 : i32
    %c0_i32_0 = arith.constant 0 : i32
    %c0_i32_1 = arith.constant 0 : i32
    %c0_i32_2 = arith.constant 0 : i32
    return %c0_i32, %c0_i32_0, %c0_i32_1 : i32, i32, i32
  }
  func.func @transform_3(%arg0: i32, %arg1: i32) -> (i32, i32, i32) {
    %c0_i32 = arith.constant 0 : i32
    %c0_i32_0 = arith.constant 0 : i32
    %c0_i32_1 = arith.constant 0 : i32
    %c0_i32_2 = arith.constant 0 : i32
    return %c0_i32, %c0_i32_0, %c0_i32_1 : i32, i32, i32
  }
  func.func @transform_4(%arg0: i32, %arg1: i32) -> (i32, i32) {
    %c0_i32 = arith.constant 0 : i32
    %c0_i32_0 = arith.constant 0 : i32
    %c0_i32_1 = arith.constant 0 : i32
    return %c0_i32, %c0_i32_0 : i32, i32
  }
  func.func @transform_5(%arg0: i32, %arg1: i32) -> (i32, i32) {
    %c0_i32 = arith.constant 0 : i32
    %c0_i32_0 = arith.constant 0 : i32
    %c0_i32_1 = arith.constant 0 : i32
    return %c0_i32, %c0_i32_0 : i32, i32
  }
  func.func @transform_6(%arg0: i32, %arg1: i32) -> (i32, i32) {
    %c0_i32 = arith.constant 0 : i32
    %c0_i32_0 = arith.constant 0 : i32
    %c0_i32_1 = arith.constant 0 : i32
    return %c0_i32, %c0_i32_0 : i32, i32
  }
  func.func @transform_7(%arg0: i32, %arg1: i32) -> (i32, i32, i32, i32) {
    %c0_i32 = arith.constant 0 : i32
    %c0_i32_0 = arith.constant 0 : i32
    %c0_i32_1 = arith.constant 0 : i32
    return %arg0, %arg1, %c0_i32, %c0_i32_0 : i32, i32, i32, i32
  }
}

</mosaic_0001>

<llo_original>
// kernel: tpu_custom_call.1
$region0: #{tpu_custom_call.1}
  #allocation0 [shape = 'u32[]', space=smem, size = 0x4, offset = 0x4, fixed_abs, tag = 'smem constant byte address 0x4 - core index']
  #allocation1 [shape = 'u32[72,128]{1,0:T(1,128)}', space=vmem, size = 0x9000, scoped, tag = 'internal scratch']
  %s0 = inlined_call_operand.vmem [shape: f32[2,32,32,3], index: 0, kind: input, shape index: {}]
  %s1 = inlined_call_operand.vmem [shape: f32[2,32,32,3], index: 1, kind: input, shape index: {}]
  %s2 = inlined_call_operand.vmem [shape: bf16[2,3,64], index: 2, kind: input, shape index: {}]
  %s3 = inlined_call_operand.vmem [shape: bf16[2,64,64], index: 3, kind: input, shape index: {}]
  %s4 = inlined_call_operand.vmem [shape: f32[4,64], index: 4, kind: input, shape index: {}]
  %s5 = inlined_call_operand.vmem [shape: bf16[64,256], index: 5, kind: input, shape index: {}]
  %s6 = inlined_call_operand.vmem [shape: f32[32,256], index: 6, kind: input, shape index: {}]
  %s7 = inlined_call_operand.hbm [shape: f32[2,32,16,128], index: 7, kind: output, shape index: {}]
  %s8 = sld [smem:[#allocation0]]
  $region61: #{tpu_custom_call.1} parent=0
    _
  %s10 = ssub.s32 1, %s8
  %s11 = scalar_select 0, %s10, %s8
  $region1: #{tpu_custom_call.1} parent=0
    #allocation2 [shape = 'u8[524288]{0}', space=vmem, size = 0x80000, scoped, tag = 'output window, operand 0']
    #allocation3 [shape = 's32[2]{0}', space=sflag, size = 0x8, scoped, tag = 'scoped memory for tpu_custom_call.1']
    %12 = vsyncpa [#allocation3], 0
    %s13 = scalar_lea.sflag [#allocation3], 1
    %14 = vsyncpa %s13, 0
    loop: start=0, step=1, limit=4
    $region2: #{tpu_custom_call.1} parent=1 // loop_pre_header
      _
    $region3: #{tpu_custom_call.1} parent=1 // loop_header
      %s16 = sphi 0, %s20
      %p17 = scmp.ge.s32.totalorder %s16, 4
      %s23 = sphi 0, %s35
      %s24 = sphi 0, %s31
      %s25 = sphi 0, %s23
      %s26 = sphi 0, %s24
      %s27 = sphi 0, %s25
      %s28 = sphi 0, %s26
      %s40 = sphi 0, %s42
      %s43 = sphi 0, %s40
      %s44 = sphi 0, %s43
      %s60 = sphi 0, %s44
      %s68 = sphi 0, %s70
      %s71 = sphi 0, %s68
      %s72 = sphi 0, %s71
      %s88 = sphi 0, %s72
      %s92 = sphi 0, %s92
      %s94 = sphi 0, %s92
      %s95 = sphi 0, %s94
      %s109 = sphi 0, %s95
      %s113 = sphi 0, %s113
      %s115 = sphi 0, %s113
      %s116 = sphi 0, %s115
      %s130 = sphi 0, %s116
      %s134 = sphi 0, %s134
      %s136 = sphi 0, %s134
      %s137 = sphi 0, %s136
      %s151 = sphi 0, %s137
      %s155 = sphi 0, %s155
      %s157 = sphi 0, %s155
      %s158 = sphi 0, %s157
      %s172 = sphi 0, %s158
      %s176 = sphi 0, %s176
      %s178 = sphi 0, %s176
      %s179 = sphi 0, %s178
      %s193 = sphi 0, %s179
      %s201 = sphi 0, %s203
      %s204 = sphi 0, %s201
      %s205 = sphi 0, %s204
      %s221 = sphi 0, %s205
    $region4: #{tpu_custom_call.1} parent=1 // loop_header_branch
      %19 = sbr.rel (%p17) target = $region8
    $region5: #{tpu_custom_call.1} parent=1 // loop_body
      %s21 = ssub.s32 %s16, 1
      %s22 = ssub.s32 %s16, 2
      %s29 = sadd.s32 1, %s24
      %p30 = scmp.ge.s32.totalorder %s29, 1
      %s31 = scalar_select %p30, 0, %s29
      %s32 = sadd.s32 1, %s23
      %s33 = scalar_select %p30, %s32, %s23
      %p34 = scmp.ge.s32.totalorder %s33, 2
      %s35 = scalar_select %p34, 0, %s33
      %s36 = ssub.s32 %s23, %s35
      %s37 = ssub.s32 %s24, %s31
      %s38 = sor.u32 %s36, %s37
      %p39 = scmp.eq.s32.totalorder %s38, 0
      %s41 = sadd.s32 %s40, 1
      %s42 = scalar_select %p39, %s40, %s41
      %p45 = pneg %p39
      %p46 = scmp.eq.s32.totalorder %s16, 1
      %p47 = por %p45, %p46
      %p48 = scmp.ne.s32.totalorder %s40, %s43
      %p49 = scmp.eq.s32.totalorder %s16, 0
      %p50 = por %p48, %p49
      %p51 = scmp.ne.s32.totalorder %s40, %s43
      %p52 = scmp.eq.s32.totalorder %s21, 1
      %p53 = por %p51, %p52
      %p54 = scmp.ne.s32.totalorder %s43, %s44
      %p55 = scmp.eq.s32.totalorder %s21, 0
      %p56 = por %p54, %p55
      %p57 = scmp.ne.s32.totalorder %s43, %s44
      %p58 = scmp.eq.s32.totalorder %s22, 1
      %p59 = por %p57, %p58
      %p61 = scmp.ne.s32.totalorder %s44, %s60
      %p62 = scmp.eq.s32.totalorder %s22, 0
      %p63 = por %p61, %p62
      %s64 = ssub.s32 %s23, %s35
      %s65 = ssub.s32 %s24, %s31
      %s66 = sor.u32 %s64, %s65
      %p67 = scmp.eq.s32.totalorder %s66, 0
      %s69 = sadd.s32 %s68, 1
      %s70 = scalar_select %p67, %s68, %s69
      %p73 = pneg %p67
      %p74 = scmp.eq.s32.totalorder %s16, 1
      %p75 = por %p73, %p74
      %p76 = scmp.ne.s32.totalorder %s68, %s71
      %p77 = scmp.eq.s32.totalorder %s16, 0
      %p78 = por %p76, %p77
      %p79 = scmp.ne.s32.totalorder %s68, %s71
      %p80 = scmp.eq.s32.totalorder %s21, 1
      %p81 = por %p79, %p80
      %p82 = scmp.ne.s32.totalorder %s71, %s72
      %p83 = scmp.eq.s32.totalorder %s21, 0
      %p84 = por %p82, %p83
      %p85 = scmp.ne.s32.totalorder %s71, %s72
      %p86 = scmp.eq.s32.totalorder %s22, 1
      %p87 = por %p85, %p86
      %p89 = scmp.ne.s32.totalorder %s72, %s88
      %p90 = scmp.eq.s32.totalorder %s22, 0
      %p91 = por %p89, %p90
      %s93 = sadd.s32 %s92, 1
      %p96 = scmp.eq.s32.totalorder %s16, 1
      %p97 = scmp.ne.s32.totalorder %s92, %s94
      %p98 = scmp.eq.s32.totalorder %s16, 0
      %p99 = por %p97, %p98
      %p100 = scmp.ne.s32.totalorder %s92, %s94
      %p101 = scmp.eq.s32.totalorder %s21, 1
      %p102 = por %p100, %p101
      %p103 = scmp.ne.s32.totalorder %s94, %s95
      %p104 = scmp.eq.s32.totalorder %s21, 0
      %p105 = por %p103, %p104
      %p106 = scmp.ne.s32.totalorder %s94, %s95
      %p107 = scmp.eq.s32.totalorder %s22, 1
      %p108 = por %p106, %p107
      %p110 = scmp.ne.s32.totalorder %s95, %s109
      %p111 = scmp.eq.s32.totalorder %s22, 0
      %p112 = por %p110, %p111
      %s114 = sadd.s32 %s113, 1
      %p117 = scmp.eq.s32.totalorder %s16, 1
      %p118 = scmp.ne.s32.totalorder %s113, %s115
      %p119 = scmp.eq.s32.totalorder %s16, 0
      %p120 = por %p118, %p119
      %p121 = scmp.ne.s32.totalorder %s113, %s115
      %p122 = scmp.eq.s32.totalorder %s21, 1
      %p123 = por %p121, %p122
      %p124 = scmp.ne.s32.totalorder %s115, %s116
      %p125 = scmp.eq.s32.totalorder %s21, 0
      %p126 = por %p124, %p125
      %p127 = scmp.ne.s32.totalorder %s115, %s116
      %p128 = scmp.eq.s32.totalorder %s22, 1
      %p129 = por %p127, %p128
      %p131 = scmp.ne.s32.totalorder %s116, %s130
      %p132 = scmp.eq.s32.totalorder %s22, 0
      %p133 = por %p131, %p132
      %s135 = sadd.s32 %s134, 1
      %p138 = scmp.eq.s32.totalorder %s16, 1
      %p139 = scmp.ne.s32.totalorder %s134, %s136
      %p140 = scmp.eq.s32.totalorder %s16, 0
      %p141 = por %p139, %p140
      %p142 = scmp.ne.s32.totalorder %s134, %s136
      %p143 = scmp.eq.s32.totalorder %s21, 1
      %p144 = por %p142, %p143
      %p145 = scmp.ne.s32.totalorder %s136, %s137
      %p146 = scmp.eq.s32.totalorder %s21, 0
      %p147 = por %p145, %p146
      %p148 = scmp.ne.s32.totalorder %s136, %s137
      %p149 = scmp.eq.s32.totalorder %s22, 1
      %p150 = por %p148, %p149
      %p152 = scmp.ne.s32.totalorder %s137, %s151
      %p153 = scmp.eq.s32.totalorder %s22, 0
      %p154 = por %p152, %p153
      %s156 = sadd.s32 %s155, 1
      %p159 = scmp.eq.s32.totalorder %s16, 1
      %p160 = scmp.ne.s32.totalorder %s155, %s157
      %p161 = scmp.eq.s32.totalorder %s16, 0
      %p162 = por %p160, %p161
      %p163 = scmp.ne.s32.totalorder %s155, %s157
      %p164 = scmp.eq.s32.totalorder %s21, 1
      %p165 = por %p163, %p164
      %p166 = scmp.ne.s32.totalorder %s157, %s158
      %p167 = scmp.eq.s32.totalorder %s21, 0
      %p168 = por %p166, %p167
      %p169 = scmp.ne.s32.totalorder %s157, %s158
      %p170 = scmp.eq.s32.totalorder %s22, 1
      %p171 = por %p169, %p170
      %p173 = scmp.ne.s32.totalorder %s158, %s172
      %p174 = scmp.eq.s32.totalorder %s22, 0
      %p175 = por %p173, %p174
      %s177 = sadd.s32 %s176, 1
      %p180 = scmp.eq.s32.totalorder %s16, 1
      %p181 = scmp.ne.s32.totalorder %s176, %s178
      %p182 = scmp.eq.s32.totalorder %s16, 0
      %p183 = por %p181, %p182
      %p184 = scmp.ne.s32.totalorder %s176, %s178
      %p185 = scmp.eq.s32.totalorder %s21, 1
      %p186 = por %p184, %p185
      %p187 = scmp.ne.s32.totalorder %s178, %s179
      %p188 = scmp.eq.s32.totalorder %s21, 0
      %p189 = por %p187, %p188
      %p190 = scmp.ne.s32.totalorder %s178, %s179
      %p191 = scmp.eq.s32.totalorder %s22, 1
      %p192 = por %p190, %p191
      %p194 = scmp.ne.s32.totalorder %s179, %s193
      %p195 = scmp.eq.s32.totalorder %s22, 0
      %p196 = por %p194, %p195
      %s197 = ssub.s32 %s23, %s35
      %s198 = ssub.s32 %s24, %s31
      %s199 = sor.u32 %s197, %s198
      %p200 = scmp.eq.s32.totalorder %s199, 0
      %s202 = sadd.s32 %s201, 1
      %s203 = scalar_select %p200, %s201, %s202
      %p206 = pneg %p200
      %p207 = scmp.eq.s32.totalorder %s16, 1
      %p208 = por %p206, %p207
      %p209 = scmp.ne.s32.totalorder %s201, %s204
      %p210 = scmp.eq.s32.totalorder %s16, 0
      %p211 = por %p209, %p210
      %p212 = scmp.ne.s32.totalorder %s201, %s204
      %p213 = scmp.eq.s32.totalorder %s21, 1
      %p214 = por %p212, %p213
      %p215 = scmp.ne.s32.totalorder %s204, %s205
      %p216 = scmp.eq.s32.totalorder %s21, 0
      %p217 = por %p215, %p216
      %p218 = scmp.ne.s32.totalorder %s204, %s205
      %p219 = scmp.eq.s32.totalorder %s22, 1
      %p220 = por %p218, %p219
      %p222 = scmp.ne.s32.totalorder %s205, %s221
      %p223 = scmp.eq.s32.totalorder %s22, 0
      %p224 = por %p222, %p223
      %p225 = scmp.le.s32.totalorder 1, %s16
      %p226 = scmp.lt.s32.totalorder %s16, 3
      %p227 = pnand %p225, %p226
      %p228 = pneg %p227
      // Predicated region
      $region9: #{tpu_custom_call.1} parent=5 // pred_check
        _
      $region10: #{tpu_custom_call.1} parent=5 // pred_check_branch
        %230 = sbr.rel (%p227) target = $region12
      $region11: #{tpu_custom_call.1} parent=5 // pred_region
        %s231 = ssub.s32 %s16, 1
        // Predicated region
        $region13: #{tpu_custom_call.1} parent=11 // pred_check
          %p232 = pneg %p105
        $region14: #{tpu_custom_call.1} parent=11 // pred_check_branch
          %234 = sbr.rel (%p232) target = $region16
        $region15: #{tpu_custom_call.1} parent=11 // pred_region
          _
        $region16: #{tpu_custom_call.1} parent=11 // pred_fallthru
          _
        // Predicated region
        $region17: #{tpu_custom_call.1} parent=11 // pred_check
          %p235 = pneg %p126
        $region18: #{tpu_custom_call.1} parent=11 // pred_check_branch
          %237 = sbr.rel (%p235) target = $region20
        $region19: #{tpu_custom_call.1} parent=11 // pred_region
          _
        $region20: #{tpu_custom_call.1} parent=11 // pred_fallthru
          _
        // Predicated region
        $region21: #{tpu_custom_call.1} parent=11 // pred_check
          %p238 = pneg %p147
        $region22: #{tpu_custom_call.1} parent=11 // pred_check_branch
          %240 = sbr.rel (%p238) target = $region24
        $region23: #{tpu_custom_call.1} parent=11 // pred_region
          _
        $region24: #{tpu_custom_call.1} parent=11 // pred_fallthru
          _
        // Predicated region
        $region25: #{tpu_custom_call.1} parent=11 // pred_check
          %p241 = pneg %p168
        $region26: #{tpu_custom_call.1} parent=11 // pred_check_branch
          %243 = sbr.rel (%p241) target = $region28
        $region27: #{tpu_custom_call.1} parent=11 // pred_region
          _
        $region28: #{tpu_custom_call.1} parent=11 // pred_fallthru
          _
        // Predicated region
        $region29: #{tpu_custom_call.1} parent=11 // pred_check
          %p244 = pneg %p189
        $region30: #{tpu_custom_call.1} parent=11 // pred_check_branch
          %246 = sbr.rel (%p244) target = $region32
        $region31: #{tpu_custom_call.1} parent=11 // pred_region
          _
        $region32: #{tpu_custom_call.1} parent=11 // pred_fallthru
          _
      $region12: #{tpu_custom_call.1} parent=5 // pred_fallthru
        _
      %p247 = scmp.lt.s32.totalorder %s16, 2
      // Predicated region
      $region33: #{tpu_custom_call.1} parent=5 // pred_check
        %p248 = pneg %p247
      $region34: #{tpu_custom_call.1} parent=5 // pred_check_branch
        %250 = sbr.rel (%p248) target = $region36
      $region35: #{tpu_custom_call.1} parent=5 // pred_region
        // Predicated region
        $region37: #{tpu_custom_call.1} parent=35 // pred_check
          %p251 = pneg %p50
        $region38: #{tpu_custom_call.1} parent=35 // pred_check_branch
          %253 = sbr.rel (%p251) target = $region40
        $region39: #{tpu_custom_call.1} parent=35 // pred_region
          %s254 = smul.u32 32, %s24
          %p255 = scmp.lt.s32.totalorder %s23, 1
          %s256 = scalar_select %p255, %s23, 1
          %p257 = scmp.lt.s32.totalorder %s254, 31
          %s258 = scalar_select %p257, %s254, 31
          %s259 = smul.addr %s258, 4
          %s260 = smul.addr %s256, 128
          %s261 = sadd.s32 %s259, %s260
          %s262 = smul.addr %s261, 8
          %s263 = scalar_lea.vmem %s0, %s262
          %s264 = smul.u32 32, %s24
        $region40: #{tpu_custom_call.1} parent=35 // pred_fallthru
          _
        // Predicated region
        $region41: #{tpu_custom_call.1} parent=35 // pred_check
          %p265 = pneg %p78
        $region42: #{tpu_custom_call.1} parent=35 // pred_check_branch
          %267 = sbr.rel (%p265) target = $region44
        $region43: #{tpu_custom_call.1} parent=35 // pred_region
          %s268 = smul.u32 32, %s24
          %p269 = scmp.lt.s32.totalorder %s23, 1
          %s270 = scalar_select %p269, %s23, 1
          %p271 = scmp.lt.s32.totalorder %s268, 31
          %s272 = scalar_select %p271, %s268, 31
          %s273 = smul.addr %s272, 4
          %s274 = smul.addr %s270, 128
          %s275 = sadd.s32 %s273, %s274
          %s276 = smul.addr %s275, 8
          %s277 = scalar_lea.vmem %s1, %s276
          %s278 = smul.u32 32, %s24
        $region44: #{tpu_custom_call.1} parent=35 // pred_fallthru
          _
      $region36: #{tpu_custom_call.1} parent=5 // pred_fallthru
        _
      %p279 = scmp.le.s32.totalorder 1, %s16
      %p280 = scmp.lt.s32.totalorder %s16, 3
      %p281 = pnand %p279, %p280
      %p282 = pneg %p281
      // Predicated region
      $region45: #{tpu_custom_call.1} parent=5 // pred_check
        _
      $region46: #{tpu_custom_call.1} parent=5 // pred_check_branch
        %284 = sbr.rel (%p281) target = $region48
      $region47: #{tpu_custom_call.1} parent=5 // pred_region
        %s285 = ssub.s32 %s16, 1
        %s286 = smul.u32 32, %s26
        %p287 = scmp.lt.s32.totalorder %s25, 1
        %s288 = scalar_select %p287, %s25, 1
        %p289 = scmp.lt.s32.totalorder %s286, 31
        %s290 = scalar_select %p289, %s286, 31
        %s291 = smul.addr %s290, 4
        %s292 = smul.addr %s288, 128
        %s293 = sadd.s32 %s291, %s292
        %s294 = smul.addr %s293, 8
        %s295 = scalar_lea.vmem %s0, %s294
        %p296 = pneg %p56
        %p297 = pneg %p53
        %s298 = smul.u32 32, %s26
        %p299 = scmp.lt.s32.totalorder %s25, 1
        %s300 = scalar_select %p299, %s25, 1
        %p301 = scmp.lt.s32.totalorder %s298, 31
        %s302 = scalar_select %p301, %s298, 31
        %s303 = smul.addr %s302, 4
        %s304 = smul.addr %s300, 128
        %s305 = sadd.s32 %s303, %s304
        %s306 = smul.addr %s305, 8
        %s307 = scalar_lea.vmem %s1, %s306
        %p308 = pneg %p84
        %p309 = pneg %p81
        %p310 = pneg %p105
        %p311 = pneg %p102
        %p312 = pneg %p126
        %p313 = pneg %p123
        %p314 = pneg %p147
        %p315 = pneg %p144
        %p316 = pneg %p168
        %p317 = pneg %p165
        %p318 = pneg %p189
        %p319 = pneg %p186
        %p320 = pneg %p217
        %p321 = pneg %p214
        %s322 = sand.u32 %s204, 1
        %s323 = scalar_lea.sflag [#allocation3], %s322
        %s324 = sand.u32 %s204, 1
        %s325 = smul.addr %s324, 512
        %s326 = scalar_lea.vmem [#allocation2], %s325
        %s327 = smul.u32 32, %s26
        %p328 = scmp.lt.s32.totalorder %s25, 1
        %s329 = scalar_select %p328, %s25, 1
        %p330 = scmp.lt.s32.totalorder %s327, 31
        %s331 = scalar_select %p330, %s327, 31
        %s332 = smul.addr %s331, 4
        %s333 = smul.addr %s329, 128
        %s334 = sadd.s32 %s332, %s333
        %s335 = smul.addr %s334, 8
        %s336 = scalar_lea.vmem %s0, %s335
        %s337 = smul.u32 32, %s26
        %s338 = smul.u32 32, %s26
        %p339 = scmp.lt.s32.totalorder %s25, 1
        %s340 = scalar_select %p339, %s25, 1
        %p341 = scmp.lt.s32.totalorder %s338, 31
        %s342 = scalar_select %p341, %s338, 31
        %s343 = smul.addr %s342, 4
        %s344 = smul.addr %s340, 128
        %s345 = sadd.s32 %s343, %s344
        %s346 = smul.addr %s345, 8
        %s347 = scalar_lea.vmem %s1, %s346
        %s348 = smul.u32 32, %s26
        %s349 = smul.u32 32, %s26
        %v351 = vld [vmem:[%s336] sm:$0xff]
        %v352 = vld [vmem:[%s336 + $0x8] sm:$0xff]
        %v353 = vld [vmem:[%s336 + $0x10] sm:$0xff]
        %v354 = vld [vmem:[%s336 + $0x18] sm:$0xff]
        %v355 = vld [vmem:[%s336 + $0x20] sm:$0xff]
        %v356 = vld [vmem:[%s336 + $0x28] sm:$0xff]
        %v357 = vld [vmem:[%s336 + $0x30] sm:$0xff]
        %v358 = vld [vmem:[%s336 + $0x38] sm:$0xff]
        %v359 = vld [vmem:[%s336 + $0x40] sm:$0xff]
        %v360 = vld [vmem:[%s336 + $0x48] sm:$0xff]
        %v361 = vld [vmem:[%s336 + $0x50] sm:$0xff]
        %v362 = vld [vmem:[%s336 + $0x58] sm:$0xff]
        %v363 = vld [vmem:[%s336 + $0x60] sm:$0xff]
        %v364 = vld [vmem:[%s336 + $0x68] sm:$0xff]
        %v365 = vld [vmem:[%s336 + $0x70] sm:$0xff]
        %v366 = vld [vmem:[%s336 + $0x78] sm:$0xff]
        %v367 = vld [vmem:[%s336 + $0x80] sm:$0xff]
        %v368 = vld [vmem:[%s336 + $0x88] sm:$0xff]
        %v369 = vld [vmem:[%s336 + $0x90] sm:$0xff]
        %v370 = vld [vmem:[%s336 + $0x98] sm:$0xff]
        %v371 = vld [vmem:[%s336 + $0xa0] sm:$0xff]
        %v372 = vld [vmem:[%s336 + $0xa8] sm:$0xff]
        %v373 = vld [vmem:[%s336 + $0xb0] sm:$0xff]
        %v374 = vld [vmem:[%s336 + $0xb8] sm:$0xff]
        %v375 = vld [vmem:[%s336 + $0xc0] sm:$0xff]
        %v376 = vld [vmem:[%s336 + $0xc8] sm:$0xff]
        %v377 = vld [vmem:[%s336 + $0xd0] sm:$0xff]
        %v378 = vld [vmem:[%s336 + $0xd8] sm:$0xff]
        %v379 = vld [vmem:[%s336 + $0xe0] sm:$0xff]
        %v380 = vld [vmem:[%s336 + $0xe8] sm:$0xff]
        %v381 = vld [vmem:[%s336 + $0xf0] sm:$0xff]
        %v382 = vld [vmem:[%s336 + $0xf8] sm:$0xff]
        %v383 = vld [vmem:[%s336 + $0x100] sm:$0xff]
        %v384 = vld [vmem:[%s336 + $0x108] sm:$0xff]
        %v385 = vld [vmem:[%s336 + $0x110] sm:$0xff]
        %v386 = vld [vmem:[%s336 + $0x118] sm:$0xff]
        %v387 = vld [vmem:[%s336 + $0x120] sm:$0xff]
        %v388 = vld [vmem:[%s336 + $0x128] sm:$0xff]
        %v389 = vld [vmem:[%s336 + $0x130] sm:$0xff]
        %v390 = vld [vmem:[%s336 + $0x138] sm:$0xff]
        %v391 = vld [vmem:[%s336 + $0x140] sm:$0xff]
        %v392 = vld [vmem:[%s336 + $0x148] sm:$0xff]
        %v393 = vld [vmem:[%s336 + $0x150] sm:$0xff]
        %v394 = vld [vmem:[%s336 + $0x158] sm:$0xff]
        %v395 = vld [vmem:[%s336 + $0x160] sm:$0xff]
        %v396 = vld [vmem:[%s336 + $0x168] sm:$0xff]
        %v397 = vld [vmem:[%s336 + $0x170] sm:$0xff]
        %v398 = vld [vmem:[%s336 + $0x178] sm:$0xff]
        %v399 = vld [vmem:[%s336 + $0x180] sm:$0xff]
        %v400 = vld [vmem:[%s336 + $0x188] sm:$0xff]
        %v401 = vld [vmem:[%s336 + $0x190] sm:$0xff]
        %v402 = vld [vmem:[%s336 + $0x198] sm:$0xff]
        %v403 = vld [vmem:[%s336 + $0x1a0] sm:$0xff]
        %v404 = vld [vmem:[%s336 + $0x1a8] sm:$0xff]
        %v405 = vld [vmem:[%s336 + $0x1b0] sm:$0xff]
        %v406 = vld [vmem:[%s336 + $0x1b8] sm:$0xff]
        %v407 = vld [vmem:[%s336 + $0x1c0] sm:$0xff]
        %v408 = vld [vmem:[%s336 + $0x1c8] sm:$0xff]
        %v409 = vld [vmem:[%s336 + $0x1d0] sm:$0xff]
        %v410 = vld [vmem:[%s336 + $0x1d8] sm:$0xff]
        %v411 = vld [vmem:[%s336 + $0x1e0] sm:$0xff]
        %v412 = vld [vmem:[%s336 + $0x1e8] sm:$0xff]
        %v413 = vld [vmem:[%s336 + $0x1f0] sm:$0xff]
        %v414 = vld [vmem:[%s336 + $0x1f8] sm:$0xff]
        %v415 = vld [vmem:[%s336 + $0x200] sm:$0xff]
        %v416 = vld [vmem:[%s336 + $0x208] sm:$0xff]
        %v417 = vld [vmem:[%s336 + $0x210] sm:$0xff]
        %v418 = vld [vmem:[%s336 + $0x218] sm:$0xff]
        %v419 = vld [vmem:[%s336 + $0x220] sm:$0xff]
        %v420 = vld [vmem:[%s336 + $0x228] sm:$0xff]
        %v421 = vld [vmem:[%s336 + $0x230] sm:$0xff]
        %v422 = vld [vmem:[%s336 + $0x238] sm:$0xff]
        %v423 = vld [vmem:[%s336 + $0x240] sm:$0xff]
        %v424 = vld [vmem:[%s336 + $0x248] sm:$0xff]
        %v425 = vld [vmem:[%s336 + $0x250] sm:$0xff]
        %v426 = vld [vmem:[%s336 + $0x258] sm:$0xff]
        %v427 = vld [vmem:[%s336 + $0x260] sm:$0xff]
        %v428 = vld [vmem:[%s336 + $0x268] sm:$0xff]
        %v429 = vld [vmem:[%s336 + $0x270] sm:$0xff]
        %v430 = vld [vmem:[%s336 + $0x278] sm:$0xff]
        %v431 = vld [vmem:[%s336 + $0x280] sm:$0xff]
        %v432 = vld [vmem:[%s336 + $0x288] sm:$0xff]
        %v433 = vld [vmem:[%s336 + $0x290] sm:$0xff]
        %v434 = vld [vmem:[%s336 + $0x298] sm:$0xff]
        %v435 = vld [vmem:[%s336 + $0x2a0] sm:$0xff]
        %v436 = vld [vmem:[%s336 + $0x2a8] sm:$0xff]
        %v437 = vld [vmem:[%s336 + $0x2b0] sm:$0xff]
        %v438 = vld [vmem:[%s336 + $0x2b8] sm:$0xff]
        %v439 = vld [vmem:[%s336 + $0x2c0] sm:$0xff]
        %v440 = vld [vmem:[%s336 + $0x2c8] sm:$0xff]
        %v441 = vld [vmem:[%s336 + $0x2d0] sm:$0xff]
        %v442 = vld [vmem:[%s336 + $0x2d8] sm:$0xff]
        %v443 = vld [vmem:[%s336 + $0x2e0] sm:$0xff]
        %v444 = vld [vmem:[%s336 + $0x2e8] sm:$0xff]
        %v445 = vld [vmem:[%s336 + $0x2f0] sm:$0xff]
        %v446 = vld [vmem:[%s336 + $0x2f8] sm:$0xff]
        %v447 = vld [vmem:[%s336 + $0x300] sm:$0xff]
        %v448 = vld [vmem:[%s336 + $0x308] sm:$0xff]
        %v449 = vld [vmem:[%s336 + $0x310] sm:$0xff]
        %v450 = vld [vmem:[%s336 + $0x318] sm:$0xff]
        %v451 = vld [vmem:[%s336 + $0x320] sm:$0xff]
        %v452 = vld [vmem:[%s336 + $0x328] sm:$0xff]
        %v453 = vld [vmem:[%s336 + $0x330] sm:$0xff]
        %v454 = vld [vmem:[%s336 + $0x338] sm:$0xff]
        %v455 = vld [vmem:[%s336 + $0x340] sm:$0xff]
        %v456 = vld [vmem:[%s336 + $0x348] sm:$0xff]
        %v457 = vld [vmem:[%s336 + $0x350] sm:$0xff]
        %v458 = vld [vmem:[%s336 + $0x358] sm:$0xff]
        %v459 = vld [vmem:[%s336 + $0x360] sm:$0xff]
        %v460 = vld [vmem:[%s336 + $0x368] sm:$0xff]
        %v461 = vld [vmem:[%s336 + $0x370] sm:$0xff]
        %v462 = vld [vmem:[%s336 + $0x378] sm:$0xff]
        %v463 = vld [vmem:[%s336 + $0x380] sm:$0xff]
        %v464 = vld [vmem:[%s336 + $0x388] sm:$0xff]
        %v465 = vld [vmem:[%s336 + $0x390] sm:$0xff]
        %v466 = vld [vmem:[%s336 + $0x398] sm:$0xff]
        %v467 = vld [vmem:[%s336 + $0x3a0] sm:$0xff]
        %v468 = vld [vmem:[%s336 + $0x3a8] sm:$0xff]
        %v469 = vld [vmem:[%s336 + $0x3b0] sm:$0xff]
        %v470 = vld [vmem:[%s336 + $0x3b8] sm:$0xff]
        %v471 = vld [vmem:[%s336 + $0x3c0] sm:$0xff]
        %v472 = vld [vmem:[%s336 + $0x3c8] sm:$0xff]
        %v473 = vld [vmem:[%s336 + $0x3d0] sm:$0xff]
        %v474 = vld [vmem:[%s336 + $0x3d8] sm:$0xff]
        %v475 = vld [vmem:[%s336 + $0x3e0] sm:$0xff]
        %v476 = vld [vmem:[%s336 + $0x3e8] sm:$0xff]
        %v477 = vld [vmem:[%s336 + $0x3f0] sm:$0xff]
        %v478 = vld [vmem:[%s336 + $0x3f8] sm:$0xff]
        %v479 = vld [vmem:[%s347] sm:$0xff]
        %v480 = vld [vmem:[%s347 + $0x8] sm:$0xff]
        %v481 = vld [vmem:[%s347 + $0x10] sm:$0xff]
        %v482 = vld [vmem:[%s347 + $0x18] sm:$0xff]
        %v483 = vld [vmem:[%s347 + $0x20] sm:$0xff]
        %v484 = vld [vmem:[%s347 + $0x28] sm:$0xff]
        %v485 = vld [vmem:[%s347 + $0x30] sm:$0xff]
        %v486 = vld [vmem:[%s347 + $0x38] sm:$0xff]
        %v487 = vld [vmem:[%s347 + $0x40] sm:$0xff]
        %v488 = vld [vmem:[%s347 + $0x48] sm:$0xff]
        %v489 = vld [vmem:[%s347 + $0x50] sm:$0xff]
        %v490 = vld [vmem:[%s347 + $0x58] sm:$0xff]
        %v491 = vld [vmem:[%s347 + $0x60] sm:$0xff]
        %v492 = vld [vmem:[%s347 + $0x68] sm:$0xff]
        %v493 = vld [vmem:[%s347 + $0x70] sm:$0xff]
        %v494 = vld [vmem:[%s347 + $0x78] sm:$0xff]
        %v495 = vld [vmem:[%s347 + $0x80] sm:$0xff]
        %v496 = vld [vmem:[%s347 + $0x88] sm:$0xff]
        %v497 = vld [vmem:[%s347 + $0x90] sm:$0xff]
        %v498 = vld [vmem:[%s347 + $0x98] sm:$0xff]
        %v499 = vld [vmem:[%s347 + $0xa0] sm:$0xff]
        %v500 = vld [vmem:[%s347 + $0xa8] sm:$0xff]
        %v501 = vld [vmem:[%s347 + $0xb0] sm:$0xff]
        %v502 = vld [vmem:[%s347 + $0xb8] sm:$0xff]
        %v503 = vld [vmem:[%s347 + $0xc0] sm:$0xff]
        %v504 = vld [vmem:[%s347 + $0xc8] sm:$0xff]
        %v505 = vld [vmem:[%s347 + $0xd0] sm:$0xff]
        %v506 = vld [vmem:[%s347 + $0xd8] sm:$0xff]
        %v507 = vld [vmem:[%s347 + $0xe0] sm:$0xff]
        %v508 = vld [vmem:[%s347 + $0xe8] sm:$0xff]
        %v509 = vld [vmem:[%s347 + $0xf0] sm:$0xff]
        %v510 = vld [vmem:[%s347 + $0xf8] sm:$0xff]
        %v511 = vld [vmem:[%s347 + $0x100] sm:$0xff]
        %v512 = vld [vmem:[%s347 + $0x108] sm:$0xff]
        %v513 = vld [vmem:[%s347 + $0x110] sm:$0xff]
        %v514 = vld [vmem:[%s347 + $0x118] sm:$0xff]
        %v515 = vld [vmem:[%s347 + $0x120] sm:$0xff]
        %v516 = vld [vmem:[%s347 + $0x128] sm:$0xff]
        %v517 = vld [vmem:[%s347 + $0x130] sm:$0xff]
        %v518 = vld [vmem:[%s347 + $0x138] sm:$0xff]
        %v519 = vld [vmem:[%s347 + $0x140] sm:$0xff]
        %v520 = vld [vmem:[%s347 + $0x148] sm:$0xff]
        %v521 = vld [vmem:[%s347 + $0x150] sm:$0xff]
        %v522 = vld [vmem:[%s347 + $0x158] sm:$0xff]
        %v523 = vld [vmem:[%s347 + $0x160] sm:$0xff]
        %v524 = vld [vmem:[%s347 + $0x168] sm:$0xff]
        %v525 = vld [vmem:[%s347 + $0x170] sm:$0xff]
        %v526 = vld [vmem:[%s347 + $0x178] sm:$0xff]
        %v527 = vld [vmem:[%s347 + $0x180] sm:$0xff]
        %v528 = vld [vmem:[%s347 + $0x188] sm:$0xff]
        %v529 = vld [vmem:[%s347 + $0x190] sm:$0xff]
        %v530 = vld [vmem:[%s347 + $0x198] sm:$0xff]
        %v531 = vld [vmem:[%s347 + $0x1a0] sm:$0xff]
        %v532 = vld [vmem:[%s347 + $0x1a8] sm:$0xff]
        %v533 = vld [vmem:[%s347 + $0x1b0] sm:$0xff]
        %v534 = vld [vmem:[%s347 + $0x1b8] sm:$0xff]
        %v535 = vld [vmem:[%s347 + $0x1c0] sm:$0xff]
        %v536 = vld [vmem:[%s347 + $0x1c8] sm:$0xff]
        %v537 = vld [vmem:[%s347 + $0x1d0] sm:$0xff]
        %v538 = vld [vmem:[%s347 + $0x1d8] sm:$0xff]
        %v539 = vld [vmem:[%s347 + $0x1e0] sm:$0xff]
        %v540 = vld [vmem:[%s347 + $0x1e8] sm:$0xff]
        %v541 = vld [vmem:[%s347 + $0x1f0] sm:$0xff]
        %v542 = vld [vmem:[%s347 + $0x1f8] sm:$0xff]
        %v543 = vld [vmem:[%s347 + $0x200] sm:$0xff]
        %v544 = vld [vmem:[%s347 + $0x208] sm:$0xff]
        %v545 = vld [vmem:[%s347 + $0x210] sm:$0xff]
        %v546 = vld [vmem:[%s347 + $0x218] sm:$0xff]
        %v547 = vld [vmem:[%s347 + $0x220] sm:$0xff]
        %v548 = vld [vmem:[%s347 + $0x228] sm:$0xff]
        %v549 = vld [vmem:[%s347 + $0x230] sm:$0xff]
        %v550 = vld [vmem:[%s347 + $0x238] sm:$0xff]
        %v551 = vld [vmem:[%s347 + $0x240] sm:$0xff]
        %v552 = vld [vmem:[%s347 + $0x248] sm:$0xff]
        %v553 = vld [vmem:[%s347 + $0x250] sm:$0xff]
        %v554 = vld [vmem:[%s347 + $0x258] sm:$0xff]
        %v555 = vld [vmem:[%s347 + $0x260] sm:$0xff]
        %v556 = vld [vmem:[%s347 + $0x268] sm:$0xff]
        %v557 = vld [vmem:[%s347 + $0x270] sm:$0xff]
        %v558 = vld [vmem:[%s347 + $0x278] sm:$0xff]
        %v559 = vld [vmem:[%s347 + $0x280] sm:$0xff]
        %v560 = vld [vmem:[%s347 + $0x288] sm:$0xff]
        %v561 = vld [vmem:[%s347 + $0x290] sm:$0xff]
        %v562 = vld [vmem:[%s347 + $0x298] sm:$0xff]
        %v563 = vld [vmem:[%s347 + $0x2a0] sm:$0xff]
        %v564 = vld [vmem:[%s347 + $0x2a8] sm:$0xff]
        %v565 = vld [vmem:[%s347 + $0x2b0] sm:$0xff]
        %v566 = vld [vmem:[%s347 + $0x2b8] sm:$0xff]
        %v567 = vld [vmem:[%s347 + $0x2c0] sm:$0xff]
        %v568 = vld [vmem:[%s347 + $0x2c8] sm:$0xff]
        %v569 = vld [vmem:[%s347 + $0x2d0] sm:$0xff]
        %v570 = vld [vmem:[%s347 + $0x2d8] sm:$0xff]
        %v571 = vld [vmem:[%s347 + $0x2e0] sm:$0xff]
        %v572 = vld [vmem:[%s347 + $0x2e8] sm:$0xff]
        %v573 = vld [vmem:[%s347 + $0x2f0] sm:$0xff]
        %v574 = vld [vmem:[%s347 + $0x2f8] sm:$0xff]
        %v575 = vld [vmem:[%s347 + $0x300] sm:$0xff]
        %v576 = vld [vmem:[%s347 + $0x308] sm:$0xff]
        %v577 = vld [vmem:[%s347 + $0x310] sm:$0xff]
        %v578 = vld [vmem:[%s347 + $0x318] sm:$0xff]
        %v579 = vld [vmem:[%s347 + $0x320] sm:$0xff]
        %v580 = vld [vmem:[%s347 + $0x328] sm:$0xff]
        %v581 = vld [vmem:[%s347 + $0x330] sm:$0xff]
        %v582 = vld [vmem:[%s347 + $0x338] sm:$0xff]
        %v583 = vld [vmem:[%s347 + $0x340] sm:$0xff]
        %v584 = vld [vmem:[%s347 + $0x348] sm:$0xff]
        %v585 = vld [vmem:[%s347 + $0x350] sm:$0xff]
        %v586 = vld [vmem:[%s347 + $0x358] sm:$0xff]
        %v587 = vld [vmem:[%s347 + $0x360] sm:$0xff]
        %v588 = vld [vmem:[%s347 + $0x368] sm:$0xff]
        %v589 = vld [vmem:[%s347 + $0x370] sm:$0xff]
        %v590 = vld [vmem:[%s347 + $0x378] sm:$0xff]
        %v591 = vld [vmem:[%s347 + $0x380] sm:$0xff]
        %v592 = vld [vmem:[%s347 + $0x388] sm:$0xff]
        %v593 = vld [vmem:[%s347 + $0x390] sm:$0xff]
        %v594 = vld [vmem:[%s347 + $0x398] sm:$0xff]
        %v595 = vld [vmem:[%s347 + $0x3a0] sm:$0xff]
        %v596 = vld [vmem:[%s347 + $0x3a8] sm:$0xff]
        %v597 = vld [vmem:[%s347 + $0x3b0] sm:$0xff]
        %v598 = vld [vmem:[%s347 + $0x3b8] sm:$0xff]
        %v599 = vld [vmem:[%s347 + $0x3c0] sm:$0xff]
        %v600 = vld [vmem:[%s347 + $0x3c8] sm:$0xff]
        %v601 = vld [vmem:[%s347 + $0x3d0] sm:$0xff]
        %v602 = vld [vmem:[%s347 + $0x3d8] sm:$0xff]
        %v603 = vld [vmem:[%s347 + $0x3e0] sm:$0xff]
        %v604 = vld [vmem:[%s347 + $0x3e8] sm:$0xff]
        %v605 = vld [vmem:[%s347 + $0x3f0] sm:$0xff]
        %v606 = vld [vmem:[%s347 + $0x3f8] sm:$0xff]
        %v607 = vpack.c.bf16 %v352, %v351
        %v608 = vpack.c.bf16 %v354, %v353
        %v609 = vpack.c.bf16 %v356, %v355
        %v610 = vpack.c.bf16 %v358, %v357
        %v611 = vpack.c.bf16 %v360, %v359
        %v612 = vpack.c.bf16 %v362, %v361
        %v613 = vpack.c.bf16 %v364, %v363
        %v614 = vpack.c.bf16 %v366, %v365
        %v615 = vpack.c.bf16 %v368, %v367
        %v616 = vpack.c.bf16 %v370, %v369
        %v617 = vpack.c.bf16 %v372, %v371
        %v618 = vpack.c.bf16 %v374, %v373
        %v619 = vpack.c.bf16 %v376, %v375
        %v620 = vpack.c.bf16 %v378, %v377
        %v621 = vpack.c.bf16 %v380, %v379
        %v622 = vpack.c.bf16 %v382, %v381
        %v623 = vpack.c.bf16 %v384, %v383
        %v624 = vpack.c.bf16 %v386, %v385
        %v625 = vpack.c.bf16 %v388, %v387
        %v626 = vpack.c.bf16 %v390, %v389
        %v627 = vpack.c.bf16 %v392, %v391
        %v628 = vpack.c.bf16 %v394, %v393
        %v629 = vpack.c.bf16 %v396, %v395
        %v630 = vpack.c.bf16 %v398, %v397
        %v631 = vpack.c.bf16 %v400, %v399
        %v632 = vpack.c.bf16 %v402, %v401
        %v633 = vpack.c.bf16 %v404, %v403
        %v634 = vpack.c.bf16 %v406, %v405
        %v635 = vpack.c.bf16 %v408, %v407
        %v636 = vpack.c.bf16 %v410, %v409
        %v637 = vpack.c.bf16 %v412, %v411
        %v638 = vpack.c.bf16 %v414, %v413
        %v639 = vpack.c.bf16 %v416, %v415
        %v640 = vpack.c.bf16 %v418, %v417
        %v641 = vpack.c.bf16 %v420, %v419
        %v642 = vpack.c.bf16 %v422, %v421
        %v643 = vpack.c.bf16 %v424, %v423
        %v644 = vpack.c.bf16 %v426, %v425
        %v645 = vpack.c.bf16 %v428, %v427
        %v646 = vpack.c.bf16 %v430, %v429
        %v647 = vpack.c.bf16 %v432, %v431
        %v648 = vpack.c.bf16 %v434, %v433
        %v649 = vpack.c.bf16 %v436, %v435
        %v650 = vpack.c.bf16 %v438, %v437
        %v651 = vpack.c.bf16 %v440, %v439
        %v652 = vpack.c.bf16 %v442, %v441
        %v653 = vpack.c.bf16 %v444, %v443
        %v654 = vpack.c.bf16 %v446, %v445
        %v655 = vpack.c.bf16 %v448, %v447
        %v656 = vpack.c.bf16 %v450, %v449
        %v657 = vpack.c.bf16 %v452, %v451
        %v658 = vpack.c.bf16 %v454, %v453
        %v659 = vpack.c.bf16 %v456, %v455
        %v660 = vpack.c.bf16 %v458, %v457
        %v661 = vpack.c.bf16 %v460, %v459
        %v662 = vpack.c.bf16 %v462, %v461
        %v663 = vpack.c.bf16 %v464, %v463
        %v664 = vpack.c.bf16 %v466, %v465
        %v665 = vpack.c.bf16 %v468, %v467
        %v666 = vpack.c.bf16 %v470, %v469
        %v667 = vpack.c.bf16 %v472, %v471
        %v668 = vpack.c.bf16 %v474, %v473
        %v669 = vpack.c.bf16 %v476, %v475
        %v670 = vpack.c.bf16 %v478, %v477
        %v671 = vld [vmem:[%s2] sm:$0x3]
        %v672 = vld [vmem:[%s4] sm:$0x1]
        %v673 = vperm.slane %v672, 0
        %vm674 = vcmask 23552
        %v676 = vsel %vm674, %v607, 0
        %v679 = vsel %vm674, %v608, 0
        %v682 = vsel %vm674, %v609, 0
        %v685 = vsel %vm674, %v610, 0
        %v688 = vsel %vm674, %v611, 0
        %v691 = vsel %vm674, %v612, 0
        %v694 = vsel %vm674, %v613, 0
        %v697 = vsel %vm674, %v614, 0
        %v700 = vsel %vm674, %v615, 0
        %v703 = vsel %vm674, %v616, 0
        %v706 = vsel %vm674, %v617, 0
        %v709 = vsel %vm674, %v618, 0
        %v712 = vsel %vm674, %v619, 0
        %v715 = vsel %vm674, %v620, 0
        %v718 = vsel %vm674, %v621, 0
        %v721 = vsel %vm674, %v622, 0
        %v724 = vsel %vm674, %v623, 0
        %v727 = vsel %vm674, %v624, 0
        %v730 = vsel %vm674, %v625, 0
        %v733 = vsel %vm674, %v626, 0
        %v736 = vsel %vm674, %v627, 0
        %v739 = vsel %vm674, %v628, 0
        %v742 = vsel %vm674, %v629, 0
        %v745 = vsel %vm674, %v630, 0
        %v748 = vsel %vm674, %v631, 0
        %v751 = vsel %vm674, %v632, 0
        %v754 = vsel %vm674, %v633, 0
        %v757 = vsel %vm674, %v634, 0
        %v760 = vsel %vm674, %v635, 0
        %v763 = vsel %vm674, %v636, 0
        %v766 = vsel %vm674, %v637, 0
        %v769 = vsel %vm674, %v638, 0
        %v772 = vsel %vm674, %v639, 0
        %v775 = vsel %vm674, %v640, 0
        %v778 = vsel %vm674, %v641, 0
        %v781 = vsel %vm674, %v642, 0
        %v784 = vsel %vm674, %v643, 0
        %v787 = vsel %vm674, %v644, 0
        %v790 = vsel %vm674, %v645, 0
        %v793 = vsel %vm674, %v646, 0
        %v796 = vsel %vm674, %v647, 0
        %v799 = vsel %vm674, %v648, 0
        %v802 = vsel %vm674, %v649, 0
        %v805 = vsel %vm674, %v650, 0
        %v808 = vsel %vm674, %v651, 0
        %v811 = vsel %vm674, %v652, 0
        %v814 = vsel %vm674, %v653, 0
        %v817 = vsel %vm674, %v654, 0
        %v820 = vsel %vm674, %v655, 0
        %v823 = vsel %vm674, %v656, 0
        %v826 = vsel %vm674, %v657, 0
        %v829 = vsel %vm674, %v658, 0
        %v832 = vsel %vm674, %v659, 0
        %v835 = vsel %vm674, %v660, 0
        %v838 = vsel %vm674, %v661, 0
        %v841 = vsel %vm674, %v662, 0
        %v844 = vsel %vm674, %v663, 0
        %v847 = vsel %vm674, %v664, 0
        %v850 = vsel %vm674, %v665, 0
        %v853 = vsel %vm674, %v666, 0
        %v856 = vsel %vm674, %v667, 0
        %v859 = vsel %vm674, %v668, 0
        %v862 = vsel %vm674, %v669, 0
        %v865 = vsel %vm674, %v670, 0
        %vm867 = vcmask 1040384
        %vm868 = vcmask 1041408
        %v869 = vsel %vm867, 4294967295, 65535
        %v870 = vsel %vm868, %v869, 0
        %v872 = vand.u32 %v671, %v870
        %874 = vmatpush.bf16.msra.mxu0 0
        %875 = vmatpush.bf16.msra.mxu0 0
        %876 = vmatpush.bf16.msra.mxu0 0
        %877 = vmatpush.bf16.msra.mxu0 0
        %878 = vmatpush.bf16.msra.mxu0 0
        %879 = vmatpush.bf16.msra.mxu0 0
        %880 = vmatpush.bf16.msra.mxu0 0
        %881 = vmatpush.bf16.msra.mxu0 %v872
        %882 = vmatmul.bf16.gmra.mxu0 %v676
        %v883 = vpop.f32.mrf.mxu0
        %v884 = vadd.f32 %v673, %v883
        %v885 = vpop.f32.mrf.mxu0
        %v886 = vadd.f32 %v673, %v885
        %887 = vmatmul.bf16.gmra.mxu0 %v679
        %v888 = vpop.f32.mrf.mxu0
        %v889 = vadd.f32 %v673, %v888
        %v890 = vpop.f32.mrf.mxu0
        %v891 = vadd.f32 %v673, %v890
        %892 = vmatmul.bf16.gmra.mxu0 %v682
        %v893 = vpop.f32.mrf.mxu0
        %v894 = vadd.f32 %v673, %v893
        %v895 = vpop.f32.mrf.mxu0
        %v896 = vadd.f32 %v673, %v895
        %897 = vmatmul.bf16.gmra.mxu0 %v685
        %v898 = vpop.f32.mrf.mxu0
        %v899 = vadd.f32 %v673, %v898
        %v900 = vpop.f32.mrf.mxu0
        %v901 = vadd.f32 %v673, %v900
        %902 = vmatmul.bf16.gmra.mxu0 %v688
        %v903 = vpop.f32.mrf.mxu0
        %v904 = vadd.f32 %v673, %v903
        %v905 = vpop.f32.mrf.mxu0
        %v906 = vadd.f32 %v673, %v905
        %907 = vmatmul.bf16.gmra.mxu0 %v691
        %v908 = vpop.f32.mrf.mxu0
        %v909 = vadd.f32 %v673, %v908
        %v910 = vpop.f32.mrf.mxu0
        %v911 = vadd.f32 %v673, %v910
        %912 = vmatmul.bf16.gmra.mxu0 %v694
        %v913 = vpop.f32.mrf.mxu0
        %v914 = vadd.f32 %v673, %v913
        %v915 = vpop.f32.mrf.mxu0
        %v916 = vadd.f32 %v673, %v915
        %917 = vmatmul.bf16.gmra.mxu0 %v697
        %v918 = vpop.f32.mrf.mxu0
        %v919 = vadd.f32 %v673, %v918
        %v920 = vpop.f32.mrf.mxu0
        %v921 = vadd.f32 %v673, %v920
        %922 = vmatmul.bf16.gmra.mxu0 %v700
        %v923 = vpop.f32.mrf.mxu0
        %v924 = vadd.f32 %v673, %v923
        %v925 = vpop.f32.mrf.mxu0
        %v926 = vadd.f32 %v673, %v925
        %927 = vmatmul.bf16.gmra.mxu0 %v703
        %v928 = vpop.f32.mrf.mxu0
        %v929 = vadd.f32 %v673, %v928
        %v930 = vpop.f32.mrf.mxu0
        %v931 = vadd.f32 %v673, %v930
        %932 = vmatmul.bf16.gmra.mxu0 %v706
        %v933 = vpop.f32.mrf.mxu0
        %v934 = vadd.f32 %v673, %v933
        %v935 = vpop.f32.mrf.mxu0
        %v936 = vadd.f32 %v673, %v935
        %937 = vmatmul.bf16.gmra.mxu0 %v709
        %v938 = vpop.f32.mrf.mxu0
        %v939 = vadd.f32 %v673, %v938
        %v940 = vpop.f32.mrf.mxu0
        %v941 = vadd.f32 %v673, %v940
        %942 = vmatmul.bf16.gmra.mxu0 %v712
        %v943 = vpop.f32.mrf.mxu0
        %v944 = vadd.f32 %v673, %v943
        %v945 = vpop.f32.mrf.mxu0
        %v946 = vadd.f32 %v673, %v945
        %947 = vmatmul.bf16.gmra.mxu0 %v715
        %v948 = vpop.f32.mrf.mxu0
        %v949 = vadd.f32 %v673, %v948
        %v950 = vpop.f32.mrf.mxu0
        %v951 = vadd.f32 %v673, %v950
        %952 = vmatmul.bf16.gmra.mxu0 %v718
        %v953 = vpop.f32.mrf.mxu0
        %v954 = vadd.f32 %v673, %v953
        %v955 = vpop.f32.mrf.mxu0
        %v956 = vadd.f32 %v673, %v955
        %957 = vmatmul.bf16.gmra.mxu0 %v721
        %v958 = vpop.f32.mrf.mxu0
        %v959 = vadd.f32 %v673, %v958
        %v960 = vpop.f32.mrf.mxu0
        %v961 = vadd.f32 %v673, %v960
        %962 = vmatmul.bf16.gmra.mxu0 %v724
        %v963 = vpop.f32.mrf.mxu0
        %v964 = vadd.f32 %v673, %v963
        %v965 = vpop.f32.mrf.mxu0
        %v966 = vadd.f32 %v673, %v965
        %967 = vmatmul.bf16.gmra.mxu0 %v727
        %v968 = vpop.f32.mrf.mxu0
        %v969 = vadd.f32 %v673, %v968
        %v970 = vpop.f32.mrf.mxu0
        %v971 = vadd.f32 %v673, %v970
        %972 = vmatmul.bf16.gmra.mxu0 %v730
        %v973 = vpop.f32.mrf.mxu0
        %v974 = vadd.f32 %v673, %v973
        %v975 = vpop.f32.mrf.mxu0
        %v976 = vadd.f32 %v673, %v975
        %977 = vmatmul.bf16.gmra.mxu0 %v733
        %v978 = vpop.f32.mrf.mxu0
        %v979 = vadd.f32 %v673, %v978
        %v980 = vpop.f32.mrf.mxu0
        %v981 = vadd.f32 %v673, %v980
        %982 = vmatmul.bf16.gmra.mxu0 %v736
        %v983 = vpop.f32.mrf.mxu0
        %v984 = vadd.f32 %v673, %v983
        %v985 = vpop.f32.mrf.mxu0
        %v986 = vadd.f32 %v673, %v985
        %987 = vmatmul.bf16.gmra.mxu0 %v739
        %v988 = vpop.f32.mrf.mxu0
        %v989 = vadd.f32 %v673, %v988
        %v990 = vpop.f32.mrf.mxu0
        %v991 = vadd.f32 %v673, %v990
        %992 = vmatmul.bf16.gmra.mxu0 %v742
        %v993 = vpop.f32.mrf.mxu0
        %v994 = vadd.f32 %v673, %v993
        %v995 = vpop.f32.mrf.mxu0
        %v996 = vadd.f32 %v673, %v995
        %997 = vmatmul.bf16.gmra.mxu0 %v745
        %v998 = vpop.f32.mrf.mxu0
        %v999 = vadd.f32 %v673, %v998
        %v1000 = vpop.f32.mrf.mxu0
        %v1001 = vadd.f32 %v673, %v1000
        %1002 = vmatmul.bf16.gmra.mxu0 %v748
        %v1003 = vpop.f32.mrf.mxu0
        %v1004 = vadd.f32 %v673, %v1003
        %v1005 = vpop.f32.mrf.mxu0
        %v1006 = vadd.f32 %v673, %v1005
        %1007 = vmatmul.bf16.gmra.mxu0 %v751
        %v1008 = vpop.f32.mrf.mxu0
        %v1009 = vadd.f32 %v673, %v1008
        %v1010 = vpop.f32.mrf.mxu0
        %v1011 = vadd.f32 %v673, %v1010
        %1012 = vmatmul.bf16.gmra.mxu0 %v754
        %v1013 = vpop.f32.mrf.mxu0
        %v1014 = vadd.f32 %v673, %v1013
        %v1015 = vpop.f32.mrf.mxu0
        %v1016 = vadd.f32 %v673, %v1015
        %1017 = vmatmul.bf16.gmra.mxu0 %v757
        %v1018 = vpop.f32.mrf.mxu0
        %v1019 = vadd.f32 %v673, %v1018
        %v1020 = vpop.f32.mrf.mxu0
        %v1021 = vadd.f32 %v673, %v1020
        %1022 = vmatmul.bf16.gmra.mxu0 %v760
        %v1023 = vpop.f32.mrf.mxu0
        %v1024 = vadd.f32 %v673, %v1023
        %v1025 = vpop.f32.mrf.mxu0
        %v1026 = vadd.f32 %v673, %v1025
        %1027 = vmatmul.bf16.gmra.mxu0 %v763
        %v1028 = vpop.f32.mrf.mxu0
        %v1029 = vadd.f32 %v673, %v1028
        %v1030 = vpop.f32.mrf.mxu0
        %v1031 = vadd.f32 %v673, %v1030
        %1032 = vmatmul.bf16.gmra.mxu0 %v766
        %v1033 = vpop.f32.mrf.mxu0
        %v1034 = vadd.f32 %v673, %v1033
        %v1035 = vpop.f32.mrf.mxu0
        %v1036 = vadd.f32 %v673, %v1035
        %1037 = vmatmul.bf16.gmra.mxu0 %v769
        %v1038 = vpop.f32.mrf.mxu0
        %v1039 = vadd.f32 %v673, %v1038
        %v1040 = vpop.f32.mrf.mxu0
        %v1041 = vadd.f32 %v673, %v1040
        %1042 = vmatmul.bf16.gmra.mxu0 %v772
        %v1043 = vpop.f32.mrf.mxu0
        %v1044 = vadd.f32 %v673, %v1043
        %v1045 = vpop.f32.mrf.mxu0
        %v1046 = vadd.f32 %v673, %v1045
        %1047 = vmatmul.bf16.gmra.mxu0 %v775
        %v1048 = vpop.f32.mrf.mxu0
        %v1049 = vadd.f32 %v673, %v1048
        %v1050 = vpop.f32.mrf.mxu0
        %v1051 = vadd.f32 %v673, %v1050
        %1052 = vmatmul.bf16.gmra.mxu0 %v778
        %v1053 = vpop.f32.mrf.mxu0
        %v1054 = vadd.f32 %v673, %v1053
        %v1055 = vpop.f32.mrf.mxu0
        %v1056 = vadd.f32 %v673, %v1055
        %1057 = vmatmul.bf16.gmra.mxu0 %v781
        %v1058 = vpop.f32.mrf.mxu0
        %v1059 = vadd.f32 %v673, %v1058
        %v1060 = vpop.f32.mrf.mxu0
        %v1061 = vadd.f32 %v673, %v1060
        %1062 = vmatmul.bf16.gmra.mxu0 %v784
        %v1063 = vpop.f32.mrf.mxu0
        %v1064 = vadd.f32 %v673, %v1063
        %v1065 = vpop.f32.mrf.mxu0
        %v1066 = vadd.f32 %v673, %v1065
        %1067 = vmatmul.bf16.gmra.mxu0 %v787
        %v1068 = vpop.f32.mrf.mxu0
        %v1069 = vadd.f32 %v673, %v1068
        %v1070 = vpop.f32.mrf.mxu0
        %v1071 = vadd.f32 %v673, %v1070
        %1072 = vmatmul.bf16.gmra.mxu0 %v790
        %v1073 = vpop.f32.mrf.mxu0
        %v1074 = vadd.f32 %v673, %v1073
        %v1075 = vpop.f32.mrf.mxu0
        %v1076 = vadd.f32 %v673, %v1075
        %1077 = vmatmul.bf16.gmra.mxu0 %v793
        %v1078 = vpop.f32.mrf.mxu0
        %v1079 = vadd.f32 %v673, %v1078
        %v1080 = vpop.f32.mrf.mxu0
        %v1081 = vadd.f32 %v673, %v1080
        %1082 = vmatmul.bf16.gmra.mxu0 %v796
        %v1083 = vpop.f32.mrf.mxu0
        %v1084 = vadd.f32 %v673, %v1083
        %v1085 = vpop.f32.mrf.mxu0
        %v1086 = vadd.f32 %v673, %v1085
        %1087 = vmatmul.bf16.gmra.mxu0 %v799
        %v1088 = vpop.f32.mrf.mxu0
        %v1089 = vadd.f32 %v673, %v1088
        %v1090 = vpop.f32.mrf.mxu0
        %v1091 = vadd.f32 %v673, %v1090
        %1092 = vmatmul.bf16.gmra.mxu0 %v802
        %v1093 = vpop.f32.mrf.mxu0
        %v1094 = vadd.f32 %v673, %v1093
        %v1095 = vpop.f32.mrf.mxu0
        %v1096 = vadd.f32 %v673, %v1095
        %1097 = vmatmul.bf16.gmra.mxu0 %v805
        %v1098 = vpop.f32.mrf.mxu0
        %v1099 = vadd.f32 %v673, %v1098
        %v1100 = vpop.f32.mrf.mxu0
        %v1101 = vadd.f32 %v673, %v1100
        %1102 = vmatmul.bf16.gmra.mxu0 %v808
        %v1103 = vpop.f32.mrf.mxu0
        %v1104 = vadd.f32 %v673, %v1103
        %v1105 = vpop.f32.mrf.mxu0
        %v1106 = vadd.f32 %v673, %v1105
        %1107 = vmatmul.bf16.gmra.mxu0 %v811
        %v1108 = vpop.f32.mrf.mxu0
        %v1109 = vadd.f32 %v673, %v1108
        %v1110 = vpop.f32.mrf.mxu0
        %v1111 = vadd.f32 %v673, %v1110
        %1112 = vmatmul.bf16.gmra.mxu0 %v814
        %v1113 = vpop.f32.mrf.mxu0
        %v1114 = vadd.f32 %v673, %v1113
        %v1115 = vpop.f32.mrf.mxu0
        %v1116 = vadd.f32 %v673, %v1115
        %1117 = vmatmul.bf16.gmra.mxu0 %v817
        %v1118 = vpop.f32.mrf.mxu0
        %v1119 = vadd.f32 %v673, %v1118
        %v1120 = vpop.f32.mrf.mxu0
        %v1121 = vadd.f32 %v673, %v1120
        %1122 = vmatmul.bf16.gmra.mxu0 %v820
        %v1123 = vpop.f32.mrf.mxu0
        %v1124 = vadd.f32 %v673, %v1123
        %v1125 = vpop.f32.mrf.mxu0
        %v1126 = vadd.f32 %v673, %v1125
        %1127 = vmatmul.bf16.gmra.mxu0 %v823
        %v1128 = vpop.f32.mrf.mxu0
        %v1129 = vadd.f32 %v673, %v1128
        %v1130 = vpop.f32.mrf.mxu0
        %v1131 = vadd.f32 %v673, %v1130
        %1132 = vmatmul.bf16.gmra.mxu0 %v826
        %v1133 = vpop.f32.mrf.mxu0
        %v1134 = vadd.f32 %v673, %v1133
        %v1135 = vpop.f32.mrf.mxu0
        %v1136 = vadd.f32 %v673, %v1135
        %1137 = vmatmul.bf16.gmra.mxu0 %v829
        %v1138 = vpop.f32.mrf.mxu0
        %v1139 = vadd.f32 %v673, %v1138
        %v1140 = vpop.f32.mrf.mxu0
        %v1141 = vadd.f32 %v673, %v1140
        %1142 = vmatmul.bf16.gmra.mxu0 %v832
        %v1143 = vpop.f32.mrf.mxu0
        %v1144 = vadd.f32 %v673, %v1143
        %v1145 = vpop.f32.mrf.mxu0
        %v1146 = vadd.f32 %v673, %v1145
        %1147 = vmatmul.bf16.gmra.mxu0 %v835
        %v1148 = vpop.f32.mrf.mxu0
        %v1149 = vadd.f32 %v673, %v1148
        %v1150 = vpop.f32.mrf.mxu0
        %v1151 = vadd.f32 %v673, %v1150
        %1152 = vmatmul.bf16.gmra.mxu0 %v838
        %v1153 = vpop.f32.mrf.mxu0
        %v1154 = vadd.f32 %v673, %v1153
        %v1155 = vpop.f32.mrf.mxu0
        %v1156 = vadd.f32 %v673, %v1155
        %1157 = vmatmul.bf16.gmra.mxu0 %v841
        %v1158 = vpop.f32.mrf.mxu0
        %v1159 = vadd.f32 %v673, %v1158
        %v1160 = vpop.f32.mrf.mxu0
        %v1161 = vadd.f32 %v673, %v1160
        %1162 = vmatmul.bf16.gmra.mxu0 %v844
        %v1163 = vpop.f32.mrf.mxu0
        %v1164 = vadd.f32 %v673, %v1163
        %v1165 = vpop.f32.mrf.mxu0
        %v1166 = vadd.f32 %v673, %v1165
        %1167 = vmatmul.bf16.gmra.mxu0 %v847
        %v1168 = vpop.f32.mrf.mxu0
        %v1169 = vadd.f32 %v673, %v1168
        %v1170 = vpop.f32.mrf.mxu0
        %v1171 = vadd.f32 %v673, %v1170
        %1172 = vmatmul.bf16.gmra.mxu0 %v850
        %v1173 = vpop.f32.mrf.mxu0
        %v1174 = vadd.f32 %v673, %v1173
        %v1175 = vpop.f32.mrf.mxu0
        %v1176 = vadd.f32 %v673, %v1175
        %1177 = vmatmul.bf16.gmra.mxu0 %v853
        %v1178 = vpop.f32.mrf.mxu0
        %v1179 = vadd.f32 %v673, %v1178
        %v1180 = vpop.f32.mrf.mxu0
        %v1181 = vadd.f32 %v673, %v1180
        %1182 = vmatmul.bf16.gmra.mxu0 %v856
        %v1183 = vpop.f32.mrf.mxu0
        %v1184 = vadd.f32 %v673, %v1183
        %v1185 = vpop.f32.mrf.mxu0
        %v1186 = vadd.f32 %v673, %v1185
        %1187 = vmatmul.bf16.gmra.mxu0 %v859
        %v1188 = vpop.f32.mrf.mxu0
        %v1189 = vadd.f32 %v673, %v1188
        %v1190 = vpop.f32.mrf.mxu0
        %v1191 = vadd.f32 %v673, %v1190
        %1192 = vmatmul.bf16.gmra.mxu0 %v862
        %v1193 = vpop.f32.mrf.mxu0
        %v1194 = vadd.f32 %v673, %v1193
        %v1195 = vpop.f32.mrf.mxu0
        %v1196 = vadd.f32 %v673, %v1195
        %1197 = vmatmul.bf16.gmra.mxu0 %v865
        %v1198 = vpop.f32.mrf.mxu0
        %v1199 = vadd.f32 %v673, %v1198
        %v1200 = vpop.f32.mrf.mxu0
        %v1201 = vadd.f32 %v673, %v1200
        %1202 = vdwg.mxu0
        %v1203 = vmax.f32 %v884, 0.0
        %v1204 = vmax.f32 %v886, 0.0
        %v1205 = vmax.f32 %v889, 0.0
        %v1206 = vmax.f32 %v891, 0.0
        %v1207 = vmax.f32 %v894, 0.0
        %v1208 = vmax.f32 %v896, 0.0
        %v1209 = vmax.f32 %v899, 0.0
        %v1210 = vmax.f32 %v901, 0.0
        %v1211 = vmax.f32 %v904, 0.0
        %v1212 = vmax.f32 %v906, 0.0
        %v1213 = vmax.f32 %v909, 0.0
        %v1214 = vmax.f32 %v911, 0.0
        %v1215 = vmax.f32 %v914, 0.0
        %v1216 = vmax.f32 %v916, 0.0
        %v1217 = vmax.f32 %v919, 0.0
        %v1218 = vmax.f32 %v921, 0.0
        %v1219 = vmax.f32 %v924, 0.0
        %v1220 = vmax.f32 %v926, 0.0
        %v1221 = vmax.f32 %v929, 0.0
        %v1222 = vmax.f32 %v931, 0.0
        %v1223 = vmax.f32 %v934, 0.0
        %v1224 = vmax.f32 %v936, 0.0
        %v1225 = vmax.f32 %v939, 0.0
        %v1226 = vmax.f32 %v941, 0.0
        %v1227 = vmax.f32 %v944, 0.0
        %v1228 = vmax.f32 %v946, 0.0
        %v1229 = vmax.f32 %v949, 0.0
        %v1230 = vmax.f32 %v951, 0.0
        %v1231 = vmax.f32 %v954, 0.0
        %v1232 = vmax.f32 %v956, 0.0
        %v1233 = vmax.f32 %v959, 0.0
        %v1234 = vmax.f32 %v961, 0.0
        %v1235 = vmax.f32 %v964, 0.0
        %v1236 = vmax.f32 %v966, 0.0
        %v1237 = vmax.f32 %v969, 0.0
        %v1238 = vmax.f32 %v971, 0.0
        %v1239 = vmax.f32 %v974, 0.0
        %v1240 = vmax.f32 %v976, 0.0
        %v1241 = vmax.f32 %v979, 0.0
        %v1242 = vmax.f32 %v981, 0.0
        %v1243 = vmax.f32 %v984, 0.0
        %v1244 = vmax.f32 %v986, 0.0
        %v1245 = vmax.f32 %v989, 0.0
        %v1246 = vmax.f32 %v991, 0.0
        %v1247 = vmax.f32 %v994, 0.0
        %v1248 = vmax.f32 %v996, 0.0
        %v1249 = vmax.f32 %v999, 0.0
        %v1250 = vmax.f32 %v1001, 0.0
        %v1251 = vmax.f32 %v1004, 0.0
        %v1252 = vmax.f32 %v1006, 0.0
        %v1253 = vmax.f32 %v1009, 0.0
        %v1254 = vmax.f32 %v1011, 0.0
        %v1255 = vmax.f32 %v1014, 0.0
        %v1256 = vmax.f32 %v1016, 0.0
        %v1257 = vmax.f32 %v1019, 0.0
        %v1258 = vmax.f32 %v1021, 0.0
        %v1259 = vmax.f32 %v1024, 0.0
        %v1260 = vmax.f32 %v1026, 0.0
        %v1261 = vmax.f32 %v1029, 0.0
        %v1262 = vmax.f32 %v1031, 0.0
        %v1263 = vmax.f32 %v1034, 0.0
        %v1264 = vmax.f32 %v1036, 0.0
        %v1265 = vmax.f32 %v1039, 0.0
        %v1266 = vmax.f32 %v1041, 0.0
        %v1267 = vmax.f32 %v1044, 0.0
        %v1268 = vmax.f32 %v1046, 0.0
        %v1269 = vmax.f32 %v1049, 0.0
        %v1270 = vmax.f32 %v1051, 0.0
        %v1271 = vmax.f32 %v1054, 0.0
        %v1272 = vmax.f32 %v1056, 0.0
        %v1273 = vmax.f32 %v1059, 0.0
        %v1274 = vmax.f32 %v1061, 0.0
        %v1275 = vmax.f32 %v1064, 0.0
        %v1276 = vmax.f32 %v1066, 0.0
        %v1277 = vmax.f32 %v1069, 0.0
        %v1278 = vmax.f32 %v1071, 0.0
        %v1279 = vmax.f32 %v1074, 0.0
        %v1280 = vmax.f32 %v1076, 0.0
        %v1281 = vmax.f32 %v1079, 0.0
        %v1282 = vmax.f32 %v1081, 0.0
        %v1283 = vmax.f32 %v1084, 0.0
        %v1284 = vmax.f32 %v1086, 0.0
        %v1285 = vmax.f32 %v1089, 0.0
        %v1286 = vmax.f32 %v1091, 0.0
        %v1287 = vmax.f32 %v1094, 0.0
        %v1288 = vmax.f32 %v1096, 0.0
        %v1289 = vmax.f32 %v1099, 0.0
        %v1290 = vmax.f32 %v1101, 0.0
        %v1291 = vmax.f32 %v1104, 0.0
        %v1292 = vmax.f32 %v1106, 0.0
        %v1293 = vmax.f32 %v1109, 0.0
        %v1294 = vmax.f32 %v1111, 0.0
        %v1295 = vmax.f32 %v1114, 0.0
        %v1296 = vmax.f32 %v1116, 0.0
        %v1297 = vmax.f32 %v1119, 0.0
        %v1298 = vmax.f32 %v1121, 0.0
        %v1299 = vmax.f32 %v1124, 0.0
        %v1300 = vmax.f32 %v1126, 0.0
        %v1301 = vmax.f32 %v1129, 0.0
        %v1302 = vmax.f32 %v1131, 0.0
        %v1303 = vmax.f32 %v1134, 0.0
        %v1304 = vmax.f32 %v1136, 0.0
        %v1305 = vmax.f32 %v1139, 0.0
        %v1306 = vmax.f32 %v1141, 0.0
        %v1307 = vmax.f32 %v1144, 0.0
        %v1308 = vmax.f32 %v1146, 0.0
        %v1309 = vmax.f32 %v1149, 0.0
        %v1310 = vmax.f32 %v1151, 0.0
        %v1311 = vmax.f32 %v1154, 0.0
        %v1312 = vmax.f32 %v1156, 0.0
        %v1313 = vmax.f32 %v1159, 0.0
        %v1314 = vmax.f32 %v1161, 0.0
        %v1315 = vmax.f32 %v1164, 0.0
        %v1316 = vmax.f32 %v1166, 0.0
        %v1317 = vmax.f32 %v1169, 0.0
        %v1318 = vmax.f32 %v1171, 0.0
        %v1319 = vmax.f32 %v1174, 0.0
        %v1320 = vmax.f32 %v1176, 0.0
        %v1321 = vmax.f32 %v1179, 0.0
        %v1322 = vmax.f32 %v1181, 0.0
        %v1323 = vmax.f32 %v1184, 0.0
        %v1324 = vmax.f32 %v1186, 0.0
        %v1325 = vmax.f32 %v1189, 0.0
        %v1326 = vmax.f32 %v1191, 0.0
        %v1327 = vmax.f32 %v1194, 0.0
        %v1328 = vmax.f32 %v1196, 0.0
        %v1329 = vmax.f32 %v1199, 0.0
        %v1330 = vmax.f32 %v1201, 0.0
        %v1331 = vpack.c.bf16 %v1204, %v1203
        %v1332 = vpack.c.bf16 %v1206, %v1205
        %v1333 = vpack.c.bf16 %v1208, %v1207
        %v1334 = vpack.c.bf16 %v1210, %v1209
        %v1335 = vpack.c.bf16 %v1212, %v1211
        %v1336 = vpack.c.bf16 %v1214, %v1213
        %v1337 = vpack.c.bf16 %v1216, %v1215
        %v1338 = vpack.c.bf16 %v1218, %v1217
        %v1339 = vpack.c.bf16 %v1220, %v1219
        %v1340 = vpack.c.bf16 %v1222, %v1221
        %v1341 = vpack.c.bf16 %v1224, %v1223
        %v1342 = vpack.c.bf16 %v1226, %v1225
        %v1343 = vpack.c.bf16 %v1228, %v1227
        %v1344 = vpack.c.bf16 %v1230, %v1229
        %v1345 = vpack.c.bf16 %v1232, %v1231
        %v1346 = vpack.c.bf16 %v1234, %v1233
        %v1347 = vpack.c.bf16 %v1236, %v1235
        %v1348 = vpack.c.bf16 %v1238, %v1237
        %v1349 = vpack.c.bf16 %v1240, %v1239
        %v1350 = vpack.c.bf16 %v1242, %v1241
        %v1351 = vpack.c.bf16 %v1244, %v1243
        %v1352 = vpack.c.bf16 %v1246, %v1245
        %v1353 = vpack.c.bf16 %v1248, %v1247
        %v1354 = vpack.c.bf16 %v1250, %v1249
        %v1355 = vpack.c.bf16 %v1252, %v1251
        %v1356 = vpack.c.bf16 %v1254, %v1253
        %v1357 = vpack.c.bf16 %v1256, %v1255
        %v1358 = vpack.c.bf16 %v1258, %v1257
        %v1359 = vpack.c.bf16 %v1260, %v1259
        %v1360 = vpack.c.bf16 %v1262, %v1261
        %v1361 = vpack.c.bf16 %v1264, %v1263
        %v1362 = vpack.c.bf16 %v1266, %v1265
        %v1363 = vpack.c.bf16 %v1268, %v1267
        %v1364 = vpack.c.bf16 %v1270, %v1269
        %v1365 = vpack.c.bf16 %v1272, %v1271
        %v1366 = vpack.c.bf16 %v1274, %v1273
        %v1367 = vpack.c.bf16 %v1276, %v1275
        %v1368 = vpack.c.bf16 %v1278, %v1277
        %v1369 = vpack.c.bf16 %v1280, %v1279
        %v1370 = vpack.c.bf16 %v1282, %v1281
        %v1371 = vpack.c.bf16 %v1284, %v1283
        %v1372 = vpack.c.bf16 %v1286, %v1285
        %v1373 = vpack.c.bf16 %v1288, %v1287
        %v1374 = vpack.c.bf16 %v1290, %v1289
        %v1375 = vpack.c.bf16 %v1292, %v1291
        %v1376 = vpack.c.bf16 %v1294, %v1293
        %v1377 = vpack.c.bf16 %v1296, %v1295
        %v1378 = vpack.c.bf16 %v1298, %v1297
        %v1379 = vpack.c.bf16 %v1300, %v1299
        %v1380 = vpack.c.bf16 %v1302, %v1301
        %v1381 = vpack.c.bf16 %v1304, %v1303
        %v1382 = vpack.c.bf16 %v1306, %v1305
        %v1383 = vpack.c.bf16 %v1308, %v1307
        %v1384 = vpack.c.bf16 %v1310, %v1309
        %v1385 = vpack.c.bf16 %v1312, %v1311
        %v1386 = vpack.c.bf16 %v1314, %v1313
        %v1387 = vpack.c.bf16 %v1316, %v1315
        %v1388 = vpack.c.bf16 %v1318, %v1317
        %v1389 = vpack.c.bf16 %v1320, %v1319
        %v1390 = vpack.c.bf16 %v1322, %v1321
        %v1391 = vpack.c.bf16 %v1324, %v1323
        %v1392 = vpack.c.bf16 %v1326, %v1325
        %v1393 = vpack.c.bf16 %v1328, %v1327
        %v1394 = vpack.c.bf16 %v1330, %v1329
        %v1395 = vld [vmem:[%s3] sm:$0xf]
        %v1396 = vld [vmem:[%s3 + $0x4] sm:$0xf]
        %v1397 = vld [vmem:[%s3 + $0x8] sm:$0xf]
        %v1398 = vld [vmem:[%s3 + $0xc] sm:$0xf]
        %v1399 = vld [vmem:[%s3 + $0x10] sm:$0xf]
        %v1400 = vld [vmem:[%s3 + $0x14] sm:$0xf]
        %v1401 = vld [vmem:[%s3 + $0x18] sm:$0xf]
        %v1402 = vld [vmem:[%s3 + $0x1c] sm:$0xf]
        %v1403 = vld [vmem:[%s4 + $0x1] sm:$0x1]
        %v1404 = vperm.slane %v1403, 0
        %v1413 = vunpack.c.l.b16 %v1395
        %v1414 = vunpack.c.l.b16 %v1396
        %v1415 = vunpack.c.l.b16 %v1397
        %v1416 = vunpack.c.l.b16 %v1398
        %v1417 = vunpack.c.l.b16 %v1399
        %v1418 = vunpack.c.l.b16 %v1400
        %v1419 = vunpack.c.l.b16 %v1401
        %v1420 = vunpack.c.l.b16 %v1402
        %v1421 = vpack.c.b16 %v1414, %v1413
        %v1422 = vpack.c.b16 %v1416, %v1415
        %v1423 = vpack.c.b16 %v1418, %v1417
        %v1424 = vpack.c.b16 %v1420, %v1419
        %vm1429 = vcmask 523264
        %v1431 = vsel %vm1429, %v1331, 0
        %v1434 = vsel %vm1429, %v1332, 0
        %v1437 = vsel %vm1429, %v1333, 0
        %v1440 = vsel %vm1429, %v1334, 0
        %v1443 = vsel %vm1429, %v1335, 0
        %v1446 = vsel %vm1429, %v1336, 0
        %v1449 = vsel %vm1429, %v1337, 0
        %v1452 = vsel %vm1429, %v1338, 0
        %v1455 = vsel %vm1429, %v1339, 0
        %v1458 = vsel %vm1429, %v1340, 0
        %v1461 = vsel %vm1429, %v1341, 0
        %v1464 = vsel %vm1429, %v1342, 0
        %v1467 = vsel %vm1429, %v1343, 0
        %v1470 = vsel %vm1429, %v1344, 0
        %v1473 = vsel %vm1429, %v1345, 0
        %v1476 = vsel %vm1429, %v1346, 0
        %v1479 = vsel %vm1429, %v1347, 0
        %v1482 = vsel %vm1429, %v1348, 0
        %v1485 = vsel %vm1429, %v1349, 0
        %v1488 = vsel %vm1429, %v1350, 0
        %v1491 = vsel %vm1429, %v1351, 0
        %v1494 = vsel %vm1429, %v1352, 0
        %v1497 = vsel %vm1429, %v1353, 0
        %v1500 = vsel %vm1429, %v1354, 0
        %v1503 = vsel %vm1429, %v1355, 0
        %v1506 = vsel %vm1429, %v1356, 0
        %v1509 = vsel %vm1429, %v1357, 0
        %v1512 = vsel %vm1429, %v1358, 0
        %v1515 = vsel %vm1429, %v1359, 0
        %v1518 = vsel %vm1429, %v1360, 0
        %v1521 = vsel %vm1429, %v1361, 0
        %v1524 = vsel %vm1429, %v1362, 0
        %v1527 = vsel %vm1429, %v1363, 0
        %v1530 = vsel %vm1429, %v1364, 0
        %v1533 = vsel %vm1429, %v1365, 0
        %v1536 = vsel %vm1429, %v1366, 0
        %v1539 = vsel %vm1429, %v1367, 0
        %v1542 = vsel %vm1429, %v1368, 0
        %v1545 = vsel %vm1429, %v1369, 0
        %v1548 = vsel %vm1429, %v1370, 0
        %v1551 = vsel %vm1429, %v1371, 0
        %v1554 = vsel %vm1429, %v1372, 0
        %v1557 = vsel %vm1429, %v1373, 0
        %v1560 = vsel %vm1429, %v1374, 0
        %v1563 = vsel %vm1429, %v1375, 0
        %v1566 = vsel %vm1429, %v1376, 0
        %v1569 = vsel %vm1429, %v1377, 0
        %v1572 = vsel %vm1429, %v1378, 0
        %v1575 = vsel %vm1429, %v1379, 0
        %v1578 = vsel %vm1429, %v1380, 0
        %v1581 = vsel %vm1429, %v1381, 0
        %v1584 = vsel %vm1429, %v1382, 0
        %v1587 = vsel %vm1429, %v1383, 0
        %v1590 = vsel %vm1429, %v1384, 0
        %v1593 = vsel %vm1429, %v1385, 0
        %v1596 = vsel %vm1429, %v1386, 0
        %v1599 = vsel %vm1429, %v1387, 0
        %v1602 = vsel %vm1429, %v1388, 0
        %v1605 = vsel %vm1429, %v1389, 0
        %v1608 = vsel %vm1429, %v1390, 0
        %v1611 = vsel %vm1429, %v1391, 0
        %v1614 = vsel %vm1429, %v1392, 0
        %v1617 = vsel %vm1429, %v1393, 0
        %v1620 = vsel %vm1429, %v1394, 0
        %1622 = vmatpush.bf16.msra.mxu0 0
        %1623 = vmatpush.bf16.msra.mxu0 0
        %1624 = vmatpush.bf16.msra.mxu0 0
        %1625 = vmatpush.bf16.msra.mxu0 0
        %1626 = vmatpush.bf16.msra.mxu0 %v1424
        %1627 = vmatpush.bf16.msra.mxu0 %v1423
        %1628 = vmatpush.bf16.msra.mxu0 %v1422
        %1629 = vmatpush.bf16.msra.mxu0 %v1421
        %1630 = vmatmul.bf16.gmra.mxu0 %v1431
        %v1631 = vpop.f32.mrf.mxu0
        %v1632 = vadd.f32 %v1404, %v1631
        %v1633 = vpop.f32.mrf.mxu0
        %v1634 = vadd.f32 %v1404, %v1633
        %1635 = vmatmul.bf16.gmra.mxu0 %v1434
        %v1636 = vpop.f32.mrf.mxu0
        %v1637 = vadd.f32 %v1404, %v1636
        %v1638 = vpop.f32.mrf.mxu0
        %v1639 = vadd.f32 %v1404, %v1638
        %1640 = vmatmul.bf16.gmra.mxu0 %v1437
        %v1641 = vpop.f32.mrf.mxu0
        %v1642 = vadd.f32 %v1404, %v1641
        %v1643 = vpop.f32.mrf.mxu0
        %v1644 = vadd.f32 %v1404, %v1643
        %1645 = vmatmul.bf16.gmra.mxu0 %v1440
        %v1646 = vpop.f32.mrf.mxu0
        %v1647 = vadd.f32 %v1404, %v1646
        %v1648 = vpop.f32.mrf.mxu0
        %v1649 = vadd.f32 %v1404, %v1648
        %1650 = vmatmul.bf16.gmra.mxu0 %v1443
        %v1651 = vpop.f32.mrf.mxu0
        %v1652 = vadd.f32 %v1404, %v1651
        %v1653 = vpop.f32.mrf.mxu0
        %v1654 = vadd.f32 %v1404, %v1653
        %1655 = vmatmul.bf16.gmra.mxu0 %v1446
        %v1656 = vpop.f32.mrf.mxu0
        %v1657 = vadd.f32 %v1404, %v1656
        %v1658 = vpop.f32.mrf.mxu0
        %v1659 = vadd.f32 %v1404, %v1658
        %1660 = vmatmul.bf16.gmra.mxu0 %v1449
        %v1661 = vpop.f32.mrf.mxu0
        %v1662 = vadd.f32 %v1404, %v1661
        %v1663 = vpop.f32.mrf.mxu0
        %v1664 = vadd.f32 %v1404, %v1663
        %1665 = vmatmul.bf16.gmra.mxu0 %v1452
        %v1666 = vpop.f32.mrf.mxu0
        %v1667 = vadd.f32 %v1404, %v1666
        %v1668 = vpop.f32.mrf.mxu0
        %v1669 = vadd.f32 %v1404, %v1668
        %1670 = vmatmul.bf16.gmra.mxu0 %v1455
        %v1671 = vpop.f32.mrf.mxu0
        %v1672 = vadd.f32 %v1404, %v1671
        %v1673 = vpop.f32.mrf.mxu0
        %v1674 = vadd.f32 %v1404, %v1673
        %1675 = vmatmul.bf16.gmra.mxu0 %v1458
        %v1676 = vpop.f32.mrf.mxu0
        %v1677 = vadd.f32 %v1404, %v1676
        %v1678 = vpop.f32.mrf.mxu0
        %v1679 = vadd.f32 %v1404, %v1678
        %1680 = vmatmul.bf16.gmra.mxu0 %v1461
        %v1681 = vpop.f32.mrf.mxu0
        %v1682 = vadd.f32 %v1404, %v1681
        %v1683 = vpop.f32.mrf.mxu0
        %v1684 = vadd.f32 %v1404, %v1683
        %1685 = vmatmul.bf16.gmra.mxu0 %v1464
        %v1686 = vpop.f32.mrf.mxu0
        %v1687 = vadd.f32 %v1404, %v1686
        %v1688 = vpop.f32.mrf.mxu0
        %v1689 = vadd.f32 %v1404, %v1688
        %1690 = vmatmul.bf16.gmra.mxu0 %v1467
        %v1691 = vpop.f32.mrf.mxu0
        %v1692 = vadd.f32 %v1404, %v1691
        %v1693 = vpop.f32.mrf.mxu0
        %v1694 = vadd.f32 %v1404, %v1693
        %1695 = vmatmul.bf16.gmra.mxu0 %v1470
        %v1696 = vpop.f32.mrf.mxu0
        %v1697 = vadd.f32 %v1404, %v1696
        %v1698 = vpop.f32.mrf.mxu0
        %v1699 = vadd.f32 %v1404, %v1698
        %1700 = vmatmul.bf16.gmra.mxu0 %v1473
        %v1701 = vpop.f32.mrf.mxu0
        %v1702 = vadd.f32 %v1404, %v1701
        %v1703 = vpop.f32.mrf.mxu0
        %v1704 = vadd.f32 %v1404, %v1703
        %1705 = vmatmul.bf16.gmra.mxu0 %v1476
        %v1706 = vpop.f32.mrf.mxu0
        %v1707 = vadd.f32 %v1404, %v1706
        %v1708 = vpop.f32.mrf.mxu0
        %v1709 = vadd.f32 %v1404, %v1708
        %1710 = vmatmul.bf16.gmra.mxu0 %v1479
        %v1711 = vpop.f32.mrf.mxu0
        %v1712 = vadd.f32 %v1404, %v1711
        %v1713 = vpop.f32.mrf.mxu0
        %v1714 = vadd.f32 %v1404, %v1713
        %1715 = vmatmul.bf16.gmra.mxu0 %v1482
        %v1716 = vpop.f32.mrf.mxu0
        %v1717 = vadd.f32 %v1404, %v1716
        %v1718 = vpop.f32.mrf.mxu0
        %v1719 = vadd.f32 %v1404, %v1718
        %1720 = vmatmul.bf16.gmra.mxu0 %v1485
        %v1721 = vpop.f32.mrf.mxu0
        %v1722 = vadd.f32 %v1404, %v1721
        %v1723 = vpop.f32.mrf.mxu0
        %v1724 = vadd.f32 %v1404, %v1723
        %1725 = vmatmul.bf16.gmra.mxu0 %v1488
        %v1726 = vpop.f32.mrf.mxu0
        %v1727 = vadd.f32 %v1404, %v1726
        %v1728 = vpop.f32.mrf.mxu0
        %v1729 = vadd.f32 %v1404, %v1728
        %1730 = vmatmul.bf16.gmra.mxu0 %v1491
        %v1731 = vpop.f32.mrf.mxu0
        %v1732 = vadd.f32 %v1404, %v1731
        %v1733 = vpop.f32.mrf.mxu0
        %v1734 = vadd.f32 %v1404, %v1733
        %1735 = vmatmul.bf16.gmra.mxu0 %v1494
        %v1736 = vpop.f32.mrf.mxu0
        %v1737 = vadd.f32 %v1404, %v1736
        %v1738 = vpop.f32.mrf.mxu0
        %v1739 = vadd.f32 %v1404, %v1738
        %1740 = vmatmul.bf16.gmra.mxu0 %v1497
        %v1741 = vpop.f32.mrf.mxu0
        %v1742 = vadd.f32 %v1404, %v1741
        %v1743 = vpop.f32.mrf.mxu0
        %v1744 = vadd.f32 %v1404, %v1743
        %1745 = vmatmul.bf16.gmra.mxu0 %v1500
        %v1746 = vpop.f32.mrf.mxu0
        %v1747 = vadd.f32 %v1404, %v1746
        %v1748 = vpop.f32.mrf.mxu0
        %v1749 = vadd.f32 %v1404, %v1748
        %1750 = vmatmul.bf16.gmra.mxu0 %v1503
        %v1751 = vpop.f32.mrf.mxu0
        %v1752 = vadd.f32 %v1404, %v1751
        %v1753 = vpop.f32.mrf.mxu0
        %v1754 = vadd.f32 %v1404, %v1753
        %1755 = vmatmul.bf16.gmra.mxu0 %v1506
        %v1756 = vpop.f32.mrf.mxu0
        %v1757 = vadd.f32 %v1404, %v1756
        %v1758 = vpop.f32.mrf.mxu0
        %v1759 = vadd.f32 %v1404, %v1758
        %1760 = vmatmul.bf16.gmra.mxu0 %v1509
        %v1761 = vpop.f32.mrf.mxu0
        %v1762 = vadd.f32 %v1404, %v1761
        %v1763 = vpop.f32.mrf.mxu0
        %v1764 = vadd.f32 %v1404, %v1763
        %1765 = vmatmul.bf16.gmra.mxu0 %v1512
        %v1766 = vpop.f32.mrf.mxu0
        %v1767 = vadd.f32 %v1404, %v1766
        %v1768 = vpop.f32.mrf.mxu0
        %v1769 = vadd.f32 %v1404, %v1768
        %1770 = vmatmul.bf16.gmra.mxu0 %v1515
        %v1771 = vpop.f32.mrf.mxu0
        %v1772 = vadd.f32 %v1404, %v1771
        %v1773 = vpop.f32.mrf.mxu0
        %v1774 = vadd.f32 %v1404, %v1773
        %1775 = vmatmul.bf16.gmra.mxu0 %v1518
        %v1776 = vpop.f32.mrf.mxu0
        %v1777 = vadd.f32 %v1404, %v1776
        %v1778 = vpop.f32.mrf.mxu0
        %v1779 = vadd.f32 %v1404, %v1778
        %1780 = vmatmul.bf16.gmra.mxu0 %v1521
        %v1781 = vpop.f32.mrf.mxu0
        %v1782 = vadd.f32 %v1404, %v1781
        %v1783 = vpop.f32.mrf.mxu0
        %v1784 = vadd.f32 %v1404, %v1783
        %1785 = vmatmul.bf16.gmra.mxu0 %v1524
        %v1786 = vpop.f32.mrf.mxu0
        %v1787 = vadd.f32 %v1404, %v1786
        %v1788 = vpop.f32.mrf.mxu0
        %v1789 = vadd.f32 %v1404, %v1788
        %1790 = vmatmul.bf16.gmra.mxu0 %v1527
        %v1791 = vpop.f32.mrf.mxu0
        %v1792 = vadd.f32 %v1404, %v1791
        %v1793 = vpop.f32.mrf.mxu0
        %v1794 = vadd.f32 %v1404, %v1793
        %1795 = vmatmul.bf16.gmra.mxu0 %v1530
        %v1796 = vpop.f32.mrf.mxu0
        %v1797 = vadd.f32 %v1404, %v1796
        %v1798 = vpop.f32.mrf.mxu0
        %v1799 = vadd.f32 %v1404, %v1798
        %1800 = vmatmul.bf16.gmra.mxu0 %v1533
        %v1801 = vpop.f32.mrf.mxu0
        %v1802 = vadd.f32 %v1404, %v1801
        %v1803 = vpop.f32.mrf.mxu0
        %v1804 = vadd.f32 %v1404, %v1803
        %1805 = vmatmul.bf16.gmra.mxu0 %v1536
        %v1806 = vpop.f32.mrf.mxu0
        %v1807 = vadd.f32 %v1404, %v1806
        %v1808 = vpop.f32.mrf.mxu0
        %v1809 = vadd.f32 %v1404, %v1808
        %1810 = vmatmul.bf16.gmra.mxu0 %v1539
        %v1811 = vpop.f32.mrf.mxu0
        %v1812 = vadd.f32 %v1404, %v1811
        %v1813 = vpop.f32.mrf.mxu0
        %v1814 = vadd.f32 %v1404, %v1813
        %1815 = vmatmul.bf16.gmra.mxu0 %v1542
        %v1816 = vpop.f32.mrf.mxu0
        %v1817 = vadd.f32 %v1404, %v1816
        %v1818 = vpop.f32.mrf.mxu0
        %v1819 = vadd.f32 %v1404, %v1818
        %1820 = vmatmul.bf16.gmra.mxu0 %v1545
        %v1821 = vpop.f32.mrf.mxu0
        %v1822 = vadd.f32 %v1404, %v1821
        %v1823 = vpop.f32.mrf.mxu0
        %v1824 = vadd.f32 %v1404, %v1823
        %1825 = vmatmul.bf16.gmra.mxu0 %v1548
        %v1826 = vpop.f32.mrf.mxu0
        %v1827 = vadd.f32 %v1404, %v1826
        %v1828 = vpop.f32.mrf.mxu0
        %v1829 = vadd.f32 %v1404, %v1828
        %1830 = vmatmul.bf16.gmra.mxu0 %v1551
        %v1831 = vpop.f32.mrf.mxu0
        %v1832 = vadd.f32 %v1404, %v1831
        %v1833 = vpop.f32.mrf.mxu0
        %v1834 = vadd.f32 %v1404, %v1833
        %1835 = vmatmul.bf16.gmra.mxu0 %v1554
        %v1836 = vpop.f32.mrf.mxu0
        %v1837 = vadd.f32 %v1404, %v1836
        %v1838 = vpop.f32.mrf.mxu0
        %v1839 = vadd.f32 %v1404, %v1838
        %1840 = vmatmul.bf16.gmra.mxu0 %v1557
        %v1841 = vpop.f32.mrf.mxu0
        %v1842 = vadd.f32 %v1404, %v1841
        %v1843 = vpop.f32.mrf.mxu0
        %v1844 = vadd.f32 %v1404, %v1843
        %1845 = vmatmul.bf16.gmra.mxu0 %v1560
        %v1846 = vpop.f32.mrf.mxu0
        %v1847 = vadd.f32 %v1404, %v1846
        %v1848 = vpop.f32.mrf.mxu0
        %v1849 = vadd.f32 %v1404, %v1848
        %1850 = vmatmul.bf16.gmra.mxu0 %v1563
        %v1851 = vpop.f32.mrf.mxu0
        %v1852 = vadd.f32 %v1404, %v1851
        %v1853 = vpop.f32.mrf.mxu0
        %v1854 = vadd.f32 %v1404, %v1853
        %1855 = vmatmul.bf16.gmra.mxu0 %v1566
        %v1856 = vpop.f32.mrf.mxu0
        %v1857 = vadd.f32 %v1404, %v1856
        %v1858 = vpop.f32.mrf.mxu0
        %v1859 = vadd.f32 %v1404, %v1858
        %1860 = vmatmul.bf16.gmra.mxu0 %v1569
        %v1861 = vpop.f32.mrf.mxu0
        %v1862 = vadd.f32 %v1404, %v1861
        %v1863 = vpop.f32.mrf.mxu0
        %v1864 = vadd.f32 %v1404, %v1863
        %1865 = vmatmul.bf16.gmra.mxu0 %v1572
        %v1866 = vpop.f32.mrf.mxu0
        %v1867 = vadd.f32 %v1404, %v1866
        %v1868 = vpop.f32.mrf.mxu0
        %v1869 = vadd.f32 %v1404, %v1868
        %1870 = vmatmul.bf16.gmra.mxu0 %v1575
        %v1871 = vpop.f32.mrf.mxu0
        %v1872 = vadd.f32 %v1404, %v1871
        %v1873 = vpop.f32.mrf.mxu0
        %v1874 = vadd.f32 %v1404, %v1873
        %1875 = vmatmul.bf16.gmra.mxu0 %v1578
        %v1876 = vpop.f32.mrf.mxu0
        %v1877 = vadd.f32 %v1404, %v1876
        %v1878 = vpop.f32.mrf.mxu0
        %v1879 = vadd.f32 %v1404, %v1878
        %1880 = vmatmul.bf16.gmra.mxu0 %v1581
        %v1881 = vpop.f32.mrf.mxu0
        %v1882 = vadd.f32 %v1404, %v1881
        %v1883 = vpop.f32.mrf.mxu0
        %v1884 = vadd.f32 %v1404, %v1883
        %1885 = vmatmul.bf16.gmra.mxu0 %v1584
        %v1886 = vpop.f32.mrf.mxu0
        %v1887 = vadd.f32 %v1404, %v1886
        %v1888 = vpop.f32.mrf.mxu0
        %v1889 = vadd.f32 %v1404, %v1888
        %1890 = vmatmul.bf16.gmra.mxu0 %v1587
        %v1891 = vpop.f32.mrf.mxu0
        %v1892 = vadd.f32 %v1404, %v1891
        %v1893 = vpop.f32.mrf.mxu0
        %v1894 = vadd.f32 %v1404, %v1893
        %1895 = vmatmul.bf16.gmra.mxu0 %v1590
        %v1896 = vpop.f32.mrf.mxu0
        %v1897 = vadd.f32 %v1404, %v1896
        %v1898 = vpop.f32.mrf.mxu0
        %v1899 = vadd.f32 %v1404, %v1898
        %1900 = vmatmul.bf16.gmra.mxu0 %v1593
        %v1901 = vpop.f32.mrf.mxu0
        %v1902 = vadd.f32 %v1404, %v1901
        %v1903 = vpop.f32.mrf.mxu0
        %v1904 = vadd.f32 %v1404, %v1903
        %1905 = vmatmul.bf16.gmra.mxu0 %v1596
        %v1906 = vpop.f32.mrf.mxu0
        %v1907 = vadd.f32 %v1404, %v1906
        %v1908 = vpop.f32.mrf.mxu0
        %v1909 = vadd.f32 %v1404, %v1908
        %1910 = vmatmul.bf16.gmra.mxu0 %v1599
        %v1911 = vpop.f32.mrf.mxu0
        %v1912 = vadd.f32 %v1404, %v1911
        %v1913 = vpop.f32.mrf.mxu0
        %v1914 = vadd.f32 %v1404, %v1913
        %1915 = vmatmul.bf16.gmra.mxu0 %v1602
        %v1916 = vpop.f32.mrf.mxu0
        %v1917 = vadd.f32 %v1404, %v1916
        %v1918 = vpop.f32.mrf.mxu0
        %v1919 = vadd.f32 %v1404, %v1918
        %1920 = vmatmul.bf16.gmra.mxu0 %v1605
        %v1921 = vpop.f32.mrf.mxu0
        %v1922 = vadd.f32 %v1404, %v1921
        %v1923 = vpop.f32.mrf.mxu0
        %v1924 = vadd.f32 %v1404, %v1923
        %1925 = vmatmul.bf16.gmra.mxu0 %v1608
        %v1926 = vpop.f32.mrf.mxu0
        %v1927 = vadd.f32 %v1404, %v1926
        %v1928 = vpop.f32.mrf.mxu0
        %v1929 = vadd.f32 %v1404, %v1928
        %1930 = vmatmul.bf16.gmra.mxu0 %v1611
        %v1931 = vpop.f32.mrf.mxu0
        %v1932 = vadd.f32 %v1404, %v1931
        %v1933 = vpop.f32.mrf.mxu0
        %v1934 = vadd.f32 %v1404, %v1933
        %1935 = vmatmul.bf16.gmra.mxu0 %v1614
        %v1936 = vpop.f32.mrf.mxu0
        %v1937 = vadd.f32 %v1404, %v1936
        %v1938 = vpop.f32.mrf.mxu0
        %v1939 = vadd.f32 %v1404, %v1938
        %1940 = vmatmul.bf16.gmra.mxu0 %v1617
        %v1941 = vpop.f32.mrf.mxu0
        %v1942 = vadd.f32 %v1404, %v1941
        %v1943 = vpop.f32.mrf.mxu0
        %v1944 = vadd.f32 %v1404, %v1943
        %1945 = vmatmul.bf16.gmra.mxu0 %v1620
        %v1946 = vpop.f32.mrf.mxu0
        %v1947 = vadd.f32 %v1404, %v1946
        %v1948 = vpop.f32.mrf.mxu0
        %v1949 = vadd.f32 %v1404, %v1948
        %1950 = vdwg.mxu0
        %v1951 = vmax.f32 %v1632, 0.0
        %v1952 = vmax.f32 %v1634, 0.0
        %v1953 = vmax.f32 %v1637, 0.0
        %v1954 = vmax.f32 %v1639, 0.0
        %v1955 = vmax.f32 %v1642, 0.0
        %v1956 = vmax.f32 %v1644, 0.0
        %v1957 = vmax.f32 %v1647, 0.0
        %v1958 = vmax.f32 %v1649, 0.0
        %v1959 = vmax.f32 %v1652, 0.0
        %v1960 = vmax.f32 %v1654, 0.0
        %v1961 = vmax.f32 %v1657, 0.0
        %v1962 = vmax.f32 %v1659, 0.0
        %v1963 = vmax.f32 %v1662, 0.0
        %v1964 = vmax.f32 %v1664, 0.0
        %v1965 = vmax.f32 %v1667, 0.0
        %v1966 = vmax.f32 %v1669, 0.0
        %v1967 = vmax.f32 %v1672, 0.0
        %v1968 = vmax.f32 %v1674, 0.0
        %v1969 = vmax.f32 %v1677, 0.0
        %v1970 = vmax.f32 %v1679, 0.0
        %v1971 = vmax.f32 %v1682, 0.0
        %v1972 = vmax.f32 %v1684, 0.0
        %v1973 = vmax.f32 %v1687, 0.0
        %v1974 = vmax.f32 %v1689, 0.0
        %v1975 = vmax.f32 %v1692, 0.0
        %v1976 = vmax.f32 %v1694, 0.0
        %v1977 = vmax.f32 %v1697, 0.0
        %v1978 = vmax.f32 %v1699, 0.0
        %v1979 = vmax.f32 %v1702, 0.0
        %v1980 = vmax.f32 %v1704, 0.0
        %v1981 = vmax.f32 %v1707, 0.0
        %v1982 = vmax.f32 %v1709, 0.0
        %v1983 = vmax.f32 %v1712, 0.0
        %v1984 = vmax.f32 %v1714, 0.0
        %v1985 = vmax.f32 %v1717, 0.0
        %v1986 = vmax.f32 %v1719, 0.0
        %v1987 = vmax.f32 %v1722, 0.0
        %v1988 = vmax.f32 %v1724, 0.0
        %v1989 = vmax.f32 %v1727, 0.0
        %v1990 = vmax.f32 %v1729, 0.0
        %v1991 = vmax.f32 %v1732, 0.0
        %v1992 = vmax.f32 %v1734, 0.0
        %v1993 = vmax.f32 %v1737, 0.0
        %v1994 = vmax.f32 %v1739, 0.0
        %v1995 = vmax.f32 %v1742, 0.0
        %v1996 = vmax.f32 %v1744, 0.0
        %v1997 = vmax.f32 %v1747, 0.0
        %v1998 = vmax.f32 %v1749, 0.0
        %v1999 = vmax.f32 %v1752, 0.0
        %v2000 = vmax.f32 %v1754, 0.0
        %v2001 = vmax.f32 %v1757, 0.0
        %v2002 = vmax.f32 %v1759, 0.0
        %v2003 = vmax.f32 %v1762, 0.0
        %v2004 = vmax.f32 %v1764, 0.0
        %v2005 = vmax.f32 %v1767, 0.0
        %v2006 = vmax.f32 %v1769, 0.0
        %v2007 = vmax.f32 %v1772, 0.0
        %v2008 = vmax.f32 %v1774, 0.0
        %v2009 = vmax.f32 %v1777, 0.0
        %v2010 = vmax.f32 %v1779, 0.0
        %v2011 = vmax.f32 %v1782, 0.0
        %v2012 = vmax.f32 %v1784, 0.0
        %v2013 = vmax.f32 %v1787, 0.0
        %v2014 = vmax.f32 %v1789, 0.0
        %v2015 = vmax.f32 %v1792, 0.0
        %v2016 = vmax.f32 %v1794, 0.0
        %v2017 = vmax.f32 %v1797, 0.0
        %v2018 = vmax.f32 %v1799, 0.0
        %v2019 = vmax.f32 %v1802, 0.0
        %v2020 = vmax.f32 %v1804, 0.0
        %v2021 = vmax.f32 %v1807, 0.0
        %v2022 = vmax.f32 %v1809, 0.0
        %v2023 = vmax.f32 %v1812, 0.0
        %v2024 = vmax.f32 %v1814, 0.0
        %v2025 = vmax.f32 %v1817, 0.0
        %v2026 = vmax.f32 %v1819, 0.0
        %v2027 = vmax.f32 %v1822, 0.0
        %v2028 = vmax.f32 %v1824, 0.0
        %v2029 = vmax.f32 %v1827, 0.0
        %v2030 = vmax.f32 %v1829, 0.0
        %v2031 = vmax.f32 %v1832, 0.0
        %v2032 = vmax.f32 %v1834, 0.0
        %v2033 = vmax.f32 %v1837, 0.0
        %v2034 = vmax.f32 %v1839, 0.0
        %v2035 = vmax.f32 %v1842, 0.0
        %v2036 = vmax.f32 %v1844, 0.0
        %v2037 = vmax.f32 %v1847, 0.0
        %v2038 = vmax.f32 %v1849, 0.0
        %v2039 = vmax.f32 %v1852, 0.0
        %v2040 = vmax.f32 %v1854, 0.0
        %v2041 = vmax.f32 %v1857, 0.0
        %v2042 = vmax.f32 %v1859, 0.0
        %v2043 = vmax.f32 %v1862, 0.0
        %v2044 = vmax.f32 %v1864, 0.0
        %v2045 = vmax.f32 %v1867, 0.0
        %v2046 = vmax.f32 %v1869, 0.0
        %v2047 = vmax.f32 %v1872, 0.0
        %v2048 = vmax.f32 %v1874, 0.0
        %v2049 = vmax.f32 %v1877, 0.0
        %v2050 = vmax.f32 %v1879, 0.0
        %v2051 = vmax.f32 %v1882, 0.0
        %v2052 = vmax.f32 %v1884, 0.0
        %v2053 = vmax.f32 %v1887, 0.0
        %v2054 = vmax.f32 %v1889, 0.0
        %v2055 = vmax.f32 %v1892, 0.0
        %v2056 = vmax.f32 %v1894, 0.0
        %v2057 = vmax.f32 %v1897, 0.0
        %v2058 = vmax.f32 %v1899, 0.0
        %v2059 = vmax.f32 %v1902, 0.0
        %v2060 = vmax.f32 %v1904, 0.0
        %v2061 = vmax.f32 %v1907, 0.0
        %v2062 = vmax.f32 %v1909, 0.0
        %v2063 = vmax.f32 %v1912, 0.0
        %v2064 = vmax.f32 %v1914, 0.0
        %v2065 = vmax.f32 %v1917, 0.0
        %v2066 = vmax.f32 %v1919, 0.0
        %v2067 = vmax.f32 %v1922, 0.0
        %v2068 = vmax.f32 %v1924, 0.0
        %v2069 = vmax.f32 %v1927, 0.0
        %v2070 = vmax.f32 %v1929, 0.0
        %v2071 = vmax.f32 %v1932, 0.0
        %v2072 = vmax.f32 %v1934, 0.0
        %v2073 = vmax.f32 %v1937, 0.0
        %v2074 = vmax.f32 %v1939, 0.0
        %v2075 = vmax.f32 %v1942, 0.0
        %v2076 = vmax.f32 %v1944, 0.0
        %v2077 = vmax.f32 %v1947, 0.0
        %v2078 = vmax.f32 %v1949, 0.0
        %v2079 = vpack.c.bf16 %v480, %v479
        %v2080 = vpack.c.bf16 %v482, %v481
        %v2081 = vpack.c.bf16 %v484, %v483
        %v2082 = vpack.c.bf16 %v486, %v485
        %v2083 = vpack.c.bf16 %v488, %v487
        %v2084 = vpack.c.bf16 %v490, %v489
        %v2085 = vpack.c.bf16 %v492, %v491
        %v2086 = vpack.c.bf16 %v494, %v493
        %v2087 = vpack.c.bf16 %v496, %v495
        %v2088 = vpack.c.bf16 %v498, %v497
        %v2089 = vpack.c.bf16 %v500, %v499
        %v2090 = vpack.c.bf16 %v502, %v501
        %v2091 = vpack.c.bf16 %v504, %v503
        %v2092 = vpack.c.bf16 %v506, %v505
        %v2093 = vpack.c.bf16 %v508, %v507
        %v2094 = vpack.c.bf16 %v510, %v509
        %v2095 = vpack.c.bf16 %v512, %v511
        %v2096 = vpack.c.bf16 %v514, %v513
        %v2097 = vpack.c.bf16 %v516, %v515
        %v2098 = vpack.c.bf16 %v518, %v517
        %v2099 = vpack.c.bf16 %v520, %v519
        %v2100 = vpack.c.bf16 %v522, %v521
        %v2101 = vpack.c.bf16 %v524, %v523
        %v2102 = vpack.c.bf16 %v526, %v525
        %v2103 = vpack.c.bf16 %v528, %v527
        %v2104 = vpack.c.bf16 %v530, %v529
        %v2105 = vpack.c.bf16 %v532, %v531
        %v2106 = vpack.c.bf16 %v534, %v533
        %v2107 = vpack.c.bf16 %v536, %v535
        %v2108 = vpack.c.bf16 %v538, %v537
        %v2109 = vpack.c.bf16 %v540, %v539
        %v2110 = vpack.c.bf16 %v542, %v541
        %v2111 = vpack.c.bf16 %v544, %v543
        %v2112 = vpack.c.bf16 %v546, %v545
        %v2113 = vpack.c.bf16 %v548, %v547
        %v2114 = vpack.c.bf16 %v550, %v549
        %v2115 = vpack.c.bf16 %v552, %v551
        %v2116 = vpack.c.bf16 %v554, %v553
        %v2117 = vpack.c.bf16 %v556, %v555
        %v2118 = vpack.c.bf16 %v558, %v557
        %v2119 = vpack.c.bf16 %v560, %v559
        %v2120 = vpack.c.bf16 %v562, %v561
        %v2121 = vpack.c.bf16 %v564, %v563
        %v2122 = vpack.c.bf16 %v566, %v565
        %v2123 = vpack.c.bf16 %v568, %v567
        %v2124 = vpack.c.bf16 %v570, %v569
        %v2125 = vpack.c.bf16 %v572, %v571
        %v2126 = vpack.c.bf16 %v574, %v573
        %v2127 = vpack.c.bf16 %v576, %v575
        %v2128 = vpack.c.bf16 %v578, %v577
        %v2129 = vpack.c.bf16 %v580, %v579
        %v2130 = vpack.c.bf16 %v582, %v581
        %v2131 = vpack.c.bf16 %v584, %v583
        %v2132 = vpack.c.bf16 %v586, %v585
        %v2133 = vpack.c.bf16 %v588, %v587
        %v2134 = vpack.c.bf16 %v590, %v589
        %v2135 = vpack.c.bf16 %v592, %v591
        %v2136 = vpack.c.bf16 %v594, %v593
        %v2137 = vpack.c.bf16 %v596, %v595
        %v2138 = vpack.c.bf16 %v598, %v597
        %v2139 = vpack.c.bf16 %v600, %v599
        %v2140 = vpack.c.bf16 %v602, %v601
        %v2141 = vpack.c.bf16 %v604, %v603
        %v2142 = vpack.c.bf16 %v606, %v605
        %s2143 = scalar_lea.vmem %s2, 2
        %v2144 = vld [vmem:[%s2143] sm:$0x3]
        %v2145 = vld [vmem:[%s4 + $0x2] sm:$0x1]
        %v2146 = vperm.slane %v2145, 0
        %v2148 = vsel %vm674, %v2079, 0
        %v2151 = vsel %vm674, %v2080, 0
        %v2154 = vsel %vm674, %v2081, 0
        %v2157 = vsel %vm674, %v2082, 0
        %v2160 = vsel %vm674, %v2083, 0
        %v2163 = vsel %vm674, %v2084, 0
        %v2166 = vsel %vm674, %v2085, 0
        %v2169 = vsel %vm674, %v2086, 0
        %v2172 = vsel %vm674, %v2087, 0
        %v2175 = vsel %vm674, %v2088, 0
        %v2178 = vsel %vm674, %v2089, 0
        %v2181 = vsel %vm674, %v2090, 0
        %v2184 = vsel %vm674, %v2091, 0
        %v2187 = vsel %vm674, %v2092, 0
        %v2190 = vsel %vm674, %v2093, 0
        %v2193 = vsel %vm674, %v2094, 0
        %v2196 = vsel %vm674, %v2095, 0
        %v2199 = vsel %vm674, %v2096, 0
        %v2202 = vsel %vm674, %v2097, 0
        %v2205 = vsel %vm674, %v2098, 0
        %v2208 = vsel %vm674, %v2099, 0
        %v2211 = vsel %vm674, %v2100, 0
        %v2214 = vsel %vm674, %v2101, 0
        %v2217 = vsel %vm674, %v2102, 0
        %v2220 = vsel %vm674, %v2103, 0
        %v2223 = vsel %vm674, %v2104, 0
        %v2226 = vsel %vm674, %v2105, 0
        %v2229 = vsel %vm674, %v2106, 0
        %v2232 = vsel %vm674, %v2107, 0
        %v2235 = vsel %vm674, %v2108, 0
        %v2238 = vsel %vm674, %v2109, 0
        %v2241 = vsel %vm674, %v2110, 0
        %v2244 = vsel %vm674, %v2111, 0
        %v2247 = vsel %vm674, %v2112, 0
        %v2250 = vsel %vm674, %v2113, 0
        %v2253 = vsel %vm674, %v2114, 0
        %v2256 = vsel %vm674, %v2115, 0
        %v2259 = vsel %vm674, %v2116, 0
        %v2262 = vsel %vm674, %v2117, 0
        %v2265 = vsel %vm674, %v2118, 0
        %v2268 = vsel %vm674, %v2119, 0
        %v2271 = vsel %vm674, %v2120, 0
        %v2274 = vsel %vm674, %v2121, 0
        %v2277 = vsel %vm674, %v2122, 0
        %v2280 = vsel %vm674, %v2123, 0
        %v2283 = vsel %vm674, %v2124, 0
        %v2286 = vsel %vm674, %v2125, 0
        %v2289 = vsel %vm674, %v2126, 0
        %v2292 = vsel %vm674, %v2127, 0
        %v2295 = vsel %vm674, %v2128, 0
        %v2298 = vsel %vm674, %v2129, 0
        %v2301 = vsel %vm674, %v2130, 0
        %v2304 = vsel %vm674, %v2131, 0
        %v2307 = vsel %vm674, %v2132, 0
        %v2310 = vsel %vm674, %v2133, 0
        %v2313 = vsel %vm674, %v2134, 0
        %v2316 = vsel %vm674, %v2135, 0
        %v2319 = vsel %vm674, %v2136, 0
        %v2322 = vsel %vm674, %v2137, 0
        %v2325 = vsel %vm674, %v2138, 0
        %v2328 = vsel %vm674, %v2139, 0
        %v2331 = vsel %vm674, %v2140, 0
        %v2334 = vsel %vm674, %v2141, 0
        %v2337 = vsel %vm674, %v2142, 0
        %v2340 = vand.u32 %v2144, %v870
        %2342 = vmatpush.bf16.msra.mxu0 0
        %2343 = vmatpush.bf16.msra.mxu0 0
        %2344 = vmatpush.bf16.msra.mxu0 0
        %2345 = vmatpush.bf16.msra.mxu0 0
        %2346 = vmatpush.bf16.msra.mxu0 0
        %2347 = vmatpush.bf16.msra.mxu0 0
        %2348 = vmatpush.bf16.msra.mxu0 0
        %2349 = vmatpush.bf16.msra.mxu0 %v2340
        %2350 = vmatmul.bf16.gmra.mxu0 %v2148
        %v2351 = vpop.f32.mrf.mxu0
        %v2352 = vadd.f32 %v2146, %v2351
        %v2353 = vpop.f32.mrf.mxu0
        %v2354 = vadd.f32 %v2146, %v2353
        %2355 = vmatmul.bf16.gmra.mxu0 %v2151
        %v2356 = vpop.f32.mrf.mxu0
        %v2357 = vadd.f32 %v2146, %v2356
        %v2358 = vpop.f32.mrf.mxu0
        %v2359 = vadd.f32 %v2146, %v2358
        %2360 = vmatmul.bf16.gmra.mxu0 %v2154
        %v2361 = vpop.f32.mrf.mxu0
        %v2362 = vadd.f32 %v2146, %v2361
        %v2363 = vpop.f32.mrf.mxu0
        %v2364 = vadd.f32 %v2146, %v2363
        %2365 = vmatmul.bf16.gmra.mxu0 %v2157
        %v2366 = vpop.f32.mrf.mxu0
        %v2367 = vadd.f32 %v2146, %v2366
        %v2368 = vpop.f32.mrf.mxu0
        %v2369 = vadd.f32 %v2146, %v2368
        %2370 = vmatmul.bf16.gmra.mxu0 %v2160
        %v2371 = vpop.f32.mrf.mxu0
        %v2372 = vadd.f32 %v2146, %v2371
        %v2373 = vpop.f32.mrf.mxu0
        %v2374 = vadd.f32 %v2146, %v2373
        %2375 = vmatmul.bf16.gmra.mxu0 %v2163
        %v2376 = vpop.f32.mrf.mxu0
        %v2377 = vadd.f32 %v2146, %v2376
        %v2378 = vpop.f32.mrf.mxu0
        %v2379 = vadd.f32 %v2146, %v2378
        %2380 = vmatmul.bf16.gmra.mxu0 %v2166
        %v2381 = vpop.f32.mrf.mxu0
        %v2382 = vadd.f32 %v2146, %v2381
        %v2383 = vpop.f32.mrf.mxu0
        %v2384 = vadd.f32 %v2146, %v2383
        %2385 = vmatmul.bf16.gmra.mxu0 %v2169
        %v2386 = vpop.f32.mrf.mxu0
        %v2387 = vadd.f32 %v2146, %v2386
        %v2388 = vpop.f32.mrf.mxu0
        %v2389 = vadd.f32 %v2146, %v2388
        %2390 = vmatmul.bf16.gmra.mxu0 %v2172
        %v2391 = vpop.f32.mrf.mxu0
        %v2392 = vadd.f32 %v2146, %v2391
        %v2393 = vpop.f32.mrf.mxu0
        %v2394 = vadd.f32 %v2146, %v2393
        %2395 = vmatmul.bf16.gmra.mxu0 %v2175
        %v2396 = vpop.f32.mrf.mxu0
        %v2397 = vadd.f32 %v2146, %v2396
        %v2398 = vpop.f32.mrf.mxu0
        %v2399 = vadd.f32 %v2146, %v2398
        %2400 = vmatmul.bf16.gmra.mxu0 %v2178
        %v2401 = vpop.f32.mrf.mxu0
        %v2402 = vadd.f32 %v2146, %v2401
        %v2403 = vpop.f32.mrf.mxu0
        %v2404 = vadd.f32 %v2146, %v2403
        %2405 = vmatmul.bf16.gmra.mxu0 %v2181
        %v2406 = vpop.f32.mrf.mxu0
        %v2407 = vadd.f32 %v2146, %v2406
        %v2408 = vpop.f32.mrf.mxu0
        %v2409 = vadd.f32 %v2146, %v2408
        %2410 = vmatmul.bf16.gmra.mxu0 %v2184
        %v2411 = vpop.f32.mrf.mxu0
        %v2412 = vadd.f32 %v2146, %v2411
        %v2413 = vpop.f32.mrf.mxu0
        %v2414 = vadd.f32 %v2146, %v2413
        %2415 = vmatmul.bf16.gmra.mxu0 %v2187
        %v2416 = vpop.f32.mrf.mxu0
        %v2417 = vadd.f32 %v2146, %v2416
        %v2418 = vpop.f32.mrf.mxu0
        %v2419 = vadd.f32 %v2146, %v2418
        %2420 = vmatmul.bf16.gmra.mxu0 %v2190
        %v2421 = vpop.f32.mrf.mxu0
        %v2422 = vadd.f32 %v2146, %v2421
        %v2423 = vpop.f32.mrf.mxu0
        %v2424 = vadd.f32 %v2146, %v2423
        %2425 = vmatmul.bf16.gmra.mxu0 %v2193
        %v2426 = vpop.f32.mrf.mxu0
        %v2427 = vadd.f32 %v2146, %v2426
        %v2428 = vpop.f32.mrf.mxu0
        %v2429 = vadd.f32 %v2146, %v2428
        %2430 = vmatmul.bf16.gmra.mxu0 %v2196
        %v2431 = vpop.f32.mrf.mxu0
        %v2432 = vadd.f32 %v2146, %v2431
        %v2433 = vpop.f32.mrf.mxu0
        %v2434 = vadd.f32 %v2146, %v2433
        %2435 = vmatmul.bf16.gmra.mxu0 %v2199
        %v2436 = vpop.f32.mrf.mxu0
        %v2437 = vadd.f32 %v2146, %v2436
        %v2438 = vpop.f32.mrf.mxu0
        %v2439 = vadd.f32 %v2146, %v2438
        %2440 = vmatmul.bf16.gmra.mxu0 %v2202
        %v2441 = vpop.f32.mrf.mxu0
        %v2442 = vadd.f32 %v2146, %v2441
        %v2443 = vpop.f32.mrf.mxu0
        %v2444 = vadd.f32 %v2146, %v2443
        %2445 = vmatmul.bf16.gmra.mxu0 %v2205
        %v2446 = vpop.f32.mrf.mxu0
        %v2447 = vadd.f32 %v2146, %v2446
        %v2448 = vpop.f32.mrf.mxu0
        %v2449 = vadd.f32 %v2146, %v2448
        %2450 = vmatmul.bf16.gmra.mxu0 %v2208
        %v2451 = vpop.f32.mrf.mxu0
        %v2452 = vadd.f32 %v2146, %v2451
        %v2453 = vpop.f32.mrf.mxu0
        %v2454 = vadd.f32 %v2146, %v2453
        %2455 = vmatmul.bf16.gmra.mxu0 %v2211
        %v2456 = vpop.f32.mrf.mxu0
        %v2457 = vadd.f32 %v2146, %v2456
        %v2458 = vpop.f32.mrf.mxu0
        %v2459 = vadd.f32 %v2146, %v2458
        %2460 = vmatmul.bf16.gmra.mxu0 %v2214
        %v2461 = vpop.f32.mrf.mxu0
        %v2462 = vadd.f32 %v2146, %v2461
        %v2463 = vpop.f32.mrf.mxu0
        %v2464 = vadd.f32 %v2146, %v2463
        %2465 = vmatmul.bf16.gmra.mxu0 %v2217
        %v2466 = vpop.f32.mrf.mxu0
        %v2467 = vadd.f32 %v2146, %v2466
        %v2468 = vpop.f32.mrf.mxu0
        %v2469 = vadd.f32 %v2146, %v2468
        %2470 = vmatmul.bf16.gmra.mxu0 %v2220
        %v2471 = vpop.f32.mrf.mxu0
        %v2472 = vadd.f32 %v2146, %v2471
        %v2473 = vpop.f32.mrf.mxu0
        %v2474 = vadd.f32 %v2146, %v2473
        %2475 = vmatmul.bf16.gmra.mxu0 %v2223
        %v2476 = vpop.f32.mrf.mxu0
        %v2477 = vadd.f32 %v2146, %v2476
        %v2478 = vpop.f32.mrf.mxu0
        %v2479 = vadd.f32 %v2146, %v2478
        %2480 = vmatmul.bf16.gmra.mxu0 %v2226
        %v2481 = vpop.f32.mrf.mxu0
        %v2482 = vadd.f32 %v2146, %v2481
        %v2483 = vpop.f32.mrf.mxu0
        %v2484 = vadd.f32 %v2146, %v2483
        %2485 = vmatmul.bf16.gmra.mxu0 %v2229
        %v2486 = vpop.f32.mrf.mxu0
        %v2487 = vadd.f32 %v2146, %v2486
        %v2488 = vpop.f32.mrf.mxu0
        %v2489 = vadd.f32 %v2146, %v2488
        %2490 = vmatmul.bf16.gmra.mxu0 %v2232
        %v2491 = vpop.f32.mrf.mxu0
        %v2492 = vadd.f32 %v2146, %v2491
        %v2493 = vpop.f32.mrf.mxu0
        %v2494 = vadd.f32 %v2146, %v2493
        %2495 = vmatmul.bf16.gmra.mxu0 %v2235
        %v2496 = vpop.f32.mrf.mxu0
        %v2497 = vadd.f32 %v2146, %v2496
        %v2498 = vpop.f32.mrf.mxu0
        %v2499 = vadd.f32 %v2146, %v2498
        %2500 = vmatmul.bf16.gmra.mxu0 %v2238
        %v2501 = vpop.f32.mrf.mxu0
        %v2502 = vadd.f32 %v2146, %v2501
        %v2503 = vpop.f32.mrf.mxu0
        %v2504 = vadd.f32 %v2146, %v2503
        %2505 = vmatmul.bf16.gmra.mxu0 %v2241
        %v2506 = vpop.f32.mrf.mxu0
        %v2507 = vadd.f32 %v2146, %v2506
        %v2508 = vpop.f32.mrf.mxu0
        %v2509 = vadd.f32 %v2146, %v2508
        %2510 = vmatmul.bf16.gmra.mxu0 %v2244
        %v2511 = vpop.f32.mrf.mxu0
        %v2512 = vadd.f32 %v2146, %v2511
        %v2513 = vpop.f32.mrf.mxu0
        %v2514 = vadd.f32 %v2146, %v2513
        %2515 = vmatmul.bf16.gmra.mxu0 %v2247
        %v2516 = vpop.f32.mrf.mxu0
        %v2517 = vadd.f32 %v2146, %v2516
        %v2518 = vpop.f32.mrf.mxu0
        %v2519 = vadd.f32 %v2146, %v2518
        %2520 = vmatmul.bf16.gmra.mxu0 %v2250
        %v2521 = vpop.f32.mrf.mxu0
        %v2522 = vadd.f32 %v2146, %v2521
        %v2523 = vpop.f32.mrf.mxu0
        %v2524 = vadd.f32 %v2146, %v2523
        %2525 = vmatmul.bf16.gmra.mxu0 %v2253
        %v2526 = vpop.f32.mrf.mxu0
        %v2527 = vadd.f32 %v2146, %v2526
        %v2528 = vpop.f32.mrf.mxu0
        %v2529 = vadd.f32 %v2146, %v2528
        %2530 = vmatmul.bf16.gmra.mxu0 %v2256
        %v2531 = vpop.f32.mrf.mxu0
        %v2532 = vadd.f32 %v2146, %v2531
        %v2533 = vpop.f32.mrf.mxu0
        %v2534 = vadd.f32 %v2146, %v2533
        %2535 = vmatmul.bf16.gmra.mxu0 %v2259
        %v2536 = vpop.f32.mrf.mxu0
        %v2537 = vadd.f32 %v2146, %v2536
        %v2538 = vpop.f32.mrf.mxu0
        %v2539 = vadd.f32 %v2146, %v2538
        %2540 = vmatmul.bf16.gmra.mxu0 %v2262
        %v2541 = vpop.f32.mrf.mxu0
        %v2542 = vadd.f32 %v2146, %v2541
        %v2543 = vpop.f32.mrf.mxu0
        %v2544 = vadd.f32 %v2146, %v2543
        %2545 = vmatmul.bf16.gmra.mxu0 %v2265
        %v2546 = vpop.f32.mrf.mxu0
        %v2547 = vadd.f32 %v2146, %v2546
        %v2548 = vpop.f32.mrf.mxu0
        %v2549 = vadd.f32 %v2146, %v2548
        %2550 = vmatmul.bf16.gmra.mxu0 %v2268
        %v2551 = vpop.f32.mrf.mxu0
        %v2552 = vadd.f32 %v2146, %v2551
        %v2553 = vpop.f32.mrf.mxu0
        %v2554 = vadd.f32 %v2146, %v2553
        %2555 = vmatmul.bf16.gmra.mxu0 %v2271
        %v2556 = vpop.f32.mrf.mxu0
        %v2557 = vadd.f32 %v2146, %v2556
        %v2558 = vpop.f32.mrf.mxu0
        %v2559 = vadd.f32 %v2146, %v2558
        %2560 = vmatmul.bf16.gmra.mxu0 %v2274
        %v2561 = vpop.f32.mrf.mxu0
        %v2562 = vadd.f32 %v2146, %v2561
        %v2563 = vpop.f32.mrf.mxu0
        %v2564 = vadd.f32 %v2146, %v2563
        %2565 = vmatmul.bf16.gmra.mxu0 %v2277
        %v2566 = vpop.f32.mrf.mxu0
        %v2567 = vadd.f32 %v2146, %v2566
        %v2568 = vpop.f32.mrf.mxu0
        %v2569 = vadd.f32 %v2146, %v2568
        %2570 = vmatmul.bf16.gmra.mxu0 %v2280
        %v2571 = vpop.f32.mrf.mxu0
        %v2572 = vadd.f32 %v2146, %v2571
        %v2573 = vpop.f32.mrf.mxu0
        %v2574 = vadd.f32 %v2146, %v2573
        %2575 = vmatmul.bf16.gmra.mxu0 %v2283
        %v2576 = vpop.f32.mrf.mxu0
        %v2577 = vadd.f32 %v2146, %v2576
        %v2578 = vpop.f32.mrf.mxu0
        %v2579 = vadd.f32 %v2146, %v2578
        %2580 = vmatmul.bf16.gmra.mxu0 %v2286
        %v2581 = vpop.f32.mrf.mxu0
        %v2582 = vadd.f32 %v2146, %v2581
        %v2583 = vpop.f32.mrf.mxu0
        %v2584 = vadd.f32 %v2146, %v2583
        %2585 = vmatmul.bf16.gmra.mxu0 %v2289
        %v2586 = vpop.f32.mrf.mxu0
        %v2587 = vadd.f32 %v2146, %v2586
        %v2588 = vpop.f32.mrf.mxu0
        %v2589 = vadd.f32 %v2146, %v2588
        %2590 = vmatmul.bf16.gmra.mxu0 %v2292
        %v2591 = vpop.f32.mrf.mxu0
        %v2592 = vadd.f32 %v2146, %v2591
        %v2593 = vpop.f32.mrf.mxu0
        %v2594 = vadd.f32 %v2146, %v2593
        %2595 = vmatmul.bf16.gmra.mxu0 %v2295
        %v2596 = vpop.f32.mrf.mxu0
        %v2597 = vadd.f32 %v2146, %v2596
        %v2598 = vpop.f32.mrf.mxu0
        %v2599 = vadd.f32 %v2146, %v2598
        %2600 = vmatmul.bf16.gmra.mxu0 %v2298
        %v2601 = vpop.f32.mrf.mxu0
        %v2602 = vadd.f32 %v2146, %v2601
        %v2603 = vpop.f32.mrf.mxu0
        %v2604 = vadd.f32 %v2146, %v2603
        %2605 = vmatmul.bf16.gmra.mxu0 %v2301
        %v2606 = vpop.f32.mrf.mxu0
        %v2607 = vadd.f32 %v2146, %v2606
        %v2608 = vpop.f32.mrf.mxu0
        %v2609 = vadd.f32 %v2146, %v2608
        %2610 = vmatmul.bf16.gmra.mxu0 %v2304
        %v2611 = vpop.f32.mrf.mxu0
        %v2612 = vadd.f32 %v2146, %v2611
        %v2613 = vpop.f32.mrf.mxu0
        %v2614 = vadd.f32 %v2146, %v2613
        %2615 = vmatmul.bf16.gmra.mxu0 %v2307
        %v2616 = vpop.f32.mrf.mxu0
        %v2617 = vadd.f32 %v2146, %v2616
        %v2618 = vpop.f32.mrf.mxu0
        %v2619 = vadd.f32 %v2146, %v2618
        %2620 = vmatmul.bf16.gmra.mxu0 %v2310
        %v2621 = vpop.f32.mrf.mxu0
        %v2622 = vadd.f32 %v2146, %v2621
        %v2623 = vpop.f32.mrf.mxu0
        %v2624 = vadd.f32 %v2146, %v2623
        %2625 = vmatmul.bf16.gmra.mxu0 %v2313
        %v2626 = vpop.f32.mrf.mxu0
        %v2627 = vadd.f32 %v2146, %v2626
        %v2628 = vpop.f32.mrf.mxu0
        %v2629 = vadd.f32 %v2146, %v2628
        %2630 = vmatmul.bf16.gmra.mxu0 %v2316
        %v2631 = vpop.f32.mrf.mxu0
        %v2632 = vadd.f32 %v2146, %v2631
        %v2633 = vpop.f32.mrf.mxu0
        %v2634 = vadd.f32 %v2146, %v2633
        %2635 = vmatmul.bf16.gmra.mxu0 %v2319
        %v2636 = vpop.f32.mrf.mxu0
        %v2637 = vadd.f32 %v2146, %v2636
        %v2638 = vpop.f32.mrf.mxu0
        %v2639 = vadd.f32 %v2146, %v2638
        %2640 = vmatmul.bf16.gmra.mxu0 %v2322
        %v2641 = vpop.f32.mrf.mxu0
        %v2642 = vadd.f32 %v2146, %v2641
        %v2643 = vpop.f32.mrf.mxu0
        %v2644 = vadd.f32 %v2146, %v2643
        %2645 = vmatmul.bf16.gmra.mxu0 %v2325
        %v2646 = vpop.f32.mrf.mxu0
        %v2647 = vadd.f32 %v2146, %v2646
        %v2648 = vpop.f32.mrf.mxu0
        %v2649 = vadd.f32 %v2146, %v2648
        %2650 = vmatmul.bf16.gmra.mxu0 %v2328
        %v2651 = vpop.f32.mrf.mxu0
        %v2652 = vadd.f32 %v2146, %v2651
        %v2653 = vpop.f32.mrf.mxu0
        %v2654 = vadd.f32 %v2146, %v2653
        %2655 = vmatmul.bf16.gmra.mxu0 %v2331
        %v2656 = vpop.f32.mrf.mxu0
        %v2657 = vadd.f32 %v2146, %v2656
        %v2658 = vpop.f32.mrf.mxu0
        %v2659 = vadd.f32 %v2146, %v2658
        %2660 = vmatmul.bf16.gmra.mxu0 %v2334
        %v2661 = vpop.f32.mrf.mxu0
        %v2662 = vadd.f32 %v2146, %v2661
        %v2663 = vpop.f32.mrf.mxu0
        %v2664 = vadd.f32 %v2146, %v2663
        %2665 = vmatmul.bf16.gmra.mxu0 %v2337
        %v2666 = vpop.f32.mrf.mxu0
        %v2667 = vadd.f32 %v2146, %v2666
        %v2668 = vpop.f32.mrf.mxu0
        %v2669 = vadd.f32 %v2146, %v2668
        %2670 = vdwg.mxu0
        %v2671 = vmax.f32 %v2352, 0.0
        %v2672 = vmax.f32 %v2354, 0.0
        %v2673 = vmax.f32 %v2357, 0.0
        %v2674 = vmax.f32 %v2359, 0.0
        %v2675 = vmax.f32 %v2362, 0.0
        %v2676 = vmax.f32 %v2364, 0.0
        %v2677 = vmax.f32 %v2367, 0.0
        %v2678 = vmax.f32 %v2369, 0.0
        %v2679 = vmax.f32 %v2372, 0.0
        %v2680 = vmax.f32 %v2374, 0.0
        %v2681 = vmax.f32 %v2377, 0.0
        %v2682 = vmax.f32 %v2379, 0.0
        %v2683 = vmax.f32 %v2382, 0.0
        %v2684 = vmax.f32 %v2384, 0.0
        %v2685 = vmax.f32 %v2387, 0.0
        %v2686 = vmax.f32 %v2389, 0.0
        %v2687 = vmax.f32 %v2392, 0.0
        %v2688 = vmax.f32 %v2394, 0.0
        %v2689 = vmax.f32 %v2397, 0.0
        %v2690 = vmax.f32 %v2399, 0.0
        %v2691 = vmax.f32 %v2402, 0.0
        %v2692 = vmax.f32 %v2404, 0.0
        %v2693 = vmax.f32 %v2407, 0.0
        %v2694 = vmax.f32 %v2409, 0.0
        %v2695 = vmax.f32 %v2412, 0.0
        %v2696 = vmax.f32 %v2414, 0.0
        %v2697 = vmax.f32 %v2417, 0.0
        %v2698 = vmax.f32 %v2419, 0.0
        %v2699 = vmax.f32 %v2422, 0.0
        %v2700 = vmax.f32 %v2424, 0.0
        %v2701 = vmax.f32 %v2427, 0.0
        %v2702 = vmax.f32 %v2429, 0.0
        %v2703 = vmax.f32 %v2432, 0.0
        %v2704 = vmax.f32 %v2434, 0.0
        %v2705 = vmax.f32 %v2437, 0.0
        %v2706 = vmax.f32 %v2439, 0.0
        %v2707 = vmax.f32 %v2442, 0.0
        %v2708 = vmax.f32 %v2444, 0.0
        %v2709 = vmax.f32 %v2447, 0.0
        %v2710 = vmax.f32 %v2449, 0.0
        %v2711 = vmax.f32 %v2452, 0.0
        %v2712 = vmax.f32 %v2454, 0.0
        %v2713 = vmax.f32 %v2457, 0.0
        %v2714 = vmax.f32 %v2459, 0.0
        %v2715 = vmax.f32 %v2462, 0.0
        %v2716 = vmax.f32 %v2464, 0.0
        %v2717 = vmax.f32 %v2467, 0.0
        %v2718 = vmax.f32 %v2469, 0.0
        %v2719 = vmax.f32 %v2472, 0.0
        %v2720 = vmax.f32 %v2474, 0.0
        %v2721 = vmax.f32 %v2477, 0.0
        %v2722 = vmax.f32 %v2479, 0.0
        %v2723 = vmax.f32 %v2482, 0.0
        %v2724 = vmax.f32 %v2484, 0.0
        %v2725 = vmax.f32 %v2487, 0.0
        %v2726 = vmax.f32 %v2489, 0.0
        %v2727 = vmax.f32 %v2492, 0.0
        %v2728 = vmax.f32 %v2494, 0.0
        %v2729 = vmax.f32 %v2497, 0.0
        %v2730 = vmax.f32 %v2499, 0.0
        %v2731 = vmax.f32 %v2502, 0.0
        %v2732 = vmax.f32 %v2504, 0.0
        %v2733 = vmax.f32 %v2507, 0.0
        %v2734 = vmax.f32 %v2509, 0.0
        %v2735 = vmax.f32 %v2512, 0.0
        %v2736 = vmax.f32 %v2514, 0.0
        %v2737 = vmax.f32 %v2517, 0.0
        %v2738 = vmax.f32 %v2519, 0.0
        %v2739 = vmax.f32 %v2522, 0.0
        %v2740 = vmax.f32 %v2524, 0.0
        %v2741 = vmax.f32 %v2527, 0.0
        %v2742 = vmax.f32 %v2529, 0.0
        %v2743 = vmax.f32 %v2532, 0.0
        %v2744 = vmax.f32 %v2534, 0.0
        %v2745 = vmax.f32 %v2537, 0.0
        %v2746 = vmax.f32 %v2539, 0.0
        %v2747 = vmax.f32 %v2542, 0.0
        %v2748 = vmax.f32 %v2544, 0.0
        %v2749 = vmax.f32 %v2547, 0.0
        %v2750 = vmax.f32 %v2549, 0.0
        %v2751 = vmax.f32 %v2552, 0.0
        %v2752 = vmax.f32 %v2554, 0.0
        %v2753 = vmax.f32 %v2557, 0.0
        %v2754 = vmax.f32 %v2559, 0.0
        %v2755 = vmax.f32 %v2562, 0.0
        %v2756 = vmax.f32 %v2564, 0.0
        %v2757 = vmax.f32 %v2567, 0.0
        %v2758 = vmax.f32 %v2569, 0.0
        %v2759 = vmax.f32 %v2572, 0.0
        %v2760 = vmax.f32 %v2574, 0.0
        %v2761 = vmax.f32 %v2577, 0.0
        %v2762 = vmax.f32 %v2579, 0.0
        %v2763 = vmax.f32 %v2582, 0.0
        %v2764 = vmax.f32 %v2584, 0.0
        %v2765 = vmax.f32 %v2587, 0.0
        %v2766 = vmax.f32 %v2589, 0.0
        %v2767 = vmax.f32 %v2592, 0.0
        %v2768 = vmax.f32 %v2594, 0.0
        %v2769 = vmax.f32 %v2597, 0.0
        %v2770 = vmax.f32 %v2599, 0.0
        %v2771 = vmax.f32 %v2602, 0.0
        %v2772 = vmax.f32 %v2604, 0.0
        %v2773 = vmax.f32 %v2607, 0.0
        %v2774 = vmax.f32 %v2609, 0.0
        %v2775 = vmax.f32 %v2612, 0.0
        %v2776 = vmax.f32 %v2614, 0.0
        %v2777 = vmax.f32 %v2617, 0.0
        %v2778 = vmax.f32 %v2619, 0.0
        %v2779 = vmax.f32 %v2622, 0.0
        %v2780 = vmax.f32 %v2624, 0.0
        %v2781 = vmax.f32 %v2627, 0.0
        %v2782 = vmax.f32 %v2629, 0.0
        %v2783 = vmax.f32 %v2632, 0.0
        %v2784 = vmax.f32 %v2634, 0.0
        %v2785 = vmax.f32 %v2637, 0.0
        %v2786 = vmax.f32 %v2639, 0.0
        %v2787 = vmax.f32 %v2642, 0.0
        %v2788 = vmax.f32 %v2644, 0.0
        %v2789 = vmax.f32 %v2647, 0.0
        %v2790 = vmax.f32 %v2649, 0.0
        %v2791 = vmax.f32 %v2652, 0.0
        %v2792 = vmax.f32 %v2654, 0.0
        %v2793 = vmax.f32 %v2657, 0.0
        %v2794 = vmax.f32 %v2659, 0.0
        %v2795 = vmax.f32 %v2662, 0.0
        %v2796 = vmax.f32 %v2664, 0.0
        %v2797 = vmax.f32 %v2667, 0.0
        %v2798 = vmax.f32 %v2669, 0.0
        %v2799 = vpack.c.bf16 %v2672, %v2671
        %v2800 = vpack.c.bf16 %v2674, %v2673
        %v2801 = vpack.c.bf16 %v2676, %v2675
        %v2802 = vpack.c.bf16 %v2678, %v2677
        %v2803 = vpack.c.bf16 %v2680, %v2679
        %v2804 = vpack.c.bf16 %v2682, %v2681
        %v2805 = vpack.c.bf16 %v2684, %v2683
        %v2806 = vpack.c.bf16 %v2686, %v2685
        %v2807 = vpack.c.bf16 %v2688, %v2687
        %v2808 = vpack.c.bf16 %v2690, %v2689
        %v2809 = vpack.c.bf16 %v2692, %v2691
        %v2810 = vpack.c.bf16 %v2694, %v2693
        %v2811 = vpack.c.bf16 %v2696, %v2695
        %v2812 = vpack.c.bf16 %v2698, %v2697
        %v2813 = vpack.c.bf16 %v2700, %v2699
        %v2814 = vpack.c.bf16 %v2702, %v2701
        %v2815 = vpack.c.bf16 %v2704, %v2703
        %v2816 = vpack.c.bf16 %v2706, %v2705
        %v2817 = vpack.c.bf16 %v2708, %v2707
        %v2818 = vpack.c.bf16 %v2710, %v2709
        %v2819 = vpack.c.bf16 %v2712, %v2711
        %v2820 = vpack.c.bf16 %v2714, %v2713
        %v2821 = vpack.c.bf16 %v2716, %v2715
        %v2822 = vpack.c.bf16 %v2718, %v2717
        %v2823 = vpack.c.bf16 %v2720, %v2719
        %v2824 = vpack.c.bf16 %v2722, %v2721
        %v2825 = vpack.c.bf16 %v2724, %v2723
        %v2826 = vpack.c.bf16 %v2726, %v2725
        %v2827 = vpack.c.bf16 %v2728, %v2727
        %v2828 = vpack.c.bf16 %v2730, %v2729
        %v2829 = vpack.c.bf16 %v2732, %v2731
        %v2830 = vpack.c.bf16 %v2734, %v2733
        %v2831 = vpack.c.bf16 %v2736, %v2735
        %v2832 = vpack.c.bf16 %v2738, %v2737
        %v2833 = vpack.c.bf16 %v2740, %v2739
        %v2834 = vpack.c.bf16 %v2742, %v2741
        %v2835 = vpack.c.bf16 %v2744, %v2743
        %v2836 = vpack.c.bf16 %v2746, %v2745
        %v2837 = vpack.c.bf16 %v2748, %v2747
        %v2838 = vpack.c.bf16 %v2750, %v2749
        %v2839 = vpack.c.bf16 %v2752, %v2751
        %v2840 = vpack.c.bf16 %v2754, %v2753
        %v2841 = vpack.c.bf16 %v2756, %v2755
        %v2842 = vpack.c.bf16 %v2758, %v2757
        %v2843 = vpack.c.bf16 %v2760, %v2759
        %v2844 = vpack.c.bf16 %v2762, %v2761
        %v2845 = vpack.c.bf16 %v2764, %v2763
        %v2846 = vpack.c.bf16 %v2766, %v2765
        %v2847 = vpack.c.bf16 %v2768, %v2767
        %v2848 = vpack.c.bf16 %v2770, %v2769
        %v2849 = vpack.c.bf16 %v2772, %v2771
        %v2850 = vpack.c.bf16 %v2774, %v2773
        %v2851 = vpack.c.bf16 %v2776, %v2775
        %v2852 = vpack.c.bf16 %v2778, %v2777
        %v2853 = vpack.c.bf16 %v2780, %v2779
        %v2854 = vpack.c.bf16 %v2782, %v2781
        %v2855 = vpack.c.bf16 %v2784, %v2783
        %v2856 = vpack.c.bf16 %v2786, %v2785
        %v2857 = vpack.c.bf16 %v2788, %v2787
        %v2858 = vpack.c.bf16 %v2790, %v2789
        %v2859 = vpack.c.bf16 %v2792, %v2791
        %v2860 = vpack.c.bf16 %v2794, %v2793
        %v2861 = vpack.c.bf16 %v2796, %v2795
        %v2862 = vpack.c.bf16 %v2798, %v2797
        %s2863 = scalar_lea.vmem %s3, 32
        %v2864 = vld [vmem:[%s2863] sm:$0xf]
        %v2865 = vld [vmem:[%s2863 + $0x4] sm:$0xf]
        %v2866 = vld [vmem:[%s2863 + $0x8] sm:$0xf]
        %v2867 = vld [vmem:[%s2863 + $0xc] sm:$0xf]
        %v2868 = vld [vmem:[%s2863 + $0x10] sm:$0xf]
        %v2869 = vld [vmem:[%s2863 + $0x14] sm:$0xf]
        %v2870 = vld [vmem:[%s2863 + $0x18] sm:$0xf]
        %v2871 = vld [vmem:[%s2863 + $0x1c] sm:$0xf]
        %v2872 = vld [vmem:[%s4 + $0x3] sm:$0x1]
        %v2873 = vperm.slane %v2872, 0
        %v2882 = vunpack.c.l.b16 %v2864
        %v2883 = vunpack.c.l.b16 %v2865
        %v2884 = vunpack.c.l.b16 %v2866
        %v2885 = vunpack.c.l.b16 %v2867
        %v2886 = vunpack.c.l.b16 %v2868
        %v2887 = vunpack.c.l.b16 %v2869
        %v2888 = vunpack.c.l.b16 %v2870
        %v2889 = vunpack.c.l.b16 %v2871
        %v2890 = vpack.c.b16 %v2883, %v2882
        %v2891 = vpack.c.b16 %v2885, %v2884
        %v2892 = vpack.c.b16 %v2887, %v2886
        %v2893 = vpack.c.b16 %v2889, %v2888
        %v2899 = vsel %vm1429, %v2799, 0
        %v2902 = vsel %vm1429, %v2800, 0
        %v2905 = vsel %vm1429, %v2801, 0
        %v2908 = vsel %vm1429, %v2802, 0
        %v2911 = vsel %vm1429, %v2803, 0
        %v2914 = vsel %vm1429, %v2804, 0
        %v2917 = vsel %vm1429, %v2805, 0
        %v2920 = vsel %vm1429, %v2806, 0
        %v2923 = vsel %vm1429, %v2807, 0
        %v2926 = vsel %vm1429, %v2808, 0
        %v2929 = vsel %vm1429, %v2809, 0
        %v2932 = vsel %vm1429, %v2810, 0
        %v2935 = vsel %vm1429, %v2811, 0
        %v2938 = vsel %vm1429, %v2812, 0
        %v2941 = vsel %vm1429, %v2813, 0
        %v2944 = vsel %vm1429, %v2814, 0
        %v2947 = vsel %vm1429, %v2815, 0
        %v2950 = vsel %vm1429, %v2816, 0
        %v2953 = vsel %vm1429, %v2817, 0
        %v2956 = vsel %vm1429, %v2818, 0
        %v2959 = vsel %vm1429, %v2819, 0
        %v2962 = vsel %vm1429, %v2820, 0
        %v2965 = vsel %vm1429, %v2821, 0
        %v2968 = vsel %vm1429, %v2822, 0
        %v2971 = vsel %vm1429, %v2823, 0
        %v2974 = vsel %vm1429, %v2824, 0
        %v2977 = vsel %vm1429, %v2825, 0
        %v2980 = vsel %vm1429, %v2826, 0
        %v2983 = vsel %vm1429, %v2827, 0
        %v2986 = vsel %vm1429, %v2828, 0
        %v2989 = vsel %vm1429, %v2829, 0
        %v2992 = vsel %vm1429, %v2830, 0
        %v2995 = vsel %vm1429, %v2831, 0
        %v2998 = vsel %vm1429, %v2832, 0
        %v3001 = vsel %vm1429, %v2833, 0
        %v3004 = vsel %vm1429, %v2834, 0
        %v3007 = vsel %vm1429, %v2835, 0
        %v3010 = vsel %vm1429, %v2836, 0
        %v3013 = vsel %vm1429, %v2837, 0
        %v3016 = vsel %vm1429, %v2838, 0
        %v3019 = vsel %vm1429, %v2839, 0
        %v3022 = vsel %vm1429, %v2840, 0
        %v3025 = vsel %vm1429, %v2841, 0
        %v3028 = vsel %vm1429, %v2842, 0
        %v3031 = vsel %vm1429, %v2843, 0
        %v3034 = vsel %vm1429, %v2844, 0
        %v3037 = vsel %vm1429, %v2845, 0
        %v3040 = vsel %vm1429, %v2846, 0
        %v3043 = vsel %vm1429, %v2847, 0
        %v3046 = vsel %vm1429, %v2848, 0
        %v3049 = vsel %vm1429, %v2849, 0
        %v3052 = vsel %vm1429, %v2850, 0
        %v3055 = vsel %vm1429, %v2851, 0
        %v3058 = vsel %vm1429, %v2852, 0
        %v3061 = vsel %vm1429, %v2853, 0
        %v3064 = vsel %vm1429, %v2854, 0
        %v3067 = vsel %vm1429, %v2855, 0
        %v3070 = vsel %vm1429, %v2856, 0
        %v3073 = vsel %vm1429, %v2857, 0
        %v3076 = vsel %vm1429, %v2858, 0
        %v3079 = vsel %vm1429, %v2859, 0
        %v3082 = vsel %vm1429, %v2860, 0
        %v3085 = vsel %vm1429, %v2861, 0
        %v3088 = vsel %vm1429, %v2862, 0
        %3090 = vmatpush.bf16.msra.mxu0 0
        %3091 = vmatpush.bf16.msra.mxu0 0
        %3092 = vmatpush.bf16.msra.mxu0 0
        %3093 = vmatpush.bf16.msra.mxu0 0
        %3094 = vmatpush.bf16.msra.mxu0 %v2893
        %3095 = vmatpush.bf16.msra.mxu0 %v2892
        %3096 = vmatpush.bf16.msra.mxu0 %v2891
        %3097 = vmatpush.bf16.msra.mxu0 %v2890
        %3098 = vmatmul.bf16.gmra.mxu0 %v2899
        %v3099 = vpop.f32.mrf.mxu0
        %v3100 = vadd.f32 %v2873, %v3099
        %v3101 = vpop.f32.mrf.mxu0
        %v3102 = vadd.f32 %v2873, %v3101
        %3103 = vmatmul.bf16.gmra.mxu0 %v2902
        %v3104 = vpop.f32.mrf.mxu0
        %v3105 = vadd.f32 %v2873, %v3104
        %v3106 = vpop.f32.mrf.mxu0
        %v3107 = vadd.f32 %v2873, %v3106
        %3108 = vmatmul.bf16.gmra.mxu0 %v2905
        %v3109 = vpop.f32.mrf.mxu0
        %v3110 = vadd.f32 %v2873, %v3109
        %v3111 = vpop.f32.mrf.mxu0
        %v3112 = vadd.f32 %v2873, %v3111
        %3113 = vmatmul.bf16.gmra.mxu0 %v2908
        %v3114 = vpop.f32.mrf.mxu0
        %v3115 = vadd.f32 %v2873, %v3114
        %v3116 = vpop.f32.mrf.mxu0
        %v3117 = vadd.f32 %v2873, %v3116
        %3118 = vmatmul.bf16.gmra.mxu0 %v2911
        %v3119 = vpop.f32.mrf.mxu0
        %v3120 = vadd.f32 %v2873, %v3119
        %v3121 = vpop.f32.mrf.mxu0
        %v3122 = vadd.f32 %v2873, %v3121
        %3123 = vmatmul.bf16.gmra.mxu0 %v2914
        %v3124 = vpop.f32.mrf.mxu0
        %v3125 = vadd.f32 %v2873, %v3124
        %v3126 = vpop.f32.mrf.mxu0
        %v3127 = vadd.f32 %v2873, %v3126
        %3128 = vmatmul.bf16.gmra.mxu0 %v2917
        %v3129 = vpop.f32.mrf.mxu0
        %v3130 = vadd.f32 %v2873, %v3129
        %v3131 = vpop.f32.mrf.mxu0
        %v3132 = vadd.f32 %v2873, %v3131
        %3133 = vmatmul.bf16.gmra.mxu0 %v2920
        %v3134 = vpop.f32.mrf.mxu0
        %v3135 = vadd.f32 %v2873, %v3134
        %v3136 = vpop.f32.mrf.mxu0
        %v3137 = vadd.f32 %v2873, %v3136
        %3138 = vmatmul.bf16.gmra.mxu0 %v2923
        %v3139 = vpop.f32.mrf.mxu0
        %v3140 = vadd.f32 %v2873, %v3139
        %v3141 = vpop.f32.mrf.mxu0
        %v3142 = vadd.f32 %v2873, %v3141
        %3143 = vmatmul.bf16.gmra.mxu0 %v2926
        %v3144 = vpop.f32.mrf.mxu0
        %v3145 = vadd.f32 %v2873, %v3144
        %v3146 = vpop.f32.mrf.mxu0
        %v3147 = vadd.f32 %v2873, %v3146
        %3148 = vmatmul.bf16.gmra.mxu0 %v2929
        %v3149 = vpop.f32.mrf.mxu0
        %v3150 = vadd.f32 %v2873, %v3149
        %v3151 = vpop.f32.mrf.mxu0
        %v3152 = vadd.f32 %v2873, %v3151
        %3153 = vmatmul.bf16.gmra.mxu0 %v2932
        %v3154 = vpop.f32.mrf.mxu0
        %v3155 = vadd.f32 %v2873, %v3154
        %v3156 = vpop.f32.mrf.mxu0
        %v3157 = vadd.f32 %v2873, %v3156
        %3158 = vmatmul.bf16.gmra.mxu0 %v2935
        %v3159 = vpop.f32.mrf.mxu0
        %v3160 = vadd.f32 %v2873, %v3159
        %v3161 = vpop.f32.mrf.mxu0
        %v3162 = vadd.f32 %v2873, %v3161
        %3163 = vmatmul.bf16.gmra.mxu0 %v2938
        %v3164 = vpop.f32.mrf.mxu0
        %v3165 = vadd.f32 %v2873, %v3164
        %v3166 = vpop.f32.mrf.mxu0
        %v3167 = vadd.f32 %v2873, %v3166
        %3168 = vmatmul.bf16.gmra.mxu0 %v2941
        %v3169 = vpop.f32.mrf.mxu0
        %v3170 = vadd.f32 %v2873, %v3169
        %v3171 = vpop.f32.mrf.mxu0
        %v3172 = vadd.f32 %v2873, %v3171
        %3173 = vmatmul.bf16.gmra.mxu0 %v2944
        %v3174 = vpop.f32.mrf.mxu0
        %v3175 = vadd.f32 %v2873, %v3174
        %v3176 = vpop.f32.mrf.mxu0
        %v3177 = vadd.f32 %v2873, %v3176
        %3178 = vmatmul.bf16.gmra.mxu0 %v2947
        %v3179 = vpop.f32.mrf.mxu0
        %v3180 = vadd.f32 %v2873, %v3179
        %v3181 = vpop.f32.mrf.mxu0
        %v3182 = vadd.f32 %v2873, %v3181
        %3183 = vmatmul.bf16.gmra.mxu0 %v2950
        %v3184 = vpop.f32.mrf.mxu0
        %v3185 = vadd.f32 %v2873, %v3184
        %v3186 = vpop.f32.mrf.mxu0
        %v3187 = vadd.f32 %v2873, %v3186
        %3188 = vmatmul.bf16.gmra.mxu0 %v2953
        %v3189 = vpop.f32.mrf.mxu0
        %v3190 = vadd.f32 %v2873, %v3189
        %v3191 = vpop.f32.mrf.mxu0
        %v3192 = vadd.f32 %v2873, %v3191
        %3193 = vmatmul.bf16.gmra.mxu0 %v2956
        %v3194 = vpop.f32.mrf.mxu0
        %v3195 = vadd.f32 %v2873, %v3194
        %v3196 = vpop.f32.mrf.mxu0
        %v3197 = vadd.f32 %v2873, %v3196
        %3198 = vmatmul.bf16.gmra.mxu0 %v2959
        %v3199 = vpop.f32.mrf.mxu0
        %v3200 = vadd.f32 %v2873, %v3199
        %v3201 = vpop.f32.mrf.mxu0
        %v3202 = vadd.f32 %v2873, %v3201
        %3203 = vmatmul.bf16.gmra.mxu0 %v2962
        %v3204 = vpop.f32.mrf.mxu0
        %v3205 = vadd.f32 %v2873, %v3204
        %v3206 = vpop.f32.mrf.mxu0
        %v3207 = vadd.f32 %v2873, %v3206
        %3208 = vmatmul.bf16.gmra.mxu0 %v2965
        %v3209 = vpop.f32.mrf.mxu0
        %v3210 = vadd.f32 %v2873, %v3209
        %v3211 = vpop.f32.mrf.mxu0
        %v3212 = vadd.f32 %v2873, %v3211
        %3213 = vmatmul.bf16.gmra.mxu0 %v2968
        %v3214 = vpop.f32.mrf.mxu0
        %v3215 = vadd.f32 %v2873, %v3214
        %v3216 = vpop.f32.mrf.mxu0
        %v3217 = vadd.f32 %v2873, %v3216
        %3218 = vmatmul.bf16.gmra.mxu0 %v2971
        %v3219 = vpop.f32.mrf.mxu0
        %v3220 = vadd.f32 %v2873, %v3219
        %v3221 = vpop.f32.mrf.mxu0
        %v3222 = vadd.f32 %v2873, %v3221
        %3223 = vmatmul.bf16.gmra.mxu0 %v2974
        %v3224 = vpop.f32.mrf.mxu0
        %v3225 = vadd.f32 %v2873, %v3224
        %v3226 = vpop.f32.mrf.mxu0
        %v3227 = vadd.f32 %v2873, %v3226
        %3228 = vmatmul.bf16.gmra.mxu0 %v2977
        %v3229 = vpop.f32.mrf.mxu0
        %v3230 = vadd.f32 %v2873, %v3229
        %v3231 = vpop.f32.mrf.mxu0
        %v3232 = vadd.f32 %v2873, %v3231
        %3233 = vmatmul.bf16.gmra.mxu0 %v2980
        %v3234 = vpop.f32.mrf.mxu0
        %v3235 = vadd.f32 %v2873, %v3234
        %v3236 = vpop.f32.mrf.mxu0
        %v3237 = vadd.f32 %v2873, %v3236
        %3238 = vmatmul.bf16.gmra.mxu0 %v2983
        %v3239 = vpop.f32.mrf.mxu0
        %v3240 = vadd.f32 %v2873, %v3239
        %v3241 = vpop.f32.mrf.mxu0
        %v3242 = vadd.f32 %v2873, %v3241
        %3243 = vmatmul.bf16.gmra.mxu0 %v2986
        %v3244 = vpop.f32.mrf.mxu0
        %v3245 = vadd.f32 %v2873, %v3244
        %v3246 = vpop.f32.mrf.mxu0
        %v3247 = vadd.f32 %v2873, %v3246
        %3248 = vmatmul.bf16.gmra.mxu0 %v2989
        %v3249 = vpop.f32.mrf.mxu0
        %v3250 = vadd.f32 %v2873, %v3249
        %v3251 = vpop.f32.mrf.mxu0
        %v3252 = vadd.f32 %v2873, %v3251
        %3253 = vmatmul.bf16.gmra.mxu0 %v2992
        %v3254 = vpop.f32.mrf.mxu0
        %v3255 = vadd.f32 %v2873, %v3254
        %v3256 = vpop.f32.mrf.mxu0
        %v3257 = vadd.f32 %v2873, %v3256
        %3258 = vmatmul.bf16.gmra.mxu0 %v2995
        %v3259 = vpop.f32.mrf.mxu0
        %v3260 = vadd.f32 %v2873, %v3259
        %v3261 = vpop.f32.mrf.mxu0
        %v3262 = vadd.f32 %v2873, %v3261
        %3263 = vmatmul.bf16.gmra.mxu0 %v2998
        %v3264 = vpop.f32.mrf.mxu0
        %v3265 = vadd.f32 %v2873, %v3264
        %v3266 = vpop.f32.mrf.mxu0
        %v3267 = vadd.f32 %v2873, %v3266
        %3268 = vmatmul.bf16.gmra.mxu0 %v3001
        %v3269 = vpop.f32.mrf.mxu0
        %v3270 = vadd.f32 %v2873, %v3269
        %v3271 = vpop.f32.mrf.mxu0
        %v3272 = vadd.f32 %v2873, %v3271
        %3273 = vmatmul.bf16.gmra.mxu0 %v3004
        %v3274 = vpop.f32.mrf.mxu0
        %v3275 = vadd.f32 %v2873, %v3274
        %v3276 = vpop.f32.mrf.mxu0
        %v3277 = vadd.f32 %v2873, %v3276
        %3278 = vmatmul.bf16.gmra.mxu0 %v3007
        %v3279 = vpop.f32.mrf.mxu0
        %v3280 = vadd.f32 %v2873, %v3279
        %v3281 = vpop.f32.mrf.mxu0
        %v3282 = vadd.f32 %v2873, %v3281
        %3283 = vmatmul.bf16.gmra.mxu0 %v3010
        %v3284 = vpop.f32.mrf.mxu0
        %v3285 = vadd.f32 %v2873, %v3284
        %v3286 = vpop.f32.mrf.mxu0
        %v3287 = vadd.f32 %v2873, %v3286
        %3288 = vmatmul.bf16.gmra.mxu0 %v3013
        %v3289 = vpop.f32.mrf.mxu0
        %v3290 = vadd.f32 %v2873, %v3289
        %v3291 = vpop.f32.mrf.mxu0
        %v3292 = vadd.f32 %v2873, %v3291
        %3293 = vmatmul.bf16.gmra.mxu0 %v3016
        %v3294 = vpop.f32.mrf.mxu0
        %v3295 = vadd.f32 %v2873, %v3294
        %v3296 = vpop.f32.mrf.mxu0
        %v3297 = vadd.f32 %v2873, %v3296
        %3298 = vmatmul.bf16.gmra.mxu0 %v3019
        %v3299 = vpop.f32.mrf.mxu0
        %v3300 = vadd.f32 %v2873, %v3299
        %v3301 = vpop.f32.mrf.mxu0
        %v3302 = vadd.f32 %v2873, %v3301
        %3303 = vmatmul.bf16.gmra.mxu0 %v3022
        %v3304 = vpop.f32.mrf.mxu0
        %v3305 = vadd.f32 %v2873, %v3304
        %v3306 = vpop.f32.mrf.mxu0
        %v3307 = vadd.f32 %v2873, %v3306
        %3308 = vmatmul.bf16.gmra.mxu0 %v3025
        %v3309 = vpop.f32.mrf.mxu0
        %v3310 = vadd.f32 %v2873, %v3309
        %v3311 = vpop.f32.mrf.mxu0
        %v3312 = vadd.f32 %v2873, %v3311
        %3313 = vmatmul.bf16.gmra.mxu0 %v3028
        %v3314 = vpop.f32.mrf.mxu0
        %v3315 = vadd.f32 %v2873, %v3314
        %v3316 = vpop.f32.mrf.mxu0
        %v3317 = vadd.f32 %v2873, %v3316
        %3318 = vmatmul.bf16.gmra.mxu0 %v3031
        %v3319 = vpop.f32.mrf.mxu0
        %v3320 = vadd.f32 %v2873, %v3319
        %v3321 = vpop.f32.mrf.mxu0
        %v3322 = vadd.f32 %v2873, %v3321
        %3323 = vmatmul.bf16.gmra.mxu0 %v3034
        %v3324 = vpop.f32.mrf.mxu0
        %v3325 = vadd.f32 %v2873, %v3324
        %v3326 = vpop.f32.mrf.mxu0
        %v3327 = vadd.f32 %v2873, %v3326
        %3328 = vmatmul.bf16.gmra.mxu0 %v3037
        %v3329 = vpop.f32.mrf.mxu0
        %v3330 = vadd.f32 %v2873, %v3329
        %v3331 = vpop.f32.mrf.mxu0
        %v3332 = vadd.f32 %v2873, %v3331
        %3333 = vmatmul.bf16.gmra.mxu0 %v3040
        %v3334 = vpop.f32.mrf.mxu0
        %v3335 = vadd.f32 %v2873, %v3334
        %v3336 = vpop.f32.mrf.mxu0
        %v3337 = vadd.f32 %v2873, %v3336
        %3338 = vmatmul.bf16.gmra.mxu0 %v3043
        %v3339 = vpop.f32.mrf.mxu0
        %v3340 = vadd.f32 %v2873, %v3339
        %v3341 = vpop.f32.mrf.mxu0
        %v3342 = vadd.f32 %v2873, %v3341
        %3343 = vmatmul.bf16.gmra.mxu0 %v3046
        %v3344 = vpop.f32.mrf.mxu0
        %v3345 = vadd.f32 %v2873, %v3344
        %v3346 = vpop.f32.mrf.mxu0
        %v3347 = vadd.f32 %v2873, %v3346
        %3348 = vmatmul.bf16.gmra.mxu0 %v3049
        %v3349 = vpop.f32.mrf.mxu0
        %v3350 = vadd.f32 %v2873, %v3349
        %v3351 = vpop.f32.mrf.mxu0
        %v3352 = vadd.f32 %v2873, %v3351
        %3353 = vmatmul.bf16.gmra.mxu0 %v3052
        %v3354 = vpop.f32.mrf.mxu0
        %v3355 = vadd.f32 %v2873, %v3354
        %v3356 = vpop.f32.mrf.mxu0
        %v3357 = vadd.f32 %v2873, %v3356
        %3358 = vmatmul.bf16.gmra.mxu0 %v3055
        %v3359 = vpop.f32.mrf.mxu0
        %v3360 = vadd.f32 %v2873, %v3359
        %v3361 = vpop.f32.mrf.mxu0
        %v3362 = vadd.f32 %v2873, %v3361
        %3363 = vmatmul.bf16.gmra.mxu0 %v3058
        %v3364 = vpop.f32.mrf.mxu0
        %v3365 = vadd.f32 %v2873, %v3364
        %v3366 = vpop.f32.mrf.mxu0
        %v3367 = vadd.f32 %v2873, %v3366
        %3368 = vmatmul.bf16.gmra.mxu0 %v3061
        %v3369 = vpop.f32.mrf.mxu0
        %v3370 = vadd.f32 %v2873, %v3369
        %v3371 = vpop.f32.mrf.mxu0
        %v3372 = vadd.f32 %v2873, %v3371
        %3373 = vmatmul.bf16.gmra.mxu0 %v3064
        %v3374 = vpop.f32.mrf.mxu0
        %v3375 = vadd.f32 %v2873, %v3374
        %v3376 = vpop.f32.mrf.mxu0
        %v3377 = vadd.f32 %v2873, %v3376
        %3378 = vmatmul.bf16.gmra.mxu0 %v3067
        %v3379 = vpop.f32.mrf.mxu0
        %v3380 = vadd.f32 %v2873, %v3379
        %v3381 = vpop.f32.mrf.mxu0
        %v3382 = vadd.f32 %v2873, %v3381
        %3383 = vmatmul.bf16.gmra.mxu0 %v3070
        %v3384 = vpop.f32.mrf.mxu0
        %v3385 = vadd.f32 %v2873, %v3384
        %v3386 = vpop.f32.mrf.mxu0
        %v3387 = vadd.f32 %v2873, %v3386
        %3388 = vmatmul.bf16.gmra.mxu0 %v3073
        %v3389 = vpop.f32.mrf.mxu0
        %v3390 = vadd.f32 %v2873, %v3389
        %v3391 = vpop.f32.mrf.mxu0
        %v3392 = vadd.f32 %v2873, %v3391
        %3393 = vmatmul.bf16.gmra.mxu0 %v3076
        %v3394 = vpop.f32.mrf.mxu0
        %v3395 = vadd.f32 %v2873, %v3394
        %v3396 = vpop.f32.mrf.mxu0
        %v3397 = vadd.f32 %v2873, %v3396
        %3398 = vmatmul.bf16.gmra.mxu0 %v3079
        %v3399 = vpop.f32.mrf.mxu0
        %v3400 = vadd.f32 %v2873, %v3399
        %v3401 = vpop.f32.mrf.mxu0
        %v3402 = vadd.f32 %v2873, %v3401
        %3403 = vmatmul.bf16.gmra.mxu0 %v3082
        %v3404 = vpop.f32.mrf.mxu0
        %v3405 = vadd.f32 %v2873, %v3404
        %v3406 = vpop.f32.mrf.mxu0
        %v3407 = vadd.f32 %v2873, %v3406
        %3408 = vmatmul.bf16.gmra.mxu0 %v3085
        %v3409 = vpop.f32.mrf.mxu0
        %v3410 = vadd.f32 %v2873, %v3409
        %v3411 = vpop.f32.mrf.mxu0
        %v3412 = vadd.f32 %v2873, %v3411
        %3413 = vmatmul.bf16.gmra.mxu0 %v3088
        %v3414 = vpop.f32.mrf.mxu0
        %v3415 = vadd.f32 %v2873, %v3414
        %v3416 = vpop.f32.mrf.mxu0
        %v3417 = vadd.f32 %v2873, %v3416
        %3418 = vdwg.mxu0
        %v3419 = vmax.f32 %v3100, 0.0
        %v3420 = vmax.f32 %v3102, 0.0
        %v3421 = vmax.f32 %v3105, 0.0
        %v3422 = vmax.f32 %v3107, 0.0
        %v3423 = vmax.f32 %v3110, 0.0
        %v3424 = vmax.f32 %v3112, 0.0
        %v3425 = vmax.f32 %v3115, 0.0
        %v3426 = vmax.f32 %v3117, 0.0
        %v3427 = vmax.f32 %v3120, 0.0
        %v3428 = vmax.f32 %v3122, 0.0
        %v3429 = vmax.f32 %v3125, 0.0
        %v3430 = vmax.f32 %v3127, 0.0
        %v3431 = vmax.f32 %v3130, 0.0
        %v3432 = vmax.f32 %v3132, 0.0
        %v3433 = vmax.f32 %v3135, 0.0
        %v3434 = vmax.f32 %v3137, 0.0
        %v3435 = vmax.f32 %v3140, 0.0
        %v3436 = vmax.f32 %v3142, 0.0
        %v3437 = vmax.f32 %v3145, 0.0
        %v3438 = vmax.f32 %v3147, 0.0
        %v3439 = vmax.f32 %v3150, 0.0
        %v3440 = vmax.f32 %v3152, 0.0
        %v3441 = vmax.f32 %v3155, 0.0
        %v3442 = vmax.f32 %v3157, 0.0
        %v3443 = vmax.f32 %v3160, 0.0
        %v3444 = vmax.f32 %v3162, 0.0
        %v3445 = vmax.f32 %v3165, 0.0
        %v3446 = vmax.f32 %v3167, 0.0
        %v3447 = vmax.f32 %v3170, 0.0
        %v3448 = vmax.f32 %v3172, 0.0
        %v3449 = vmax.f32 %v3175, 0.0
        %v3450 = vmax.f32 %v3177, 0.0
        %v3451 = vmax.f32 %v3180, 0.0
        %v3452 = vmax.f32 %v3182, 0.0
        %v3453 = vmax.f32 %v3185, 0.0
        %v3454 = vmax.f32 %v3187, 0.0
        %v3455 = vmax.f32 %v3190, 0.0
        %v3456 = vmax.f32 %v3192, 0.0
        %v3457 = vmax.f32 %v3195, 0.0
        %v3458 = vmax.f32 %v3197, 0.0
        %v3459 = vmax.f32 %v3200, 0.0
        %v3460 = vmax.f32 %v3202, 0.0
        %v3461 = vmax.f32 %v3205, 0.0
        %v3462 = vmax.f32 %v3207, 0.0
        %v3463 = vmax.f32 %v3210, 0.0
        %v3464 = vmax.f32 %v3212, 0.0
        %v3465 = vmax.f32 %v3215, 0.0
        %v3466 = vmax.f32 %v3217, 0.0
        %v3467 = vmax.f32 %v3220, 0.0
        %v3468 = vmax.f32 %v3222, 0.0
        %v3469 = vmax.f32 %v3225, 0.0
        %v3470 = vmax.f32 %v3227, 0.0
        %v3471 = vmax.f32 %v3230, 0.0
        %v3472 = vmax.f32 %v3232, 0.0
        %v3473 = vmax.f32 %v3235, 0.0
        %v3474 = vmax.f32 %v3237, 0.0
        %v3475 = vmax.f32 %v3240, 0.0
        %v3476 = vmax.f32 %v3242, 0.0
        %v3477 = vmax.f32 %v3245, 0.0
        %v3478 = vmax.f32 %v3247, 0.0
        %v3479 = vmax.f32 %v3250, 0.0
        %v3480 = vmax.f32 %v3252, 0.0
        %v3481 = vmax.f32 %v3255, 0.0
        %v3482 = vmax.f32 %v3257, 0.0
        %v3483 = vmax.f32 %v3260, 0.0
        %v3484 = vmax.f32 %v3262, 0.0
        %v3485 = vmax.f32 %v3265, 0.0
        %v3486 = vmax.f32 %v3267, 0.0
        %v3487 = vmax.f32 %v3270, 0.0
        %v3488 = vmax.f32 %v3272, 0.0
        %v3489 = vmax.f32 %v3275, 0.0
        %v3490 = vmax.f32 %v3277, 0.0
        %v3491 = vmax.f32 %v3280, 0.0
        %v3492 = vmax.f32 %v3282, 0.0
        %v3493 = vmax.f32 %v3285, 0.0
        %v3494 = vmax.f32 %v3287, 0.0
        %v3495 = vmax.f32 %v3290, 0.0
        %v3496 = vmax.f32 %v3292, 0.0
        %v3497 = vmax.f32 %v3295, 0.0
        %v3498 = vmax.f32 %v3297, 0.0
        %v3499 = vmax.f32 %v3300, 0.0
        %v3500 = vmax.f32 %v3302, 0.0
        %v3501 = vmax.f32 %v3305, 0.0
        %v3502 = vmax.f32 %v3307, 0.0
        %v3503 = vmax.f32 %v3310, 0.0
        %v3504 = vmax.f32 %v3312, 0.0
        %v3505 = vmax.f32 %v3315, 0.0
        %v3506 = vmax.f32 %v3317, 0.0
        %v3507 = vmax.f32 %v3320, 0.0
        %v3508 = vmax.f32 %v3322, 0.0
        %v3509 = vmax.f32 %v3325, 0.0
        %v3510 = vmax.f32 %v3327, 0.0
        %v3511 = vmax.f32 %v3330, 0.0
        %v3512 = vmax.f32 %v3332, 0.0
        %v3513 = vmax.f32 %v3335, 0.0
        %v3514 = vmax.f32 %v3337, 0.0
        %v3515 = vmax.f32 %v3340, 0.0
        %v3516 = vmax.f32 %v3342, 0.0
        %v3517 = vmax.f32 %v3345, 0.0
        %v3518 = vmax.f32 %v3347, 0.0
        %v3519 = vmax.f32 %v3350, 0.0
        %v3520 = vmax.f32 %v3352, 0.0
        %v3521 = vmax.f32 %v3355, 0.0
        %v3522 = vmax.f32 %v3357, 0.0
        %v3523 = vmax.f32 %v3360, 0.0
        %v3524 = vmax.f32 %v3362, 0.0
        %v3525 = vmax.f32 %v3365, 0.0
        %v3526 = vmax.f32 %v3367, 0.0
        %v3527 = vmax.f32 %v3370, 0.0
        %v3528 = vmax.f32 %v3372, 0.0
        %v3529 = vmax.f32 %v3375, 0.0
        %v3530 = vmax.f32 %v3377, 0.0
        %v3531 = vmax.f32 %v3380, 0.0
        %v3532 = vmax.f32 %v3382, 0.0
        %v3533 = vmax.f32 %v3385, 0.0
        %v3534 = vmax.f32 %v3387, 0.0
        %v3535 = vmax.f32 %v3390, 0.0
        %v3536 = vmax.f32 %v3392, 0.0
        %v3537 = vmax.f32 %v3395, 0.0
        %v3538 = vmax.f32 %v3397, 0.0
        %v3539 = vmax.f32 %v3400, 0.0
        %v3540 = vmax.f32 %v3402, 0.0
        %v3541 = vmax.f32 %v3405, 0.0
        %v3542 = vmax.f32 %v3407, 0.0
        %v3543 = vmax.f32 %v3410, 0.0
        %v3544 = vmax.f32 %v3412, 0.0
        %v3545 = vmax.f32 %v3415, 0.0
        %v3546 = vmax.f32 %v3417, 0.0
        %v3547 = vadd.f32 %v1951, %v3419
        %v3548 = vadd.f32 %v1952, %v3420
        %v3549 = vadd.f32 %v1953, %v3421
        %v3550 = vadd.f32 %v1954, %v3422
        %v3551 = vadd.f32 %v1955, %v3423
        %v3552 = vadd.f32 %v1956, %v3424
        %v3553 = vadd.f32 %v1957, %v3425
        %v3554 = vadd.f32 %v1958, %v3426
        %v3555 = vadd.f32 %v1959, %v3427
        %v3556 = vadd.f32 %v1960, %v3428
        %v3557 = vadd.f32 %v1961, %v3429
        %v3558 = vadd.f32 %v1962, %v3430
        %v3559 = vadd.f32 %v1963, %v3431
        %v3560 = vadd.f32 %v1964, %v3432
        %v3561 = vadd.f32 %v1965, %v3433
        %v3562 = vadd.f32 %v1966, %v3434
        %v3563 = vadd.f32 %v1967, %v3435
        %v3564 = vadd.f32 %v1968, %v3436
        %v3565 = vadd.f32 %v1969, %v3437
        %v3566 = vadd.f32 %v1970, %v3438
        %v3567 = vadd.f32 %v1971, %v3439
        %v3568 = vadd.f32 %v1972, %v3440
        %v3569 = vadd.f32 %v1973, %v3441
        %v3570 = vadd.f32 %v1974, %v3442
        %v3571 = vadd.f32 %v1975, %v3443
        %v3572 = vadd.f32 %v1976, %v3444
        %v3573 = vadd.f32 %v1977, %v3445
        %v3574 = vadd.f32 %v1978, %v3446
        %v3575 = vadd.f32 %v1979, %v3447
        %v3576 = vadd.f32 %v1980, %v3448
        %v3577 = vadd.f32 %v1981, %v3449
        %v3578 = vadd.f32 %v1982, %v3450
        %v3579 = vadd.f32 %v1983, %v3451
        %v3580 = vadd.f32 %v1984, %v3452
        %v3581 = vadd.f32 %v1985, %v3453
        %v3582 = vadd.f32 %v1986, %v3454
        %v3583 = vadd.f32 %v1987, %v3455
        %v3584 = vadd.f32 %v1988, %v3456
        %v3585 = vadd.f32 %v1989, %v3457
        %v3586 = vadd.f32 %v1990, %v3458
        %v3587 = vadd.f32 %v1991, %v3459
        %v3588 = vadd.f32 %v1992, %v3460
        %v3589 = vadd.f32 %v1993, %v3461
        %v3590 = vadd.f32 %v1994, %v3462
        %v3591 = vadd.f32 %v1995, %v3463
        %v3592 = vadd.f32 %v1996, %v3464
        %v3593 = vadd.f32 %v1997, %v3465
        %v3594 = vadd.f32 %v1998, %v3466
        %v3595 = vadd.f32 %v1999, %v3467
        %v3596 = vadd.f32 %v2000, %v3468
        %v3597 = vadd.f32 %v2001, %v3469
        %v3598 = vadd.f32 %v2002, %v3470
        %v3599 = vadd.f32 %v2003, %v3471
        %v3600 = vadd.f32 %v2004, %v3472
        %v3601 = vadd.f32 %v2005, %v3473
        %v3602 = vadd.f32 %v2006, %v3474
        %v3603 = vadd.f32 %v2007, %v3475
        %v3604 = vadd.f32 %v2008, %v3476
        %v3605 = vadd.f32 %v2009, %v3477
        %v3606 = vadd.f32 %v2010, %v3478
        %v3607 = vadd.f32 %v2011, %v3479
        %v3608 = vadd.f32 %v2012, %v3480
        %v3609 = vadd.f32 %v2013, %v3481
        %v3610 = vadd.f32 %v2014, %v3482
        %v3611 = vadd.f32 %v2015, %v3483
        %v3612 = vadd.f32 %v2016, %v3484
        %v3613 = vadd.f32 %v2017, %v3485
        %v3614 = vadd.f32 %v2018, %v3486
        %v3615 = vadd.f32 %v2019, %v3487
        %v3616 = vadd.f32 %v2020, %v3488
        %v3617 = vadd.f32 %v2021, %v3489
        %v3618 = vadd.f32 %v2022, %v3490
        %v3619 = vadd.f32 %v2023, %v3491
        %v3620 = vadd.f32 %v2024, %v3492
        %v3621 = vadd.f32 %v2025, %v3493
        %v3622 = vadd.f32 %v2026, %v3494
        %v3623 = vadd.f32 %v2027, %v3495
        %v3624 = vadd.f32 %v2028, %v3496
        %v3625 = vadd.f32 %v2029, %v3497
        %v3626 = vadd.f32 %v2030, %v3498
        %v3627 = vadd.f32 %v2031, %v3499
        %v3628 = vadd.f32 %v2032, %v3500
        %v3629 = vadd.f32 %v2033, %v3501
        %v3630 = vadd.f32 %v2034, %v3502
        %v3631 = vadd.f32 %v2035, %v3503
        %v3632 = vadd.f32 %v2036, %v3504
        %v3633 = vadd.f32 %v2037, %v3505
        %v3634 = vadd.f32 %v2038, %v3506
        %v3635 = vadd.f32 %v2039, %v3507
        %v3636 = vadd.f32 %v2040, %v3508
        %v3637 = vadd.f32 %v2041, %v3509
        %v3638 = vadd.f32 %v2042, %v3510
        %v3639 = vadd.f32 %v2043, %v3511
        %v3640 = vadd.f32 %v2044, %v3512
        %v3641 = vadd.f32 %v2045, %v3513
        %v3642 = vadd.f32 %v2046, %v3514
        %v3643 = vadd.f32 %v2047, %v3515
        %v3644 = vadd.f32 %v2048, %v3516
        %v3645 = vadd.f32 %v2049, %v3517
        %v3646 = vadd.f32 %v2050, %v3518
        %v3647 = vadd.f32 %v2051, %v3519
        %v3648 = vadd.f32 %v2052, %v3520
        %v3649 = vadd.f32 %v2053, %v3521
        %v3650 = vadd.f32 %v2054, %v3522
        %v3651 = vadd.f32 %v2055, %v3523
        %v3652 = vadd.f32 %v2056, %v3524
        %v3653 = vadd.f32 %v2057, %v3525
        %v3654 = vadd.f32 %v2058, %v3526
        %v3655 = vadd.f32 %v2059, %v3527
        %v3656 = vadd.f32 %v2060, %v3528
        %v3657 = vadd.f32 %v2061, %v3529
        %v3658 = vadd.f32 %v2062, %v3530
        %v3659 = vadd.f32 %v2063, %v3531
        %v3660 = vadd.f32 %v2064, %v3532
        %v3661 = vadd.f32 %v2065, %v3533
        %v3662 = vadd.f32 %v2066, %v3534
        %v3663 = vadd.f32 %v2067, %v3535
        %v3664 = vadd.f32 %v2068, %v3536
        %v3665 = vadd.f32 %v2069, %v3537
        %v3666 = vadd.f32 %v2070, %v3538
        %v3667 = vadd.f32 %v2071, %v3539
        %v3668 = vadd.f32 %v2072, %v3540
        %v3669 = vadd.f32 %v2073, %v3541
        %v3670 = vadd.f32 %v2074, %v3542
        %v3671 = vadd.f32 %v2075, %v3543
        %v3672 = vadd.f32 %v2076, %v3544
        %v3673 = vadd.f32 %v2077, %v3545
        %v3674 = vadd.f32 %v2078, %v3546
        %v3675 = vpack.c.bf16 %v3548, %v3547
        %v3676 = vpack.c.bf16 %v3550, %v3549
        %v3677 = vpack.c.bf16 %v3552, %v3551
        %v3678 = vpack.c.bf16 %v3554, %v3553
        %v3679 = vpack.c.bf16 %v3556, %v3555
        %v3680 = vpack.c.bf16 %v3558, %v3557
        %v3681 = vpack.c.bf16 %v3560, %v3559
        %v3682 = vpack.c.bf16 %v3562, %v3561
        %v3683 = vpack.c.bf16 %v3564, %v3563
        %v3684 = vpack.c.bf16 %v3566, %v3565
        %v3685 = vpack.c.bf16 %v3568, %v3567
        %v3686 = vpack.c.bf16 %v3570, %v3569
        %v3687 = vpack.c.bf16 %v3572, %v3571
        %v3688 = vpack.c.bf16 %v3574, %v3573
        %v3689 = vpack.c.bf16 %v3576, %v3575
        %v3690 = vpack.c.bf16 %v3578, %v3577
        %v3691 = vpack.c.bf16 %v3580, %v3579
        %v3692 = vpack.c.bf16 %v3582, %v3581
        %v3693 = vpack.c.bf16 %v3584, %v3583
        %v3694 = vpack.c.bf16 %v3586, %v3585
        %v3695 = vpack.c.bf16 %v3588, %v3587
        %v3696 = vpack.c.bf16 %v3590, %v3589
        %v3697 = vpack.c.bf16 %v3592, %v3591
        %v3698 = vpack.c.bf16 %v3594, %v3593
        %v3699 = vpack.c.bf16 %v3596, %v3595
        %v3700 = vpack.c.bf16 %v3598, %v3597
        %v3701 = vpack.c.bf16 %v3600, %v3599
        %v3702 = vpack.c.bf16 %v3602, %v3601
        %v3703 = vpack.c.bf16 %v3604, %v3603
        %v3704 = vpack.c.bf16 %v3606, %v3605
        %v3705 = vpack.c.bf16 %v3608, %v3607
        %v3706 = vpack.c.bf16 %v3610, %v3609
        %v3707 = vpack.c.bf16 %v3612, %v3611
        %v3708 = vpack.c.bf16 %v3614, %v3613
        %v3709 = vpack.c.bf16 %v3616, %v3615
        %v3710 = vpack.c.bf16 %v3618, %v3617
        %v3711 = vpack.c.bf16 %v3620, %v3619
        %v3712 = vpack.c.bf16 %v3622, %v3621
        %v3713 = vpack.c.bf16 %v3624, %v3623
        %v3714 = vpack.c.bf16 %v3626, %v3625
        %v3715 = vpack.c.bf16 %v3628, %v3627
        %v3716 = vpack.c.bf16 %v3630, %v3629
        %v3717 = vpack.c.bf16 %v3632, %v3631
        %v3718 = vpack.c.bf16 %v3634, %v3633
        %v3719 = vpack.c.bf16 %v3636, %v3635
        %v3720 = vpack.c.bf16 %v3638, %v3637
        %v3721 = vpack.c.bf16 %v3640, %v3639
        %v3722 = vpack.c.bf16 %v3642, %v3641
        %v3723 = vpack.c.bf16 %v3644, %v3643
        %v3724 = vpack.c.bf16 %v3646, %v3645
        %v3725 = vpack.c.bf16 %v3648, %v3647
        %v3726 = vpack.c.bf16 %v3650, %v3649
        %v3727 = vpack.c.bf16 %v3652, %v3651
        %v3728 = vpack.c.bf16 %v3654, %v3653
        %v3729 = vpack.c.bf16 %v3656, %v3655
        %v3730 = vpack.c.bf16 %v3658, %v3657
        %v3731 = vpack.c.bf16 %v3660, %v3659
        %v3732 = vpack.c.bf16 %v3662, %v3661
        %v3733 = vpack.c.bf16 %v3664, %v3663
        %v3734 = vpack.c.bf16 %v3666, %v3665
        %v3735 = vpack.c.bf16 %v3668, %v3667
        %v3736 = vpack.c.bf16 %v3670, %v3669
        %v3737 = vpack.c.bf16 %v3672, %v3671
        %v3738 = vpack.c.bf16 %v3674, %v3673
        %v3739 = vld [vmem:[%s5] sm:$0xff]
        %v3740 = vld [vmem:[%s5 + $0x8] sm:$0xff]
        %v3741 = vld [vmem:[%s5 + $0x10] sm:$0xff]
        %v3742 = vld [vmem:[%s5 + $0x18] sm:$0xff]
        %v3743 = vld [vmem:[%s5 + $0x20] sm:$0xff]
        %v3744 = vld [vmem:[%s5 + $0x28] sm:$0xff]
        %v3745 = vld [vmem:[%s5 + $0x30] sm:$0xff]
        %v3746 = vld [vmem:[%s5 + $0x38] sm:$0xff]
        %v3755 = vunpack.c.l.b16 %v3739
        %v3756 = vunpack.c.h.b16 %v3739
        %v3757 = vunpack.c.l.b16 %v3740
        %v3758 = vunpack.c.h.b16 %v3740
        %v3759 = vunpack.c.l.b16 %v3741
        %v3760 = vunpack.c.h.b16 %v3741
        %v3761 = vunpack.c.l.b16 %v3742
        %v3762 = vunpack.c.h.b16 %v3742
        %v3763 = vunpack.c.l.b16 %v3743
        %v3764 = vunpack.c.h.b16 %v3743
        %v3765 = vunpack.c.l.b16 %v3744
        %v3766 = vunpack.c.h.b16 %v3744
        %v3767 = vunpack.c.l.b16 %v3745
        %v3768 = vunpack.c.h.b16 %v3745
        %v3769 = vunpack.c.l.b16 %v3746
        %v3770 = vunpack.c.h.b16 %v3746
        %v3771 = vpack.c.b16 %v3757, %v3755
        %v3772 = vpack.c.b16 %v3758, %v3756
        %v3773 = vpack.c.b16 %v3761, %v3759
        %v3774 = vpack.c.b16 %v3762, %v3760
        %v3775 = vpack.c.b16 %v3765, %v3763
        %v3776 = vpack.c.b16 %v3766, %v3764
        %v3777 = vpack.c.b16 %v3769, %v3767
        %v3778 = vpack.c.b16 %v3770, %v3768
        %v3788 = vsel %vm1429, %v3675, 0
        %v3791 = vsel %vm1429, %v3676, 0
        %v3794 = vsel %vm1429, %v3677, 0
        %v3797 = vsel %vm1429, %v3678, 0
        %v3800 = vsel %vm1429, %v3679, 0
        %v3803 = vsel %vm1429, %v3680, 0
        %v3806 = vsel %vm1429, %v3681, 0
        %v3809 = vsel %vm1429, %v3682, 0
        %v3812 = vsel %vm1429, %v3683, 0
        %v3815 = vsel %vm1429, %v3684, 0
        %v3818 = vsel %vm1429, %v3685, 0
        %v3821 = vsel %vm1429, %v3686, 0
        %v3824 = vsel %vm1429, %v3687, 0
        %v3827 = vsel %vm1429, %v3688, 0
        %v3830 = vsel %vm1429, %v3689, 0
        %v3833 = vsel %vm1429, %v3690, 0
        %v3836 = vsel %vm1429, %v3691, 0
        %v3839 = vsel %vm1429, %v3692, 0
        %v3842 = vsel %vm1429, %v3693, 0
        %v3845 = vsel %vm1429, %v3694, 0
        %v3848 = vsel %vm1429, %v3695, 0
        %v3851 = vsel %vm1429, %v3696, 0
        %v3854 = vsel %vm1429, %v3697, 0
        %v3857 = vsel %vm1429, %v3698, 0
        %v3860 = vsel %vm1429, %v3699, 0
        %v3863 = vsel %vm1429, %v3700, 0
        %v3866 = vsel %vm1429, %v3701, 0
        %v3869 = vsel %vm1429, %v3702, 0
        %v3872 = vsel %vm1429, %v3703, 0
        %v3875 = vsel %vm1429, %v3704, 0
        %v3878 = vsel %vm1429, %v3705, 0
        %v3881 = vsel %vm1429, %v3706, 0
        %v3884 = vsel %vm1429, %v3707, 0
        %v3887 = vsel %vm1429, %v3708, 0
        %v3890 = vsel %vm1429, %v3709, 0
        %v3893 = vsel %vm1429, %v3710, 0
        %v3896 = vsel %vm1429, %v3711, 0
        %v3899 = vsel %vm1429, %v3712, 0
        %v3902 = vsel %vm1429, %v3713, 0
        %v3905 = vsel %vm1429, %v3714, 0
        %v3908 = vsel %vm1429, %v3715, 0
        %v3911 = vsel %vm1429, %v3716, 0
        %v3914 = vsel %vm1429, %v3717, 0
        %v3917 = vsel %vm1429, %v3718, 0
        %v3920 = vsel %vm1429, %v3719, 0
        %v3923 = vsel %vm1429, %v3720, 0
        %v3926 = vsel %vm1429, %v3721, 0
        %v3929 = vsel %vm1429, %v3722, 0
        %v3932 = vsel %vm1429, %v3723, 0
        %v3935 = vsel %vm1429, %v3724, 0
        %v3938 = vsel %vm1429, %v3725, 0
        %v3941 = vsel %vm1429, %v3726, 0
        %v3944 = vsel %vm1429, %v3727, 0
        %v3947 = vsel %vm1429, %v3728, 0
        %v3950 = vsel %vm1429, %v3729, 0
        %v3953 = vsel %vm1429, %v3730, 0
        %v3956 = vsel %vm1429, %v3731, 0
        %v3959 = vsel %vm1429, %v3732, 0
        %v3962 = vsel %vm1429, %v3733, 0
        %v3965 = vsel %vm1429, %v3734, 0
        %v3968 = vsel %vm1429, %v3735, 0
        %v3971 = vsel %vm1429, %v3736, 0
        %v3974 = vsel %vm1429, %v3737, 0
        %v3977 = vsel %vm1429, %v3738, 0
        %3979 = vmatpush.bf16.msra.mxu0 0
        %3980 = vmatpush.bf16.msra.mxu0 0
        %3981 = vmatpush.bf16.msra.mxu0 0
        %3982 = vmatpush.bf16.msra.mxu0 0
        %3983 = vmatpush.bf16.msra.mxu0 %v3777
        %3984 = vmatpush.bf16.msra.mxu0 %v3775
        %3985 = vmatpush.bf16.msra.mxu0 %v3773
        %3986 = vmatpush.bf16.msra.mxu0 %v3771
        %3987 = vmatmul.bf16.gmra.mxu0 %v3788
        %v3988 = vpop.f32.mrf.mxu0
        %v3989 = vadd.f32 0.0, %v3988
        %v3990 = vpop.f32.mrf.mxu0
        %v3991 = vadd.f32 0.0, %v3990
        %3992 = vmatmul.bf16.gmra.mxu0 %v3791
        %v3993 = vpop.f32.mrf.mxu0
        %v3994 = vadd.f32 0.0, %v3993
        %v3995 = vpop.f32.mrf.mxu0
        %v3996 = vadd.f32 0.0, %v3995
        %3997 = vmatmul.bf16.gmra.mxu0 %v3794
        %v3998 = vpop.f32.mrf.mxu0
        %v3999 = vadd.f32 0.0, %v3998
        %v4000 = vpop.f32.mrf.mxu0
        %v4001 = vadd.f32 0.0, %v4000
        %4002 = vmatmul.bf16.gmra.mxu0 %v3797
        %v4003 = vpop.f32.mrf.mxu0
        %v4004 = vadd.f32 0.0, %v4003
        %v4005 = vpop.f32.mrf.mxu0
        %v4006 = vadd.f32 0.0, %v4005
        %4007 = vmatmul.bf16.gmra.mxu0 %v3800
        %v4008 = vpop.f32.mrf.mxu0
        %v4009 = vadd.f32 0.0, %v4008
        %v4010 = vpop.f32.mrf.mxu0
        %v4011 = vadd.f32 0.0, %v4010
        %4012 = vmatmul.bf16.gmra.mxu0 %v3803
        %v4013 = vpop.f32.mrf.mxu0
        %v4014 = vadd.f32 0.0, %v4013
        %v4015 = vpop.f32.mrf.mxu0
        %v4016 = vadd.f32 0.0, %v4015
        %4017 = vmatmul.bf16.gmra.mxu0 %v3806
        %v4018 = vpop.f32.mrf.mxu0
        %v4019 = vadd.f32 0.0, %v4018
        %v4020 = vpop.f32.mrf.mxu0
        %v4021 = vadd.f32 0.0, %v4020
        %4022 = vmatmul.bf16.gmra.mxu0 %v3809
        %v4023 = vpop.f32.mrf.mxu0
        %v4024 = vadd.f32 0.0, %v4023
        %v4025 = vpop.f32.mrf.mxu0
        %v4026 = vadd.f32 0.0, %v4025
        %4027 = vmatmul.bf16.gmra.mxu0 %v3812
        %v4028 = vpop.f32.mrf.mxu0
        %v4029 = vadd.f32 0.0, %v4028
        %v4030 = vpop.f32.mrf.mxu0
        %v4031 = vadd.f32 0.0, %v4030
        %4032 = vmatmul.bf16.gmra.mxu0 %v3815
        %v4033 = vpop.f32.mrf.mxu0
        %v4034 = vadd.f32 0.0, %v4033
        %v4035 = vpop.f32.mrf.mxu0
        %v4036 = vadd.f32 0.0, %v4035
        %4037 = vmatmul.bf16.gmra.mxu0 %v3818
        %v4038 = vpop.f32.mrf.mxu0
        %v4039 = vadd.f32 0.0, %v4038
        %v4040 = vpop.f32.mrf.mxu0
        %v4041 = vadd.f32 0.0, %v4040
        %4042 = vmatmul.bf16.gmra.mxu0 %v3821
        %v4043 = vpop.f32.mrf.mxu0
        %v4044 = vadd.f32 0.0, %v4043
        %v4045 = vpop.f32.mrf.mxu0
        %v4046 = vadd.f32 0.0, %v4045
        %4047 = vmatmul.bf16.gmra.mxu0 %v3824
        %v4048 = vpop.f32.mrf.mxu0
        %v4049 = vadd.f32 0.0, %v4048
        %v4050 = vpop.f32.mrf.mxu0
        %v4051 = vadd.f32 0.0, %v4050
        %4052 = vmatmul.bf16.gmra.mxu0 %v3827
        %v4053 = vpop.f32.mrf.mxu0
        %v4054 = vadd.f32 0.0, %v4053
        %v4055 = vpop.f32.mrf.mxu0
        %v4056 = vadd.f32 0.0, %v4055
        %4057 = vmatmul.bf16.gmra.mxu0 %v3830
        %v4058 = vpop.f32.mrf.mxu0
        %v4059 = vadd.f32 0.0, %v4058
        %v4060 = vpop.f32.mrf.mxu0
        %v4061 = vadd.f32 0.0, %v4060
        %4062 = vmatmul.bf16.gmra.mxu0 %v3833
        %v4063 = vpop.f32.mrf.mxu0
        %v4064 = vadd.f32 0.0, %v4063
        %v4065 = vpop.f32.mrf.mxu0
        %v4066 = vadd.f32 0.0, %v4065
        %4067 = vmatmul.bf16.gmra.mxu0 %v3836
        %v4068 = vpop.f32.mrf.mxu0
        %v4069 = vadd.f32 0.0, %v4068
        %v4070 = vpop.f32.mrf.mxu0
        %v4071 = vadd.f32 0.0, %v4070
        %4072 = vmatmul.bf16.gmra.mxu0 %v3839
        %v4073 = vpop.f32.mrf.mxu0
        %v4074 = vadd.f32 0.0, %v4073
        %v4075 = vpop.f32.mrf.mxu0
        %v4076 = vadd.f32 0.0, %v4075
        %4077 = vmatmul.bf16.gmra.mxu0 %v3842
        %v4078 = vpop.f32.mrf.mxu0
        %v4079 = vadd.f32 0.0, %v4078
        %v4080 = vpop.f32.mrf.mxu0
        %v4081 = vadd.f32 0.0, %v4080
        %4082 = vmatmul.bf16.gmra.mxu0 %v3845
        %v4083 = vpop.f32.mrf.mxu0
        %v4084 = vadd.f32 0.0, %v4083
        %v4085 = vpop.f32.mrf.mxu0
        %v4086 = vadd.f32 0.0, %v4085
        %4087 = vmatmul.bf16.gmra.mxu0 %v3848
        %v4088 = vpop.f32.mrf.mxu0
        %v4089 = vadd.f32 0.0, %v4088
        %v4090 = vpop.f32.mrf.mxu0
        %v4091 = vadd.f32 0.0, %v4090
        %4092 = vmatmul.bf16.gmra.mxu0 %v3851
        %v4093 = vpop.f32.mrf.mxu0
        %v4094 = vadd.f32 0.0, %v4093
        %v4095 = vpop.f32.mrf.mxu0
        %v4096 = vadd.f32 0.0, %v4095
        %4097 = vmatmul.bf16.gmra.mxu0 %v3854
        %v4098 = vpop.f32.mrf.mxu0
        %v4099 = vadd.f32 0.0, %v4098
        %v4100 = vpop.f32.mrf.mxu0
        %v4101 = vadd.f32 0.0, %v4100
        %4102 = vmatmul.bf16.gmra.mxu0 %v3857
        %v4103 = vpop.f32.mrf.mxu0
        %v4104 = vadd.f32 0.0, %v4103
        %v4105 = vpop.f32.mrf.mxu0
        %v4106 = vadd.f32 0.0, %v4105
        %4107 = vmatmul.bf16.gmra.mxu0 %v3860
        %v4108 = vpop.f32.mrf.mxu0
        %v4109 = vadd.f32 0.0, %v4108
        %v4110 = vpop.f32.mrf.mxu0
        %v4111 = vadd.f32 0.0, %v4110
        %4112 = vmatmul.bf16.gmra.mxu0 %v3863
        %v4113 = vpop.f32.mrf.mxu0
        %v4114 = vadd.f32 0.0, %v4113
        %v4115 = vpop.f32.mrf.mxu0
        %v4116 = vadd.f32 0.0, %v4115
        %4117 = vmatmul.bf16.gmra.mxu0 %v3866
        %v4118 = vpop.f32.mrf.mxu0
        %v4119 = vadd.f32 0.0, %v4118
        %v4120 = vpop.f32.mrf.mxu0
        %v4121 = vadd.f32 0.0, %v4120
        %4122 = vmatmul.bf16.gmra.mxu0 %v3869
        %v4123 = vpop.f32.mrf.mxu0
        %v4124 = vadd.f32 0.0, %v4123
        %v4125 = vpop.f32.mrf.mxu0
        %v4126 = vadd.f32 0.0, %v4125
        %4127 = vmatmul.bf16.gmra.mxu0 %v3872
        %v4128 = vpop.f32.mrf.mxu0
        %v4129 = vadd.f32 0.0, %v4128
        %v4130 = vpop.f32.mrf.mxu0
        %v4131 = vadd.f32 0.0, %v4130
        %4132 = vmatmul.bf16.gmra.mxu0 %v3875
        %v4133 = vpop.f32.mrf.mxu0
        %v4134 = vadd.f32 0.0, %v4133
        %v4135 = vpop.f32.mrf.mxu0
        %v4136 = vadd.f32 0.0, %v4135
        %4137 = vmatmul.bf16.gmra.mxu0 %v3878
        %v4138 = vpop.f32.mrf.mxu0
        %v4139 = vadd.f32 0.0, %v4138
        %v4140 = vpop.f32.mrf.mxu0
        %v4141 = vadd.f32 0.0, %v4140
        %4142 = vmatmul.bf16.gmra.mxu0 %v3881
        %v4143 = vpop.f32.mrf.mxu0
        %v4144 = vadd.f32 0.0, %v4143
        %v4145 = vpop.f32.mrf.mxu0
        %v4146 = vadd.f32 0.0, %v4145
        %4147 = vmatmul.bf16.gmra.mxu0 %v3884
        %v4148 = vpop.f32.mrf.mxu0
        %v4149 = vadd.f32 0.0, %v4148
        %v4150 = vpop.f32.mrf.mxu0
        %v4151 = vadd.f32 0.0, %v4150
        %4152 = vmatmul.bf16.gmra.mxu0 %v3887
        %v4153 = vpop.f32.mrf.mxu0
        %v4154 = vadd.f32 0.0, %v4153
        %v4155 = vpop.f32.mrf.mxu0
        %v4156 = vadd.f32 0.0, %v4155
        %4157 = vmatmul.bf16.gmra.mxu0 %v3890
        %v4158 = vpop.f32.mrf.mxu0
        %v4159 = vadd.f32 0.0, %v4158
        %v4160 = vpop.f32.mrf.mxu0
        %v4161 = vadd.f32 0.0, %v4160
        %4162 = vmatmul.bf16.gmra.mxu0 %v3893
        %v4163 = vpop.f32.mrf.mxu0
        %v4164 = vadd.f32 0.0, %v4163
        %v4165 = vpop.f32.mrf.mxu0
        %v4166 = vadd.f32 0.0, %v4165
        %4167 = vmatmul.bf16.gmra.mxu0 %v3896
        %v4168 = vpop.f32.mrf.mxu0
        %v4169 = vadd.f32 0.0, %v4168
        %v4170 = vpop.f32.mrf.mxu0
        %v4171 = vadd.f32 0.0, %v4170
        %4172 = vmatmul.bf16.gmra.mxu0 %v3899
        %v4173 = vpop.f32.mrf.mxu0
        %v4174 = vadd.f32 0.0, %v4173
        %v4175 = vpop.f32.mrf.mxu0
        %v4176 = vadd.f32 0.0, %v4175
        %4177 = vmatmul.bf16.gmra.mxu0 %v3902
        %v4178 = vpop.f32.mrf.mxu0
        %v4179 = vadd.f32 0.0, %v4178
        %v4180 = vpop.f32.mrf.mxu0
        %v4181 = vadd.f32 0.0, %v4180
        %4182 = vmatmul.bf16.gmra.mxu0 %v3905
        %v4183 = vpop.f32.mrf.mxu0
        %v4184 = vadd.f32 0.0, %v4183
        %v4185 = vpop.f32.mrf.mxu0
        %v4186 = vadd.f32 0.0, %v4185
        %4187 = vmatmul.bf16.gmra.mxu0 %v3908
        %v4188 = vpop.f32.mrf.mxu0
        %v4189 = vadd.f32 0.0, %v4188
        %v4190 = vpop.f32.mrf.mxu0
        %v4191 = vadd.f32 0.0, %v4190
        %4192 = vmatmul.bf16.gmra.mxu0 %v3911
        %v4193 = vpop.f32.mrf.mxu0
        %v4194 = vadd.f32 0.0, %v4193
        %v4195 = vpop.f32.mrf.mxu0
        %v4196 = vadd.f32 0.0, %v4195
        %4197 = vmatmul.bf16.gmra.mxu0 %v3914
        %v4198 = vpop.f32.mrf.mxu0
        %v4199 = vadd.f32 0.0, %v4198
        %v4200 = vpop.f32.mrf.mxu0
        %v4201 = vadd.f32 0.0, %v4200
        %4202 = vmatmul.bf16.gmra.mxu0 %v3917
        %v4203 = vpop.f32.mrf.mxu0
        %v4204 = vadd.f32 0.0, %v4203
        %v4205 = vpop.f32.mrf.mxu0
        %v4206 = vadd.f32 0.0, %v4205
        %4207 = vmatmul.bf16.gmra.mxu0 %v3920
        %v4208 = vpop.f32.mrf.mxu0
        %v4209 = vadd.f32 0.0, %v4208
        %v4210 = vpop.f32.mrf.mxu0
        %v4211 = vadd.f32 0.0, %v4210
        %4212 = vmatmul.bf16.gmra.mxu0 %v3923
        %v4213 = vpop.f32.mrf.mxu0
        %v4214 = vadd.f32 0.0, %v4213
        %v4215 = vpop.f32.mrf.mxu0
        %v4216 = vadd.f32 0.0, %v4215
        %4217 = vmatmul.bf16.gmra.mxu0 %v3926
        %v4218 = vpop.f32.mrf.mxu0
        %v4219 = vadd.f32 0.0, %v4218
        %v4220 = vpop.f32.mrf.mxu0
        %v4221 = vadd.f32 0.0, %v4220
        %4222 = vmatmul.bf16.gmra.mxu0 %v3929
        %v4223 = vpop.f32.mrf.mxu0
        %v4224 = vadd.f32 0.0, %v4223
        %v4225 = vpop.f32.mrf.mxu0
        %v4226 = vadd.f32 0.0, %v4225
        %4227 = vmatmul.bf16.gmra.mxu0 %v3932
        %v4228 = vpop.f32.mrf.mxu0
        %v4229 = vadd.f32 0.0, %v4228
        %v4230 = vpop.f32.mrf.mxu0
        %v4231 = vadd.f32 0.0, %v4230
        %4232 = vmatmul.bf16.gmra.mxu0 %v3935
        %v4233 = vpop.f32.mrf.mxu0
        %v4234 = vadd.f32 0.0, %v4233
        %v4235 = vpop.f32.mrf.mxu0
        %v4236 = vadd.f32 0.0, %v4235
        %4237 = vmatmul.bf16.gmra.mxu0 %v3938
        %v4238 = vpop.f32.mrf.mxu0
        %v4239 = vadd.f32 0.0, %v4238
        %v4240 = vpop.f32.mrf.mxu0
        %v4241 = vadd.f32 0.0, %v4240
        %4242 = vmatmul.bf16.gmra.mxu0 %v3941
        %v4243 = vpop.f32.mrf.mxu0
        %v4244 = vadd.f32 0.0, %v4243
        %v4245 = vpop.f32.mrf.mxu0
        %v4246 = vadd.f32 0.0, %v4245
        %4247 = vmatmul.bf16.gmra.mxu0 %v3944
        %v4248 = vpop.f32.mrf.mxu0
        %v4249 = vadd.f32 0.0, %v4248
        %v4250 = vpop.f32.mrf.mxu0
        %v4251 = vadd.f32 0.0, %v4250
        %4252 = vmatmul.bf16.gmra.mxu0 %v3947
        %v4253 = vpop.f32.mrf.mxu0
        %v4254 = vadd.f32 0.0, %v4253
        %v4255 = vpop.f32.mrf.mxu0
        %v4256 = vadd.f32 0.0, %v4255
        %4257 = vmatmul.bf16.gmra.mxu0 %v3950
        %v4258 = vpop.f32.mrf.mxu0
        %v4259 = vadd.f32 0.0, %v4258
        %v4260 = vpop.f32.mrf.mxu0
        %v4261 = vadd.f32 0.0, %v4260
        %4262 = vmatmul.bf16.gmra.mxu0 %v3953
        %v4263 = vpop.f32.mrf.mxu0
        %v4264 = vadd.f32 0.0, %v4263
        %v4265 = vpop.f32.mrf.mxu0
        %v4266 = vadd.f32 0.0, %v4265
        %4267 = vmatmul.bf16.gmra.mxu0 %v3956
        %v4268 = vpop.f32.mrf.mxu0
        %v4269 = vadd.f32 0.0, %v4268
        %v4270 = vpop.f32.mrf.mxu0
        %v4271 = vadd.f32 0.0, %v4270
        %4272 = vmatmul.bf16.gmra.mxu0 %v3959
        %v4273 = vpop.f32.mrf.mxu0
        %v4274 = vadd.f32 0.0, %v4273
        %v4275 = vpop.f32.mrf.mxu0
        %v4276 = vadd.f32 0.0, %v4275
        %4277 = vmatmul.bf16.gmra.mxu0 %v3962
        %v4278 = vpop.f32.mrf.mxu0
        %v4279 = vadd.f32 0.0, %v4278
        %v4280 = vpop.f32.mrf.mxu0
        %v4281 = vadd.f32 0.0, %v4280
        %4282 = vmatmul.bf16.gmra.mxu0 %v3965
        %v4283 = vpop.f32.mrf.mxu0
        %v4284 = vadd.f32 0.0, %v4283
        %v4285 = vpop.f32.mrf.mxu0
        %v4286 = vadd.f32 0.0, %v4285
        %4287 = vmatmul.bf16.gmra.mxu0 %v3968
        %v4288 = vpop.f32.mrf.mxu0
        %v4289 = vadd.f32 0.0, %v4288
        %v4290 = vpop.f32.mrf.mxu0
        %v4291 = vadd.f32 0.0, %v4290
        %4292 = vmatmul.bf16.gmra.mxu0 %v3971
        %v4293 = vpop.f32.mrf.mxu0
        %v4294 = vadd.f32 0.0, %v4293
        %v4295 = vpop.f32.mrf.mxu0
        %v4296 = vadd.f32 0.0, %v4295
        %4297 = vmatmul.bf16.gmra.mxu0 %v3974
        %v4298 = vpop.f32.mrf.mxu0
        %v4299 = vadd.f32 0.0, %v4298
        %v4300 = vpop.f32.mrf.mxu0
        %v4301 = vadd.f32 0.0, %v4300
        %4302 = vmatmul.bf16.gmra.mxu0 %v3977
        %v4303 = vpop.f32.mrf.mxu0
        %v4304 = vadd.f32 0.0, %v4303
        %v4305 = vpop.f32.mrf.mxu0
        %v4306 = vadd.f32 0.0, %v4305
        %4307 = vdwg.mxu0
        %4308 = vmatpush.bf16.msra.mxu0 0
        %4309 = vmatpush.bf16.msra.mxu0 0
        %4310 = vmatpush.bf16.msra.mxu0 0
        %4311 = vmatpush.bf16.msra.mxu0 0
        %4312 = vmatpush.bf16.msra.mxu0 %v3778
        %4313 = vmatpush.bf16.msra.mxu0 %v3776
        %4314 = vmatpush.bf16.msra.mxu0 %v3774
        %4315 = vmatpush.bf16.msra.mxu0 %v3772
        %4316 = vmatmul.bf16.gmra.mxu0 %v3788
        %v4317 = vpop.f32.mrf.mxu0
        %v4318 = vadd.f32 0.0, %v4317
        %v4319 = vpop.f32.mrf.mxu0
        %v4320 = vadd.f32 0.0, %v4319
        %4321 = vmatmul.bf16.gmra.mxu0 %v3791
        %v4322 = vpop.f32.mrf.mxu0
        %v4323 = vadd.f32 0.0, %v4322
        %v4324 = vpop.f32.mrf.mxu0
        %v4325 = vadd.f32 0.0, %v4324
        %4326 = vmatmul.bf16.gmra.mxu0 %v3794
        %v4327 = vpop.f32.mrf.mxu0
        %v4328 = vadd.f32 0.0, %v4327
        %v4329 = vpop.f32.mrf.mxu0
        %v4330 = vadd.f32 0.0, %v4329
        %4331 = vmatmul.bf16.gmra.mxu0 %v3797
        %v4332 = vpop.f32.mrf.mxu0
        %v4333 = vadd.f32 0.0, %v4332
        %v4334 = vpop.f32.mrf.mxu0
        %v4335 = vadd.f32 0.0, %v4334
        %4336 = vmatmul.bf16.gmra.mxu0 %v3800
        %v4337 = vpop.f32.mrf.mxu0
        %v4338 = vadd.f32 0.0, %v4337
        %v4339 = vpop.f32.mrf.mxu0
        %v4340 = vadd.f32 0.0, %v4339
        %4341 = vmatmul.bf16.gmra.mxu0 %v3803
        %v4342 = vpop.f32.mrf.mxu0
        %v4343 = vadd.f32 0.0, %v4342
        %v4344 = vpop.f32.mrf.mxu0
        %v4345 = vadd.f32 0.0, %v4344
        %4346 = vmatmul.bf16.gmra.mxu0 %v3806
        %v4347 = vpop.f32.mrf.mxu0
        %v4348 = vadd.f32 0.0, %v4347
        %v4349 = vpop.f32.mrf.mxu0
        %v4350 = vadd.f32 0.0, %v4349
        %4351 = vmatmul.bf16.gmra.mxu0 %v3809
        %v4352 = vpop.f32.mrf.mxu0
        %v4353 = vadd.f32 0.0, %v4352
        %v4354 = vpop.f32.mrf.mxu0
        %v4355 = vadd.f32 0.0, %v4354
        %4356 = vmatmul.bf16.gmra.mxu0 %v3812
        %v4357 = vpop.f32.mrf.mxu0
        %v4358 = vadd.f32 0.0, %v4357
        %v4359 = vpop.f32.mrf.mxu0
        %v4360 = vadd.f32 0.0, %v4359
        %4361 = vmatmul.bf16.gmra.mxu0 %v3815
        %v4362 = vpop.f32.mrf.mxu0
        %v4363 = vadd.f32 0.0, %v4362
        %v4364 = vpop.f32.mrf.mxu0
        %v4365 = vadd.f32 0.0, %v4364
        %4366 = vmatmul.bf16.gmra.mxu0 %v3818
        %v4367 = vpop.f32.mrf.mxu0
        %v4368 = vadd.f32 0.0, %v4367
        %v4369 = vpop.f32.mrf.mxu0
        %v4370 = vadd.f32 0.0, %v4369
        %4371 = vmatmul.bf16.gmra.mxu0 %v3821
        %v4372 = vpop.f32.mrf.mxu0
        %v4373 = vadd.f32 0.0, %v4372
        %v4374 = vpop.f32.mrf.mxu0
        %v4375 = vadd.f32 0.0, %v4374
        %4376 = vmatmul.bf16.gmra.mxu0 %v3824
        %v4377 = vpop.f32.mrf.mxu0
        %v4378 = vadd.f32 0.0, %v4377
        %v4379 = vpop.f32.mrf.mxu0
        %v4380 = vadd.f32 0.0, %v4379
        %4381 = vmatmul.bf16.gmra.mxu0 %v3827
        %v4382 = vpop.f32.mrf.mxu0
        %v4383 = vadd.f32 0.0, %v4382
        %v4384 = vpop.f32.mrf.mxu0
        %v4385 = vadd.f32 0.0, %v4384
        %4386 = vmatmul.bf16.gmra.mxu0 %v3830
        %v4387 = vpop.f32.mrf.mxu0
        %v4388 = vadd.f32 0.0, %v4387
        %v4389 = vpop.f32.mrf.mxu0
        %v4390 = vadd.f32 0.0, %v4389
        %4391 = vmatmul.bf16.gmra.mxu0 %v3833
        %v4392 = vpop.f32.mrf.mxu0
        %v4393 = vadd.f32 0.0, %v4392
        %v4394 = vpop.f32.mrf.mxu0
        %v4395 = vadd.f32 0.0, %v4394
        %4396 = vmatmul.bf16.gmra.mxu0 %v3836
        %v4397 = vpop.f32.mrf.mxu0
        %v4398 = vadd.f32 0.0, %v4397
        %v4399 = vpop.f32.mrf.mxu0
        %v4400 = vadd.f32 0.0, %v4399
        %4401 = vmatmul.bf16.gmra.mxu0 %v3839
        %v4402 = vpop.f32.mrf.mxu0
        %v4403 = vadd.f32 0.0, %v4402
        %v4404 = vpop.f32.mrf.mxu0
        %v4405 = vadd.f32 0.0, %v4404
        %4406 = vmatmul.bf16.gmra.mxu0 %v3842
        %v4407 = vpop.f32.mrf.mxu0
        %v4408 = vadd.f32 0.0, %v4407
        %v4409 = vpop.f32.mrf.mxu0
        %v4410 = vadd.f32 0.0, %v4409
        %4411 = vmatmul.bf16.gmra.mxu0 %v3845
        %v4412 = vpop.f32.mrf.mxu0
        %v4413 = vadd.f32 0.0, %v4412
        %v4414 = vpop.f32.mrf.mxu0
        %v4415 = vadd.f32 0.0, %v4414
        %4416 = vmatmul.bf16.gmra.mxu0 %v3848
        %v4417 = vpop.f32.mrf.mxu0
        %v4418 = vadd.f32 0.0, %v4417
        %v4419 = vpop.f32.mrf.mxu0
        %v4420 = vadd.f32 0.0, %v4419
        %4421 = vmatmul.bf16.gmra.mxu0 %v3851
        %v4422 = vpop.f32.mrf.mxu0
        %v4423 = vadd.f32 0.0, %v4422
        %v4424 = vpop.f32.mrf.mxu0
        %v4425 = vadd.f32 0.0, %v4424
        %4426 = vmatmul.bf16.gmra.mxu0 %v3854
        %v4427 = vpop.f32.mrf.mxu0
        %v4428 = vadd.f32 0.0, %v4427
        %v4429 = vpop.f32.mrf.mxu0
        %v4430 = vadd.f32 0.0, %v4429
        %4431 = vmatmul.bf16.gmra.mxu0 %v3857
        %v4432 = vpop.f32.mrf.mxu0
        %v4433 = vadd.f32 0.0, %v4432
        %v4434 = vpop.f32.mrf.mxu0
        %v4435 = vadd.f32 0.0, %v4434
        %4436 = vmatmul.bf16.gmra.mxu0 %v3860
        %v4437 = vpop.f32.mrf.mxu0
        %v4438 = vadd.f32 0.0, %v4437
        %v4439 = vpop.f32.mrf.mxu0
        %v4440 = vadd.f32 0.0, %v4439
        %4441 = vmatmul.bf16.gmra.mxu0 %v3863
        %v4442 = vpop.f32.mrf.mxu0
        %v4443 = vadd.f32 0.0, %v4442
        %v4444 = vpop.f32.mrf.mxu0
        %v4445 = vadd.f32 0.0, %v4444
        %4446 = vmatmul.bf16.gmra.mxu0 %v3866
        %v4447 = vpop.f32.mrf.mxu0
        %v4448 = vadd.f32 0.0, %v4447
        %v4449 = vpop.f32.mrf.mxu0
        %v4450 = vadd.f32 0.0, %v4449
        %4451 = vmatmul.bf16.gmra.mxu0 %v3869
        %v4452 = vpop.f32.mrf.mxu0
        %v4453 = vadd.f32 0.0, %v4452
        %v4454 = vpop.f32.mrf.mxu0
        %v4455 = vadd.f32 0.0, %v4454
        %4456 = vmatmul.bf16.gmra.mxu0 %v3872
        %v4457 = vpop.f32.mrf.mxu0
        %v4458 = vadd.f32 0.0, %v4457
        %v4459 = vpop.f32.mrf.mxu0
        %v4460 = vadd.f32 0.0, %v4459
        %4461 = vmatmul.bf16.gmra.mxu0 %v3875
        %v4462 = vpop.f32.mrf.mxu0
        %v4463 = vadd.f32 0.0, %v4462
        %v4464 = vpop.f32.mrf.mxu0
        %v4465 = vadd.f32 0.0, %v4464
        %4466 = vmatmul.bf16.gmra.mxu0 %v3878
        %v4467 = vpop.f32.mrf.mxu0
        %v4468 = vadd.f32 0.0, %v4467
        %v4469 = vpop.f32.mrf.mxu0
        %v4470 = vadd.f32 0.0, %v4469
        %4471 = vmatmul.bf16.gmra.mxu0 %v3881
        %v4472 = vpop.f32.mrf.mxu0
        %v4473 = vadd.f32 0.0, %v4472
        %v4474 = vpop.f32.mrf.mxu0
        %v4475 = vadd.f32 0.0, %v4474
        %4476 = vmatmul.bf16.gmra.mxu0 %v3884
        %v4477 = vpop.f32.mrf.mxu0
        %v4478 = vadd.f32 0.0, %v4477
        %v4479 = vpop.f32.mrf.mxu0
        %v4480 = vadd.f32 0.0, %v4479
        %4481 = vmatmul.bf16.gmra.mxu0 %v3887
        %v4482 = vpop.f32.mrf.mxu0
        %v4483 = vadd.f32 0.0, %v4482
        %v4484 = vpop.f32.mrf.mxu0
        %v4485 = vadd.f32 0.0, %v4484
        %4486 = vmatmul.bf16.gmra.mxu0 %v3890
        %v4487 = vpop.f32.mrf.mxu0
        %v4488 = vadd.f32 0.0, %v4487
        %v4489 = vpop.f32.mrf.mxu0
        %v4490 = vadd.f32 0.0, %v4489
        %4491 = vmatmul.bf16.gmra.mxu0 %v3893
        %v4492 = vpop.f32.mrf.mxu0
        %v4493 = vadd.f32 0.0, %v4492
        %v4494 = vpop.f32.mrf.mxu0
        %v4495 = vadd.f32 0.0, %v4494
        %4496 = vmatmul.bf16.gmra.mxu0 %v3896
        %v4497 = vpop.f32.mrf.mxu0
        %v4498 = vadd.f32 0.0, %v4497
        %v4499 = vpop.f32.mrf.mxu0
        %v4500 = vadd.f32 0.0, %v4499
        %4501 = vmatmul.bf16.gmra.mxu0 %v3899
        %v4502 = vpop.f32.mrf.mxu0
        %v4503 = vadd.f32 0.0, %v4502
        %v4504 = vpop.f32.mrf.mxu0
        %v4505 = vadd.f32 0.0, %v4504
        %4506 = vmatmul.bf16.gmra.mxu0 %v3902
        %v4507 = vpop.f32.mrf.mxu0
        %v4508 = vadd.f32 0.0, %v4507
        %v4509 = vpop.f32.mrf.mxu0
        %v4510 = vadd.f32 0.0, %v4509
        %4511 = vmatmul.bf16.gmra.mxu0 %v3905
        %v4512 = vpop.f32.mrf.mxu0
        %v4513 = vadd.f32 0.0, %v4512
        %v4514 = vpop.f32.mrf.mxu0
        %v4515 = vadd.f32 0.0, %v4514
        %4516 = vmatmul.bf16.gmra.mxu0 %v3908
        %v4517 = vpop.f32.mrf.mxu0
        %v4518 = vadd.f32 0.0, %v4517
        %v4519 = vpop.f32.mrf.mxu0
        %v4520 = vadd.f32 0.0, %v4519
        %4521 = vmatmul.bf16.gmra.mxu0 %v3911
        %v4522 = vpop.f32.mrf.mxu0
        %v4523 = vadd.f32 0.0, %v4522
        %v4524 = vpop.f32.mrf.mxu0
        %v4525 = vadd.f32 0.0, %v4524
        %4526 = vmatmul.bf16.gmra.mxu0 %v3914
        %v4527 = vpop.f32.mrf.mxu0
        %v4528 = vadd.f32 0.0, %v4527
        %v4529 = vpop.f32.mrf.mxu0
        %v4530 = vadd.f32 0.0, %v4529
        %4531 = vmatmul.bf16.gmra.mxu0 %v3917
        %v4532 = vpop.f32.mrf.mxu0
        %v4533 = vadd.f32 0.0, %v4532
        %v4534 = vpop.f32.mrf.mxu0
        %v4535 = vadd.f32 0.0, %v4534
        %4536 = vmatmul.bf16.gmra.mxu0 %v3920
        %v4537 = vpop.f32.mrf.mxu0
        %v4538 = vadd.f32 0.0, %v4537
        %v4539 = vpop.f32.mrf.mxu0
        %v4540 = vadd.f32 0.0, %v4539
        %4541 = vmatmul.bf16.gmra.mxu0 %v3923
        %v4542 = vpop.f32.mrf.mxu0
        %v4543 = vadd.f32 0.0, %v4542
        %v4544 = vpop.f32.mrf.mxu0
        %v4545 = vadd.f32 0.0, %v4544
        %4546 = vmatmul.bf16.gmra.mxu0 %v3926
        %v4547 = vpop.f32.mrf.mxu0
        %v4548 = vadd.f32 0.0, %v4547
        %v4549 = vpop.f32.mrf.mxu0
        %v4550 = vadd.f32 0.0, %v4549
        %4551 = vmatmul.bf16.gmra.mxu0 %v3929
        %v4552 = vpop.f32.mrf.mxu0
        %v4553 = vadd.f32 0.0, %v4552
        %v4554 = vpop.f32.mrf.mxu0
        %v4555 = vadd.f32 0.0, %v4554
        %4556 = vmatmul.bf16.gmra.mxu0 %v3932
        %v4557 = vpop.f32.mrf.mxu0
        %v4558 = vadd.f32 0.0, %v4557
        %v4559 = vpop.f32.mrf.mxu0
        %v4560 = vadd.f32 0.0, %v4559
        %4561 = vmatmul.bf16.gmra.mxu0 %v3935
        %v4562 = vpop.f32.mrf.mxu0
        %v4563 = vadd.f32 0.0, %v4562
        %v4564 = vpop.f32.mrf.mxu0
        %v4565 = vadd.f32 0.0, %v4564
        %4566 = vmatmul.bf16.gmra.mxu0 %v3938
        %v4567 = vpop.f32.mrf.mxu0
        %v4568 = vadd.f32 0.0, %v4567
        %v4569 = vpop.f32.mrf.mxu0
        %v4570 = vadd.f32 0.0, %v4569
        %4571 = vmatmul.bf16.gmra.mxu0 %v3941
        %v4572 = vpop.f32.mrf.mxu0
        %v4573 = vadd.f32 0.0, %v4572
        %v4574 = vpop.f32.mrf.mxu0
        %v4575 = vadd.f32 0.0, %v4574
        %4576 = vmatmul.bf16.gmra.mxu0 %v3944
        %v4577 = vpop.f32.mrf.mxu0
        %v4578 = vadd.f32 0.0, %v4577
        %v4579 = vpop.f32.mrf.mxu0
        %v4580 = vadd.f32 0.0, %v4579
        %4581 = vmatmul.bf16.gmra.mxu0 %v3947
        %v4582 = vpop.f32.mrf.mxu0
        %v4583 = vadd.f32 0.0, %v4582
        %v4584 = vpop.f32.mrf.mxu0
        %v4585 = vadd.f32 0.0, %v4584
        %4586 = vmatmul.bf16.gmra.mxu0 %v3950
        %v4587 = vpop.f32.mrf.mxu0
        %v4588 = vadd.f32 0.0, %v4587
        %v4589 = vpop.f32.mrf.mxu0
        %v4590 = vadd.f32 0.0, %v4589
        %4591 = vmatmul.bf16.gmra.mxu0 %v3953
        %v4592 = vpop.f32.mrf.mxu0
        %v4593 = vadd.f32 0.0, %v4592
        %v4594 = vpop.f32.mrf.mxu0
        %v4595 = vadd.f32 0.0, %v4594
        %4596 = vmatmul.bf16.gmra.mxu0 %v3956
        %v4597 = vpop.f32.mrf.mxu0
        %v4598 = vadd.f32 0.0, %v4597
        %v4599 = vpop.f32.mrf.mxu0
        %v4600 = vadd.f32 0.0, %v4599
        %4601 = vmatmul.bf16.gmra.mxu0 %v3959
        %v4602 = vpop.f32.mrf.mxu0
        %v4603 = vadd.f32 0.0, %v4602
        %v4604 = vpop.f32.mrf.mxu0
        %v4605 = vadd.f32 0.0, %v4604
        %4606 = vmatmul.bf16.gmra.mxu0 %v3962
        %v4607 = vpop.f32.mrf.mxu0
        %v4608 = vadd.f32 0.0, %v4607
        %v4609 = vpop.f32.mrf.mxu0
        %v4610 = vadd.f32 0.0, %v4609
        %4611 = vmatmul.bf16.gmra.mxu0 %v3965
        %v4612 = vpop.f32.mrf.mxu0
        %v4613 = vadd.f32 0.0, %v4612
        %v4614 = vpop.f32.mrf.mxu0
        %v4615 = vadd.f32 0.0, %v4614
        %4616 = vmatmul.bf16.gmra.mxu0 %v3968
        %v4617 = vpop.f32.mrf.mxu0
        %v4618 = vadd.f32 0.0, %v4617
        %v4619 = vpop.f32.mrf.mxu0
        %v4620 = vadd.f32 0.0, %v4619
        %4621 = vmatmul.bf16.gmra.mxu0 %v3971
        %v4622 = vpop.f32.mrf.mxu0
        %v4623 = vadd.f32 0.0, %v4622
        %v4624 = vpop.f32.mrf.mxu0
        %v4625 = vadd.f32 0.0, %v4624
        %4626 = vmatmul.bf16.gmra.mxu0 %v3974
        %v4627 = vpop.f32.mrf.mxu0
        %v4628 = vadd.f32 0.0, %v4627
        %v4629 = vpop.f32.mrf.mxu0
        %v4630 = vadd.f32 0.0, %v4629
        %4631 = vmatmul.bf16.gmra.mxu0 %v3977
        %v4632 = vpop.f32.mrf.mxu0
        %v4633 = vadd.f32 0.0, %v4632
        %v4634 = vpop.f32.mrf.mxu0
        %v4635 = vadd.f32 0.0, %v4634
        %4636 = vdwg.mxu0
        %v4637 = vld [vmem:[%s6] sm:$0xff]
        %v4638 = vld [vmem:[%s6 + $0x8] sm:$0xff]
        %v4639 = vld [vmem:[%s6 + $0x10] sm:$0xff]
        %v4640 = vld [vmem:[%s6 + $0x18] sm:$0xff]
        %v4641 = vld [vmem:[%s6 + $0x20] sm:$0xff]
        %v4642 = vld [vmem:[%s6 + $0x28] sm:$0xff]
        %v4643 = vld [vmem:[%s6 + $0x30] sm:$0xff]
        %v4644 = vld [vmem:[%s6 + $0x38] sm:$0xff]
        %v4645 = vadd.f32 %v3989, %v4637
        %v4646 = vadd.f32 %v4318, %v4638
        %v4647 = vadd.f32 %v3991, %v4639
        %v4648 = vadd.f32 %v4320, %v4640
        %v4649 = vadd.f32 %v3994, %v4641
        %v4650 = vadd.f32 %v4323, %v4642
        %v4651 = vadd.f32 %v3996, %v4643
        %v4652 = vadd.f32 %v4325, %v4644
        %v4653 = vadd.f32 %v3999, %v4637
        %v4654 = vadd.f32 %v4328, %v4638
        %v4655 = vadd.f32 %v4001, %v4639
        %v4656 = vadd.f32 %v4330, %v4640
        %v4657 = vadd.f32 %v4004, %v4641
        %v4658 = vadd.f32 %v4333, %v4642
        %v4659 = vadd.f32 %v4006, %v4643
        %v4660 = vadd.f32 %v4335, %v4644
        %v4661 = vadd.f32 %v4009, %v4637
        %v4662 = vadd.f32 %v4338, %v4638
        %v4663 = vadd.f32 %v4011, %v4639
        %v4664 = vadd.f32 %v4340, %v4640
        %v4665 = vadd.f32 %v4014, %v4641
        %v4666 = vadd.f32 %v4343, %v4642
        %v4667 = vadd.f32 %v4016, %v4643
        %v4668 = vadd.f32 %v4345, %v4644
        %v4669 = vadd.f32 %v4019, %v4637
        %v4670 = vadd.f32 %v4348, %v4638
        %v4671 = vadd.f32 %v4021, %v4639
        %v4672 = vadd.f32 %v4350, %v4640
        %v4673 = vadd.f32 %v4024, %v4641
        %v4674 = vadd.f32 %v4353, %v4642
        %v4675 = vadd.f32 %v4026, %v4643
        %v4676 = vadd.f32 %v4355, %v4644
        %v4677 = vadd.f32 %v4029, %v4637
        %v4678 = vadd.f32 %v4358, %v4638
        %v4679 = vadd.f32 %v4031, %v4639
        %v4680 = vadd.f32 %v4360, %v4640
        %v4681 = vadd.f32 %v4034, %v4641
        %v4682 = vadd.f32 %v4363, %v4642
        %v4683 = vadd.f32 %v4036, %v4643
        %v4684 = vadd.f32 %v4365, %v4644
        %v4685 = vadd.f32 %v4039, %v4637
        %v4686 = vadd.f32 %v4368, %v4638
        %v4687 = vadd.f32 %v4041, %v4639
        %v4688 = vadd.f32 %v4370, %v4640
        %v4689 = vadd.f32 %v4044, %v4641
        %v4690 = vadd.f32 %v4373, %v4642
        %v4691 = vadd.f32 %v4046, %v4643
        %v4692 = vadd.f32 %v4375, %v4644
        %v4693 = vadd.f32 %v4049, %v4637
        %v4694 = vadd.f32 %v4378, %v4638
        %v4695 = vadd.f32 %v4051, %v4639
        %v4696 = vadd.f32 %v4380, %v4640
        %v4697 = vadd.f32 %v4054, %v4641
        %v4698 = vadd.f32 %v4383, %v4642
        %v4699 = vadd.f32 %v4056, %v4643
        %v4700 = vadd.f32 %v4385, %v4644
        %v4701 = vadd.f32 %v4059, %v4637
        %v4702 = vadd.f32 %v4388, %v4638
        %v4703 = vadd.f32 %v4061, %v4639
        %v4704 = vadd.f32 %v4390, %v4640
        %v4705 = vadd.f32 %v4064, %v4641
        %v4706 = vadd.f32 %v4393, %v4642
        %v4707 = vadd.f32 %v4066, %v4643
        %v4708 = vadd.f32 %v4395, %v4644
        %v4709 = vadd.f32 %v4069, %v4637
        %v4710 = vadd.f32 %v4398, %v4638
        %v4711 = vadd.f32 %v4071, %v4639
        %v4712 = vadd.f32 %v4400, %v4640
        %v4713 = vadd.f32 %v4074, %v4641
        %v4714 = vadd.f32 %v4403, %v4642
        %v4715 = vadd.f32 %v4076, %v4643
        %v4716 = vadd.f32 %v4405, %v4644
        %v4717 = vadd.f32 %v4079, %v4637
        %v4718 = vadd.f32 %v4408, %v4638
        %v4719 = vadd.f32 %v4081, %v4639
        %v4720 = vadd.f32 %v4410, %v4640
        %v4721 = vadd.f32 %v4084, %v4641
        %v4722 = vadd.f32 %v4413, %v4642
        %v4723 = vadd.f32 %v4086, %v4643
        %v4724 = vadd.f32 %v4415, %v4644
        %v4725 = vadd.f32 %v4089, %v4637
        %v4726 = vadd.f32 %v4418, %v4638
        %v4727 = vadd.f32 %v4091, %v4639
        %v4728 = vadd.f32 %v4420, %v4640
        %v4729 = vadd.f32 %v4094, %v4641
        %v4730 = vadd.f32 %v4423, %v4642
        %v4731 = vadd.f32 %v4096, %v4643
        %v4732 = vadd.f32 %v4425, %v4644
        %v4733 = vadd.f32 %v4099, %v4637
        %v4734 = vadd.f32 %v4428, %v4638
        %v4735 = vadd.f32 %v4101, %v4639
        %v4736 = vadd.f32 %v4430, %v4640
        %v4737 = vadd.f32 %v4104, %v4641
        %v4738 = vadd.f32 %v4433, %v4642
        %v4739 = vadd.f32 %v4106, %v4643
        %v4740 = vadd.f32 %v4435, %v4644
        %v4741 = vadd.f32 %v4109, %v4637
        %v4742 = vadd.f32 %v4438, %v4638
        %v4743 = vadd.f32 %v4111, %v4639
        %v4744 = vadd.f32 %v4440, %v4640
        %v4745 = vadd.f32 %v4114, %v4641
        %v4746 = vadd.f32 %v4443, %v4642
        %v4747 = vadd.f32 %v4116, %v4643
        %v4748 = vadd.f32 %v4445, %v4644
        %v4749 = vadd.f32 %v4119, %v4637
        %v4750 = vadd.f32 %v4448, %v4638
        %v4751 = vadd.f32 %v4121, %v4639
        %v4752 = vadd.f32 %v4450, %v4640
        %v4753 = vadd.f32 %v4124, %v4641
        %v4754 = vadd.f32 %v4453, %v4642
        %v4755 = vadd.f32 %v4126, %v4643
        %v4756 = vadd.f32 %v4455, %v4644
        %v4757 = vadd.f32 %v4129, %v4637
        %v4758 = vadd.f32 %v4458, %v4638
        %v4759 = vadd.f32 %v4131, %v4639
        %v4760 = vadd.f32 %v4460, %v4640
        %v4761 = vadd.f32 %v4134, %v4641
        %v4762 = vadd.f32 %v4463, %v4642
        %v4763 = vadd.f32 %v4136, %v4643
        %v4764 = vadd.f32 %v4465, %v4644
        %v4765 = vadd.f32 %v4139, %v4637
        %v4766 = vadd.f32 %v4468, %v4638
        %v4767 = vadd.f32 %v4141, %v4639
        %v4768 = vadd.f32 %v4470, %v4640
        %v4769 = vadd.f32 %v4144, %v4641
        %v4770 = vadd.f32 %v4473, %v4642
        %v4771 = vadd.f32 %v4146, %v4643
        %v4772 = vadd.f32 %v4475, %v4644
        %v4773 = vadd.f32 %v4149, %v4637
        %v4774 = vadd.f32 %v4478, %v4638
        %v4775 = vadd.f32 %v4151, %v4639
        %v4776 = vadd.f32 %v4480, %v4640
        %v4777 = vadd.f32 %v4154, %v4641
        %v4778 = vadd.f32 %v4483, %v4642
        %v4779 = vadd.f32 %v4156, %v4643
        %v4780 = vadd.f32 %v4485, %v4644
        %v4781 = vadd.f32 %v4159, %v4637
        %v4782 = vadd.f32 %v4488, %v4638
        %v4783 = vadd.f32 %v4161, %v4639
        %v4784 = vadd.f32 %v4490, %v4640
        %v4785 = vadd.f32 %v4164, %v4641
        %v4786 = vadd.f32 %v4493, %v4642
        %v4787 = vadd.f32 %v4166, %v4643
        %v4788 = vadd.f32 %v4495, %v4644
        %v4789 = vadd.f32 %v4169, %v4637
        %v4790 = vadd.f32 %v4498, %v4638
        %v4791 = vadd.f32 %v4171, %v4639
        %v4792 = vadd.f32 %v4500, %v4640
        %v4793 = vadd.f32 %v4174, %v4641
        %v4794 = vadd.f32 %v4503, %v4642
        %v4795 = vadd.f32 %v4176, %v4643
        %v4796 = vadd.f32 %v4505, %v4644
        %v4797 = vadd.f32 %v4179, %v4637
        %v4798 = vadd.f32 %v4508, %v4638
        %v4799 = vadd.f32 %v4181, %v4639
        %v4800 = vadd.f32 %v4510, %v4640
        %v4801 = vadd.f32 %v4184, %v4641
        %v4802 = vadd.f32 %v4513, %v4642
        %v4803 = vadd.f32 %v4186, %v4643
        %v4804 = vadd.f32 %v4515, %v4644
        %v4805 = vadd.f32 %v4189, %v4637
        %v4806 = vadd.f32 %v4518, %v4638
        %v4807 = vadd.f32 %v4191, %v4639
        %v4808 = vadd.f32 %v4520, %v4640
        %v4809 = vadd.f32 %v4194, %v4641
        %v4810 = vadd.f32 %v4523, %v4642
        %v4811 = vadd.f32 %v4196, %v4643
        %v4812 = vadd.f32 %v4525, %v4644
        %v4813 = vadd.f32 %v4199, %v4637
        %v4814 = vadd.f32 %v4528, %v4638
        %v4815 = vadd.f32 %v4201, %v4639
        %v4816 = vadd.f32 %v4530, %v4640
        %v4817 = vadd.f32 %v4204, %v4641
        %v4818 = vadd.f32 %v4533, %v4642
        %v4819 = vadd.f32 %v4206, %v4643
        %v4820 = vadd.f32 %v4535, %v4644
        %v4821 = vadd.f32 %v4209, %v4637
        %v4822 = vadd.f32 %v4538, %v4638
        %v4823 = vadd.f32 %v4211, %v4639
        %v4824 = vadd.f32 %v4540, %v4640
        %v4825 = vadd.f32 %v4214, %v4641
        %v4826 = vadd.f32 %v4543, %v4642
        %v4827 = vadd.f32 %v4216, %v4643
        %v4828 = vadd.f32 %v4545, %v4644
        %v4829 = vadd.f32 %v4219, %v4637
        %v4830 = vadd.f32 %v4548, %v4638
        %v4831 = vadd.f32 %v4221, %v4639
        %v4832 = vadd.f32 %v4550, %v4640
        %v4833 = vadd.f32 %v4224, %v4641
        %v4834 = vadd.f32 %v4553, %v4642
        %v4835 = vadd.f32 %v4226, %v4643
        %v4836 = vadd.f32 %v4555, %v4644
        %v4837 = vadd.f32 %v4229, %v4637
        %v4838 = vadd.f32 %v4558, %v4638
        %v4839 = vadd.f32 %v4231, %v4639
        %v4840 = vadd.f32 %v4560, %v4640
        %v4841 = vadd.f32 %v4234, %v4641
        %v4842 = vadd.f32 %v4563, %v4642
        %v4843 = vadd.f32 %v4236, %v4643
        %v4844 = vadd.f32 %v4565, %v4644
        %v4845 = vadd.f32 %v4239, %v4637
        %v4846 = vadd.f32 %v4568, %v4638
        %v4847 = vadd.f32 %v4241, %v4639
        %v4848 = vadd.f32 %v4570, %v4640
        %v4849 = vadd.f32 %v4244, %v4641
        %v4850 = vadd.f32 %v4573, %v4642
        %v4851 = vadd.f32 %v4246, %v4643
        %v4852 = vadd.f32 %v4575, %v4644
        %v4853 = vadd.f32 %v4249, %v4637
        %v4854 = vadd.f32 %v4578, %v4638
        %v4855 = vadd.f32 %v4251, %v4639
        %v4856 = vadd.f32 %v4580, %v4640
        %v4857 = vadd.f32 %v4254, %v4641
        %v4858 = vadd.f32 %v4583, %v4642
        %v4859 = vadd.f32 %v4256, %v4643
        %v4860 = vadd.f32 %v4585, %v4644
        %v4861 = vadd.f32 %v4259, %v4637
        %v4862 = vadd.f32 %v4588, %v4638
        %v4863 = vadd.f32 %v4261, %v4639
        %v4864 = vadd.f32 %v4590, %v4640
        %v4865 = vadd.f32 %v4264, %v4641
        %v4866 = vadd.f32 %v4593, %v4642
        %v4867 = vadd.f32 %v4266, %v4643
        %v4868 = vadd.f32 %v4595, %v4644
        %v4869 = vadd.f32 %v4269, %v4637
        %v4870 = vadd.f32 %v4598, %v4638
        %v4871 = vadd.f32 %v4271, %v4639
        %v4872 = vadd.f32 %v4600, %v4640
        %v4873 = vadd.f32 %v4274, %v4641
        %v4874 = vadd.f32 %v4603, %v4642
        %v4875 = vadd.f32 %v4276, %v4643
        %v4876 = vadd.f32 %v4605, %v4644
        %v4877 = vadd.f32 %v4279, %v4637
        %v4878 = vadd.f32 %v4608, %v4638
        %v4879 = vadd.f32 %v4281, %v4639
        %v4880 = vadd.f32 %v4610, %v4640
        %v4881 = vadd.f32 %v4284, %v4641
        %v4882 = vadd.f32 %v4613, %v4642
        %v4883 = vadd.f32 %v4286, %v4643
        %v4884 = vadd.f32 %v4615, %v4644
        %v4885 = vadd.f32 %v4289, %v4637
        %v4886 = vadd.f32 %v4618, %v4638
        %v4887 = vadd.f32 %v4291, %v4639
        %v4888 = vadd.f32 %v4620, %v4640
        %v4889 = vadd.f32 %v4294, %v4641
        %v4890 = vadd.f32 %v4623, %v4642
        %v4891 = vadd.f32 %v4296, %v4643
        %v4892 = vadd.f32 %v4625, %v4644
        %v4893 = vadd.f32 %v4299, %v4637
        %v4894 = vadd.f32 %v4628, %v4638
        %v4895 = vadd.f32 %v4301, %v4639
        %v4896 = vadd.f32 %v4630, %v4640
        %v4897 = vadd.f32 %v4304, %v4641
        %v4898 = vadd.f32 %v4633, %v4642
        %v4899 = vadd.f32 %v4306, %v4643
        %v4900 = vadd.f32 %v4635, %v4644
        %v4901 = vpack.c.bf16 %v3547, %v3547
        %v4902 = vpack.c.bf16 %v3548, %v3548
        %v4903 = vpack.c.bf16 %v3549, %v3549
        %v4904 = vpack.c.bf16 %v3550, %v3550
        %v4905 = vpack.c.bf16 %v3551, %v3551
        %v4906 = vpack.c.bf16 %v3552, %v3552
        %v4907 = vpack.c.bf16 %v3553, %v3553
        %v4908 = vpack.c.bf16 %v3554, %v3554
        %v4909 = vpack.c.bf16 %v3555, %v3555
        %v4910 = vpack.c.bf16 %v3556, %v3556
        %v4911 = vpack.c.bf16 %v3557, %v3557
        %v4912 = vpack.c.bf16 %v3558, %v3558
        %v4913 = vpack.c.bf16 %v3559, %v3559
        %v4914 = vpack.c.bf16 %v3560, %v3560
        %v4915 = vpack.c.bf16 %v3561, %v3561
        %v4916 = vpack.c.bf16 %v3562, %v3562
        %v4917 = vpack.c.bf16 %v3563, %v3563
        %v4918 = vpack.c.bf16 %v3564, %v3564
        %v4919 = vpack.c.bf16 %v3565, %v3565
        %v4920 = vpack.c.bf16 %v3566, %v3566
        %v4921 = vpack.c.bf16 %v3567, %v3567
        %v4922 = vpack.c.bf16 %v3568, %v3568
        %v4923 = vpack.c.bf16 %v3569, %v3569
        %v4924 = vpack.c.bf16 %v3570, %v3570
        %v4925 = vpack.c.bf16 %v3571, %v3571
        %v4926 = vpack.c.bf16 %v3572, %v3572
        %v4927 = vpack.c.bf16 %v3573, %v3573
        %v4928 = vpack.c.bf16 %v3574, %v3574
        %v4929 = vpack.c.bf16 %v3575, %v3575
        %v4930 = vpack.c.bf16 %v3576, %v3576
        %v4931 = vpack.c.bf16 %v3577, %v3577
        %v4932 = vpack.c.bf16 %v3578, %v3578
        %v4933 = vpack.c.bf16 %v3579, %v3579
        %v4934 = vpack.c.bf16 %v3580, %v3580
        %v4935 = vpack.c.bf16 %v3581, %v3581
        %v4936 = vpack.c.bf16 %v3582, %v3582
        %v4937 = vpack.c.bf16 %v3583, %v3583
        %v4938 = vpack.c.bf16 %v3584, %v3584
        %v4939 = vpack.c.bf16 %v3585, %v3585
        %v4940 = vpack.c.bf16 %v3586, %v3586
        %v4941 = vpack.c.bf16 %v3587, %v3587
        %v4942 = vpack.c.bf16 %v3588, %v3588
        %v4943 = vpack.c.bf16 %v3589, %v3589
        %v4944 = vpack.c.bf16 %v3590, %v3590
        %v4945 = vpack.c.bf16 %v3591, %v3591
        %v4946 = vpack.c.bf16 %v3592, %v3592
        %v4947 = vpack.c.bf16 %v3593, %v3593
        %v4948 = vpack.c.bf16 %v3594, %v3594
        %v4949 = vpack.c.bf16 %v3595, %v3595
        %v4950 = vpack.c.bf16 %v3596, %v3596
        %v4951 = vpack.c.bf16 %v3597, %v3597
        %v4952 = vpack.c.bf16 %v3598, %v3598
        %v4953 = vpack.c.bf16 %v3599, %v3599
        %v4954 = vpack.c.bf16 %v3600, %v3600
        %v4955 = vpack.c.bf16 %v3601, %v3601
        %v4956 = vpack.c.bf16 %v3602, %v3602
        %v4957 = vpack.c.bf16 %v3603, %v3603
        %v4958 = vpack.c.bf16 %v3604, %v3604
        %v4959 = vpack.c.bf16 %v3605, %v3605
        %v4960 = vpack.c.bf16 %v3606, %v3606
        %v4961 = vpack.c.bf16 %v3607, %v3607
        %v4962 = vpack.c.bf16 %v3608, %v3608
        %v4963 = vpack.c.bf16 %v3609, %v3609
        %v4964 = vpack.c.bf16 %v3610, %v3610
        %v4965 = vpack.c.bf16 %v3611, %v3611
        %v4966 = vpack.c.bf16 %v3612, %v3612
        %v4967 = vpack.c.bf16 %v3613, %v3613
        %v4968 = vpack.c.bf16 %v3614, %v3614
        %v4969 = vpack.c.bf16 %v3615, %v3615
        %v4970 = vpack.c.bf16 %v3616, %v3616
        %v4971 = vpack.c.bf16 %v3617, %v3617
        %v4972 = vpack.c.bf16 %v3618, %v3618
        %v4973 = vpack.c.bf16 %v3619, %v3619
        %v4974 = vpack.c.bf16 %v3620, %v3620
        %v4975 = vpack.c.bf16 %v3621, %v3621
        %v4976 = vpack.c.bf16 %v3622, %v3622
        %v4977 = vpack.c.bf16 %v3623, %v3623
        %v4978 = vpack.c.bf16 %v3624, %v3624
        %v4979 = vpack.c.bf16 %v3625, %v3625
        %v4980 = vpack.c.bf16 %v3626, %v3626
        %v4981 = vpack.c.bf16 %v3627, %v3627
        %v4982 = vpack.c.bf16 %v3628, %v3628
        %v4983 = vpack.c.bf16 %v3629, %v3629
        %v4984 = vpack.c.bf16 %v3630, %v3630
        %v4985 = vpack.c.bf16 %v3631, %v3631
        %v4986 = vpack.c.bf16 %v3632, %v3632
        %v4987 = vpack.c.bf16 %v3633, %v3633
        %v4988 = vpack.c.bf16 %v3634, %v3634
        %v4989 = vpack.c.bf16 %v3635, %v3635
        %v4990 = vpack.c.bf16 %v3636, %v3636
        %v4991 = vpack.c.bf16 %v3637, %v3637
        %v4992 = vpack.c.bf16 %v3638, %v3638
        %v4993 = vpack.c.bf16 %v3639, %v3639
        %v4994 = vpack.c.bf16 %v3640, %v3640
        %v4995 = vpack.c.bf16 %v3641, %v3641
        %v4996 = vpack.c.bf16 %v3642, %v3642
        %v4997 = vpack.c.bf16 %v3643, %v3643
        %v4998 = vpack.c.bf16 %v3644, %v3644
        %v4999 = vpack.c.bf16 %v3645, %v3645
        %v5000 = vpack.c.bf16 %v3646, %v3646
        %v5001 = vpack.c.bf16 %v3647, %v3647
        %v5002 = vpack.c.bf16 %v3648, %v3648
        %v5003 = vpack.c.bf16 %v3649, %v3649
        %v5004 = vpack.c.bf16 %v3650, %v3650
        %v5005 = vpack.c.bf16 %v3651, %v3651
        %v5006 = vpack.c.bf16 %v3652, %v3652
        %v5007 = vpack.c.bf16 %v3653, %v3653
        %v5008 = vpack.c.bf16 %v3654, %v3654
        %v5009 = vpack.c.bf16 %v3655, %v3655
        %v5010 = vpack.c.bf16 %v3656, %v3656
        %v5011 = vpack.c.bf16 %v3657, %v3657
        %v5012 = vpack.c.bf16 %v3658, %v3658
        %v5013 = vpack.c.bf16 %v3659, %v3659
        %v5014 = vpack.c.bf16 %v3660, %v3660
        %v5015 = vpack.c.bf16 %v3661, %v3661
        %v5016 = vpack.c.bf16 %v3662, %v3662
        %v5017 = vpack.c.bf16 %v3663, %v3663
        %v5018 = vpack.c.bf16 %v3664, %v3664
        %v5019 = vpack.c.bf16 %v3665, %v3665
        %v5020 = vpack.c.bf16 %v3666, %v3666
        %v5021 = vpack.c.bf16 %v3667, %v3667
        %v5022 = vpack.c.bf16 %v3668, %v3668
        %v5023 = vpack.c.bf16 %v3669, %v3669
        %v5024 = vpack.c.bf16 %v3670, %v3670
        %v5025 = vpack.c.bf16 %v3671, %v3671
        %v5026 = vpack.c.bf16 %v3672, %v3672
        %v5027 = vpack.c.bf16 %v3673, %v3673
        %v5028 = vpack.c.bf16 %v3674, %v3674
        %v5029 = vpack.c.bf16 %v4645, %v4645
        %v5030 = vpack.c.bf16 %v4647, %v4647
        %v5031 = vpack.c.bf16 %v4649, %v4649
        %v5032 = vpack.c.bf16 %v4651, %v4651
        %v5033 = vpack.c.bf16 %v4653, %v4653
        %v5034 = vpack.c.bf16 %v4655, %v4655
        %v5035 = vpack.c.bf16 %v4657, %v4657
        %v5036 = vpack.c.bf16 %v4659, %v4659
        %v5037 = vpack.c.bf16 %v4661, %v4661
        %v5038 = vpack.c.bf16 %v4663, %v4663
        %v5039 = vpack.c.bf16 %v4665, %v4665
        %v5040 = vpack.c.bf16 %v4667, %v4667
        %v5041 = vpack.c.bf16 %v4669, %v4669
        %v5042 = vpack.c.bf16 %v4671, %v4671
        %v5043 = vpack.c.bf16 %v4673, %v4673
        %v5044 = vpack.c.bf16 %v4675, %v4675
        %v5045 = vpack.c.bf16 %v4677, %v4677
        %v5046 = vpack.c.bf16 %v4679, %v4679
        %v5047 = vpack.c.bf16 %v4681, %v4681
        %v5048 = vpack.c.bf16 %v4683, %v4683
        %v5049 = vpack.c.bf16 %v4685, %v4685
        %v5050 = vpack.c.bf16 %v4687, %v4687
        %v5051 = vpack.c.bf16 %v4689, %v4689
        %v5052 = vpack.c.bf16 %v4691, %v4691
        %v5053 = vpack.c.bf16 %v4693, %v4693
        %v5054 = vpack.c.bf16 %v4695, %v4695
        %v5055 = vpack.c.bf16 %v4697, %v4697
        %v5056 = vpack.c.bf16 %v4699, %v4699
        %v5057 = vpack.c.bf16 %v4701, %v4701
        %v5058 = vpack.c.bf16 %v4703, %v4703
        %v5059 = vpack.c.bf16 %v4705, %v4705
        %v5060 = vpack.c.bf16 %v4707, %v4707
        %v5061 = vpack.c.bf16 %v4709, %v4709
        %v5062 = vpack.c.bf16 %v4711, %v4711
        %v5063 = vpack.c.bf16 %v4713, %v4713
        %v5064 = vpack.c.bf16 %v4715, %v4715
        %v5065 = vpack.c.bf16 %v4717, %v4717
        %v5066 = vpack.c.bf16 %v4719, %v4719
        %v5067 = vpack.c.bf16 %v4721, %v4721
        %v5068 = vpack.c.bf16 %v4723, %v4723
        %v5069 = vpack.c.bf16 %v4725, %v4725
        %v5070 = vpack.c.bf16 %v4727, %v4727
        %v5071 = vpack.c.bf16 %v4729, %v4729
        %v5072 = vpack.c.bf16 %v4731, %v4731
        %v5073 = vpack.c.bf16 %v4733, %v4733
        %v5074 = vpack.c.bf16 %v4735, %v4735
        %v5075 = vpack.c.bf16 %v4737, %v4737
        %v5076 = vpack.c.bf16 %v4739, %v4739
        %v5077 = vpack.c.bf16 %v4741, %v4741
        %v5078 = vpack.c.bf16 %v4743, %v4743
        %v5079 = vpack.c.bf16 %v4745, %v4745
        %v5080 = vpack.c.bf16 %v4747, %v4747
        %v5081 = vpack.c.bf16 %v4749, %v4749
        %v5082 = vpack.c.bf16 %v4751, %v4751
        %v5083 = vpack.c.bf16 %v4753, %v4753
        %v5084 = vpack.c.bf16 %v4755, %v4755
        %v5085 = vpack.c.bf16 %v4757, %v4757
        %v5086 = vpack.c.bf16 %v4759, %v4759
        %v5087 = vpack.c.bf16 %v4761, %v4761
        %v5088 = vpack.c.bf16 %v4763, %v4763
        %v5089 = vpack.c.bf16 %v4765, %v4765
        %v5090 = vpack.c.bf16 %v4767, %v4767
        %v5091 = vpack.c.bf16 %v4769, %v4769
        %v5092 = vpack.c.bf16 %v4771, %v4771
        %v5093 = vpack.c.bf16 %v4773, %v4773
        %v5094 = vpack.c.bf16 %v4775, %v4775
        %v5095 = vpack.c.bf16 %v4777, %v4777
        %v5096 = vpack.c.bf16 %v4779, %v4779
        %v5097 = vpack.c.bf16 %v4781, %v4781
        %v5098 = vpack.c.bf16 %v4783, %v4783
        %v5099 = vpack.c.bf16 %v4785, %v4785
        %v5100 = vpack.c.bf16 %v4787, %v4787
        %v5101 = vpack.c.bf16 %v4789, %v4789
        %v5102 = vpack.c.bf16 %v4791, %v4791
        %v5103 = vpack.c.bf16 %v4793, %v4793
        %v5104 = vpack.c.bf16 %v4795, %v4795
        %v5105 = vpack.c.bf16 %v4797, %v4797
        %v5106 = vpack.c.bf16 %v4799, %v4799
        %v5107 = vpack.c.bf16 %v4801, %v4801
        %v5108 = vpack.c.bf16 %v4803, %v4803
        %v5109 = vpack.c.bf16 %v4805, %v4805
        %v5110 = vpack.c.bf16 %v4807, %v4807
        %v5111 = vpack.c.bf16 %v4809, %v4809
        %v5112 = vpack.c.bf16 %v4811, %v4811
        %v5113 = vpack.c.bf16 %v4813, %v4813
        %v5114 = vpack.c.bf16 %v4815, %v4815
        %v5115 = vpack.c.bf16 %v4817, %v4817
        %v5116 = vpack.c.bf16 %v4819, %v4819
        %v5117 = vpack.c.bf16 %v4821, %v4821
        %v5118 = vpack.c.bf16 %v4823, %v4823
        %v5119 = vpack.c.bf16 %v4825, %v4825
        %v5120 = vpack.c.bf16 %v4827, %v4827
        %v5121 = vpack.c.bf16 %v4829, %v4829
        %v5122 = vpack.c.bf16 %v4831, %v4831
        %v5123 = vpack.c.bf16 %v4833, %v4833
        %v5124 = vpack.c.bf16 %v4835, %v4835
        %v5125 = vpack.c.bf16 %v4837, %v4837
        %v5126 = vpack.c.bf16 %v4839, %v4839
        %v5127 = vpack.c.bf16 %v4841, %v4841
        %v5128 = vpack.c.bf16 %v4843, %v4843
        %v5129 = vpack.c.bf16 %v4845, %v4845
        %v5130 = vpack.c.bf16 %v4847, %v4847
        %v5131 = vpack.c.bf16 %v4849, %v4849
        %v5132 = vpack.c.bf16 %v4851, %v4851
        %v5133 = vpack.c.bf16 %v4853, %v4853
        %v5134 = vpack.c.bf16 %v4855, %v4855
        %v5135 = vpack.c.bf16 %v4857, %v4857
        %v5136 = vpack.c.bf16 %v4859, %v4859
        %v5137 = vpack.c.bf16 %v4861, %v4861
        %v5138 = vpack.c.bf16 %v4863, %v4863
        %v5139 = vpack.c.bf16 %v4865, %v4865
        %v5140 = vpack.c.bf16 %v4867, %v4867
        %v5141 = vpack.c.bf16 %v4869, %v4869
        %v5142 = vpack.c.bf16 %v4871, %v4871
        %v5143 = vpack.c.bf16 %v4873, %v4873
        %v5144 = vpack.c.bf16 %v4875, %v4875
        %v5145 = vpack.c.bf16 %v4877, %v4877
        %v5146 = vpack.c.bf16 %v4879, %v4879
        %v5147 = vpack.c.bf16 %v4881, %v4881
        %v5148 = vpack.c.bf16 %v4883, %v4883
        %v5149 = vpack.c.bf16 %v4885, %v4885
        %v5150 = vpack.c.bf16 %v4887, %v4887
        %v5151 = vpack.c.bf16 %v4889, %v4889
        %v5152 = vpack.c.bf16 %v4891, %v4891
        %v5153 = vpack.c.bf16 %v4893, %v4893
        %v5154 = vpack.c.bf16 %v4895, %v4895
        %v5155 = vpack.c.bf16 %v4897, %v4897
        %v5156 = vpack.c.bf16 %v4899, %v4899
        %v5161 = vunpack.c.l.b16 %v5029
        %v5162 = vunpack.c.l.b16 %v5030
        %v5163 = vunpack.c.l.b16 %v5031
        %v5164 = vunpack.c.l.b16 %v5032
        %v5165 = vpack.c.b16 %v5162, %v5161
        %v5166 = vpack.c.b16 %v5164, %v5163
        %v5171 = vunpack.c.l.b16 %v4901
        %v5172 = vunpack.c.l.b16 %v4902
        %v5173 = vunpack.c.l.b16 %v4903
        %v5174 = vunpack.c.l.b16 %v4904
        %v5175 = vpack.c.b16 %v5172, %v5171
        %v5176 = vpack.c.b16 %v5174, %v5173
        %5181 = vrot.lane.b32.xlu0 %v4646, 64
        %v5182 = vpop.permute.xlu0 %5181
        %5183 = vrot.lane.b32.xlu0 %v4648, 64
        %v5184 = vpop.permute.xlu0 %5183
        %5185 = vrot.lane.b32.xlu0 %v4650, 64
        %v5186 = vpop.permute.xlu0 %5185
        %5187 = vrot.lane.b32.xlu0 %v4652, 64
        %v5188 = vpop.permute.xlu0 %5187
        %v5194 = vsel %vm1429, %v5165, 0
        %v5197 = vsel %vm1429, %v5166, 0
        %v5200 = vsel %vm1429, %v5175, 0
        %v5203 = vsel %vm1429, %v5176, 0
        %5205 = vmatpush.bf16.xpose.msra.mxu0 0
        %5206 = vmatpush.bf16.xpose.msra.mxu0 0
        %5207 = vmatpush.bf16.xpose.msra.mxu0 0
        %5208 = vmatpush.bf16.xpose.msra.mxu0 0
        %5209 = vmatpush.bf16.xpose.msra.mxu0 0
        %5210 = vmatpush.bf16.xpose.msra.mxu0 0
        %5211 = vmatpush.bf16.xpose.msra.mxu0 %v5203
        %5212 = vmatpush.bf16.xpose.msra.mxu0 %v5200
        %5213 = vmatmul.bf16.gmra.mxu0 %v5194
        %v5214 = vpop.f32.mrf.mxu0
        %v5215 = vadd.f32 %v5182, %v5214
        %v5216 = vpop.f32.mrf.mxu0
        %v5217 = vadd.f32 %v5184, %v5216
        %5218 = vmatmul.bf16.gmra.mxu0 %v5197
        %v5219 = vpop.f32.mrf.mxu0
        %v5220 = vadd.f32 %v5186, %v5219
        %v5221 = vpop.f32.mrf.mxu0
        %v5222 = vadd.f32 %v5188, %v5221
        %5223 = vdwg.mxu0
        %v5228 = vunpack.c.l.b16 %v5033
        %v5229 = vunpack.c.l.b16 %v5034
        %v5230 = vunpack.c.l.b16 %v5035
        %v5231 = vunpack.c.l.b16 %v5036
        %v5232 = vpack.c.b16 %v5229, %v5228
        %v5233 = vpack.c.b16 %v5231, %v5230
        %v5238 = vunpack.c.l.b16 %v4905
        %v5239 = vunpack.c.l.b16 %v4906
        %v5240 = vunpack.c.l.b16 %v4907
        %v5241 = vunpack.c.l.b16 %v4908
        %v5242 = vpack.c.b16 %v5239, %v5238
        %v5243 = vpack.c.b16 %v5241, %v5240
        %5248 = vrot.lane.b32.xlu0 %v4654, 64
        %v5249 = vpop.permute.xlu0 %5248
        %5250 = vrot.lane.b32.xlu0 %v4656, 64
        %v5251 = vpop.permute.xlu0 %5250
        %5252 = vrot.lane.b32.xlu0 %v4658, 64
        %v5253 = vpop.permute.xlu0 %5252
        %5254 = vrot.lane.b32.xlu0 %v4660, 64
        %v5255 = vpop.permute.xlu0 %5254
        %v5261 = vsel %vm1429, %v5232, 0
        %v5264 = vsel %vm1429, %v5233, 0
        %v5267 = vsel %vm1429, %v5242, 0
        %v5270 = vsel %vm1429, %v5243, 0
        %5272 = vmatpush.bf16.xpose.msra.mxu0 0
        %5273 = vmatpush.bf16.xpose.msra.mxu0 0
        %5274 = vmatpush.bf16.xpose.msra.mxu0 0
        %5275 = vmatpush.bf16.xpose.msra.mxu0 0
        %5276 = vmatpush.bf16.xpose.msra.mxu0 0
        %5277 = vmatpush.bf16.xpose.msra.mxu0 0
        %5278 = vmatpush.bf16.xpose.msra.mxu0 %v5270
        %5279 = vmatpush.bf16.xpose.msra.mxu0 %v5267
        %5280 = vmatmul.bf16.gmra.mxu0 %v5261
        %v5281 = vpop.f32.mrf.mxu0
        %v5282 = vadd.f32 %v5249, %v5281
        %v5283 = vpop.f32.mrf.mxu0
        %v5284 = vadd.f32 %v5251, %v5283
        %5285 = vmatmul.bf16.gmra.mxu0 %v5264
        %v5286 = vpop.f32.mrf.mxu0
        %v5287 = vadd.f32 %v5253, %v5286
        %v5288 = vpop.f32.mrf.mxu0
        %v5289 = vadd.f32 %v5255, %v5288
        %5290 = vdwg.mxu0
        %v5295 = vunpack.c.l.b16 %v5037
        %v5296 = vunpack.c.l.b16 %v5038
        %v5297 = vunpack.c.l.b16 %v5039
        %v5298 = vunpack.c.l.b16 %v5040
        %v5299 = vpack.c.b16 %v5296, %v5295
        %v5300 = vpack.c.b16 %v5298, %v5297
        %v5305 = vunpack.c.l.b16 %v4909
        %v5306 = vunpack.c.l.b16 %v4910
        %v5307 = vunpack.c.l.b16 %v4911
        %v5308 = vunpack.c.l.b16 %v4912
        %v5309 = vpack.c.b16 %v5306, %v5305
        %v5310 = vpack.c.b16 %v5308, %v5307
        %5315 = vrot.lane.b32.xlu0 %v4662, 64
        %v5316 = vpop.permute.xlu0 %5315
        %5317 = vrot.lane.b32.xlu0 %v4664, 64
        %v5318 = vpop.permute.xlu0 %5317
        %5319 = vrot.lane.b32.xlu0 %v4666, 64
        %v5320 = vpop.permute.xlu0 %5319
        %5321 = vrot.lane.b32.xlu0 %v4668, 64
        %v5322 = vpop.permute.xlu0 %5321
        %v5328 = vsel %vm1429, %v5299, 0
        %v5331 = vsel %vm1429, %v5300, 0
        %v5334 = vsel %vm1429, %v5309, 0
        %v5337 = vsel %vm1429, %v5310, 0
        %5339 = vmatpush.bf16.xpose.msra.mxu0 0
        %5340 = vmatpush.bf16.xpose.msra.mxu0 0
        %5341 = vmatpush.bf16.xpose.msra.mxu0 0
        %5342 = vmatpush.bf16.xpose.msra.mxu0 0
        %5343 = vmatpush.bf16.xpose.msra.mxu0 0
        %5344 = vmatpush.bf16.xpose.msra.mxu0 0
        %5345 = vmatpush.bf16.xpose.msra.mxu0 %v5337
        %5346 = vmatpush.bf16.xpose.msra.mxu0 %v5334
        %5347 = vmatmul.bf16.gmra.mxu0 %v5328
        %v5348 = vpop.f32.mrf.mxu0
        %v5349 = vadd.f32 %v5316, %v5348
        %v5350 = vpop.f32.mrf.mxu0
        %v5351 = vadd.f32 %v5318, %v5350
        %5352 = vmatmul.bf16.gmra.mxu0 %v5331
        %v5353 = vpop.f32.mrf.mxu0
        %v5354 = vadd.f32 %v5320, %v5353
        %v5355 = vpop.f32.mrf.mxu0
        %v5356 = vadd.f32 %v5322, %v5355
        %5357 = vdwg.mxu0
        %v5362 = vunpack.c.l.b16 %v5041
        %v5363 = vunpack.c.l.b16 %v5042
        %v5364 = vunpack.c.l.b16 %v5043
        %v5365 = vunpack.c.l.b16 %v5044
        %v5366 = vpack.c.b16 %v5363, %v5362
        %v5367 = vpack.c.b16 %v5365, %v5364
        %v5372 = vunpack.c.l.b16 %v4913
        %v5373 = vunpack.c.l.b16 %v4914
        %v5374 = vunpack.c.l.b16 %v4915
        %v5375 = vunpack.c.l.b16 %v4916
        %v5376 = vpack.c.b16 %v5373, %v5372
        %v5377 = vpack.c.b16 %v5375, %v5374
        %5382 = vrot.lane.b32.xlu0 %v4670, 64
        %v5383 = vpop.permute.xlu0 %5382
        %5384 = vrot.lane.b32.xlu0 %v4672, 64
        %v5385 = vpop.permute.xlu0 %5384
        %5386 = vrot.lane.b32.xlu0 %v4674, 64
        %v5387 = vpop.permute.xlu0 %5386
        %5388 = vrot.lane.b32.xlu0 %v4676, 64
        %v5389 = vpop.permute.xlu0 %5388
        %v5395 = vsel %vm1429, %v5366, 0
        %v5398 = vsel %vm1429, %v5367, 0
        %v5401 = vsel %vm1429, %v5376, 0
        %v5404 = vsel %vm1429, %v5377, 0
        %5406 = vmatpush.bf16.xpose.msra.mxu0 0
        %5407 = vmatpush.bf16.xpose.msra.mxu0 0
        %5408 = vmatpush.bf16.xpose.msra.mxu0 0
        %5409 = vmatpush.bf16.xpose.msra.mxu0 0
        %5410 = vmatpush.bf16.xpose.msra.mxu0 0
        %5411 = vmatpush.bf16.xpose.msra.mxu0 0
        %5412 = vmatpush.bf16.xpose.msra.mxu0 %v5404
        %5413 = vmatpush.bf16.xpose.msra.mxu0 %v5401
        %5414 = vmatmul.bf16.gmra.mxu0 %v5395
        %v5415 = vpop.f32.mrf.mxu0
        %v5416 = vadd.f32 %v5383, %v5415
        %v5417 = vpop.f32.mrf.mxu0
        %v5418 = vadd.f32 %v5385, %v5417
        %5419 = vmatmul.bf16.gmra.mxu0 %v5398
        %v5420 = vpop.f32.mrf.mxu0
        %v5421 = vadd.f32 %v5387, %v5420
        %v5422 = vpop.f32.mrf.mxu0
        %v5423 = vadd.f32 %v5389, %v5422
        %5424 = vdwg.mxu0
        %v5429 = vunpack.c.l.b16 %v5045
        %v5430 = vunpack.c.l.b16 %v5046
        %v5431 = vunpack.c.l.b16 %v5047
        %v5432 = vunpack.c.l.b16 %v5048
        %v5433 = vpack.c.b16 %v5430, %v5429
        %v5434 = vpack.c.b16 %v5432, %v5431
        %v5439 = vunpack.c.l.b16 %v4917
        %v5440 = vunpack.c.l.b16 %v4918
        %v5441 = vunpack.c.l.b16 %v4919
        %v5442 = vunpack.c.l.b16 %v4920
        %v5443 = vpack.c.b16 %v5440, %v5439
        %v5444 = vpack.c.b16 %v5442, %v5441
        %5449 = vrot.lane.b32.xlu0 %v4678, 64
        %v5450 = vpop.permute.xlu0 %5449
        %5451 = vrot.lane.b32.xlu0 %v4680, 64
        %v5452 = vpop.permute.xlu0 %5451
        %5453 = vrot.lane.b32.xlu0 %v4682, 64
        %v5454 = vpop.permute.xlu0 %5453
        %5455 = vrot.lane.b32.xlu0 %v4684, 64
        %v5456 = vpop.permute.xlu0 %5455
        %v5462 = vsel %vm1429, %v5433, 0
        %v5465 = vsel %vm1429, %v5434, 0
        %v5468 = vsel %vm1429, %v5443, 0
        %v5471 = vsel %vm1429, %v5444, 0
        %5473 = vmatpush.bf16.xpose.msra.mxu0 0
        %5474 = vmatpush.bf16.xpose.msra.mxu0 0
        %5475 = vmatpush.bf16.xpose.msra.mxu0 0
        %5476 = vmatpush.bf16.xpose.msra.mxu0 0
        %5477 = vmatpush.bf16.xpose.msra.mxu0 0
        %5478 = vmatpush.bf16.xpose.msra.mxu0 0
        %5479 = vmatpush.bf16.xpose.msra.mxu0 %v5471
        %5480 = vmatpush.bf16.xpose.msra.mxu0 %v5468
        %5481 = vmatmul.bf16.gmra.mxu0 %v5462
        %v5482 = vpop.f32.mrf.mxu0
        %v5483 = vadd.f32 %v5450, %v5482
        %v5484 = vpop.f32.mrf.mxu0
        %v5485 = vadd.f32 %v5452, %v5484
        %5486 = vmatmul.bf16.gmra.mxu0 %v5465
        %v5487 = vpop.f32.mrf.mxu0
        %v5488 = vadd.f32 %v5454, %v5487
        %v5489 = vpop.f32.mrf.mxu0
        %v5490 = vadd.f32 %v5456, %v5489
        %5491 = vdwg.mxu0
        %v5496 = vunpack.c.l.b16 %v5049
        %v5497 = vunpack.c.l.b16 %v5050
        %v5498 = vunpack.c.l.b16 %v5051
        %v5499 = vunpack.c.l.b16 %v5052
        %v5500 = vpack.c.b16 %v5497, %v5496
        %v5501 = vpack.c.b16 %v5499, %v5498
        %v5506 = vunpack.c.l.b16 %v4921
        %v5507 = vunpack.c.l.b16 %v4922
        %v5508 = vunpack.c.l.b16 %v4923
        %v5509 = vunpack.c.l.b16 %v4924
        %v5510 = vpack.c.b16 %v5507, %v5506
        %v5511 = vpack.c.b16 %v5509, %v5508
        %5516 = vrot.lane.b32.xlu0 %v4686, 64
        %v5517 = vpop.permute.xlu0 %5516
        %5518 = vrot.lane.b32.xlu0 %v4688, 64
        %v5519 = vpop.permute.xlu0 %5518
        %5520 = vrot.lane.b32.xlu0 %v4690, 64
        %v5521 = vpop.permute.xlu0 %5520
        %5522 = vrot.lane.b32.xlu0 %v4692, 64
        %v5523 = vpop.permute.xlu0 %5522
        %v5529 = vsel %vm1429, %v5500, 0
        %v5532 = vsel %vm1429, %v5501, 0
        %v5535 = vsel %vm1429, %v5510, 0
        %v5538 = vsel %vm1429, %v5511, 0
        %5540 = vmatpush.bf16.xpose.msra.mxu0 0
        %5541 = vmatpush.bf16.xpose.msra.mxu0 0
        %5542 = vmatpush.bf16.xpose.msra.mxu0 0
        %5543 = vmatpush.bf16.xpose.msra.mxu0 0
        %5544 = vmatpush.bf16.xpose.msra.mxu0 0
        %5545 = vmatpush.bf16.xpose.msra.mxu0 0
        %5546 = vmatpush.bf16.xpose.msra.mxu0 %v5538
        %5547 = vmatpush.bf16.xpose.msra.mxu0 %v5535
        %5548 = vmatmul.bf16.gmra.mxu0 %v5529
        %v5549 = vpop.f32.mrf.mxu0
        %v5550 = vadd.f32 %v5517, %v5549
        %v5551 = vpop.f32.mrf.mxu0
        %v5552 = vadd.f32 %v5519, %v5551
        %5553 = vmatmul.bf16.gmra.mxu0 %v5532
        %v5554 = vpop.f32.mrf.mxu0
        %v5555 = vadd.f32 %v5521, %v5554
        %v5556 = vpop.f32.mrf.mxu0
        %v5557 = vadd.f32 %v5523, %v5556
        %5558 = vdwg.mxu0
        %v5563 = vunpack.c.l.b16 %v5053
        %v5564 = vunpack.c.l.b16 %v5054
        %v5565 = vunpack.c.l.b16 %v5055
        %v5566 = vunpack.c.l.b16 %v5056
        %v5567 = vpack.c.b16 %v5564, %v5563
        %v5568 = vpack.c.b16 %v5566, %v5565
        %v5573 = vunpack.c.l.b16 %v4925
        %v5574 = vunpack.c.l.b16 %v4926
        %v5575 = vunpack.c.l.b16 %v4927
        %v5576 = vunpack.c.l.b16 %v4928
        %v5577 = vpack.c.b16 %v5574, %v5573
        %v5578 = vpack.c.b16 %v5576, %v5575
        %5583 = vrot.lane.b32.xlu0 %v4694, 64
        %v5584 = vpop.permute.xlu0 %5583
        %5585 = vrot.lane.b32.xlu0 %v4696, 64
        %v5586 = vpop.permute.xlu0 %5585
        %5587 = vrot.lane.b32.xlu0 %v4698, 64
        %v5588 = vpop.permute.xlu0 %5587
        %5589 = vrot.lane.b32.xlu0 %v4700, 64
        %v5590 = vpop.permute.xlu0 %5589
        %v5596 = vsel %vm1429, %v5567, 0
        %v5599 = vsel %vm1429, %v5568, 0
        %v5602 = vsel %vm1429, %v5577, 0
        %v5605 = vsel %vm1429, %v5578, 0
        %5607 = vmatpush.bf16.xpose.msra.mxu0 0
        %5608 = vmatpush.bf16.xpose.msra.mxu0 0
        %5609 = vmatpush.bf16.xpose.msra.mxu0 0
        %5610 = vmatpush.bf16.xpose.msra.mxu0 0
        %5611 = vmatpush.bf16.xpose.msra.mxu0 0
        %5612 = vmatpush.bf16.xpose.msra.mxu0 0
        %5613 = vmatpush.bf16.xpose.msra.mxu0 %v5605
        %5614 = vmatpush.bf16.xpose.msra.mxu0 %v5602
        %5615 = vmatmul.bf16.gmra.mxu0 %v5596
        %v5616 = vpop.f32.mrf.mxu0
        %v5617 = vadd.f32 %v5584, %v5616
        %v5618 = vpop.f32.mrf.mxu0
        %v5619 = vadd.f32 %v5586, %v5618
        %5620 = vmatmul.bf16.gmra.mxu0 %v5599
        %v5621 = vpop.f32.mrf.mxu0
        %v5622 = vadd.f32 %v5588, %v5621
        %v5623 = vpop.f32.mrf.mxu0
        %v5624 = vadd.f32 %v5590, %v5623
        %5625 = vdwg.mxu0
        %v5630 = vunpack.c.l.b16 %v5057
        %v5631 = vunpack.c.l.b16 %v5058
        %v5632 = vunpack.c.l.b16 %v5059
        %v5633 = vunpack.c.l.b16 %v5060
        %v5634 = vpack.c.b16 %v5631, %v5630
        %v5635 = vpack.c.b16 %v5633, %v5632
        %v5640 = vunpack.c.l.b16 %v4929
        %v5641 = vunpack.c.l.b16 %v4930
        %v5642 = vunpack.c.l.b16 %v4931
        %v5643 = vunpack.c.l.b16 %v4932
        %v5644 = vpack.c.b16 %v5641, %v5640
        %v5645 = vpack.c.b16 %v5643, %v5642
        %5650 = vrot.lane.b32.xlu0 %v4702, 64
        %v5651 = vpop.permute.xlu0 %5650
        %5652 = vrot.lane.b32.xlu0 %v4704, 64
        %v5653 = vpop.permute.xlu0 %5652
        %5654 = vrot.lane.b32.xlu0 %v4706, 64
        %v5655 = vpop.permute.xlu0 %5654
        %5656 = vrot.lane.b32.xlu0 %v4708, 64
        %v5657 = vpop.permute.xlu0 %5656
        %v5663 = vsel %vm1429, %v5634, 0
        %v5666 = vsel %vm1429, %v5635, 0
        %v5669 = vsel %vm1429, %v5644, 0
        %v5672 = vsel %vm1429, %v5645, 0
        %5674 = vmatpush.bf16.xpose.msra.mxu0 0
        %5675 = vmatpush.bf16.xpose.msra.mxu0 0
        %5676 = vmatpush.bf16.xpose.msra.mxu0 0
        %5677 = vmatpush.bf16.xpose.msra.mxu0 0
        %5678 = vmatpush.bf16.xpose.msra.mxu0 0
        %5679 = vmatpush.bf16.xpose.msra.mxu0 0
        %5680 = vmatpush.bf16.xpose.msra.mxu0 %v5672
        %5681 = vmatpush.bf16.xpose.msra.mxu0 %v5669
        %5682 = vmatmul.bf16.gmra.mxu0 %v5663
        %v5683 = vpop.f32.mrf.mxu0
        %v5684 = vadd.f32 %v5651, %v5683
        %v5685 = vpop.f32.mrf.mxu0
        %v5686 = vadd.f32 %v5653, %v5685
        %5687 = vmatmul.bf16.gmra.mxu0 %v5666
        %v5688 = vpop.f32.mrf.mxu0
        %v5689 = vadd.f32 %v5655, %v5688
        %v5690 = vpop.f32.mrf.mxu0
        %v5691 = vadd.f32 %v5657, %v5690
        %5692 = vdwg.mxu0
        %v5697 = vunpack.c.l.b16 %v5061
        %v5698 = vunpack.c.l.b16 %v5062
        %v5699 = vunpack.c.l.b16 %v5063
        %v5700 = vunpack.c.l.b16 %v5064
        %v5701 = vpack.c.b16 %v5698, %v5697
        %v5702 = vpack.c.b16 %v5700, %v5699
        %v5707 = vunpack.c.l.b16 %v4933
        %v5708 = vunpack.c.l.b16 %v4934
        %v5709 = vunpack.c.l.b16 %v4935
        %v5710 = vunpack.c.l.b16 %v4936
        %v5711 = vpack.c.b16 %v5708, %v5707
        %v5712 = vpack.c.b16 %v5710, %v5709
        %5717 = vrot.lane.b32.xlu0 %v4710, 64
        %v5718 = vpop.permute.xlu0 %5717
        %5719 = vrot.lane.b32.xlu0 %v4712, 64
        %v5720 = vpop.permute.xlu0 %5719
        %5721 = vrot.lane.b32.xlu0 %v4714, 64
        %v5722 = vpop.permute.xlu0 %5721
        %5723 = vrot.lane.b32.xlu0 %v4716, 64
        %v5724 = vpop.permute.xlu0 %5723
        %v5730 = vsel %vm1429, %v5701, 0
        %v5733 = vsel %vm1429, %v5702, 0
        %v5736 = vsel %vm1429, %v5711, 0
        %v5739 = vsel %vm1429, %v5712, 0
        %5741 = vmatpush.bf16.xpose.msra.mxu0 0
        %5742 = vmatpush.bf16.xpose.msra.mxu0 0
        %5743 = vmatpush.bf16.xpose.msra.mxu0 0
        %5744 = vmatpush.bf16.xpose.msra.mxu0 0
        %5745 = vmatpush.bf16.xpose.msra.mxu0 0
        %5746 = vmatpush.bf16.xpose.msra.mxu0 0
        %5747 = vmatpush.bf16.xpose.msra.mxu0 %v5739
        %5748 = vmatpush.bf16.xpose.msra.mxu0 %v5736
        %5749 = vmatmul.bf16.gmra.mxu0 %v5730
        %v5750 = vpop.f32.mrf.mxu0
        %v5751 = vadd.f32 %v5718, %v5750
        %v5752 = vpop.f32.mrf.mxu0
        %v5753 = vadd.f32 %v5720, %v5752
        %5754 = vmatmul.bf16.gmra.mxu0 %v5733
        %v5755 = vpop.f32.mrf.mxu0
        %v5756 = vadd.f32 %v5722, %v5755
        %v5757 = vpop.f32.mrf.mxu0
        %v5758 = vadd.f32 %v5724, %v5757
        %5759 = vdwg.mxu0
        %v5764 = vunpack.c.l.b16 %v5065
        %v5765 = vunpack.c.l.b16 %v5066
        %v5766 = vunpack.c.l.b16 %v5067
        %v5767 = vunpack.c.l.b16 %v5068
        %v5768 = vpack.c.b16 %v5765, %v5764
        %v5769 = vpack.c.b16 %v5767, %v5766
        %v5774 = vunpack.c.l.b16 %v4937
        %v5775 = vunpack.c.l.b16 %v4938
        %v5776 = vunpack.c.l.b16 %v4939
        %v5777 = vunpack.c.l.b16 %v4940
        %v5778 = vpack.c.b16 %v5775, %v5774
        %v5779 = vpack.c.b16 %v5777, %v5776
        %5784 = vrot.lane.b32.xlu0 %v4718, 64
        %v5785 = vpop.permute.xlu0 %5784
        %5786 = vrot.lane.b32.xlu0 %v4720, 64
        %v5787 = vpop.permute.xlu0 %5786
        %5788 = vrot.lane.b32.xlu0 %v4722, 64
        %v5789 = vpop.permute.xlu0 %5788
        %5790 = vrot.lane.b32.xlu0 %v4724, 64
        %v5791 = vpop.permute.xlu0 %5790
        %v5797 = vsel %vm1429, %v5768, 0
        %v5800 = vsel %vm1429, %v5769, 0
        %v5803 = vsel %vm1429, %v5778, 0
        %v5806 = vsel %vm1429, %v5779, 0
        %5808 = vmatpush.bf16.xpose.msra.mxu0 0
        %5809 = vmatpush.bf16.xpose.msra.mxu0 0
        %5810 = vmatpush.bf16.xpose.msra.mxu0 0
        %5811 = vmatpush.bf16.xpose.msra.mxu0 0
        %5812 = vmatpush.bf16.xpose.msra.mxu0 0
        %5813 = vmatpush.bf16.xpose.msra.mxu0 0
        %5814 = vmatpush.bf16.xpose.msra.mxu0 %v5806
        %5815 = vmatpush.bf16.xpose.msra.mxu0 %v5803
        %5816 = vmatmul.bf16.gmra.mxu0 %v5797
        %v5817 = vpop.f32.mrf.mxu0
        %v5818 = vadd.f32 %v5785, %v5817
        %v5819 = vpop.f32.mrf.mxu0
        %v5820 = vadd.f32 %v5787, %v5819
        %5821 = vmatmul.bf16.gmra.mxu0 %v5800
        %v5822 = vpop.f32.mrf.mxu0
        %v5823 = vadd.f32 %v5789, %v5822
        %v5824 = vpop.f32.mrf.mxu0
        %v5825 = vadd.f32 %v5791, %v5824
        %5826 = vdwg.mxu0
        %v5831 = vunpack.c.l.b16 %v5069
        %v5832 = vunpack.c.l.b16 %v5070
        %v5833 = vunpack.c.l.b16 %v5071
        %v5834 = vunpack.c.l.b16 %v5072
        %v5835 = vpack.c.b16 %v5832, %v5831
        %v5836 = vpack.c.b16 %v5834, %v5833
        %v5841 = vunpack.c.l.b16 %v4941
        %v5842 = vunpack.c.l.b16 %v4942
        %v5843 = vunpack.c.l.b16 %v4943
        %v5844 = vunpack.c.l.b16 %v4944
        %v5845 = vpack.c.b16 %v5842, %v5841
        %v5846 = vpack.c.b16 %v5844, %v5843
        %5851 = vrot.lane.b32.xlu0 %v4726, 64
        %v5852 = vpop.permute.xlu0 %5851
        %5853 = vrot.lane.b32.xlu0 %v4728, 64
        %v5854 = vpop.permute.xlu0 %5853
        %5855 = vrot.lane.b32.xlu0 %v4730, 64
        %v5856 = vpop.permute.xlu0 %5855
        %5857 = vrot.lane.b32.xlu0 %v4732, 64
        %v5858 = vpop.permute.xlu0 %5857
        %v5864 = vsel %vm1429, %v5835, 0
        %v5867 = vsel %vm1429, %v5836, 0
        %v5870 = vsel %vm1429, %v5845, 0
        %v5873 = vsel %vm1429, %v5846, 0
        %5875 = vmatpush.bf16.xpose.msra.mxu0 0
        %5876 = vmatpush.bf16.xpose.msra.mxu0 0
        %5877 = vmatpush.bf16.xpose.msra.mxu0 0
        %5878 = vmatpush.bf16.xpose.msra.mxu0 0
        %5879 = vmatpush.bf16.xpose.msra.mxu0 0
        %5880 = vmatpush.bf16.xpose.msra.mxu0 0
        %5881 = vmatpush.bf16.xpose.msra.mxu0 %v5873
        %5882 = vmatpush.bf16.xpose.msra.mxu0 %v5870
        %5883 = vmatmul.bf16.gmra.mxu0 %v5864
        %v5884 = vpop.f32.mrf.mxu0
        %v5885 = vadd.f32 %v5852, %v5884
        %v5886 = vpop.f32.mrf.mxu0
        %v5887 = vadd.f32 %v5854, %v5886
        %5888 = vmatmul.bf16.gmra.mxu0 %v5867
        %v5889 = vpop.f32.mrf.mxu0
        %v5890 = vadd.f32 %v5856, %v5889
        %v5891 = vpop.f32.mrf.mxu0
        %v5892 = vadd.f32 %v5858, %v5891
        %5893 = vdwg.mxu0
        %v5898 = vunpack.c.l.b16 %v5073
        %v5899 = vunpack.c.l.b16 %v5074
        %v5900 = vunpack.c.l.b16 %v5075
        %v5901 = vunpack.c.l.b16 %v5076
        %v5902 = vpack.c.b16 %v5899, %v5898
        %v5903 = vpack.c.b16 %v5901, %v5900
        %v5908 = vunpack.c.l.b16 %v4945
        %v5909 = vunpack.c.l.b16 %v4946
        %v5910 = vunpack.c.l.b16 %v4947
        %v5911 = vunpack.c.l.b16 %v4948
        %v5912 = vpack.c.b16 %v5909, %v5908
        %v5913 = vpack.c.b16 %v5911, %v5910
        %5918 = vrot.lane.b32.xlu0 %v4734, 64
        %v5919 = vpop.permute.xlu0 %5918
        %5920 = vrot.lane.b32.xlu0 %v4736, 64
        %v5921 = vpop.permute.xlu0 %5920
        %5922 = vrot.lane.b32.xlu0 %v4738, 64
        %v5923 = vpop.permute.xlu0 %5922
        %5924 = vrot.lane.b32.xlu0 %v4740, 64
        %v5925 = vpop.permute.xlu0 %5924
        %v5931 = vsel %vm1429, %v5902, 0
        %v5934 = vsel %vm1429, %v5903, 0
        %v5937 = vsel %vm1429, %v5912, 0
        %v5940 = vsel %vm1429, %v5913, 0
        %5942 = vmatpush.bf16.xpose.msra.mxu0 0
        %5943 = vmatpush.bf16.xpose.msra.mxu0 0
        %5944 = vmatpush.bf16.xpose.msra.mxu0 0
        %5945 = vmatpush.bf16.xpose.msra.mxu0 0
        %5946 = vmatpush.bf16.xpose.msra.mxu0 0
        %5947 = vmatpush.bf16.xpose.msra.mxu0 0
        %5948 = vmatpush.bf16.xpose.msra.mxu0 %v5940
        %5949 = vmatpush.bf16.xpose.msra.mxu0 %v5937
        %5950 = vmatmul.bf16.gmra.mxu0 %v5931
        %v5951 = vpop.f32.mrf.mxu0
        %v5952 = vadd.f32 %v5919, %v5951
        %v5953 = vpop.f32.mrf.mxu0
        %v5954 = vadd.f32 %v5921, %v5953
        %5955 = vmatmul.bf16.gmra.mxu0 %v5934
        %v5956 = vpop.f32.mrf.mxu0
        %v5957 = vadd.f32 %v5923, %v5956
        %v5958 = vpop.f32.mrf.mxu0
        %v5959 = vadd.f32 %v5925, %v5958
        %5960 = vdwg.mxu0
        %v5965 = vunpack.c.l.b16 %v5077
        %v5966 = vunpack.c.l.b16 %v5078
        %v5967 = vunpack.c.l.b16 %v5079
        %v5968 = vunpack.c.l.b16 %v5080
        %v5969 = vpack.c.b16 %v5966, %v5965
        %v5970 = vpack.c.b16 %v5968, %v5967
        %v5975 = vunpack.c.l.b16 %v4949
        %v5976 = vunpack.c.l.b16 %v4950
        %v5977 = vunpack.c.l.b16 %v4951
        %v5978 = vunpack.c.l.b16 %v4952
        %v5979 = vpack.c.b16 %v5976, %v5975
        %v5980 = vpack.c.b16 %v5978, %v5977
        %5985 = vrot.lane.b32.xlu0 %v4742, 64
        %v5986 = vpop.permute.xlu0 %5985
        %5987 = vrot.lane.b32.xlu0 %v4744, 64
        %v5988 = vpop.permute.xlu0 %5987
        %5989 = vrot.lane.b32.xlu0 %v4746, 64
        %v5990 = vpop.permute.xlu0 %5989
        %5991 = vrot.lane.b32.xlu0 %v4748, 64
        %v5992 = vpop.permute.xlu0 %5991
        %v5998 = vsel %vm1429, %v5969, 0
        %v6001 = vsel %vm1429, %v5970, 0
        %v6004 = vsel %vm1429, %v5979, 0
        %v6007 = vsel %vm1429, %v5980, 0
        %6009 = vmatpush.bf16.xpose.msra.mxu0 0
        %6010 = vmatpush.bf16.xpose.msra.mxu0 0
        %6011 = vmatpush.bf16.xpose.msra.mxu0 0
        %6012 = vmatpush.bf16.xpose.msra.mxu0 0
        %6013 = vmatpush.bf16.xpose.msra.mxu0 0
        %6014 = vmatpush.bf16.xpose.msra.mxu0 0
        %6015 = vmatpush.bf16.xpose.msra.mxu0 %v6007
        %6016 = vmatpush.bf16.xpose.msra.mxu0 %v6004
        %6017 = vmatmul.bf16.gmra.mxu0 %v5998
        %v6018 = vpop.f32.mrf.mxu0
        %v6019 = vadd.f32 %v5986, %v6018
        %v6020 = vpop.f32.mrf.mxu0
        %v6021 = vadd.f32 %v5988, %v6020
        %6022 = vmatmul.bf16.gmra.mxu0 %v6001
        %v6023 = vpop.f32.mrf.mxu0
        %v6024 = vadd.f32 %v5990, %v6023
        %v6025 = vpop.f32.mrf.mxu0
        %v6026 = vadd.f32 %v5992, %v6025
        %6027 = vdwg.mxu0
        %v6032 = vunpack.c.l.b16 %v5081
        %v6033 = vunpack.c.l.b16 %v5082
        %v6034 = vunpack.c.l.b16 %v5083
        %v6035 = vunpack.c.l.b16 %v5084
        %v6036 = vpack.c.b16 %v6033, %v6032
        %v6037 = vpack.c.b16 %v6035, %v6034
        %v6042 = vunpack.c.l.b16 %v4953
        %v6043 = vunpack.c.l.b16 %v4954
        %v6044 = vunpack.c.l.b16 %v4955
        %v6045 = vunpack.c.l.b16 %v4956
        %v6046 = vpack.c.b16 %v6043, %v6042
        %v6047 = vpack.c.b16 %v6045, %v6044
        %6052 = vrot.lane.b32.xlu0 %v4750, 64
        %v6053 = vpop.permute.xlu0 %6052
        %6054 = vrot.lane.b32.xlu0 %v4752, 64
        %v6055 = vpop.permute.xlu0 %6054
        %6056 = vrot.lane.b32.xlu0 %v4754, 64
        %v6057 = vpop.permute.xlu0 %6056
        %6058 = vrot.lane.b32.xlu0 %v4756, 64
        %v6059 = vpop.permute.xlu0 %6058
        %v6065 = vsel %vm1429, %v6036, 0
        %v6068 = vsel %vm1429, %v6037, 0
        %v6071 = vsel %vm1429, %v6046, 0
        %v6074 = vsel %vm1429, %v6047, 0
        %6076 = vmatpush.bf16.xpose.msra.mxu0 0
        %6077 = vmatpush.bf16.xpose.msra.mxu0 0
        %6078 = vmatpush.bf16.xpose.msra.mxu0 0
        %6079 = vmatpush.bf16.xpose.msra.mxu0 0
        %6080 = vmatpush.bf16.xpose.msra.mxu0 0
        %6081 = vmatpush.bf16.xpose.msra.mxu0 0
        %6082 = vmatpush.bf16.xpose.msra.mxu0 %v6074
        %6083 = vmatpush.bf16.xpose.msra.mxu0 %v6071
        %6084 = vmatmul.bf16.gmra.mxu0 %v6065
        %v6085 = vpop.f32.mrf.mxu0
        %v6086 = vadd.f32 %v6053, %v6085
        %v6087 = vpop.f32.mrf.mxu0
        %v6088 = vadd.f32 %v6055, %v6087
        %6089 = vmatmul.bf16.gmra.mxu0 %v6068
        %v6090 = vpop.f32.mrf.mxu0
        %v6091 = vadd.f32 %v6057, %v6090
        %v6092 = vpop.f32.mrf.mxu0
        %v6093 = vadd.f32 %v6059, %v6092
        %6094 = vdwg.mxu0
        %v6099 = vunpack.c.l.b16 %v5085
        %v6100 = vunpack.c.l.b16 %v5086
        %v6101 = vunpack.c.l.b16 %v5087
        %v6102 = vunpack.c.l.b16 %v5088
        %v6103 = vpack.c.b16 %v6100, %v6099
        %v6104 = vpack.c.b16 %v6102, %v6101
        %v6109 = vunpack.c.l.b16 %v4957
        %v6110 = vunpack.c.l.b16 %v4958
        %v6111 = vunpack.c.l.b16 %v4959
        %v6112 = vunpack.c.l.b16 %v4960
        %v6113 = vpack.c.b16 %v6110, %v6109
        %v6114 = vpack.c.b16 %v6112, %v6111
        %6119 = vrot.lane.b32.xlu0 %v4758, 64
        %v6120 = vpop.permute.xlu0 %6119
        %6121 = vrot.lane.b32.xlu0 %v4760, 64
        %v6122 = vpop.permute.xlu0 %6121
        %6123 = vrot.lane.b32.xlu0 %v4762, 64
        %v6124 = vpop.permute.xlu0 %6123
        %6125 = vrot.lane.b32.xlu0 %v4764, 64
        %v6126 = vpop.permute.xlu0 %6125
        %v6132 = vsel %vm1429, %v6103, 0
        %v6135 = vsel %vm1429, %v6104, 0
        %v6138 = vsel %vm1429, %v6113, 0
        %v6141 = vsel %vm1429, %v6114, 0
        %6143 = vmatpush.bf16.xpose.msra.mxu0 0
        %6144 = vmatpush.bf16.xpose.msra.mxu0 0
        %6145 = vmatpush.bf16.xpose.msra.mxu0 0
        %6146 = vmatpush.bf16.xpose.msra.mxu0 0
        %6147 = vmatpush.bf16.xpose.msra.mxu0 0
        %6148 = vmatpush.bf16.xpose.msra.mxu0 0
        %6149 = vmatpush.bf16.xpose.msra.mxu0 %v6141
        %6150 = vmatpush.bf16.xpose.msra.mxu0 %v6138
        %6151 = vmatmul.bf16.gmra.mxu0 %v6132
        %v6152 = vpop.f32.mrf.mxu0
        %v6153 = vadd.f32 %v6120, %v6152
        %v6154 = vpop.f32.mrf.mxu0
        %v6155 = vadd.f32 %v6122, %v6154
        %6156 = vmatmul.bf16.gmra.mxu0 %v6135
        %v6157 = vpop.f32.mrf.mxu0
        %v6158 = vadd.f32 %v6124, %v6157
        %v6159 = vpop.f32.mrf.mxu0
        %v6160 = vadd.f32 %v6126, %v6159
        %6161 = vdwg.mxu0
        %v6166 = vunpack.c.l.b16 %v5089
        %v6167 = vunpack.c.l.b16 %v5090
        %v6168 = vunpack.c.l.b16 %v5091
        %v6169 = vunpack.c.l.b16 %v5092
        %v6170 = vpack.c.b16 %v6167, %v6166
        %v6171 = vpack.c.b16 %v6169, %v6168
        %v6176 = vunpack.c.l.b16 %v4961
        %v6177 = vunpack.c.l.b16 %v4962
        %v6178 = vunpack.c.l.b16 %v4963
        %v6179 = vunpack.c.l.b16 %v4964
        %v6180 = vpack.c.b16 %v6177, %v6176
        %v6181 = vpack.c.b16 %v6179, %v6178
        %6186 = vrot.lane.b32.xlu0 %v4766, 64
        %v6187 = vpop.permute.xlu0 %6186
        %6188 = vrot.lane.b32.xlu0 %v4768, 64
        %v6189 = vpop.permute.xlu0 %6188
        %6190 = vrot.lane.b32.xlu0 %v4770, 64
        %v6191 = vpop.permute.xlu0 %6190
        %6192 = vrot.lane.b32.xlu0 %v4772, 64
        %v6193 = vpop.permute.xlu0 %6192
        %v6199 = vsel %vm1429, %v6170, 0
        %v6202 = vsel %vm1429, %v6171, 0
        %v6205 = vsel %vm1429, %v6180, 0
        %v6208 = vsel %vm1429, %v6181, 0
        %6210 = vmatpush.bf16.xpose.msra.mxu0 0
        %6211 = vmatpush.bf16.xpose.msra.mxu0 0
        %6212 = vmatpush.bf16.xpose.msra.mxu0 0
        %6213 = vmatpush.bf16.xpose.msra.mxu0 0
        %6214 = vmatpush.bf16.xpose.msra.mxu0 0
        %6215 = vmatpush.bf16.xpose.msra.mxu0 0
        %6216 = vmatpush.bf16.xpose.msra.mxu0 %v6208
        %6217 = vmatpush.bf16.xpose.msra.mxu0 %v6205
        %6218 = vmatmul.bf16.gmra.mxu0 %v6199
        %v6219 = vpop.f32.mrf.mxu0
        %v6220 = vadd.f32 %v6187, %v6219
        %v6221 = vpop.f32.mrf.mxu0
        %v6222 = vadd.f32 %v6189, %v6221
        %6223 = vmatmul.bf16.gmra.mxu0 %v6202
        %v6224 = vpop.f32.mrf.mxu0
        %v6225 = vadd.f32 %v6191, %v6224
        %v6226 = vpop.f32.mrf.mxu0
        %v6227 = vadd.f32 %v6193, %v6226
        %6228 = vdwg.mxu0
        %v6233 = vunpack.c.l.b16 %v5093
        %v6234 = vunpack.c.l.b16 %v5094
        %v6235 = vunpack.c.l.b16 %v5095
        %v6236 = vunpack.c.l.b16 %v5096
        %v6237 = vpack.c.b16 %v6234, %v6233
        %v6238 = vpack.c.b16 %v6236, %v6235
        %v6243 = vunpack.c.l.b16 %v4965
        %v6244 = vunpack.c.l.b16 %v4966
        %v6245 = vunpack.c.l.b16 %v4967
        %v6246 = vunpack.c.l.b16 %v4968
        %v6247 = vpack.c.b16 %v6244, %v6243
        %v6248 = vpack.c.b16 %v6246, %v6245
        %6253 = vrot.lane.b32.xlu0 %v4774, 64
        %v6254 = vpop.permute.xlu0 %6253
        %6255 = vrot.lane.b32.xlu0 %v4776, 64
        %v6256 = vpop.permute.xlu0 %6255
        %6257 = vrot.lane.b32.xlu0 %v4778, 64
        %v6258 = vpop.permute.xlu0 %6257
        %6259 = vrot.lane.b32.xlu0 %v4780, 64
        %v6260 = vpop.permute.xlu0 %6259
        %v6266 = vsel %vm1429, %v6237, 0
        %v6269 = vsel %vm1429, %v6238, 0
        %v6272 = vsel %vm1429, %v6247, 0
        %v6275 = vsel %vm1429, %v6248, 0
        %6277 = vmatpush.bf16.xpose.msra.mxu0 0
        %6278 = vmatpush.bf16.xpose.msra.mxu0 0
        %6279 = vmatpush.bf16.xpose.msra.mxu0 0
        %6280 = vmatpush.bf16.xpose.msra.mxu0 0
        %6281 = vmatpush.bf16.xpose.msra.mxu0 0
        %6282 = vmatpush.bf16.xpose.msra.mxu0 0
        %6283 = vmatpush.bf16.xpose.msra.mxu0 %v6275
        %6284 = vmatpush.bf16.xpose.msra.mxu0 %v6272
        %6285 = vmatmul.bf16.gmra.mxu0 %v6266
        %v6286 = vpop.f32.mrf.mxu0
        %v6287 = vadd.f32 %v6254, %v6286
        %v6288 = vpop.f32.mrf.mxu0
        %v6289 = vadd.f32 %v6256, %v6288
        %6290 = vmatmul.bf16.gmra.mxu0 %v6269
        %v6291 = vpop.f32.mrf.mxu0
        %v6292 = vadd.f32 %v6258, %v6291
        %v6293 = vpop.f32.mrf.mxu0
        %v6294 = vadd.f32 %v6260, %v6293
        %6295 = vdwg.mxu0
        %v6300 = vunpack.c.l.b16 %v5097
        %v6301 = vunpack.c.l.b16 %v5098
        %v6302 = vunpack.c.l.b16 %v5099
        %v6303 = vunpack.c.l.b16 %v5100
        %v6304 = vpack.c.b16 %v6301, %v6300
        %v6305 = vpack.c.b16 %v6303, %v6302
        %v6310 = vunpack.c.l.b16 %v4969
        %v6311 = vunpack.c.l.b16 %v4970
        %v6312 = vunpack.c.l.b16 %v4971
        %v6313 = vunpack.c.l.b16 %v4972
        %v6314 = vpack.c.b16 %v6311, %v6310
        %v6315 = vpack.c.b16 %v6313, %v6312
        %6320 = vrot.lane.b32.xlu0 %v4782, 64
        %v6321 = vpop.permute.xlu0 %6320
        %6322 = vrot.lane.b32.xlu0 %v4784, 64
        %v6323 = vpop.permute.xlu0 %6322
        %6324 = vrot.lane.b32.xlu0 %v4786, 64
        %v6325 = vpop.permute.xlu0 %6324
        %6326 = vrot.lane.b32.xlu0 %v4788, 64
        %v6327 = vpop.permute.xlu0 %6326
        %v6333 = vsel %vm1429, %v6304, 0
        %v6336 = vsel %vm1429, %v6305, 0
        %v6339 = vsel %vm1429, %v6314, 0
        %v6342 = vsel %vm1429, %v6315, 0
        %6344 = vmatpush.bf16.xpose.msra.mxu0 0
        %6345 = vmatpush.bf16.xpose.msra.mxu0 0
        %6346 = vmatpush.bf16.xpose.msra.mxu0 0
        %6347 = vmatpush.bf16.xpose.msra.mxu0 0
        %6348 = vmatpush.bf16.xpose.msra.mxu0 0
        %6349 = vmatpush.bf16.xpose.msra.mxu0 0
        %6350 = vmatpush.bf16.xpose.msra.mxu0 %v6342
        %6351 = vmatpush.bf16.xpose.msra.mxu0 %v6339
        %6352 = vmatmul.bf16.gmra.mxu0 %v6333
        %v6353 = vpop.f32.mrf.mxu0
        %v6354 = vadd.f32 %v6321, %v6353
        %v6355 = vpop.f32.mrf.mxu0
        %v6356 = vadd.f32 %v6323, %v6355
        %6357 = vmatmul.bf16.gmra.mxu0 %v6336
        %v6358 = vpop.f32.mrf.mxu0
        %v6359 = vadd.f32 %v6325, %v6358
        %v6360 = vpop.f32.mrf.mxu0
        %v6361 = vadd.f32 %v6327, %v6360
        %6362 = vdwg.mxu0
        %v6367 = vunpack.c.l.b16 %v5101
        %v6368 = vunpack.c.l.b16 %v5102
        %v6369 = vunpack.c.l.b16 %v5103
        %v6370 = vunpack.c.l.b16 %v5104
        %v6371 = vpack.c.b16 %v6368, %v6367
        %v6372 = vpack.c.b16 %v6370, %v6369
        %v6377 = vunpack.c.l.b16 %v4973
        %v6378 = vunpack.c.l.b16 %v4974
        %v6379 = vunpack.c.l.b16 %v4975
        %v6380 = vunpack.c.l.b16 %v4976
        %v6381 = vpack.c.b16 %v6378, %v6377
        %v6382 = vpack.c.b16 %v6380, %v6379
        %6387 = vrot.lane.b32.xlu0 %v4790, 64
        %v6388 = vpop.permute.xlu0 %6387
        %6389 = vrot.lane.b32.xlu0 %v4792, 64
        %v6390 = vpop.permute.xlu0 %6389
        %6391 = vrot.lane.b32.xlu0 %v4794, 64
        %v6392 = vpop.permute.xlu0 %6391
        %6393 = vrot.lane.b32.xlu0 %v4796, 64
        %v6394 = vpop.permute.xlu0 %6393
        %v6400 = vsel %vm1429, %v6371, 0
        %v6403 = vsel %vm1429, %v6372, 0
        %v6406 = vsel %vm1429, %v6381, 0
        %v6409 = vsel %vm1429, %v6382, 0
        %6411 = vmatpush.bf16.xpose.msra.mxu0 0
        %6412 = vmatpush.bf16.xpose.msra.mxu0 0
        %6413 = vmatpush.bf16.xpose.msra.mxu0 0
        %6414 = vmatpush.bf16.xpose.msra.mxu0 0
        %6415 = vmatpush.bf16.xpose.msra.mxu0 0
        %6416 = vmatpush.bf16.xpose.msra.mxu0 0
        %6417 = vmatpush.bf16.xpose.msra.mxu0 %v6409
        %6418 = vmatpush.bf16.xpose.msra.mxu0 %v6406
        %6419 = vmatmul.bf16.gmra.mxu0 %v6400
        %v6420 = vpop.f32.mrf.mxu0
        %v6421 = vadd.f32 %v6388, %v6420
        %v6422 = vpop.f32.mrf.mxu0
        %v6423 = vadd.f32 %v6390, %v6422
        %6424 = vmatmul.bf16.gmra.mxu0 %v6403
        %v6425 = vpop.f32.mrf.mxu0
        %v6426 = vadd.f32 %v6392, %v6425
        %v6427 = vpop.f32.mrf.mxu0
        %v6428 = vadd.f32 %v6394, %v6427
        %6429 = vdwg.mxu0
        %v6434 = vunpack.c.l.b16 %v5105
        %v6435 = vunpack.c.l.b16 %v5106
        %v6436 = vunpack.c.l.b16 %v5107
        %v6437 = vunpack.c.l.b16 %v5108
        %v6438 = vpack.c.b16 %v6435, %v6434
        %v6439 = vpack.c.b16 %v6437, %v6436
        %v6444 = vunpack.c.l.b16 %v4977
        %v6445 = vunpack.c.l.b16 %v4978
        %v6446 = vunpack.c.l.b16 %v4979
        %v6447 = vunpack.c.l.b16 %v4980
        %v6448 = vpack.c.b16 %v6445, %v6444
        %v6449 = vpack.c.b16 %v6447, %v6446
        %6454 = vrot.lane.b32.xlu0 %v4798, 64
        %v6455 = vpop.permute.xlu0 %6454
        %6456 = vrot.lane.b32.xlu0 %v4800, 64
        %v6457 = vpop.permute.xlu0 %6456
        %6458 = vrot.lane.b32.xlu0 %v4802, 64
        %v6459 = vpop.permute.xlu0 %6458
        %6460 = vrot.lane.b32.xlu0 %v4804, 64
        %v6461 = vpop.permute.xlu0 %6460
        %v6467 = vsel %vm1429, %v6438, 0
        %v6470 = vsel %vm1429, %v6439, 0
        %v6473 = vsel %vm1429, %v6448, 0
        %v6476 = vsel %vm1429, %v6449, 0
        %6478 = vmatpush.bf16.xpose.msra.mxu0 0
        %6479 = vmatpush.bf16.xpose.msra.mxu0 0
        %6480 = vmatpush.bf16.xpose.msra.mxu0 0
        %6481 = vmatpush.bf16.xpose.msra.mxu0 0
        %6482 = vmatpush.bf16.xpose.msra.mxu0 0
        %6483 = vmatpush.bf16.xpose.msra.mxu0 0
        %6484 = vmatpush.bf16.xpose.msra.mxu0 %v6476
        %6485 = vmatpush.bf16.xpose.msra.mxu0 %v6473
        %6486 = vmatmul.bf16.gmra.mxu0 %v6467
        %v6487 = vpop.f32.mrf.mxu0
        %v6488 = vadd.f32 %v6455, %v6487
        %v6489 = vpop.f32.mrf.mxu0
        %v6490 = vadd.f32 %v6457, %v6489
        %6491 = vmatmul.bf16.gmra.mxu0 %v6470
        %v6492 = vpop.f32.mrf.mxu0
        %v6493 = vadd.f32 %v6459, %v6492
        %v6494 = vpop.f32.mrf.mxu0
        %v6495 = vadd.f32 %v6461, %v6494
        %6496 = vdwg.mxu0
        %v6501 = vunpack.c.l.b16 %v5109
        %v6502 = vunpack.c.l.b16 %v5110
        %v6503 = vunpack.c.l.b16 %v5111
        %v6504 = vunpack.c.l.b16 %v5112
        %v6505 = vpack.c.b16 %v6502, %v6501
        %v6506 = vpack.c.b16 %v6504, %v6503
        %v6511 = vunpack.c.l.b16 %v4981
        %v6512 = vunpack.c.l.b16 %v4982
        %v6513 = vunpack.c.l.b16 %v4983
        %v6514 = vunpack.c.l.b16 %v4984
        %v6515 = vpack.c.b16 %v6512, %v6511
        %v6516 = vpack.c.b16 %v6514, %v6513
        %6521 = vrot.lane.b32.xlu0 %v4806, 64
        %v6522 = vpop.permute.xlu0 %6521
        %6523 = vrot.lane.b32.xlu0 %v4808, 64
        %v6524 = vpop.permute.xlu0 %6523
        %6525 = vrot.lane.b32.xlu0 %v4810, 64
        %v6526 = vpop.permute.xlu0 %6525
        %6527 = vrot.lane.b32.xlu0 %v4812, 64
        %v6528 = vpop.permute.xlu0 %6527
        %v6534 = vsel %vm1429, %v6505, 0
        %v6537 = vsel %vm1429, %v6506, 0
        %v6540 = vsel %vm1429, %v6515, 0
        %v6543 = vsel %vm1429, %v6516, 0
        %6545 = vmatpush.bf16.xpose.msra.mxu0 0
        %6546 = vmatpush.bf16.xpose.msra.mxu0 0
        %6547 = vmatpush.bf16.xpose.msra.mxu0 0
        %6548 = vmatpush.bf16.xpose.msra.mxu0 0
        %6549 = vmatpush.bf16.xpose.msra.mxu0 0
        %6550 = vmatpush.bf16.xpose.msra.mxu0 0
        %6551 = vmatpush.bf16.xpose.msra.mxu0 %v6543
        %6552 = vmatpush.bf16.xpose.msra.mxu0 %v6540
        %6553 = vmatmul.bf16.gmra.mxu0 %v6534
        %v6554 = vpop.f32.mrf.mxu0
        %v6555 = vadd.f32 %v6522, %v6554
        %v6556 = vpop.f32.mrf.mxu0
        %v6557 = vadd.f32 %v6524, %v6556
        %6558 = vmatmul.bf16.gmra.mxu0 %v6537
        %v6559 = vpop.f32.mrf.mxu0
        %v6560 = vadd.f32 %v6526, %v6559
        %v6561 = vpop.f32.mrf.mxu0
        %v6562 = vadd.f32 %v6528, %v6561
        %6563 = vdwg.mxu0
        %v6568 = vunpack.c.l.b16 %v5113
        %v6569 = vunpack.c.l.b16 %v5114
        %v6570 = vunpack.c.l.b16 %v5115
        %v6571 = vunpack.c.l.b16 %v5116
        %v6572 = vpack.c.b16 %v6569, %v6568
        %v6573 = vpack.c.b16 %v6571, %v6570
        %v6578 = vunpack.c.l.b16 %v4985
        %v6579 = vunpack.c.l.b16 %v4986
        %v6580 = vunpack.c.l.b16 %v4987
        %v6581 = vunpack.c.l.b16 %v4988
        %v6582 = vpack.c.b16 %v6579, %v6578
        %v6583 = vpack.c.b16 %v6581, %v6580
        %6588 = vrot.lane.b32.xlu0 %v4814, 64
        %v6589 = vpop.permute.xlu0 %6588
        %6590 = vrot.lane.b32.xlu0 %v4816, 64
        %v6591 = vpop.permute.xlu0 %6590
        %6592 = vrot.lane.b32.xlu0 %v4818, 64
        %v6593 = vpop.permute.xlu0 %6592
        %6594 = vrot.lane.b32.xlu0 %v4820, 64
        %v6595 = vpop.permute.xlu0 %6594
        %v6601 = vsel %vm1429, %v6572, 0
        %v6604 = vsel %vm1429, %v6573, 0
        %v6607 = vsel %vm1429, %v6582, 0
        %v6610 = vsel %vm1429, %v6583, 0
        %6612 = vmatpush.bf16.xpose.msra.mxu0 0
        %6613 = vmatpush.bf16.xpose.msra.mxu0 0
        %6614 = vmatpush.bf16.xpose.msra.mxu0 0
        %6615 = vmatpush.bf16.xpose.msra.mxu0 0
        %6616 = vmatpush.bf16.xpose.msra.mxu0 0
        %6617 = vmatpush.bf16.xpose.msra.mxu0 0
        %6618 = vmatpush.bf16.xpose.msra.mxu0 %v6610
        %6619 = vmatpush.bf16.xpose.msra.mxu0 %v6607
        %6620 = vmatmul.bf16.gmra.mxu0 %v6601
        %v6621 = vpop.f32.mrf.mxu0
        %v6622 = vadd.f32 %v6589, %v6621
        %v6623 = vpop.f32.mrf.mxu0
        %v6624 = vadd.f32 %v6591, %v6623
        %6625 = vmatmul.bf16.gmra.mxu0 %v6604
        %v6626 = vpop.f32.mrf.mxu0
        %v6627 = vadd.f32 %v6593, %v6626
        %v6628 = vpop.f32.mrf.mxu0
        %v6629 = vadd.f32 %v6595, %v6628
        %6630 = vdwg.mxu0
        %v6635 = vunpack.c.l.b16 %v5117
        %v6636 = vunpack.c.l.b16 %v5118
        %v6637 = vunpack.c.l.b16 %v5119
        %v6638 = vunpack.c.l.b16 %v5120
        %v6639 = vpack.c.b16 %v6636, %v6635
        %v6640 = vpack.c.b16 %v6638, %v6637
        %v6645 = vunpack.c.l.b16 %v4989
        %v6646 = vunpack.c.l.b16 %v4990
        %v6647 = vunpack.c.l.b16 %v4991
        %v6648 = vunpack.c.l.b16 %v4992
        %v6649 = vpack.c.b16 %v6646, %v6645
        %v6650 = vpack.c.b16 %v6648, %v6647
        %6655 = vrot.lane.b32.xlu0 %v4822, 64
        %v6656 = vpop.permute.xlu0 %6655
        %6657 = vrot.lane.b32.xlu0 %v4824, 64
        %v6658 = vpop.permute.xlu0 %6657
        %6659 = vrot.lane.b32.xlu0 %v4826, 64
        %v6660 = vpop.permute.xlu0 %6659
        %6661 = vrot.lane.b32.xlu0 %v4828, 64
        %v6662 = vpop.permute.xlu0 %6661
        %v6668 = vsel %vm1429, %v6639, 0
        %v6671 = vsel %vm1429, %v6640, 0
        %v6674 = vsel %vm1429, %v6649, 0
        %v6677 = vsel %vm1429, %v6650, 0
        %6679 = vmatpush.bf16.xpose.msra.mxu0 0
        %6680 = vmatpush.bf16.xpose.msra.mxu0 0
        %6681 = vmatpush.bf16.xpose.msra.mxu0 0
        %6682 = vmatpush.bf16.xpose.msra.mxu0 0
        %6683 = vmatpush.bf16.xpose.msra.mxu0 0
        %6684 = vmatpush.bf16.xpose.msra.mxu0 0
        %6685 = vmatpush.bf16.xpose.msra.mxu0 %v6677
        %6686 = vmatpush.bf16.xpose.msra.mxu0 %v6674
        %6687 = vmatmul.bf16.gmra.mxu0 %v6668
        %v6688 = vpop.f32.mrf.mxu0
        %v6689 = vadd.f32 %v6656, %v6688
        %v6690 = vpop.f32.mrf.mxu0
        %v6691 = vadd.f32 %v6658, %v6690
        %6692 = vmatmul.bf16.gmra.mxu0 %v6671
        %v6693 = vpop.f32.mrf.mxu0
        %v6694 = vadd.f32 %v6660, %v6693
        %v6695 = vpop.f32.mrf.mxu0
        %v6696 = vadd.f32 %v6662, %v6695
        %6697 = vdwg.mxu0
        %v6702 = vunpack.c.l.b16 %v5121
        %v6703 = vunpack.c.l.b16 %v5122
        %v6704 = vunpack.c.l.b16 %v5123
        %v6705 = vunpack.c.l.b16 %v5124
        %v6706 = vpack.c.b16 %v6703, %v6702
        %v6707 = vpack.c.b16 %v6705, %v6704
        %v6712 = vunpack.c.l.b16 %v4993
        %v6713 = vunpack.c.l.b16 %v4994
        %v6714 = vunpack.c.l.b16 %v4995
        %v6715 = vunpack.c.l.b16 %v4996
        %v6716 = vpack.c.b16 %v6713, %v6712
        %v6717 = vpack.c.b16 %v6715, %v6714
        %6722 = vrot.lane.b32.xlu0 %v4830, 64
        %v6723 = vpop.permute.xlu0 %6722
        %6724 = vrot.lane.b32.xlu0 %v4832, 64
        %v6725 = vpop.permute.xlu0 %6724
        %6726 = vrot.lane.b32.xlu0 %v4834, 64
        %v6727 = vpop.permute.xlu0 %6726
        %6728 = vrot.lane.b32.xlu0 %v4836, 64
        %v6729 = vpop.permute.xlu0 %6728
        %v6735 = vsel %vm1429, %v6706, 0
        %v6738 = vsel %vm1429, %v6707, 0
        %v6741 = vsel %vm1429, %v6716, 0
        %v6744 = vsel %vm1429, %v6717, 0
        %6746 = vmatpush.bf16.xpose.msra.mxu0 0
        %6747 = vmatpush.bf16.xpose.msra.mxu0 0
        %6748 = vmatpush.bf16.xpose.msra.mxu0 0
        %6749 = vmatpush.bf16.xpose.msra.mxu0 0
        %6750 = vmatpush.bf16.xpose.msra.mxu0 0
        %6751 = vmatpush.bf16.xpose.msra.mxu0 0
        %6752 = vmatpush.bf16.xpose.msra.mxu0 %v6744
        %6753 = vmatpush.bf16.xpose.msra.mxu0 %v6741
        %6754 = vmatmul.bf16.gmra.mxu0 %v6735
        %v6755 = vpop.f32.mrf.mxu0
        %v6756 = vadd.f32 %v6723, %v6755
        %v6757 = vpop.f32.mrf.mxu0
        %v6758 = vadd.f32 %v6725, %v6757
        %6759 = vmatmul.bf16.gmra.mxu0 %v6738
        %v6760 = vpop.f32.mrf.mxu0
        %v6761 = vadd.f32 %v6727, %v6760
        %v6762 = vpop.f32.mrf.mxu0
        %v6763 = vadd.f32 %v6729, %v6762
        %6764 = vdwg.mxu0
        %v6769 = vunpack.c.l.b16 %v5125
        %v6770 = vunpack.c.l.b16 %v5126
        %v6771 = vunpack.c.l.b16 %v5127
        %v6772 = vunpack.c.l.b16 %v5128
        %v6773 = vpack.c.b16 %v6770, %v6769
        %v6774 = vpack.c.b16 %v6772, %v6771
        %v6779 = vunpack.c.l.b16 %v4997
        %v6780 = vunpack.c.l.b16 %v4998
        %v6781 = vunpack.c.l.b16 %v4999
        %v6782 = vunpack.c.l.b16 %v5000
        %v6783 = vpack.c.b16 %v6780, %v6779
        %v6784 = vpack.c.b16 %v6782, %v6781
        %6789 = vrot.lane.b32.xlu0 %v4838, 64
        %v6790 = vpop.permute.xlu0 %6789
        %6791 = vrot.lane.b32.xlu0 %v4840, 64
        %v6792 = vpop.permute.xlu0 %6791
        %6793 = vrot.lane.b32.xlu0 %v4842, 64
        %v6794 = vpop.permute.xlu0 %6793
        %6795 = vrot.lane.b32.xlu0 %v4844, 64
        %v6796 = vpop.permute.xlu0 %6795
        %v6802 = vsel %vm1429, %v6773, 0
        %v6805 = vsel %vm1429, %v6774, 0
        %v6808 = vsel %vm1429, %v6783, 0
        %v6811 = vsel %vm1429, %v6784, 0
        %6813 = vmatpush.bf16.xpose.msra.mxu0 0
        %6814 = vmatpush.bf16.xpose.msra.mxu0 0
        %6815 = vmatpush.bf16.xpose.msra.mxu0 0
        %6816 = vmatpush.bf16.xpose.msra.mxu0 0
        %6817 = vmatpush.bf16.xpose.msra.mxu0 0
        %6818 = vmatpush.bf16.xpose.msra.mxu0 0
        %6819 = vmatpush.bf16.xpose.msra.mxu0 %v6811
        %6820 = vmatpush.bf16.xpose.msra.mxu0 %v6808
        %6821 = vmatmul.bf16.gmra.mxu0 %v6802
        %v6822 = vpop.f32.mrf.mxu0
        %v6823 = vadd.f32 %v6790, %v6822
        %v6824 = vpop.f32.mrf.mxu0
        %v6825 = vadd.f32 %v6792, %v6824
        %6826 = vmatmul.bf16.gmra.mxu0 %v6805
        %v6827 = vpop.f32.mrf.mxu0
        %v6828 = vadd.f32 %v6794, %v6827
        %v6829 = vpop.f32.mrf.mxu0
        %v6830 = vadd.f32 %v6796, %v6829
        %6831 = vdwg.mxu0
        %v6836 = vunpack.c.l.b16 %v5129
        %v6837 = vunpack.c.l.b16 %v5130
        %v6838 = vunpack.c.l.b16 %v5131
        %v6839 = vunpack.c.l.b16 %v5132
        %v6840 = vpack.c.b16 %v6837, %v6836
        %v6841 = vpack.c.b16 %v6839, %v6838
        %v6846 = vunpack.c.l.b16 %v5001
        %v6847 = vunpack.c.l.b16 %v5002
        %v6848 = vunpack.c.l.b16 %v5003
        %v6849 = vunpack.c.l.b16 %v5004
        %v6850 = vpack.c.b16 %v6847, %v6846
        %v6851 = vpack.c.b16 %v6849, %v6848
        %6856 = vrot.lane.b32.xlu0 %v4846, 64
        %v6857 = vpop.permute.xlu0 %6856
        %6858 = vrot.lane.b32.xlu0 %v4848, 64
        %v6859 = vpop.permute.xlu0 %6858
        %6860 = vrot.lane.b32.xlu0 %v4850, 64
        %v6861 = vpop.permute.xlu0 %6860
        %6862 = vrot.lane.b32.xlu0 %v4852, 64
        %v6863 = vpop.permute.xlu0 %6862
        %v6869 = vsel %vm1429, %v6840, 0
        %v6872 = vsel %vm1429, %v6841, 0
        %v6875 = vsel %vm1429, %v6850, 0
        %v6878 = vsel %vm1429, %v6851, 0
        %6880 = vmatpush.bf16.xpose.msra.mxu0 0
        %6881 = vmatpush.bf16.xpose.msra.mxu0 0
        %6882 = vmatpush.bf16.xpose.msra.mxu0 0
        %6883 = vmatpush.bf16.xpose.msra.mxu0 0
        %6884 = vmatpush.bf16.xpose.msra.mxu0 0
        %6885 = vmatpush.bf16.xpose.msra.mxu0 0
        %6886 = vmatpush.bf16.xpose.msra.mxu0 %v6878
        %6887 = vmatpush.bf16.xpose.msra.mxu0 %v6875
        %6888 = vmatmul.bf16.gmra.mxu0 %v6869
        %v6889 = vpop.f32.mrf.mxu0
        %v6890 = vadd.f32 %v6857, %v6889
        %v6891 = vpop.f32.mrf.mxu0
        %v6892 = vadd.f32 %v6859, %v6891
        %6893 = vmatmul.bf16.gmra.mxu0 %v6872
        %v6894 = vpop.f32.mrf.mxu0
        %v6895 = vadd.f32 %v6861, %v6894
        %v6896 = vpop.f32.mrf.mxu0
        %v6897 = vadd.f32 %v6863, %v6896
        %6898 = vdwg.mxu0
        %v6903 = vunpack.c.l.b16 %v5133
        %v6904 = vunpack.c.l.b16 %v5134
        %v6905 = vunpack.c.l.b16 %v5135
        %v6906 = vunpack.c.l.b16 %v5136
        %v6907 = vpack.c.b16 %v6904, %v6903
        %v6908 = vpack.c.b16 %v6906, %v6905
        %v6913 = vunpack.c.l.b16 %v5005
        %v6914 = vunpack.c.l.b16 %v5006
        %v6915 = vunpack.c.l.b16 %v5007
        %v6916 = vunpack.c.l.b16 %v5008
        %v6917 = vpack.c.b16 %v6914, %v6913
        %v6918 = vpack.c.b16 %v6916, %v6915
        %6923 = vrot.lane.b32.xlu0 %v4854, 64
        %v6924 = vpop.permute.xlu0 %6923
        %6925 = vrot.lane.b32.xlu0 %v4856, 64
        %v6926 = vpop.permute.xlu0 %6925
        %6927 = vrot.lane.b32.xlu0 %v4858, 64
        %v6928 = vpop.permute.xlu0 %6927
        %6929 = vrot.lane.b32.xlu0 %v4860, 64
        %v6930 = vpop.permute.xlu0 %6929
        %v6936 = vsel %vm1429, %v6907, 0
        %v6939 = vsel %vm1429, %v6908, 0
        %v6942 = vsel %vm1429, %v6917, 0
        %v6945 = vsel %vm1429, %v6918, 0
        %6947 = vmatpush.bf16.xpose.msra.mxu0 0
        %6948 = vmatpush.bf16.xpose.msra.mxu0 0
        %6949 = vmatpush.bf16.xpose.msra.mxu0 0
        %6950 = vmatpush.bf16.xpose.msra.mxu0 0
        %6951 = vmatpush.bf16.xpose.msra.mxu0 0
        %6952 = vmatpush.bf16.xpose.msra.mxu0 0
        %6953 = vmatpush.bf16.xpose.msra.mxu0 %v6945
        %6954 = vmatpush.bf16.xpose.msra.mxu0 %v6942
        %6955 = vmatmul.bf16.gmra.mxu0 %v6936
        %v6956 = vpop.f32.mrf.mxu0
        %v6957 = vadd.f32 %v6924, %v6956
        %v6958 = vpop.f32.mrf.mxu0
        %v6959 = vadd.f32 %v6926, %v6958
        %6960 = vmatmul.bf16.gmra.mxu0 %v6939
        %v6961 = vpop.f32.mrf.mxu0
        %v6962 = vadd.f32 %v6928, %v6961
        %v6963 = vpop.f32.mrf.mxu0
        %v6964 = vadd.f32 %v6930, %v6963
        %6965 = vdwg.mxu0
        %v6970 = vunpack.c.l.b16 %v5137
        %v6971 = vunpack.c.l.b16 %v5138
        %v6972 = vunpack.c.l.b16 %v5139
        %v6973 = vunpack.c.l.b16 %v5140
        %v6974 = vpack.c.b16 %v6971, %v6970
        %v6975 = vpack.c.b16 %v6973, %v6972
        %v6980 = vunpack.c.l.b16 %v5009
        %v6981 = vunpack.c.l.b16 %v5010
        %v6982 = vunpack.c.l.b16 %v5011
        %v6983 = vunpack.c.l.b16 %v5012
        %v6984 = vpack.c.b16 %v6981, %v6980
        %v6985 = vpack.c.b16 %v6983, %v6982
        %6990 = vrot.lane.b32.xlu0 %v4862, 64
        %v6991 = vpop.permute.xlu0 %6990
        %6992 = vrot.lane.b32.xlu0 %v4864, 64
        %v6993 = vpop.permute.xlu0 %6992
        %6994 = vrot.lane.b32.xlu0 %v4866, 64
        %v6995 = vpop.permute.xlu0 %6994
        %6996 = vrot.lane.b32.xlu0 %v4868, 64
        %v6997 = vpop.permute.xlu0 %6996
        %v7003 = vsel %vm1429, %v6974, 0
        %v7006 = vsel %vm1429, %v6975, 0
        %v7009 = vsel %vm1429, %v6984, 0
        %v7012 = vsel %vm1429, %v6985, 0
        %7014 = vmatpush.bf16.xpose.msra.mxu0 0
        %7015 = vmatpush.bf16.xpose.msra.mxu0 0
        %7016 = vmatpush.bf16.xpose.msra.mxu0 0
        %7017 = vmatpush.bf16.xpose.msra.mxu0 0
        %7018 = vmatpush.bf16.xpose.msra.mxu0 0
        %7019 = vmatpush.bf16.xpose.msra.mxu0 0
        %7020 = vmatpush.bf16.xpose.msra.mxu0 %v7012
        %7021 = vmatpush.bf16.xpose.msra.mxu0 %v7009
        %7022 = vmatmul.bf16.gmra.mxu0 %v7003
        %v7023 = vpop.f32.mrf.mxu0
        %v7024 = vadd.f32 %v6991, %v7023
        %v7025 = vpop.f32.mrf.mxu0
        %v7026 = vadd.f32 %v6993, %v7025
        %7027 = vmatmul.bf16.gmra.mxu0 %v7006
        %v7028 = vpop.f32.mrf.mxu0
        %v7029 = vadd.f32 %v6995, %v7028
        %v7030 = vpop.f32.mrf.mxu0
        %v7031 = vadd.f32 %v6997, %v7030
        %7032 = vdwg.mxu0
        %v7037 = vunpack.c.l.b16 %v5141
        %v7038 = vunpack.c.l.b16 %v5142
        %v7039 = vunpack.c.l.b16 %v5143
        %v7040 = vunpack.c.l.b16 %v5144
        %v7041 = vpack.c.b16 %v7038, %v7037
        %v7042 = vpack.c.b16 %v7040, %v7039
        %v7047 = vunpack.c.l.b16 %v5013
        %v7048 = vunpack.c.l.b16 %v5014
        %v7049 = vunpack.c.l.b16 %v5015
        %v7050 = vunpack.c.l.b16 %v5016
        %v7051 = vpack.c.b16 %v7048, %v7047
        %v7052 = vpack.c.b16 %v7050, %v7049
        %7057 = vrot.lane.b32.xlu0 %v4870, 64
        %v7058 = vpop.permute.xlu0 %7057
        %7059 = vrot.lane.b32.xlu0 %v4872, 64
        %v7060 = vpop.permute.xlu0 %7059
        %7061 = vrot.lane.b32.xlu0 %v4874, 64
        %v7062 = vpop.permute.xlu0 %7061
        %7063 = vrot.lane.b32.xlu0 %v4876, 64
        %v7064 = vpop.permute.xlu0 %7063
        %v7070 = vsel %vm1429, %v7041, 0
        %v7073 = vsel %vm1429, %v7042, 0
        %v7076 = vsel %vm1429, %v7051, 0
        %v7079 = vsel %vm1429, %v7052, 0
        %7081 = vmatpush.bf16.xpose.msra.mxu0 0
        %7082 = vmatpush.bf16.xpose.msra.mxu0 0
        %7083 = vmatpush.bf16.xpose.msra.mxu0 0
        %7084 = vmatpush.bf16.xpose.msra.mxu0 0
        %7085 = vmatpush.bf16.xpose.msra.mxu0 0
        %7086 = vmatpush.bf16.xpose.msra.mxu0 0
        %7087 = vmatpush.bf16.xpose.msra.mxu0 %v7079
        %7088 = vmatpush.bf16.xpose.msra.mxu0 %v7076
        %7089 = vmatmul.bf16.gmra.mxu0 %v7070
        %v7090 = vpop.f32.mrf.mxu0
        %v7091 = vadd.f32 %v7058, %v7090
        %v7092 = vpop.f32.mrf.mxu0
        %v7093 = vadd.f32 %v7060, %v7092
        %7094 = vmatmul.bf16.gmra.mxu0 %v7073
        %v7095 = vpop.f32.mrf.mxu0
        %v7096 = vadd.f32 %v7062, %v7095
        %v7097 = vpop.f32.mrf.mxu0
        %v7098 = vadd.f32 %v7064, %v7097
        %7099 = vdwg.mxu0
        %v7104 = vunpack.c.l.b16 %v5145
        %v7105 = vunpack.c.l.b16 %v5146
        %v7106 = vunpack.c.l.b16 %v5147
        %v7107 = vunpack.c.l.b16 %v5148
        %v7108 = vpack.c.b16 %v7105, %v7104
        %v7109 = vpack.c.b16 %v7107, %v7106
        %v7114 = vunpack.c.l.b16 %v5017
        %v7115 = vunpack.c.l.b16 %v5018
        %v7116 = vunpack.c.l.b16 %v5019
        %v7117 = vunpack.c.l.b16 %v5020
        %v7118 = vpack.c.b16 %v7115, %v7114
        %v7119 = vpack.c.b16 %v7117, %v7116
        %7124 = vrot.lane.b32.xlu0 %v4878, 64
        %v7125 = vpop.permute.xlu0 %7124
        %7126 = vrot.lane.b32.xlu0 %v4880, 64
        %v7127 = vpop.permute.xlu0 %7126
        %7128 = vrot.lane.b32.xlu0 %v4882, 64
        %v7129 = vpop.permute.xlu0 %7128
        %7130 = vrot.lane.b32.xlu0 %v4884, 64
        %v7131 = vpop.permute.xlu0 %7130
        %v7137 = vsel %vm1429, %v7108, 0
        %v7140 = vsel %vm1429, %v7109, 0
        %v7143 = vsel %vm1429, %v7118, 0
        %v7146 = vsel %vm1429, %v7119, 0
        %7148 = vmatpush.bf16.xpose.msra.mxu0 0
        %7149 = vmatpush.bf16.xpose.msra.mxu0 0
        %7150 = vmatpush.bf16.xpose.msra.mxu0 0
        %7151 = vmatpush.bf16.xpose.msra.mxu0 0
        %7152 = vmatpush.bf16.xpose.msra.mxu0 0
        %7153 = vmatpush.bf16.xpose.msra.mxu0 0
        %7154 = vmatpush.bf16.xpose.msra.mxu0 %v7146
        %7155 = vmatpush.bf16.xpose.msra.mxu0 %v7143
        %7156 = vmatmul.bf16.gmra.mxu0 %v7137
        %v7157 = vpop.f32.mrf.mxu0
        %v7158 = vadd.f32 %v7125, %v7157
        %v7159 = vpop.f32.mrf.mxu0
        %v7160 = vadd.f32 %v7127, %v7159
        %7161 = vmatmul.bf16.gmra.mxu0 %v7140
        %v7162 = vpop.f32.mrf.mxu0
        %v7163 = vadd.f32 %v7129, %v7162
        %v7164 = vpop.f32.mrf.mxu0
        %v7165 = vadd.f32 %v7131, %v7164
        %7166 = vdwg.mxu0
        %v7171 = vunpack.c.l.b16 %v5149
        %v7172 = vunpack.c.l.b16 %v5150
        %v7173 = vunpack.c.l.b16 %v5151
        %v7174 = vunpack.c.l.b16 %v5152
        %v7175 = vpack.c.b16 %v7172, %v7171
        %v7176 = vpack.c.b16 %v7174, %v7173
        %v7181 = vunpack.c.l.b16 %v5021
        %v7182 = vunpack.c.l.b16 %v5022
        %v7183 = vunpack.c.l.b16 %v5023
        %v7184 = vunpack.c.l.b16 %v5024
        %v7185 = vpack.c.b16 %v7182, %v7181
        %v7186 = vpack.c.b16 %v7184, %v7183
        %7191 = vrot.lane.b32.xlu0 %v4886, 64
        %v7192 = vpop.permute.xlu0 %7191
        %7193 = vrot.lane.b32.xlu0 %v4888, 64
        %v7194 = vpop.permute.xlu0 %7193
        %7195 = vrot.lane.b32.xlu0 %v4890, 64
        %v7196 = vpop.permute.xlu0 %7195
        %7197 = vrot.lane.b32.xlu0 %v4892, 64
        %v7198 = vpop.permute.xlu0 %7197
        %v7204 = vsel %vm1429, %v7175, 0
        %v7207 = vsel %vm1429, %v7176, 0
        %v7210 = vsel %vm1429, %v7185, 0
        %v7213 = vsel %vm1429, %v7186, 0
        %7215 = vmatpush.bf16.xpose.msra.mxu0 0
        %7216 = vmatpush.bf16.xpose.msra.mxu0 0
        %7217 = vmatpush.bf16.xpose.msra.mxu0 0
        %7218 = vmatpush.bf16.xpose.msra.mxu0 0
        %7219 = vmatpush.bf16.xpose.msra.mxu0 0
        %7220 = vmatpush.bf16.xpose.msra.mxu0 0
        %7221 = vmatpush.bf16.xpose.msra.mxu0 %v7213
        %7222 = vmatpush.bf16.xpose.msra.mxu0 %v7210
        %7223 = vmatmul.bf16.gmra.mxu0 %v7204
        %v7224 = vpop.f32.mrf.mxu0
        %v7225 = vadd.f32 %v7192, %v7224
        %v7226 = vpop.f32.mrf.mxu0
        %v7227 = vadd.f32 %v7194, %v7226
        %7228 = vmatmul.bf16.gmra.mxu0 %v7207
        %v7229 = vpop.f32.mrf.mxu0
        %v7230 = vadd.f32 %v7196, %v7229
        %v7231 = vpop.f32.mrf.mxu0
        %v7232 = vadd.f32 %v7198, %v7231
        %7233 = vdwg.mxu0
        %v7238 = vunpack.c.l.b16 %v5153
        %v7239 = vunpack.c.l.b16 %v5154
        %v7240 = vunpack.c.l.b16 %v5155
        %v7241 = vunpack.c.l.b16 %v5156
        %v7242 = vpack.c.b16 %v7239, %v7238
        %v7243 = vpack.c.b16 %v7241, %v7240
        %v7248 = vunpack.c.l.b16 %v5025
        %v7249 = vunpack.c.l.b16 %v5026
        %v7250 = vunpack.c.l.b16 %v5027
        %v7251 = vunpack.c.l.b16 %v5028
        %v7252 = vpack.c.b16 %v7249, %v7248
        %v7253 = vpack.c.b16 %v7251, %v7250
        %7258 = vrot.lane.b32.xlu0 %v4894, 64
        %v7259 = vpop.permute.xlu0 %7258
        %7260 = vrot.lane.b32.xlu0 %v4896, 64
        %v7261 = vpop.permute.xlu0 %7260
        %7262 = vrot.lane.b32.xlu0 %v4898, 64
        %v7263 = vpop.permute.xlu0 %7262
        %7264 = vrot.lane.b32.xlu0 %v4900, 64
        %v7265 = vpop.permute.xlu0 %7264
        %v7271 = vsel %vm1429, %v7242, 0
        %v7274 = vsel %vm1429, %v7243, 0
        %v7277 = vsel %vm1429, %v7252, 0
        %v7280 = vsel %vm1429, %v7253, 0
        %7282 = vmatpush.bf16.xpose.msra.mxu0 0
        %7283 = vmatpush.bf16.xpose.msra.mxu0 0
        %7284 = vmatpush.bf16.xpose.msra.mxu0 0
        %7285 = vmatpush.bf16.xpose.msra.mxu0 0
        %7286 = vmatpush.bf16.xpose.msra.mxu0 0
        %7287 = vmatpush.bf16.xpose.msra.mxu0 0
        %7288 = vmatpush.bf16.xpose.msra.mxu0 %v7280
        %7289 = vmatpush.bf16.xpose.msra.mxu0 %v7277
        %7290 = vmatmul.bf16.gmra.mxu0 %v7271
        %v7291 = vpop.f32.mrf.mxu0
        %v7292 = vadd.f32 %v7259, %v7291
        %v7293 = vpop.f32.mrf.mxu0
        %v7294 = vadd.f32 %v7261, %v7293
        %7295 = vmatmul.bf16.gmra.mxu0 %v7274
        %v7296 = vpop.f32.mrf.mxu0
        %v7297 = vadd.f32 %v7263, %v7296
        %v7298 = vpop.f32.mrf.mxu0
        %v7299 = vadd.f32 %v7265, %v7298
        %7300 = vdwg.mxu0
        %vm7301 = vcmask 261120
        %v7302 = vsel %vm7301, %v5215, -inf
        %7303 = vmax.xlane.f32.xlu0 %v7302
        %v7304 = vpop.xlane.xlu0 %7303
        %v7305 = vsel %vm7301, %v5217, -inf
        %7306 = vmax.xlane.f32.xlu0 %v7305
        %v7307 = vpop.xlane.xlu0 %7306
        %v7308 = vsel %vm7301, %v5220, -inf
        %7309 = vmax.xlane.f32.xlu0 %v7308
        %v7310 = vpop.xlane.xlu0 %7309
        %v7311 = vsel %vm7301, %v5222, -inf
        %7312 = vmax.xlane.f32.xlu0 %v7311
        %v7313 = vpop.xlane.xlu0 %7312
        %v7314 = vsel %vm7301, %v5282, -inf
        %7315 = vmax.xlane.f32.xlu0 %v7314
        %v7316 = vpop.xlane.xlu0 %7315
        %v7317 = vsel %vm7301, %v5284, -inf
        %7318 = vmax.xlane.f32.xlu0 %v7317
        %v7319 = vpop.xlane.xlu0 %7318
        %v7320 = vsel %vm7301, %v5287, -inf
        %7321 = vmax.xlane.f32.xlu0 %v7320
        %v7322 = vpop.xlane.xlu0 %7321
        %v7323 = vsel %vm7301, %v5289, -inf
        %7324 = vmax.xlane.f32.xlu0 %v7323
        %v7325 = vpop.xlane.xlu0 %7324
        %v7326 = vsel %vm7301, %v5349, -inf
        %7327 = vmax.xlane.f32.xlu0 %v7326
        %v7328 = vpop.xlane.xlu0 %7327
        %v7329 = vsel %vm7301, %v5351, -inf
        %7330 = vmax.xlane.f32.xlu0 %v7329
        %v7331 = vpop.xlane.xlu0 %7330
        %v7332 = vsel %vm7301, %v5354, -inf
        %7333 = vmax.xlane.f32.xlu0 %v7332
        %v7334 = vpop.xlane.xlu0 %7333
        %v7335 = vsel %vm7301, %v5356, -inf
        %7336 = vmax.xlane.f32.xlu0 %v7335
        %v7337 = vpop.xlane.xlu0 %7336
        %v7338 = vsel %vm7301, %v5416, -inf
        %7339 = vmax.xlane.f32.xlu0 %v7338
        %v7340 = vpop.xlane.xlu0 %7339
        %v7341 = vsel %vm7301, %v5418, -inf
        %7342 = vmax.xlane.f32.xlu0 %v7341
        %v7343 = vpop.xlane.xlu0 %7342
        %v7344 = vsel %vm7301, %v5421, -inf
        %7345 = vmax.xlane.f32.xlu0 %v7344
        %v7346 = vpop.xlane.xlu0 %7345
        %v7347 = vsel %vm7301, %v5423, -inf
        %7348 = vmax.xlane.f32.xlu0 %v7347
        %v7349 = vpop.xlane.xlu0 %7348
        %v7350 = vsel %vm7301, %v5483, -inf
        %7351 = vmax.xlane.f32.xlu0 %v7350
        %v7352 = vpop.xlane.xlu0 %7351
        %v7353 = vsel %vm7301, %v5485, -inf
        %7354 = vmax.xlane.f32.xlu0 %v7353
        %v7355 = vpop.xlane.xlu0 %7354
        %v7356 = vsel %vm7301, %v5488, -inf
        %7357 = vmax.xlane.f32.xlu0 %v7356
        %v7358 = vpop.xlane.xlu0 %7357
        %v7359 = vsel %vm7301, %v5490, -inf
        %7360 = vmax.xlane.f32.xlu0 %v7359
        %v7361 = vpop.xlane.xlu0 %7360
        %v7362 = vsel %vm7301, %v5550, -inf
        %7363 = vmax.xlane.f32.xlu0 %v7362
        %v7364 = vpop.xlane.xlu0 %7363
        %v7365 = vsel %vm7301, %v5552, -inf
        %7366 = vmax.xlane.f32.xlu0 %v7365
        %v7367 = vpop.xlane.xlu0 %7366
        %v7368 = vsel %vm7301, %v5555, -inf
        %7369 = vmax.xlane.f32.xlu0 %v7368
        %v7370 = vpop.xlane.xlu0 %7369
        %v7371 = vsel %vm7301, %v5557, -inf
        %7372 = vmax.xlane.f32.xlu0 %v7371
        %v7373 = vpop.xlane.xlu0 %7372
        %v7374 = vsel %vm7301, %v5617, -inf
        %7375 = vmax.xlane.f32.xlu0 %v7374
        %v7376 = vpop.xlane.xlu0 %7375
        %v7377 = vsel %vm7301, %v5619, -inf
        %7378 = vmax.xlane.f32.xlu0 %v7377
        %v7379 = vpop.xlane.xlu0 %7378
        %v7380 = vsel %vm7301, %v5622, -inf
        %7381 = vmax.xlane.f32.xlu0 %v7380
        %v7382 = vpop.xlane.xlu0 %7381
        %v7383 = vsel %vm7301, %v5624, -inf
        %7384 = vmax.xlane.f32.xlu0 %v7383
        %v7385 = vpop.xlane.xlu0 %7384
        %v7386 = vsel %vm7301, %v5684, -inf
        %7387 = vmax.xlane.f32.xlu0 %v7386
        %v7388 = vpop.xlane.xlu0 %7387
        %v7389 = vsel %vm7301, %v5686, -inf
        %7390 = vmax.xlane.f32.xlu0 %v7389
        %v7391 = vpop.xlane.xlu0 %7390
        %v7392 = vsel %vm7301, %v5689, -inf
        %7393 = vmax.xlane.f32.xlu0 %v7392
        %v7394 = vpop.xlane.xlu0 %7393
        %v7395 = vsel %vm7301, %v5691, -inf
        %7396 = vmax.xlane.f32.xlu0 %v7395
        %v7397 = vpop.xlane.xlu0 %7396
        %v7398 = vsel %vm7301, %v5751, -inf
        %7399 = vmax.xlane.f32.xlu0 %v7398
        %v7400 = vpop.xlane.xlu0 %7399
        %v7401 = vsel %vm7301, %v5753, -inf
        %7402 = vmax.xlane.f32.xlu0 %v7401
        %v7403 = vpop.xlane.xlu0 %7402
        %v7404 = vsel %vm7301, %v5756, -inf
        %7405 = vmax.xlane.f32.xlu0 %v7404
        %v7406 = vpop.xlane.xlu0 %7405
        %v7407 = vsel %vm7301, %v5758, -inf
        %7408 = vmax.xlane.f32.xlu0 %v7407
        %v7409 = vpop.xlane.xlu0 %7408
        %v7410 = vsel %vm7301, %v5818, -inf
        %7411 = vmax.xlane.f32.xlu0 %v7410
        %v7412 = vpop.xlane.xlu0 %7411
        %v7413 = vsel %vm7301, %v5820, -inf
        %7414 = vmax.xlane.f32.xlu0 %v7413
        %v7415 = vpop.xlane.xlu0 %7414
        %v7416 = vsel %vm7301, %v5823, -inf
        %7417 = vmax.xlane.f32.xlu0 %v7416
        %v7418 = vpop.xlane.xlu0 %7417
        %v7419 = vsel %vm7301, %v5825, -inf
        %7420 = vmax.xlane.f32.xlu0 %v7419
        %v7421 = vpop.xlane.xlu0 %7420
        %v7422 = vsel %vm7301, %v5885, -inf
        %7423 = vmax.xlane.f32.xlu0 %v7422
        %v7424 = vpop.xlane.xlu0 %7423
        %v7425 = vsel %vm7301, %v5887, -inf
        %7426 = vmax.xlane.f32.xlu0 %v7425
        %v7427 = vpop.xlane.xlu0 %7426
        %v7428 = vsel %vm7301, %v5890, -inf
        %7429 = vmax.xlane.f32.xlu0 %v7428
        %v7430 = vpop.xlane.xlu0 %7429
        %v7431 = vsel %vm7301, %v5892, -inf
        %7432 = vmax.xlane.f32.xlu0 %v7431
        %v7433 = vpop.xlane.xlu0 %7432
        %v7434 = vsel %vm7301, %v5952, -inf
        %7435 = vmax.xlane.f32.xlu0 %v7434
        %v7436 = vpop.xlane.xlu0 %7435
        %v7437 = vsel %vm7301, %v5954, -inf
        %7438 = vmax.xlane.f32.xlu0 %v7437
        %v7439 = vpop.xlane.xlu0 %7438
        %v7440 = vsel %vm7301, %v5957, -inf
        %7441 = vmax.xlane.f32.xlu0 %v7440
        %v7442 = vpop.xlane.xlu0 %7441
        %v7443 = vsel %vm7301, %v5959, -inf
        %7444 = vmax.xlane.f32.xlu0 %v7443
        %v7445 = vpop.xlane.xlu0 %7444
        %v7446 = vsel %vm7301, %v6019, -inf
        %7447 = vmax.xlane.f32.xlu0 %v7446
        %v7448 = vpop.xlane.xlu0 %7447
        %v7449 = vsel %vm7301, %v6021, -inf
        %7450 = vmax.xlane.f32.xlu0 %v7449
        %v7451 = vpop.xlane.xlu0 %7450
        %v7452 = vsel %vm7301, %v6024, -inf
        %7453 = vmax.xlane.f32.xlu0 %v7452
        %v7454 = vpop.xlane.xlu0 %7453
        %v7455 = vsel %vm7301, %v6026, -inf
        %7456 = vmax.xlane.f32.xlu0 %v7455
        %v7457 = vpop.xlane.xlu0 %7456
        %v7458 = vsel %vm7301, %v6086, -inf
        %7459 = vmax.xlane.f32.xlu0 %v7458
        %v7460 = vpop.xlane.xlu0 %7459
        %v7461 = vsel %vm7301, %v6088, -inf
        %7462 = vmax.xlane.f32.xlu0 %v7461
        %v7463 = vpop.xlane.xlu0 %7462
        %v7464 = vsel %vm7301, %v6091, -inf
        %7465 = vmax.xlane.f32.xlu0 %v7464
        %v7466 = vpop.xlane.xlu0 %7465
        %v7467 = vsel %vm7301, %v6093, -inf
        %7468 = vmax.xlane.f32.xlu0 %v7467
        %v7469 = vpop.xlane.xlu0 %7468
        %v7470 = vsel %vm7301, %v6153, -inf
        %7471 = vmax.xlane.f32.xlu0 %v7470
        %v7472 = vpop.xlane.xlu0 %7471
        %v7473 = vsel %vm7301, %v6155, -inf
        %7474 = vmax.xlane.f32.xlu0 %v7473
        %v7475 = vpop.xlane.xlu0 %7474
        %v7476 = vsel %vm7301, %v6158, -inf
        %7477 = vmax.xlane.f32.xlu0 %v7476
        %v7478 = vpop.xlane.xlu0 %7477
        %v7479 = vsel %vm7301, %v6160, -inf
        %7480 = vmax.xlane.f32.xlu0 %v7479
        %v7481 = vpop.xlane.xlu0 %7480
        %v7482 = vsel %vm7301, %v6220, -inf
        %7483 = vmax.xlane.f32.xlu0 %v7482
        %v7484 = vpop.xlane.xlu0 %7483
        %v7485 = vsel %vm7301, %v6222, -inf
        %7486 = vmax.xlane.f32.xlu0 %v7485
        %v7487 = vpop.xlane.xlu0 %7486
        %v7488 = vsel %vm7301, %v6225, -inf
        %7489 = vmax.xlane.f32.xlu0 %v7488
        %v7490 = vpop.xlane.xlu0 %7489
        %v7491 = vsel %vm7301, %v6227, -inf
        %7492 = vmax.xlane.f32.xlu0 %v7491
        %v7493 = vpop.xlane.xlu0 %7492
        %v7494 = vsel %vm7301, %v6287, -inf
        %7495 = vmax.xlane.f32.xlu0 %v7494
        %v7496 = vpop.xlane.xlu0 %7495
        %v7497 = vsel %vm7301, %v6289, -inf
        %7498 = vmax.xlane.f32.xlu0 %v7497
        %v7499 = vpop.xlane.xlu0 %7498
        %v7500 = vsel %vm7301, %v6292, -inf
        %7501 = vmax.xlane.f32.xlu0 %v7500
        %v7502 = vpop.xlane.xlu0 %7501
        %v7503 = vsel %vm7301, %v6294, -inf
        %7504 = vmax.xlane.f32.xlu0 %v7503
        %v7505 = vpop.xlane.xlu0 %7504
        %v7506 = vsel %vm7301, %v6354, -inf
        %7507 = vmax.xlane.f32.xlu0 %v7506
        %v7508 = vpop.xlane.xlu0 %7507
        %v7509 = vsel %vm7301, %v6356, -inf
        %7510 = vmax.xlane.f32.xlu0 %v7509
        %v7511 = vpop.xlane.xlu0 %7510
        %v7512 = vsel %vm7301, %v6359, -inf
        %7513 = vmax.xlane.f32.xlu0 %v7512
        %v7514 = vpop.xlane.xlu0 %7513
        %v7515 = vsel %vm7301, %v6361, -inf
        %7516 = vmax.xlane.f32.xlu0 %v7515
        %v7517 = vpop.xlane.xlu0 %7516
        %v7518 = vsel %vm7301, %v6421, -inf
        %7519 = vmax.xlane.f32.xlu0 %v7518
        %v7520 = vpop.xlane.xlu0 %7519
        %v7521 = vsel %vm7301, %v6423, -inf
        %7522 = vmax.xlane.f32.xlu0 %v7521
        %v7523 = vpop.xlane.xlu0 %7522
        %v7524 = vsel %vm7301, %v6426, -inf
        %7525 = vmax.xlane.f32.xlu0 %v7524
        %v7526 = vpop.xlane.xlu0 %7525
        %v7527 = vsel %vm7301, %v6428, -inf
        %7528 = vmax.xlane.f32.xlu0 %v7527
        %v7529 = vpop.xlane.xlu0 %7528
        %v7530 = vsel %vm7301, %v6488, -inf
        %7531 = vmax.xlane.f32.xlu0 %v7530
        %v7532 = vpop.xlane.xlu0 %7531
        %v7533 = vsel %vm7301, %v6490, -inf
        %7534 = vmax.xlane.f32.xlu0 %v7533
        %v7535 = vpop.xlane.xlu0 %7534
        %v7536 = vsel %vm7301, %v6493, -inf
        %7537 = vmax.xlane.f32.xlu0 %v7536
        %v7538 = vpop.xlane.xlu0 %7537
        %v7539 = vsel %vm7301, %v6495, -inf
        %7540 = vmax.xlane.f32.xlu0 %v7539
        %v7541 = vpop.xlane.xlu0 %7540
        %v7542 = vsel %vm7301, %v6555, -inf
        %7543 = vmax.xlane.f32.xlu0 %v7542
        %v7544 = vpop.xlane.xlu0 %7543
        %v7545 = vsel %vm7301, %v6557, -inf
        %7546 = vmax.xlane.f32.xlu0 %v7545
        %v7547 = vpop.xlane.xlu0 %7546
        %v7548 = vsel %vm7301, %v6560, -inf
        %7549 = vmax.xlane.f32.xlu0 %v7548
        %v7550 = vpop.xlane.xlu0 %7549
        %v7551 = vsel %vm7301, %v6562, -inf
        %7552 = vmax.xlane.f32.xlu0 %v7551
        %v7553 = vpop.xlane.xlu0 %7552
        %v7554 = vsel %vm7301, %v6622, -inf
        %7555 = vmax.xlane.f32.xlu0 %v7554
        %v7556 = vpop.xlane.xlu0 %7555
        %v7557 = vsel %vm7301, %v6624, -inf
        %7558 = vmax.xlane.f32.xlu0 %v7557
        %v7559 = vpop.xlane.xlu0 %7558
        %v7560 = vsel %vm7301, %v6627, -inf
        %7561 = vmax.xlane.f32.xlu0 %v7560
        %v7562 = vpop.xlane.xlu0 %7561
        %v7563 = vsel %vm7301, %v6629, -inf
        %7564 = vmax.xlane.f32.xlu0 %v7563
        %v7565 = vpop.xlane.xlu0 %7564
        %v7566 = vsel %vm7301, %v6689, -inf
        %7567 = vmax.xlane.f32.xlu0 %v7566
        %v7568 = vpop.xlane.xlu0 %7567
        %v7569 = vsel %vm7301, %v6691, -inf
        %7570 = vmax.xlane.f32.xlu0 %v7569
        %v7571 = vpop.xlane.xlu0 %7570
        %v7572 = vsel %vm7301, %v6694, -inf
        %7573 = vmax.xlane.f32.xlu0 %v7572
        %v7574 = vpop.xlane.xlu0 %7573
        %v7575 = vsel %vm7301, %v6696, -inf
        %7576 = vmax.xlane.f32.xlu0 %v7575
        %v7577 = vpop.xlane.xlu0 %7576
        %v7578 = vsel %vm7301, %v6756, -inf
        %7579 = vmax.xlane.f32.xlu0 %v7578
        %v7580 = vpop.xlane.xlu0 %7579
        %v7581 = vsel %vm7301, %v6758, -inf
        %7582 = vmax.xlane.f32.xlu0 %v7581
        %v7583 = vpop.xlane.xlu0 %7582
        %v7584 = vsel %vm7301, %v6761, -inf
        %7585 = vmax.xlane.f32.xlu0 %v7584
        %v7586 = vpop.xlane.xlu0 %7585
        %v7587 = vsel %vm7301, %v6763, -inf
        %7588 = vmax.xlane.f32.xlu0 %v7587
        %v7589 = vpop.xlane.xlu0 %7588
        %v7590 = vsel %vm7301, %v6823, -inf
        %7591 = vmax.xlane.f32.xlu0 %v7590
        %v7592 = vpop.xlane.xlu0 %7591
        %v7593 = vsel %vm7301, %v6825, -inf
        %7594 = vmax.xlane.f32.xlu0 %v7593
        %v7595 = vpop.xlane.xlu0 %7594
        %v7596 = vsel %vm7301, %v6828, -inf
        %7597 = vmax.xlane.f32.xlu0 %v7596
        %v7598 = vpop.xlane.xlu0 %7597
        %v7599 = vsel %vm7301, %v6830, -inf
        %7600 = vmax.xlane.f32.xlu0 %v7599
        %v7601 = vpop.xlane.xlu0 %7600
        %v7602 = vsel %vm7301, %v6890, -inf
        %7603 = vmax.xlane.f32.xlu0 %v7602
        %v7604 = vpop.xlane.xlu0 %7603
        %v7605 = vsel %vm7301, %v6892, -inf
        %7606 = vmax.xlane.f32.xlu0 %v7605
        %v7607 = vpop.xlane.xlu0 %7606
        %v7608 = vsel %vm7301, %v6895, -inf
        %7609 = vmax.xlane.f32.xlu0 %v7608
        %v7610 = vpop.xlane.xlu0 %7609
        %v7611 = vsel %vm7301, %v6897, -inf
        %7612 = vmax.xlane.f32.xlu0 %v7611
        %v7613 = vpop.xlane.xlu0 %7612
        %v7614 = vsel %vm7301, %v6957, -inf
        %7615 = vmax.xlane.f32.xlu0 %v7614
        %v7616 = vpop.xlane.xlu0 %7615
        %v7617 = vsel %vm7301, %v6959, -inf
        %7618 = vmax.xlane.f32.xlu0 %v7617
        %v7619 = vpop.xlane.xlu0 %7618
        %v7620 = vsel %vm7301, %v6962, -inf
        %7621 = vmax.xlane.f32.xlu0 %v7620
        %v7622 = vpop.xlane.xlu0 %7621
        %v7623 = vsel %vm7301, %v6964, -inf
        %7624 = vmax.xlane.f32.xlu0 %v7623
        %v7625 = vpop.xlane.xlu0 %7624
        %v7626 = vsel %vm7301, %v7024, -inf
        %7627 = vmax.xlane.f32.xlu0 %v7626
        %v7628 = vpop.xlane.xlu0 %7627
        %v7629 = vsel %vm7301, %v7026, -inf
        %7630 = vmax.xlane.f32.xlu0 %v7629
        %v7631 = vpop.xlane.xlu0 %7630
        %v7632 = vsel %vm7301, %v7029, -inf
        %7633 = vmax.xlane.f32.xlu0 %v7632
        %v7634 = vpop.xlane.xlu0 %7633
        %v7635 = vsel %vm7301, %v7031, -inf
        %7636 = vmax.xlane.f32.xlu0 %v7635
        %v7637 = vpop.xlane.xlu0 %7636
        %v7638 = vsel %vm7301, %v7091, -inf
        %7639 = vmax.xlane.f32.xlu0 %v7638
        %v7640 = vpop.xlane.xlu0 %7639
        %v7641 = vsel %vm7301, %v7093, -inf
        %7642 = vmax.xlane.f32.xlu0 %v7641
        %v7643 = vpop.xlane.xlu0 %7642
        %v7644 = vsel %vm7301, %v7096, -inf
        %7645 = vmax.xlane.f32.xlu0 %v7644
        %v7646 = vpop.xlane.xlu0 %7645
        %v7647 = vsel %vm7301, %v7098, -inf
        %7648 = vmax.xlane.f32.xlu0 %v7647
        %v7649 = vpop.xlane.xlu0 %7648
        %v7650 = vsel %vm7301, %v7158, -inf
        %7651 = vmax.xlane.f32.xlu0 %v7650
        %v7652 = vpop.xlane.xlu0 %7651
        %v7653 = vsel %vm7301, %v7160, -inf
        %7654 = vmax.xlane.f32.xlu0 %v7653
        %v7655 = vpop.xlane.xlu0 %7654
        %v7656 = vsel %vm7301, %v7163, -inf
        %7657 = vmax.xlane.f32.xlu0 %v7656
        %v7658 = vpop.xlane.xlu0 %7657
        %v7659 = vsel %vm7301, %v7165, -inf
        %7660 = vmax.xlane.f32.xlu0 %v7659
        %v7661 = vpop.xlane.xlu0 %7660
        %v7662 = vsel %vm7301, %v7225, -inf
        %7663 = vmax.xlane.f32.xlu0 %v7662
        %v7664 = vpop.xlane.xlu0 %7663
        %v7665 = vsel %vm7301, %v7227, -inf
        %7666 = vmax.xlane.f32.xlu0 %v7665
        %v7667 = vpop.xlane.xlu0 %7666
        %v7668 = vsel %vm7301, %v7230, -inf
        %7669 = vmax.xlane.f32.xlu0 %v7668
        %v7670 = vpop.xlane.xlu0 %7669
        %v7671 = vsel %vm7301, %v7232, -inf
        %7672 = vmax.xlane.f32.xlu0 %v7671
        %v7673 = vpop.xlane.xlu0 %7672
        %v7674 = vsel %vm7301, %v7292, -inf
        %7675 = vmax.xlane.f32.xlu0 %v7674
        %v7676 = vpop.xlane.xlu0 %7675
        %v7677 = vsel %vm7301, %v7294, -inf
        %7678 = vmax.xlane.f32.xlu0 %v7677
        %v7679 = vpop.xlane.xlu0 %7678
        %v7680 = vsel %vm7301, %v7297, -inf
        %7681 = vmax.xlane.f32.xlu0 %v7680
        %v7682 = vpop.xlane.xlu0 %7681
        %v7683 = vsel %vm7301, %v7299, -inf
        %7684 = vmax.xlane.f32.xlu0 %v7683
        %v7685 = vpop.xlane.xlu0 %7684
        %v7686 = vsub.f32 %v5215, %v7304
        %v7687 = vsub.f32 %v5217, %v7307
        %v7688 = vsub.f32 %v5220, %v7310
        %v7689 = vsub.f32 %v5222, %v7313
        %v7690 = vsub.f32 %v5282, %v7316
        %v7691 = vsub.f32 %v5284, %v7319
        %v7692 = vsub.f32 %v5287, %v7322
        %v7693 = vsub.f32 %v5289, %v7325
        %v7694 = vsub.f32 %v5349, %v7328
        %v7695 = vsub.f32 %v5351, %v7331
        %v7696 = vsub.f32 %v5354, %v7334
        %v7697 = vsub.f32 %v5356, %v7337
        %v7698 = vsub.f32 %v5416, %v7340
        %v7699 = vsub.f32 %v5418, %v7343
        %v7700 = vsub.f32 %v5421, %v7346
        %v7701 = vsub.f32 %v5423, %v7349
        %v7702 = vsub.f32 %v5483, %v7352
        %v7703 = vsub.f32 %v5485, %v7355
        %v7704 = vsub.f32 %v5488, %v7358
        %v7705 = vsub.f32 %v5490, %v7361
        %v7706 = vsub.f32 %v5550, %v7364
        %v7707 = vsub.f32 %v5552, %v7367
        %v7708 = vsub.f32 %v5555, %v7370
        %v7709 = vsub.f32 %v5557, %v7373
        %v7710 = vsub.f32 %v5617, %v7376
        %v7711 = vsub.f32 %v5619, %v7379
        %v7712 = vsub.f32 %v5622, %v7382
        %v7713 = vsub.f32 %v5624, %v7385
        %v7714 = vsub.f32 %v5684, %v7388
        %v7715 = vsub.f32 %v5686, %v7391
        %v7716 = vsub.f32 %v5689, %v7394
        %v7717 = vsub.f32 %v5691, %v7397
        %v7718 = vsub.f32 %v5751, %v7400
        %v7719 = vsub.f32 %v5753, %v7403
        %v7720 = vsub.f32 %v5756, %v7406
        %v7721 = vsub.f32 %v5758, %v7409
        %v7722 = vsub.f32 %v5818, %v7412
        %v7723 = vsub.f32 %v5820, %v7415
        %v7724 = vsub.f32 %v5823, %v7418
        %v7725 = vsub.f32 %v5825, %v7421
        %v7726 = vsub.f32 %v5885, %v7424
        %v7727 = vsub.f32 %v5887, %v7427
        %v7728 = vsub.f32 %v5890, %v7430
        %v7729 = vsub.f32 %v5892, %v7433
        %v7730 = vsub.f32 %v5952, %v7436
        %v7731 = vsub.f32 %v5954, %v7439
        %v7732 = vsub.f32 %v5957, %v7442
        %v7733 = vsub.f32 %v5959, %v7445
        %v7734 = vsub.f32 %v6019, %v7448
        %v7735 = vsub.f32 %v6021, %v7451
        %v7736 = vsub.f32 %v6024, %v7454
        %v7737 = vsub.f32 %v6026, %v7457
        %v7738 = vsub.f32 %v6086, %v7460
        %v7739 = vsub.f32 %v6088, %v7463
        %v7740 = vsub.f32 %v6091, %v7466
        %v7741 = vsub.f32 %v6093, %v7469
        %v7742 = vsub.f32 %v6153, %v7472
        %v7743 = vsub.f32 %v6155, %v7475
        %v7744 = vsub.f32 %v6158, %v7478
        %v7745 = vsub.f32 %v6160, %v7481
        %v7746 = vsub.f32 %v6220, %v7484
        %v7747 = vsub.f32 %v6222, %v7487
        %v7748 = vsub.f32 %v6225, %v7490
        %v7749 = vsub.f32 %v6227, %v7493
        %v7750 = vsub.f32 %v6287, %v7496
        %v7751 = vsub.f32 %v6289, %v7499
        %v7752 = vsub.f32 %v6292, %v7502
        %v7753 = vsub.f32 %v6294, %v7505
        %v7754 = vsub.f32 %v6354, %v7508
        %v7755 = vsub.f32 %v6356, %v7511
        %v7756 = vsub.f32 %v6359, %v7514
        %v7757 = vsub.f32 %v6361, %v7517
        %v7758 = vsub.f32 %v6421, %v7520
        %v7759 = vsub.f32 %v6423, %v7523
        %v7760 = vsub.f32 %v6426, %v7526
        %v7761 = vsub.f32 %v6428, %v7529
        %v7762 = vsub.f32 %v6488, %v7532
        %v7763 = vsub.f32 %v6490, %v7535
        %v7764 = vsub.f32 %v6493, %v7538
        %v7765 = vsub.f32 %v6495, %v7541
        %v7766 = vsub.f32 %v6555, %v7544
        %v7767 = vsub.f32 %v6557, %v7547
        %v7768 = vsub.f32 %v6560, %v7550
        %v7769 = vsub.f32 %v6562, %v7553
        %v7770 = vsub.f32 %v6622, %v7556
        %v7771 = vsub.f32 %v6624, %v7559
        %v7772 = vsub.f32 %v6627, %v7562
        %v7773 = vsub.f32 %v6629, %v7565
        %v7774 = vsub.f32 %v6689, %v7568
        %v7775 = vsub.f32 %v6691, %v7571
        %v7776 = vsub.f32 %v6694, %v7574
        %v7777 = vsub.f32 %v6696, %v7577
        %v7778 = vsub.f32 %v6756, %v7580
        %v7779 = vsub.f32 %v6758, %v7583
        %v7780 = vsub.f32 %v6761, %v7586
        %v7781 = vsub.f32 %v6763, %v7589
        %v7782 = vsub.f32 %v6823, %v7592
        %v7783 = vsub.f32 %v6825, %v7595
        %v7784 = vsub.f32 %v6828, %v7598
        %v7785 = vsub.f32 %v6830, %v7601
        %v7786 = vsub.f32 %v6890, %v7604
        %v7787 = vsub.f32 %v6892, %v7607
        %v7788 = vsub.f32 %v6895, %v7610
        %v7789 = vsub.f32 %v6897, %v7613
        %v7790 = vsub.f32 %v6957, %v7616
        %v7791 = vsub.f32 %v6959, %v7619
        %v7792 = vsub.f32 %v6962, %v7622
        %v7793 = vsub.f32 %v6964, %v7625
        %v7794 = vsub.f32 %v7024, %v7628
        %v7795 = vsub.f32 %v7026, %v7631
        %v7796 = vsub.f32 %v7029, %v7634
        %v7797 = vsub.f32 %v7031, %v7637
        %v7798 = vsub.f32 %v7091, %v7640
        %v7799 = vsub.f32 %v7093, %v7643
        %v7800 = vsub.f32 %v7096, %v7646
        %v7801 = vsub.f32 %v7098, %v7649
        %v7802 = vsub.f32 %v7158, %v7652
        %v7803 = vsub.f32 %v7160, %v7655
        %v7804 = vsub.f32 %v7163, %v7658
        %v7805 = vsub.f32 %v7165, %v7661
        %v7806 = vsub.f32 %v7225, %v7664
        %v7807 = vsub.f32 %v7227, %v7667
        %v7808 = vsub.f32 %v7230, %v7670
        %v7809 = vsub.f32 %v7232, %v7673
        %v7810 = vsub.f32 %v7292, %v7676
        %v7811 = vsub.f32 %v7294, %v7679
        %v7812 = vsub.f32 %v7297, %v7682
        %v7813 = vsub.f32 %v7299, %v7685
        %v7814 = vmul.f32 %v7686, 1.442695
        %v7815 = vpow.pop %v7814
        %v7816 = vmul.f32 %v7687, 1.442695
        %v7817 = vpow.pop %v7816
        %v7818 = vmul.f32 %v7688, 1.442695
        %v7819 = vpow.pop %v7818
        %v7820 = vmul.f32 %v7689, 1.442695
        %v7821 = vpow.pop %v7820
        %v7822 = vmul.f32 %v7690, 1.442695
        %v7823 = vpow.pop %v7822
        %v7824 = vmul.f32 %v7691, 1.442695
        %v7825 = vpow.pop %v7824
        %v7826 = vmul.f32 %v7692, 1.442695
        %v7827 = vpow.pop %v7826
        %v7828 = vmul.f32 %v7693, 1.442695
        %v7829 = vpow.pop %v7828
        %v7830 = vmul.f32 %v7694, 1.442695
        %v7831 = vpow.pop %v7830
        %v7832 = vmul.f32 %v7695, 1.442695
        %v7833 = vpow.pop %v7832
        %v7834 = vmul.f32 %v7696, 1.442695
        %v7835 = vpow.pop %v7834
        %v7836 = vmul.f32 %v7697, 1.442695
        %v7837 = vpow.pop %v7836
        %v7838 = vmul.f32 %v7698, 1.442695
        %v7839 = vpow.pop %v7838
        %v7840 = vmul.f32 %v7699, 1.442695
        %v7841 = vpow.pop %v7840
        %v7842 = vmul.f32 %v7700, 1.442695
        %v7843 = vpow.pop %v7842
        %v7844 = vmul.f32 %v7701, 1.442695
        %v7845 = vpow.pop %v7844
        %v7846 = vmul.f32 %v7702, 1.442695
        %v7847 = vpow.pop %v7846
        %v7848 = vmul.f32 %v7703, 1.442695
        %v7849 = vpow.pop %v7848
        %v7850 = vmul.f32 %v7704, 1.442695
        %v7851 = vpow.pop %v7850
        %v7852 = vmul.f32 %v7705, 1.442695
        %v7853 = vpow.pop %v7852
        %v7854 = vmul.f32 %v7706, 1.442695
        %v7855 = vpow.pop %v7854
        %v7856 = vmul.f32 %v7707, 1.442695
        %v7857 = vpow.pop %v7856
        %v7858 = vmul.f32 %v7708, 1.442695
        %v7859 = vpow.pop %v7858
        %v7860 = vmul.f32 %v7709, 1.442695
        %v7861 = vpow.pop %v7860
        %v7862 = vmul.f32 %v7710, 1.442695
        %v7863 = vpow.pop %v7862
        %v7864 = vmul.f32 %v7711, 1.442695
        %v7865 = vpow.pop %v7864
        %v7866 = vmul.f32 %v7712, 1.442695
        %v7867 = vpow.pop %v7866
        %v7868 = vmul.f32 %v7713, 1.442695
        %v7869 = vpow.pop %v7868
        %v7870 = vmul.f32 %v7714, 1.442695
        %v7871 = vpow.pop %v7870
        %v7872 = vmul.f32 %v7715, 1.442695
        %v7873 = vpow.pop %v7872
        %v7874 = vmul.f32 %v7716, 1.442695
        %v7875 = vpow.pop %v7874
        %v7876 = vmul.f32 %v7717, 1.442695
        %v7877 = vpow.pop %v7876
        %v7878 = vmul.f32 %v7718, 1.442695
        %v7879 = vpow.pop %v7878
        %v7880 = vmul.f32 %v7719, 1.442695
        %v7881 = vpow.pop %v7880
        %v7882 = vmul.f32 %v7720, 1.442695
        %v7883 = vpow.pop %v7882
        %v7884 = vmul.f32 %v7721, 1.442695
        %v7885 = vpow.pop %v7884
        %v7886 = vmul.f32 %v7722, 1.442695
        %v7887 = vpow.pop %v7886
        %v7888 = vmul.f32 %v7723, 1.442695
        %v7889 = vpow.pop %v7888
        %v7890 = vmul.f32 %v7724, 1.442695
        %v7891 = vpow.pop %v7890
        %v7892 = vmul.f32 %v7725, 1.442695
        %v7893 = vpow.pop %v7892
        %v7894 = vmul.f32 %v7726, 1.442695
        %v7895 = vpow.pop %v7894
        %v7896 = vmul.f32 %v7727, 1.442695
        %v7897 = vpow.pop %v7896
        %v7898 = vmul.f32 %v7728, 1.442695
        %v7899 = vpow.pop %v7898
        %v7900 = vmul.f32 %v7729, 1.442695
        %v7901 = vpow.pop %v7900
        %v7902 = vmul.f32 %v7730, 1.442695
        %v7903 = vpow.pop %v7902
        %v7904 = vmul.f32 %v7731, 1.442695
        %v7905 = vpow.pop %v7904
        %v7906 = vmul.f32 %v7732, 1.442695
        %v7907 = vpow.pop %v7906
        %v7908 = vmul.f32 %v7733, 1.442695
        %v7909 = vpow.pop %v7908
        %v7910 = vmul.f32 %v7734, 1.442695
        %v7911 = vpow.pop %v7910
        %v7912 = vmul.f32 %v7735, 1.442695
        %v7913 = vpow.pop %v7912
        %v7914 = vmul.f32 %v7736, 1.442695
        %v7915 = vpow.pop %v7914
        %v7916 = vmul.f32 %v7737, 1.442695
        %v7917 = vpow.pop %v7916
        %v7918 = vmul.f32 %v7738, 1.442695
        %v7919 = vpow.pop %v7918
        %v7920 = vmul.f32 %v7739, 1.442695
        %v7921 = vpow.pop %v7920
        %v7922 = vmul.f32 %v7740, 1.442695
        %v7923 = vpow.pop %v7922
        %v7924 = vmul.f32 %v7741, 1.442695
        %v7925 = vpow.pop %v7924
        %v7926 = vmul.f32 %v7742, 1.442695
        %v7927 = vpow.pop %v7926
        %v7928 = vmul.f32 %v7743, 1.442695
        %v7929 = vpow.pop %v7928
        %v7930 = vmul.f32 %v7744, 1.442695
        %v7931 = vpow.pop %v7930
        %v7932 = vmul.f32 %v7745, 1.442695
        %v7933 = vpow.pop %v7932
        %v7934 = vmul.f32 %v7746, 1.442695
        %v7935 = vpow.pop %v7934
        %v7936 = vmul.f32 %v7747, 1.442695
        %v7937 = vpow.pop %v7936
        %v7938 = vmul.f32 %v7748, 1.442695
        %v7939 = vpow.pop %v7938
        %v7940 = vmul.f32 %v7749, 1.442695
        %v7941 = vpow.pop %v7940
        %v7942 = vmul.f32 %v7750, 1.442695
        %v7943 = vpow.pop %v7942
        %v7944 = vmul.f32 %v7751, 1.442695
        %v7945 = vpow.pop %v7944
        %v7946 = vmul.f32 %v7752, 1.442695
        %v7947 = vpow.pop %v7946
        %v7948 = vmul.f32 %v7753, 1.442695
        %v7949 = vpow.pop %v7948
        %v7950 = vmul.f32 %v7754, 1.442695
        %v7951 = vpow.pop %v7950
        %v7952 = vmul.f32 %v7755, 1.442695
        %v7953 = vpow.pop %v7952
        %v7954 = vmul.f32 %v7756, 1.442695
        %v7955 = vpow.pop %v7954
        %v7956 = vmul.f32 %v7757, 1.442695
        %v7957 = vpow.pop %v7956
        %v7958 = vmul.f32 %v7758, 1.442695
        %v7959 = vpow.pop %v7958
        %v7960 = vmul.f32 %v7759, 1.442695
        %v7961 = vpow.pop %v7960
        %v7962 = vmul.f32 %v7760, 1.442695
        %v7963 = vpow.pop %v7962
        %v7964 = vmul.f32 %v7761, 1.442695
        %v7965 = vpow.pop %v7964
        %v7966 = vmul.f32 %v7762, 1.442695
        %v7967 = vpow.pop %v7966
        %v7968 = vmul.f32 %v7763, 1.442695
        %v7969 = vpow.pop %v7968
        %v7970 = vmul.f32 %v7764, 1.442695
        %v7971 = vpow.pop %v7970
        %v7972 = vmul.f32 %v7765, 1.442695
        %v7973 = vpow.pop %v7972
        %v7974 = vmul.f32 %v7766, 1.442695
        %v7975 = vpow.pop %v7974
        %v7976 = vmul.f32 %v7767, 1.442695
        %v7977 = vpow.pop %v7976
        %v7978 = vmul.f32 %v7768, 1.442695
        %v7979 = vpow.pop %v7978
        %v7980 = vmul.f32 %v7769, 1.442695
        %v7981 = vpow.pop %v7980
        %v7982 = vmul.f32 %v7770, 1.442695
        %v7983 = vpow.pop %v7982
        %v7984 = vmul.f32 %v7771, 1.442695
        %v7985 = vpow.pop %v7984
        %v7986 = vmul.f32 %v7772, 1.442695
        %v7987 = vpow.pop %v7986
        %v7988 = vmul.f32 %v7773, 1.442695
        %v7989 = vpow.pop %v7988
        %v7990 = vmul.f32 %v7774, 1.442695
        %v7991 = vpow.pop %v7990
        %v7992 = vmul.f32 %v7775, 1.442695
        %v7993 = vpow.pop %v7992
        %v7994 = vmul.f32 %v7776, 1.442695
        %v7995 = vpow.pop %v7994
        %v7996 = vmul.f32 %v7777, 1.442695
        %v7997 = vpow.pop %v7996
        %v7998 = vmul.f32 %v7778, 1.442695
        %v7999 = vpow.pop %v7998
        %v8000 = vmul.f32 %v7779, 1.442695
        %v8001 = vpow.pop %v8000
        %v8002 = vmul.f32 %v7780, 1.442695
        %v8003 = vpow.pop %v8002
        %v8004 = vmul.f32 %v7781, 1.442695
        %v8005 = vpow.pop %v8004
        %v8006 = vmul.f32 %v7782, 1.442695
        %v8007 = vpow.pop %v8006
        %v8008 = vmul.f32 %v7783, 1.442695
        %v8009 = vpow.pop %v8008
        %v8010 = vmul.f32 %v7784, 1.442695
        %v8011 = vpow.pop %v8010
        %v8012 = vmul.f32 %v7785, 1.442695
        %v8013 = vpow.pop %v8012
        %v8014 = vmul.f32 %v7786, 1.442695
        %v8015 = vpow.pop %v8014
        %v8016 = vmul.f32 %v7787, 1.442695
        %v8017 = vpow.pop %v8016
        %v8018 = vmul.f32 %v7788, 1.442695
        %v8019 = vpow.pop %v8018
        %v8020 = vmul.f32 %v7789, 1.442695
        %v8021 = vpow.pop %v8020
        %v8022 = vmul.f32 %v7790, 1.442695
        %v8023 = vpow.pop %v8022
        %v8024 = vmul.f32 %v7791, 1.442695
        %v8025 = vpow.pop %v8024
        %v8026 = vmul.f32 %v7792, 1.442695
        %v8027 = vpow.pop %v8026
        %v8028 = vmul.f32 %v7793, 1.442695
        %v8029 = vpow.pop %v8028
        %v8030 = vmul.f32 %v7794, 1.442695
        %v8031 = vpow.pop %v8030
        %v8032 = vmul.f32 %v7795, 1.442695
        %v8033 = vpow.pop %v8032
        %v8034 = vmul.f32 %v7796, 1.442695
        %v8035 = vpow.pop %v8034
        %v8036 = vmul.f32 %v7797, 1.442695
        %v8037 = vpow.pop %v8036
        %v8038 = vmul.f32 %v7798, 1.442695
        %v8039 = vpow.pop %v8038
        %v8040 = vmul.f32 %v7799, 1.442695
        %v8041 = vpow.pop %v8040
        %v8042 = vmul.f32 %v7800, 1.442695
        %v8043 = vpow.pop %v8042
        %v8044 = vmul.f32 %v7801, 1.442695
        %v8045 = vpow.pop %v8044
        %v8046 = vmul.f32 %v7802, 1.442695
        %v8047 = vpow.pop %v8046
        %v8048 = vmul.f32 %v7803, 1.442695
        %v8049 = vpow.pop %v8048
        %v8050 = vmul.f32 %v7804, 1.442695
        %v8051 = vpow.pop %v8050
        %v8052 = vmul.f32 %v7805, 1.442695
        %v8053 = vpow.pop %v8052
        %v8054 = vmul.f32 %v7806, 1.442695
        %v8055 = vpow.pop %v8054
        %v8056 = vmul.f32 %v7807, 1.442695
        %v8057 = vpow.pop %v8056
        %v8058 = vmul.f32 %v7808, 1.442695
        %v8059 = vpow.pop %v8058
        %v8060 = vmul.f32 %v7809, 1.442695
        %v8061 = vpow.pop %v8060
        %v8062 = vmul.f32 %v7810, 1.442695
        %v8063 = vpow.pop %v8062
        %v8064 = vmul.f32 %v7811, 1.442695
        %v8065 = vpow.pop %v8064
        %v8066 = vmul.f32 %v7812, 1.442695
        %v8067 = vpow.pop %v8066
        %v8068 = vmul.f32 %v7813, 1.442695
        %v8069 = vpow.pop %v8068
        %v8070 = vsel %vm7301, %v7815, 0.0
        %8071 = vadd.xlane.f32.xlu0 %v8070
        %v8072 = vpop.xlane.xlu0 %8071
        %v8073 = vsel %vm7301, %v7817, 0.0
        %8074 = vadd.xlane.f32.xlu0 %v8073
        %v8075 = vpop.xlane.xlu0 %8074
        %v8076 = vsel %vm7301, %v7819, 0.0
        %8077 = vadd.xlane.f32.xlu0 %v8076
        %v8078 = vpop.xlane.xlu0 %8077
        %v8079 = vsel %vm7301, %v7821, 0.0
        %8080 = vadd.xlane.f32.xlu0 %v8079
        %v8081 = vpop.xlane.xlu0 %8080
        %v8082 = vsel %vm7301, %v7823, 0.0
        %8083 = vadd.xlane.f32.xlu0 %v8082
        %v8084 = vpop.xlane.xlu0 %8083
        %v8085 = vsel %vm7301, %v7825, 0.0
        %8086 = vadd.xlane.f32.xlu0 %v8085
        %v8087 = vpop.xlane.xlu0 %8086
        %v8088 = vsel %vm7301, %v7827, 0.0
        %8089 = vadd.xlane.f32.xlu0 %v8088
        %v8090 = vpop.xlane.xlu0 %8089
        %v8091 = vsel %vm7301, %v7829, 0.0
        %8092 = vadd.xlane.f32.xlu0 %v8091
        %v8093 = vpop.xlane.xlu0 %8092
        %v8094 = vsel %vm7301, %v7831, 0.0
        %8095 = vadd.xlane.f32.xlu0 %v8094
        %v8096 = vpop.xlane.xlu0 %8095
        %v8097 = vsel %vm7301, %v7833, 0.0
        %8098 = vadd.xlane.f32.xlu0 %v8097
        %v8099 = vpop.xlane.xlu0 %8098
        %v8100 = vsel %vm7301, %v7835, 0.0
        %8101 = vadd.xlane.f32.xlu0 %v8100
        %v8102 = vpop.xlane.xlu0 %8101
        %v8103 = vsel %vm7301, %v7837, 0.0
        %8104 = vadd.xlane.f32.xlu0 %v8103
        %v8105 = vpop.xlane.xlu0 %8104
        %v8106 = vsel %vm7301, %v7839, 0.0
        %8107 = vadd.xlane.f32.xlu0 %v8106
        %v8108 = vpop.xlane.xlu0 %8107
        %v8109 = vsel %vm7301, %v7841, 0.0
        %8110 = vadd.xlane.f32.xlu0 %v8109
        %v8111 = vpop.xlane.xlu0 %8110
        %v8112 = vsel %vm7301, %v7843, 0.0
        %8113 = vadd.xlane.f32.xlu0 %v8112
        %v8114 = vpop.xlane.xlu0 %8113
        %v8115 = vsel %vm7301, %v7845, 0.0
        %8116 = vadd.xlane.f32.xlu0 %v8115
        %v8117 = vpop.xlane.xlu0 %8116
        %v8118 = vsel %vm7301, %v7847, 0.0
        %8119 = vadd.xlane.f32.xlu0 %v8118
        %v8120 = vpop.xlane.xlu0 %8119
        %v8121 = vsel %vm7301, %v7849, 0.0
        %8122 = vadd.xlane.f32.xlu0 %v8121
        %v8123 = vpop.xlane.xlu0 %8122
        %v8124 = vsel %vm7301, %v7851, 0.0
        %8125 = vadd.xlane.f32.xlu0 %v8124
        %v8126 = vpop.xlane.xlu0 %8125
        %v8127 = vsel %vm7301, %v7853, 0.0
        %8128 = vadd.xlane.f32.xlu0 %v8127
        %v8129 = vpop.xlane.xlu0 %8128
        %v8130 = vsel %vm7301, %v7855, 0.0
        %8131 = vadd.xlane.f32.xlu0 %v8130
        %v8132 = vpop.xlane.xlu0 %8131
        %v8133 = vsel %vm7301, %v7857, 0.0
        %8134 = vadd.xlane.f32.xlu0 %v8133
        %v8135 = vpop.xlane.xlu0 %8134
        %v8136 = vsel %vm7301, %v7859, 0.0
        %8137 = vadd.xlane.f32.xlu0 %v8136
        %v8138 = vpop.xlane.xlu0 %8137
        %v8139 = vsel %vm7301, %v7861, 0.0
        %8140 = vadd.xlane.f32.xlu0 %v8139
        %v8141 = vpop.xlane.xlu0 %8140
        %v8142 = vsel %vm7301, %v7863, 0.0
        %8143 = vadd.xlane.f32.xlu0 %v8142
        %v8144 = vpop.xlane.xlu0 %8143
        %v8145 = vsel %vm7301, %v7865, 0.0
        %8146 = vadd.xlane.f32.xlu0 %v8145
        %v8147 = vpop.xlane.xlu0 %8146
        %v8148 = vsel %vm7301, %v7867, 0.0
        %8149 = vadd.xlane.f32.xlu0 %v8148
        %v8150 = vpop.xlane.xlu0 %8149
        %v8151 = vsel %vm7301, %v7869, 0.0
        %8152 = vadd.xlane.f32.xlu0 %v8151
        %v8153 = vpop.xlane.xlu0 %8152
        %v8154 = vsel %vm7301, %v7871, 0.0
        %8155 = vadd.xlane.f32.xlu0 %v8154
        %v8156 = vpop.xlane.xlu0 %8155
        %v8157 = vsel %vm7301, %v7873, 0.0
        %8158 = vadd.xlane.f32.xlu0 %v8157
        %v8159 = vpop.xlane.xlu0 %8158
        %v8160 = vsel %vm7301, %v7875, 0.0
        %8161 = vadd.xlane.f32.xlu0 %v8160
        %v8162 = vpop.xlane.xlu0 %8161
        %v8163 = vsel %vm7301, %v7877, 0.0
        %8164 = vadd.xlane.f32.xlu0 %v8163
        %v8165 = vpop.xlane.xlu0 %8164
        %v8166 = vsel %vm7301, %v7879, 0.0
        %8167 = vadd.xlane.f32.xlu0 %v8166
        %v8168 = vpop.xlane.xlu0 %8167
        %v8169 = vsel %vm7301, %v7881, 0.0
        %8170 = vadd.xlane.f32.xlu0 %v8169
        %v8171 = vpop.xlane.xlu0 %8170
        %v8172 = vsel %vm7301, %v7883, 0.0
        %8173 = vadd.xlane.f32.xlu0 %v8172
        %v8174 = vpop.xlane.xlu0 %8173
        %v8175 = vsel %vm7301, %v7885, 0.0
        %8176 = vadd.xlane.f32.xlu0 %v8175
        %v8177 = vpop.xlane.xlu0 %8176
        %v8178 = vsel %vm7301, %v7887, 0.0
        %8179 = vadd.xlane.f32.xlu0 %v8178
        %v8180 = vpop.xlane.xlu0 %8179
        %v8181 = vsel %vm7301, %v7889, 0.0
        %8182 = vadd.xlane.f32.xlu0 %v8181
        %v8183 = vpop.xlane.xlu0 %8182
        %v8184 = vsel %vm7301, %v7891, 0.0
        %8185 = vadd.xlane.f32.xlu0 %v8184
        %v8186 = vpop.xlane.xlu0 %8185
        %v8187 = vsel %vm7301, %v7893, 0.0
        %8188 = vadd.xlane.f32.xlu0 %v8187
        %v8189 = vpop.xlane.xlu0 %8188
        %v8190 = vsel %vm7301, %v7895, 0.0
        %8191 = vadd.xlane.f32.xlu0 %v8190
        %v8192 = vpop.xlane.xlu0 %8191
        %v8193 = vsel %vm7301, %v7897, 0.0
        %8194 = vadd.xlane.f32.xlu0 %v8193
        %v8195 = vpop.xlane.xlu0 %8194
        %v8196 = vsel %vm7301, %v7899, 0.0
        %8197 = vadd.xlane.f32.xlu0 %v8196
        %v8198 = vpop.xlane.xlu0 %8197
        %v8199 = vsel %vm7301, %v7901, 0.0
        %8200 = vadd.xlane.f32.xlu0 %v8199
        %v8201 = vpop.xlane.xlu0 %8200
        %v8202 = vsel %vm7301, %v7903, 0.0
        %8203 = vadd.xlane.f32.xlu0 %v8202
        %v8204 = vpop.xlane.xlu0 %8203
        %v8205 = vsel %vm7301, %v7905, 0.0
        %8206 = vadd.xlane.f32.xlu0 %v8205
        %v8207 = vpop.xlane.xlu0 %8206
        %v8208 = vsel %vm7301, %v7907, 0.0
        %8209 = vadd.xlane.f32.xlu0 %v8208
        %v8210 = vpop.xlane.xlu0 %8209
        %v8211 = vsel %vm7301, %v7909, 0.0
        %8212 = vadd.xlane.f32.xlu0 %v8211
        %v8213 = vpop.xlane.xlu0 %8212
        %v8214 = vsel %vm7301, %v7911, 0.0
        %8215 = vadd.xlane.f32.xlu0 %v8214
        %v8216 = vpop.xlane.xlu0 %8215
        %v8217 = vsel %vm7301, %v7913, 0.0
        %8218 = vadd.xlane.f32.xlu0 %v8217
        %v8219 = vpop.xlane.xlu0 %8218
        %v8220 = vsel %vm7301, %v7915, 0.0
        %8221 = vadd.xlane.f32.xlu0 %v8220
        %v8222 = vpop.xlane.xlu0 %8221
        %v8223 = vsel %vm7301, %v7917, 0.0
        %8224 = vadd.xlane.f32.xlu0 %v8223
        %v8225 = vpop.xlane.xlu0 %8224
        %v8226 = vsel %vm7301, %v7919, 0.0
        %8227 = vadd.xlane.f32.xlu0 %v8226
        %v8228 = vpop.xlane.xlu0 %8227
        %v8229 = vsel %vm7301, %v7921, 0.0
        %8230 = vadd.xlane.f32.xlu0 %v8229
        %v8231 = vpop.xlane.xlu0 %8230
        %v8232 = vsel %vm7301, %v7923, 0.0
        %8233 = vadd.xlane.f32.xlu0 %v8232
        %v8234 = vpop.xlane.xlu0 %8233
        %v8235 = vsel %vm7301, %v7925, 0.0
        %8236 = vadd.xlane.f32.xlu0 %v8235
        %v8237 = vpop.xlane.xlu0 %8236
        %v8238 = vsel %vm7301, %v7927, 0.0
        %8239 = vadd.xlane.f32.xlu0 %v8238
        %v8240 = vpop.xlane.xlu0 %8239
        %v8241 = vsel %vm7301, %v7929, 0.0
        %8242 = vadd.xlane.f32.xlu0 %v8241
        %v8243 = vpop.xlane.xlu0 %8242
        %v8244 = vsel %vm7301, %v7931, 0.0
        %8245 = vadd.xlane.f32.xlu0 %v8244
        %v8246 = vpop.xlane.xlu0 %8245
        %v8247 = vsel %vm7301, %v7933, 0.0
        %8248 = vadd.xlane.f32.xlu0 %v8247
        %v8249 = vpop.xlane.xlu0 %8248
        %v8250 = vsel %vm7301, %v7935, 0.0
        %8251 = vadd.xlane.f32.xlu0 %v8250
        %v8252 = vpop.xlane.xlu0 %8251
        %v8253 = vsel %vm7301, %v7937, 0.0
        %8254 = vadd.xlane.f32.xlu0 %v8253
        %v8255 = vpop.xlane.xlu0 %8254
        %v8256 = vsel %vm7301, %v7939, 0.0
        %8257 = vadd.xlane.f32.xlu0 %v8256
        %v8258 = vpop.xlane.xlu0 %8257
        %v8259 = vsel %vm7301, %v7941, 0.0
        %8260 = vadd.xlane.f32.xlu0 %v8259
        %v8261 = vpop.xlane.xlu0 %8260
        %v8262 = vsel %vm7301, %v7943, 0.0
        %8263 = vadd.xlane.f32.xlu0 %v8262
        %v8264 = vpop.xlane.xlu0 %8263
        %v8265 = vsel %vm7301, %v7945, 0.0
        %8266 = vadd.xlane.f32.xlu0 %v8265
        %v8267 = vpop.xlane.xlu0 %8266
        %v8268 = vsel %vm7301, %v7947, 0.0
        %8269 = vadd.xlane.f32.xlu0 %v8268
        %v8270 = vpop.xlane.xlu0 %8269
        %v8271 = vsel %vm7301, %v7949, 0.0
        %8272 = vadd.xlane.f32.xlu0 %v8271
        %v8273 = vpop.xlane.xlu0 %8272
        %v8274 = vsel %vm7301, %v7951, 0.0
        %8275 = vadd.xlane.f32.xlu0 %v8274
        %v8276 = vpop.xlane.xlu0 %8275
        %v8277 = vsel %vm7301, %v7953, 0.0
        %8278 = vadd.xlane.f32.xlu0 %v8277
        %v8279 = vpop.xlane.xlu0 %8278
        %v8280 = vsel %vm7301, %v7955, 0.0
        %8281 = vadd.xlane.f32.xlu0 %v8280
        %v8282 = vpop.xlane.xlu0 %8281
        %v8283 = vsel %vm7301, %v7957, 0.0
        %8284 = vadd.xlane.f32.xlu0 %v8283
        %v8285 = vpop.xlane.xlu0 %8284
        %v8286 = vsel %vm7301, %v7959, 0.0
        %8287 = vadd.xlane.f32.xlu0 %v8286
        %v8288 = vpop.xlane.xlu0 %8287
        %v8289 = vsel %vm7301, %v7961, 0.0
        %8290 = vadd.xlane.f32.xlu0 %v8289
        %v8291 = vpop.xlane.xlu0 %8290
        %v8292 = vsel %vm7301, %v7963, 0.0
        %8293 = vadd.xlane.f32.xlu0 %v8292
        %v8294 = vpop.xlane.xlu0 %8293
        %v8295 = vsel %vm7301, %v7965, 0.0
        %8296 = vadd.xlane.f32.xlu0 %v8295
        %v8297 = vpop.xlane.xlu0 %8296
        %v8298 = vsel %vm7301, %v7967, 0.0
        %8299 = vadd.xlane.f32.xlu0 %v8298
        %v8300 = vpop.xlane.xlu0 %8299
        %v8301 = vsel %vm7301, %v7969, 0.0
        %8302 = vadd.xlane.f32.xlu0 %v8301
        %v8303 = vpop.xlane.xlu0 %8302
        %v8304 = vsel %vm7301, %v7971, 0.0
        %8305 = vadd.xlane.f32.xlu0 %v8304
        %v8306 = vpop.xlane.xlu0 %8305
        %v8307 = vsel %vm7301, %v7973, 0.0
        %8308 = vadd.xlane.f32.xlu0 %v8307
        %v8309 = vpop.xlane.xlu0 %8308
        %v8310 = vsel %vm7301, %v7975, 0.0
        %8311 = vadd.xlane.f32.xlu0 %v8310
        %v8312 = vpop.xlane.xlu0 %8311
        %v8313 = vsel %vm7301, %v7977, 0.0
        %8314 = vadd.xlane.f32.xlu0 %v8313
        %v8315 = vpop.xlane.xlu0 %8314
        %v8316 = vsel %vm7301, %v7979, 0.0
        %8317 = vadd.xlane.f32.xlu0 %v8316
        %v8318 = vpop.xlane.xlu0 %8317
        %v8319 = vsel %vm7301, %v7981, 0.0
        %8320 = vadd.xlane.f32.xlu0 %v8319
        %v8321 = vpop.xlane.xlu0 %8320
        %v8322 = vsel %vm7301, %v7983, 0.0
        %8323 = vadd.xlane.f32.xlu0 %v8322
        %v8324 = vpop.xlane.xlu0 %8323
        %v8325 = vsel %vm7301, %v7985, 0.0
        %8326 = vadd.xlane.f32.xlu0 %v8325
        %v8327 = vpop.xlane.xlu0 %8326
        %v8328 = vsel %vm7301, %v7987, 0.0
        %8329 = vadd.xlane.f32.xlu0 %v8328
        %v8330 = vpop.xlane.xlu0 %8329
        %v8331 = vsel %vm7301, %v7989, 0.0
        %8332 = vadd.xlane.f32.xlu0 %v8331
        %v8333 = vpop.xlane.xlu0 %8332
        %v8334 = vsel %vm7301, %v7991, 0.0
        %8335 = vadd.xlane.f32.xlu0 %v8334
        %v8336 = vpop.xlane.xlu0 %8335
        %v8337 = vsel %vm7301, %v7993, 0.0
        %8338 = vadd.xlane.f32.xlu0 %v8337
        %v8339 = vpop.xlane.xlu0 %8338
        %v8340 = vsel %vm7301, %v7995, 0.0
        %8341 = vadd.xlane.f32.xlu0 %v8340
        %v8342 = vpop.xlane.xlu0 %8341
        %v8343 = vsel %vm7301, %v7997, 0.0
        %8344 = vadd.xlane.f32.xlu0 %v8343
        %v8345 = vpop.xlane.xlu0 %8344
        %v8346 = vsel %vm7301, %v7999, 0.0
        %8347 = vadd.xlane.f32.xlu0 %v8346
        %v8348 = vpop.xlane.xlu0 %8347
        %v8349 = vsel %vm7301, %v8001, 0.0
        %8350 = vadd.xlane.f32.xlu0 %v8349
        %v8351 = vpop.xlane.xlu0 %8350
        %v8352 = vsel %vm7301, %v8003, 0.0
        %8353 = vadd.xlane.f32.xlu0 %v8352
        %v8354 = vpop.xlane.xlu0 %8353
        %v8355 = vsel %vm7301, %v8005, 0.0
        %8356 = vadd.xlane.f32.xlu0 %v8355
        %v8357 = vpop.xlane.xlu0 %8356
        %v8358 = vsel %vm7301, %v8007, 0.0
        %8359 = vadd.xlane.f32.xlu0 %v8358
        %v8360 = vpop.xlane.xlu0 %8359
        %v8361 = vsel %vm7301, %v8009, 0.0
        %8362 = vadd.xlane.f32.xlu0 %v8361
        %v8363 = vpop.xlane.xlu0 %8362
        %v8364 = vsel %vm7301, %v8011, 0.0
        %8365 = vadd.xlane.f32.xlu0 %v8364
        %v8366 = vpop.xlane.xlu0 %8365
        %v8367 = vsel %vm7301, %v8013, 0.0
        %8368 = vadd.xlane.f32.xlu0 %v8367
        %v8369 = vpop.xlane.xlu0 %8368
        %v8370 = vsel %vm7301, %v8015, 0.0
        %8371 = vadd.xlane.f32.xlu0 %v8370
        %v8372 = vpop.xlane.xlu0 %8371
        %v8373 = vsel %vm7301, %v8017, 0.0
        %8374 = vadd.xlane.f32.xlu0 %v8373
        %v8375 = vpop.xlane.xlu0 %8374
        %v8376 = vsel %vm7301, %v8019, 0.0
        %8377 = vadd.xlane.f32.xlu0 %v8376
        %v8378 = vpop.xlane.xlu0 %8377
        %v8379 = vsel %vm7301, %v8021, 0.0
        %8380 = vadd.xlane.f32.xlu0 %v8379
        %v8381 = vpop.xlane.xlu0 %8380
        %v8382 = vsel %vm7301, %v8023, 0.0
        %8383 = vadd.xlane.f32.xlu0 %v8382
        %v8384 = vpop.xlane.xlu0 %8383
        %v8385 = vsel %vm7301, %v8025, 0.0
        %8386 = vadd.xlane.f32.xlu0 %v8385
        %v8387 = vpop.xlane.xlu0 %8386
        %v8388 = vsel %vm7301, %v8027, 0.0
        %8389 = vadd.xlane.f32.xlu0 %v8388
        %v8390 = vpop.xlane.xlu0 %8389
        %v8391 = vsel %vm7301, %v8029, 0.0
        %8392 = vadd.xlane.f32.xlu0 %v8391
        %v8393 = vpop.xlane.xlu0 %8392
        %v8394 = vsel %vm7301, %v8031, 0.0
        %8395 = vadd.xlane.f32.xlu0 %v8394
        %v8396 = vpop.xlane.xlu0 %8395
        %v8397 = vsel %vm7301, %v8033, 0.0
        %8398 = vadd.xlane.f32.xlu0 %v8397
        %v8399 = vpop.xlane.xlu0 %8398
        %v8400 = vsel %vm7301, %v8035, 0.0
        %8401 = vadd.xlane.f32.xlu0 %v8400
        %v8402 = vpop.xlane.xlu0 %8401
        %v8403 = vsel %vm7301, %v8037, 0.0
        %8404 = vadd.xlane.f32.xlu0 %v8403
        %v8405 = vpop.xlane.xlu0 %8404
        %v8406 = vsel %vm7301, %v8039, 0.0
        %8407 = vadd.xlane.f32.xlu0 %v8406
        %v8408 = vpop.xlane.xlu0 %8407
        %v8409 = vsel %vm7301, %v8041, 0.0
        %8410 = vadd.xlane.f32.xlu0 %v8409
        %v8411 = vpop.xlane.xlu0 %8410
        %v8412 = vsel %vm7301, %v8043, 0.0
        %8413 = vadd.xlane.f32.xlu0 %v8412
        %v8414 = vpop.xlane.xlu0 %8413
        %v8415 = vsel %vm7301, %v8045, 0.0
        %8416 = vadd.xlane.f32.xlu0 %v8415
        %v8417 = vpop.xlane.xlu0 %8416
        %v8418 = vsel %vm7301, %v8047, 0.0
        %8419 = vadd.xlane.f32.xlu0 %v8418
        %v8420 = vpop.xlane.xlu0 %8419
        %v8421 = vsel %vm7301, %v8049, 0.0
        %8422 = vadd.xlane.f32.xlu0 %v8421
        %v8423 = vpop.xlane.xlu0 %8422
        %v8424 = vsel %vm7301, %v8051, 0.0
        %8425 = vadd.xlane.f32.xlu0 %v8424
        %v8426 = vpop.xlane.xlu0 %8425
        %v8427 = vsel %vm7301, %v8053, 0.0
        %8428 = vadd.xlane.f32.xlu0 %v8427
        %v8429 = vpop.xlane.xlu0 %8428
        %v8430 = vsel %vm7301, %v8055, 0.0
        %8431 = vadd.xlane.f32.xlu0 %v8430
        %v8432 = vpop.xlane.xlu0 %8431
        %v8433 = vsel %vm7301, %v8057, 0.0
        %8434 = vadd.xlane.f32.xlu0 %v8433
        %v8435 = vpop.xlane.xlu0 %8434
        %v8436 = vsel %vm7301, %v8059, 0.0
        %8437 = vadd.xlane.f32.xlu0 %v8436
        %v8438 = vpop.xlane.xlu0 %8437
        %v8439 = vsel %vm7301, %v8061, 0.0
        %8440 = vadd.xlane.f32.xlu0 %v8439
        %v8441 = vpop.xlane.xlu0 %8440
        %v8442 = vsel %vm7301, %v8063, 0.0
        %8443 = vadd.xlane.f32.xlu0 %v8442
        %v8444 = vpop.xlane.xlu0 %8443
        %v8445 = vsel %vm7301, %v8065, 0.0
        %8446 = vadd.xlane.f32.xlu0 %v8445
        %v8447 = vpop.xlane.xlu0 %8446
        %v8448 = vsel %vm7301, %v8067, 0.0
        %8449 = vadd.xlane.f32.xlu0 %v8448
        %v8450 = vpop.xlane.xlu0 %8449
        %v8451 = vsel %vm7301, %v8069, 0.0
        %8452 = vadd.xlane.f32.xlu0 %v8451
        %v8453 = vpop.xlane.xlu0 %8452
        %v8454 = vrcp.pop %v8072
        %v8455 = vrcp.pop %v8075
        %v8456 = vrcp.pop %v8078
        %v8457 = vrcp.pop %v8081
        %v8458 = vrcp.pop %v8084
        %v8459 = vrcp.pop %v8087
        %v8460 = vrcp.pop %v8090
        %v8461 = vrcp.pop %v8093
        %v8462 = vrcp.pop %v8096
        %v8463 = vrcp.pop %v8099
        %v8464 = vrcp.pop %v8102
        %v8465 = vrcp.pop %v8105
        %v8466 = vrcp.pop %v8108
        %v8467 = vrcp.pop %v8111
        %v8468 = vrcp.pop %v8114
        %v8469 = vrcp.pop %v8117
        %v8470 = vrcp.pop %v8120
        %v8471 = vrcp.pop %v8123
        %v8472 = vrcp.pop %v8126
        %v8473 = vrcp.pop %v8129
        %v8474 = vrcp.pop %v8132
        %v8475 = vrcp.pop %v8135
        %v8476 = vrcp.pop %v8138
        %v8477 = vrcp.pop %v8141
        %v8478 = vrcp.pop %v8144
        %v8479 = vrcp.pop %v8147
        %v8480 = vrcp.pop %v8150
        %v8481 = vrcp.pop %v8153
        %v8482 = vrcp.pop %v8156
        %v8483 = vrcp.pop %v8159
        %v8484 = vrcp.pop %v8162
        %v8485 = vrcp.pop %v8165
        %v8486 = vrcp.pop %v8168
        %v8487 = vrcp.pop %v8171
        %v8488 = vrcp.pop %v8174
        %v8489 = vrcp.pop %v8177
        %v8490 = vrcp.pop %v8180
        %v8491 = vrcp.pop %v8183
        %v8492 = vrcp.pop %v8186
        %v8493 = vrcp.pop %v8189
        %v8494 = vrcp.pop %v8192
        %v8495 = vrcp.pop %v8195
        %v8496 = vrcp.pop %v8198
        %v8497 = vrcp.pop %v8201
        %v8498 = vrcp.pop %v8204
        %v8499 = vrcp.pop %v8207
        %v8500 = vrcp.pop %v8210
        %v8501 = vrcp.pop %v8213
        %v8502 = vrcp.pop %v8216
        %v8503 = vrcp.pop %v8219
        %v8504 = vrcp.pop %v8222
        %v8505 = vrcp.pop %v8225
        %v8506 = vrcp.pop %v8228
        %v8507 = vrcp.pop %v8231
        %v8508 = vrcp.pop %v8234
        %v8509 = vrcp.pop %v8237
        %v8510 = vrcp.pop %v8240
        %v8511 = vrcp.pop %v8243
        %v8512 = vrcp.pop %v8246
        %v8513 = vrcp.pop %v8249
        %v8514 = vrcp.pop %v8252
        %v8515 = vrcp.pop %v8255
        %v8516 = vrcp.pop %v8258
        %v8517 = vrcp.pop %v8261
        %v8518 = vrcp.pop %v8264
        %v8519 = vrcp.pop %v8267
        %v8520 = vrcp.pop %v8270
        %v8521 = vrcp.pop %v8273
        %v8522 = vrcp.pop %v8276
        %v8523 = vrcp.pop %v8279
        %v8524 = vrcp.pop %v8282
        %v8525 = vrcp.pop %v8285
        %v8526 = vrcp.pop %v8288
        %v8527 = vrcp.pop %v8291
        %v8528 = vrcp.pop %v8294
        %v8529 = vrcp.pop %v8297
        %v8530 = vrcp.pop %v8300
        %v8531 = vrcp.pop %v8303
        %v8532 = vrcp.pop %v8306
        %v8533 = vrcp.pop %v8309
        %v8534 = vrcp.pop %v8312
        %v8535 = vrcp.pop %v8315
        %v8536 = vrcp.pop %v8318
        %v8537 = vrcp.pop %v8321
        %v8538 = vrcp.pop %v8324
        %v8539 = vrcp.pop %v8327
        %v8540 = vrcp.pop %v8330
        %v8541 = vrcp.pop %v8333
        %v8542 = vrcp.pop %v8336
        %v8543 = vrcp.pop %v8339
        %v8544 = vrcp.pop %v8342
        %v8545 = vrcp.pop %v8345
        %v8546 = vrcp.pop %v8348
        %v8547 = vrcp.pop %v8351
        %v8548 = vrcp.pop %v8354
        %v8549 = vrcp.pop %v8357
        %v8550 = vrcp.pop %v8360
        %v8551 = vrcp.pop %v8363
        %v8552 = vrcp.pop %v8366
        %v8553 = vrcp.pop %v8369
        %v8554 = vrcp.pop %v8372
        %v8555 = vrcp.pop %v8375
        %v8556 = vrcp.pop %v8378
        %v8557 = vrcp.pop %v8381
        %v8558 = vrcp.pop %v8384
        %v8559 = vrcp.pop %v8387
        %v8560 = vrcp.pop %v8390
        %v8561 = vrcp.pop %v8393
        %v8562 = vrcp.pop %v8396
        %v8563 = vrcp.pop %v8399
        %v8564 = vrcp.pop %v8402
        %v8565 = vrcp.pop %v8405
        %v8566 = vrcp.pop %v8408
        %v8567 = vrcp.pop %v8411
        %v8568 = vrcp.pop %v8414
        %v8569 = vrcp.pop %v8417
        %v8570 = vrcp.pop %v8420
        %v8571 = vrcp.pop %v8423
        %v8572 = vrcp.pop %v8426
        %v8573 = vrcp.pop %v8429
        %v8574 = vrcp.pop %v8432
        %v8575 = vrcp.pop %v8435
        %v8576 = vrcp.pop %v8438
        %v8577 = vrcp.pop %v8441
        %v8578 = vrcp.pop %v8444
        %v8579 = vrcp.pop %v8447
        %v8580 = vrcp.pop %v8450
        %v8581 = vrcp.pop %v8453
        %v8582 = vmul.f32 %v7815, %v8454
        %v8583 = vmul.f32 %v7817, %v8455
        %v8584 = vmul.f32 %v7819, %v8456
        %v8585 = vmul.f32 %v7821, %v8457
        %v8586 = vmul.f32 %v7823, %v8458
        %v8587 = vmul.f32 %v7825, %v8459
        %v8588 = vmul.f32 %v7827, %v8460
        %v8589 = vmul.f32 %v7829, %v8461
        %v8590 = vmul.f32 %v7831, %v8462
        %v8591 = vmul.f32 %v7833, %v8463
        %v8592 = vmul.f32 %v7835, %v8464
        %v8593 = vmul.f32 %v7837, %v8465
        %v8594 = vmul.f32 %v7839, %v8466
        %v8595 = vmul.f32 %v7841, %v8467
        %v8596 = vmul.f32 %v7843, %v8468
        %v8597 = vmul.f32 %v7845, %v8469
        %v8598 = vmul.f32 %v7847, %v8470
        %v8599 = vmul.f32 %v7849, %v8471
        %v8600 = vmul.f32 %v7851, %v8472
        %v8601 = vmul.f32 %v7853, %v8473
        %v8602 = vmul.f32 %v7855, %v8474
        %v8603 = vmul.f32 %v7857, %v8475
        %v8604 = vmul.f32 %v7859, %v8476
        %v8605 = vmul.f32 %v7861, %v8477
        %v8606 = vmul.f32 %v7863, %v8478
        %v8607 = vmul.f32 %v7865, %v8479
        %v8608 = vmul.f32 %v7867, %v8480
        %v8609 = vmul.f32 %v7869, %v8481
        %v8610 = vmul.f32 %v7871, %v8482
        %v8611 = vmul.f32 %v7873, %v8483
        %v8612 = vmul.f32 %v7875, %v8484
        %v8613 = vmul.f32 %v7877, %v8485
        %v8614 = vmul.f32 %v7879, %v8486
        %v8615 = vmul.f32 %v7881, %v8487
        %v8616 = vmul.f32 %v7883, %v8488
        %v8617 = vmul.f32 %v7885, %v8489
        %v8618 = vmul.f32 %v7887, %v8490
        %v8619 = vmul.f32 %v7889, %v8491
        %v8620 = vmul.f32 %v7891, %v8492
        %v8621 = vmul.f32 %v7893, %v8493
        %v8622 = vmul.f32 %v7895, %v8494
        %v8623 = vmul.f32 %v7897, %v8495
        %v8624 = vmul.f32 %v7899, %v8496
        %v8625 = vmul.f32 %v7901, %v8497
        %v8626 = vmul.f32 %v7903, %v8498
        %v8627 = vmul.f32 %v7905, %v8499
        %v8628 = vmul.f32 %v7907, %v8500
        %v8629 = vmul.f32 %v7909, %v8501
        %v8630 = vmul.f32 %v7911, %v8502
        %v8631 = vmul.f32 %v7913, %v8503
        %v8632 = vmul.f32 %v7915, %v8504
        %v8633 = vmul.f32 %v7917, %v8505
        %v8634 = vmul.f32 %v7919, %v8506
        %v8635 = vmul.f32 %v7921, %v8507
        %v8636 = vmul.f32 %v7923, %v8508
        %v8637 = vmul.f32 %v7925, %v8509
        %v8638 = vmul.f32 %v7927, %v8510
        %v8639 = vmul.f32 %v7929, %v8511
        %v8640 = vmul.f32 %v7931, %v8512
        %v8641 = vmul.f32 %v7933, %v8513
        %v8642 = vmul.f32 %v7935, %v8514
        %v8643 = vmul.f32 %v7937, %v8515
        %v8644 = vmul.f32 %v7939, %v8516
        %v8645 = vmul.f32 %v7941, %v8517
        %v8646 = vmul.f32 %v7943, %v8518
        %v8647 = vmul.f32 %v7945, %v8519
        %v8648 = vmul.f32 %v7947, %v8520
        %v8649 = vmul.f32 %v7949, %v8521
        %v8650 = vmul.f32 %v7951, %v8522
        %v8651 = vmul.f32 %v7953, %v8523
        %v8652 = vmul.f32 %v7955, %v8524
        %v8653 = vmul.f32 %v7957, %v8525
        %v8654 = vmul.f32 %v7959, %v8526
        %v8655 = vmul.f32 %v7961, %v8527
        %v8656 = vmul.f32 %v7963, %v8528
        %v8657 = vmul.f32 %v7965, %v8529
        %v8658 = vmul.f32 %v7967, %v8530
        %v8659 = vmul.f32 %v7969, %v8531
        %v8660 = vmul.f32 %v7971, %v8532
        %v8661 = vmul.f32 %v7973, %v8533
        %v8662 = vmul.f32 %v7975, %v8534
        %v8663 = vmul.f32 %v7977, %v8535
        %v8664 = vmul.f32 %v7979, %v8536
        %v8665 = vmul.f32 %v7981, %v8537
        %v8666 = vmul.f32 %v7983, %v8538
        %v8667 = vmul.f32 %v7985, %v8539
        %v8668 = vmul.f32 %v7987, %v8540
        %v8669 = vmul.f32 %v7989, %v8541
        %v8670 = vmul.f32 %v7991, %v8542
        %v8671 = vmul.f32 %v7993, %v8543
        %v8672 = vmul.f32 %v7995, %v8544
        %v8673 = vmul.f32 %v7997, %v8545
        %v8674 = vmul.f32 %v7999, %v8546
        %v8675 = vmul.f32 %v8001, %v8547
        %v8676 = vmul.f32 %v8003, %v8548
        %v8677 = vmul.f32 %v8005, %v8549
        %v8678 = vmul.f32 %v8007, %v8550
        %v8679 = vmul.f32 %v8009, %v8551
        %v8680 = vmul.f32 %v8011, %v8552
        %v8681 = vmul.f32 %v8013, %v8553
        %v8682 = vmul.f32 %v8015, %v8554
        %v8683 = vmul.f32 %v8017, %v8555
        %v8684 = vmul.f32 %v8019, %v8556
        %v8685 = vmul.f32 %v8021, %v8557
        %v8686 = vmul.f32 %v8023, %v8558
        %v8687 = vmul.f32 %v8025, %v8559
        %v8688 = vmul.f32 %v8027, %v8560
        %v8689 = vmul.f32 %v8029, %v8561
        %v8690 = vmul.f32 %v8031, %v8562
        %v8691 = vmul.f32 %v8033, %v8563
        %v8692 = vmul.f32 %v8035, %v8564
        %v8693 = vmul.f32 %v8037, %v8565
        %v8694 = vmul.f32 %v8039, %v8566
        %v8695 = vmul.f32 %v8041, %v8567
        %v8696 = vmul.f32 %v8043, %v8568
        %v8697 = vmul.f32 %v8045, %v8569
        %v8698 = vmul.f32 %v8047, %v8570
        %v8699 = vmul.f32 %v8049, %v8571
        %v8700 = vmul.f32 %v8051, %v8572
        %v8701 = vmul.f32 %v8053, %v8573
        %v8702 = vmul.f32 %v8055, %v8574
        %v8703 = vmul.f32 %v8057, %v8575
        %v8704 = vmul.f32 %v8059, %v8576
        %v8705 = vmul.f32 %v8061, %v8577
        %v8706 = vmul.f32 %v8063, %v8578
        %v8707 = vmul.f32 %v8065, %v8579
        %v8708 = vmul.f32 %v8067, %v8580
        %v8709 = vmul.f32 %v8069, %v8581
        %v8710 = vpack.c.bf16 %v8582, %v8582
        %v8711 = vpack.c.bf16 %v8583, %v8583
        %v8712 = vpack.c.bf16 %v8584, %v8584
        %v8713 = vpack.c.bf16 %v8585, %v8585
        %v8714 = vpack.c.bf16 %v8586, %v8586
        %v8715 = vpack.c.bf16 %v8587, %v8587
        %v8716 = vpack.c.bf16 %v8588, %v8588
        %v8717 = vpack.c.bf16 %v8589, %v8589
        %v8718 = vpack.c.bf16 %v8590, %v8590
        %v8719 = vpack.c.bf16 %v8591, %v8591
        %v8720 = vpack.c.bf16 %v8592, %v8592
        %v8721 = vpack.c.bf16 %v8593, %v8593
        %v8722 = vpack.c.bf16 %v8594, %v8594
        %v8723 = vpack.c.bf16 %v8595, %v8595
        %v8724 = vpack.c.bf16 %v8596, %v8596
        %v8725 = vpack.c.bf16 %v8597, %v8597
        %v8726 = vpack.c.bf16 %v8598, %v8598
        %v8727 = vpack.c.bf16 %v8599, %v8599
        %v8728 = vpack.c.bf16 %v8600, %v8600
        %v8729 = vpack.c.bf16 %v8601, %v8601
        %v8730 = vpack.c.bf16 %v8602, %v8602
        %v8731 = vpack.c.bf16 %v8603, %v8603
        %v8732 = vpack.c.bf16 %v8604, %v8604
        %v8733 = vpack.c.bf16 %v8605, %v8605
        %v8734 = vpack.c.bf16 %v8606, %v8606
        %v8735 = vpack.c.bf16 %v8607, %v8607
        %v8736 = vpack.c.bf16 %v8608, %v8608
        %v8737 = vpack.c.bf16 %v8609, %v8609
        %v8738 = vpack.c.bf16 %v8610, %v8610
        %v8739 = vpack.c.bf16 %v8611, %v8611
        %v8740 = vpack.c.bf16 %v8612, %v8612
        %v8741 = vpack.c.bf16 %v8613, %v8613
        %v8742 = vpack.c.bf16 %v8614, %v8614
        %v8743 = vpack.c.bf16 %v8615, %v8615
        %v8744 = vpack.c.bf16 %v8616, %v8616
        %v8745 = vpack.c.bf16 %v8617, %v8617
        %v8746 = vpack.c.bf16 %v8618, %v8618
        %v8747 = vpack.c.bf16 %v8619, %v8619
        %v8748 = vpack.c.bf16 %v8620, %v8620
        %v8749 = vpack.c.bf16 %v8621, %v8621
        %v8750 = vpack.c.bf16 %v8622, %v8622
        %v8751 = vpack.c.bf16 %v8623, %v8623
        %v8752 = vpack.c.bf16 %v8624, %v8624
        %v8753 = vpack.c.bf16 %v8625, %v8625
        %v8754 = vpack.c.bf16 %v8626, %v8626
        %v8755 = vpack.c.bf16 %v8627, %v8627
        %v8756 = vpack.c.bf16 %v8628, %v8628
        %v8757 = vpack.c.bf16 %v8629, %v8629
        %v8758 = vpack.c.bf16 %v8630, %v8630
        %v8759 = vpack.c.bf16 %v8631, %v8631
        %v8760 = vpack.c.bf16 %v8632, %v8632
        %v8761 = vpack.c.bf16 %v8633, %v8633
        %v8762 = vpack.c.bf16 %v8634, %v8634
        %v8763 = vpack.c.bf16 %v8635, %v8635
        %v8764 = vpack.c.bf16 %v8636, %v8636
        %v8765 = vpack.c.bf16 %v8637, %v8637
        %v8766 = vpack.c.bf16 %v8638, %v8638
        %v8767 = vpack.c.bf16 %v8639, %v8639
        %v8768 = vpack.c.bf16 %v8640, %v8640
        %v8769 = vpack.c.bf16 %v8641, %v8641
        %v8770 = vpack.c.bf16 %v8642, %v8642
        %v8771 = vpack.c.bf16 %v8643, %v8643
        %v8772 = vpack.c.bf16 %v8644, %v8644
        %v8773 = vpack.c.bf16 %v8645, %v8645
        %v8774 = vpack.c.bf16 %v8646, %v8646
        %v8775 = vpack.c.bf16 %v8647, %v8647
        %v8776 = vpack.c.bf16 %v8648, %v8648
        %v8777 = vpack.c.bf16 %v8649, %v8649
        %v8778 = vpack.c.bf16 %v8650, %v8650
        %v8779 = vpack.c.bf16 %v8651, %v8651
        %v8780 = vpack.c.bf16 %v8652, %v8652
        %v8781 = vpack.c.bf16 %v8653, %v8653
        %v8782 = vpack.c.bf16 %v8654, %v8654
        %v8783 = vpack.c.bf16 %v8655, %v8655
        %v8784 = vpack.c.bf16 %v8656, %v8656
        %v8785 = vpack.c.bf16 %v8657, %v8657
        %v8786 = vpack.c.bf16 %v8658, %v8658
        %v8787 = vpack.c.bf16 %v8659, %v8659
        %v8788 = vpack.c.bf16 %v8660, %v8660
        %v8789 = vpack.c.bf16 %v8661, %v8661
        %v8790 = vpack.c.bf16 %v8662, %v8662
        %v8791 = vpack.c.bf16 %v8663, %v8663
        %v8792 = vpack.c.bf16 %v8664, %v8664
        %v8793 = vpack.c.bf16 %v8665, %v8665
        %v8794 = vpack.c.bf16 %v8666, %v8666
        %v8795 = vpack.c.bf16 %v8667, %v8667
        %v8796 = vpack.c.bf16 %v8668, %v8668
        %v8797 = vpack.c.bf16 %v8669, %v8669
        %v8798 = vpack.c.bf16 %v8670, %v8670
        %v8799 = vpack.c.bf16 %v8671, %v8671
        %v8800 = vpack.c.bf16 %v8672, %v8672
        %v8801 = vpack.c.bf16 %v8673, %v8673
        %v8802 = vpack.c.bf16 %v8674, %v8674
        %v8803 = vpack.c.bf16 %v8675, %v8675
        %v8804 = vpack.c.bf16 %v8676, %v8676
        %v8805 = vpack.c.bf16 %v8677, %v8677
        %v8806 = vpack.c.bf16 %v8678, %v8678
        %v8807 = vpack.c.bf16 %v8679, %v8679
        %v8808 = vpack.c.bf16 %v8680, %v8680
        %v8809 = vpack.c.bf16 %v8681, %v8681
        %v8810 = vpack.c.bf16 %v8682, %v8682
        %v8811 = vpack.c.bf16 %v8683, %v8683
        %v8812 = vpack.c.bf16 %v8684, %v8684
        %v8813 = vpack.c.bf16 %v8685, %v8685
        %v8814 = vpack.c.bf16 %v8686, %v8686
        %v8815 = vpack.c.bf16 %v8687, %v8687
        %v8816 = vpack.c.bf16 %v8688, %v8688
        %v8817 = vpack.c.bf16 %v8689, %v8689
        %v8818 = vpack.c.bf16 %v8690, %v8690
        %v8819 = vpack.c.bf16 %v8691, %v8691
        %v8820 = vpack.c.bf16 %v8692, %v8692
        %v8821 = vpack.c.bf16 %v8693, %v8693
        %v8822 = vpack.c.bf16 %v8694, %v8694
        %v8823 = vpack.c.bf16 %v8695, %v8695
        %v8824 = vpack.c.bf16 %v8696, %v8696
        %v8825 = vpack.c.bf16 %v8697, %v8697
        %v8826 = vpack.c.bf16 %v8698, %v8698
        %v8827 = vpack.c.bf16 %v8699, %v8699
        %v8828 = vpack.c.bf16 %v8700, %v8700
        %v8829 = vpack.c.bf16 %v8701, %v8701
        %v8830 = vpack.c.bf16 %v8702, %v8702
        %v8831 = vpack.c.bf16 %v8703, %v8703
        %v8832 = vpack.c.bf16 %v8704, %v8704
        %v8833 = vpack.c.bf16 %v8705, %v8705
        %v8834 = vpack.c.bf16 %v8706, %v8706
        %v8835 = vpack.c.bf16 %v8707, %v8707
        %v8836 = vpack.c.bf16 %v8708, %v8708
        %v8837 = vpack.c.bf16 %v8709, %v8709
        %v8842 = vunpack.c.l.b16 %v8710
        %v8843 = vunpack.c.l.b16 %v8711
        %v8844 = vunpack.c.l.b16 %v8712
        %v8845 = vunpack.c.l.b16 %v8713
        %v8846 = vpack.c.b16 %v8843, %v8842
        %v8847 = vpack.c.b16 %v8845, %v8844
        %8848 = vrot.lane.b32.xlu0 %v5165, 64
        %v8849 = vpop.permute.xlu0 %8848
        %8850 = vrot.lane.b32.xlu0 %v5166, 64
        %v8851 = vpop.permute.xlu0 %8850
        %v8855 = vsel %vm7301, %v8846, 0
        %v8858 = vsel %vm7301, %v8847, 0
        %8860 = vmatpush.bf16.msra.mxu0 0
        %8861 = vmatpush.bf16.msra.mxu0 0
        %8862 = vmatpush.bf16.msra.mxu0 0
        %8863 = vmatpush.bf16.msra.mxu0 0
        %8864 = vmatpush.bf16.msra.mxu0 0
        %8865 = vmatpush.bf16.msra.mxu0 0
        %8866 = vmatpush.bf16.msra.mxu0 %v8851
        %8867 = vmatpush.bf16.msra.mxu0 %v8849
        %8868 = vmatmul.bf16.gmra.mxu0 %v8855
        %v8869 = vpop.f32.mrf.mxu0
        %v8870 = vadd.f32 %v4646, %v8869
        %v8871 = vpop.f32.mrf.mxu0
        %v8872 = vadd.f32 %v4648, %v8871
        %8873 = vmatmul.bf16.gmra.mxu0 %v8858
        %v8874 = vpop.f32.mrf.mxu0
        %v8875 = vadd.f32 %v4650, %v8874
        %v8876 = vpop.f32.mrf.mxu0
        %v8877 = vadd.f32 %v4652, %v8876
        %8878 = vdwg.mxu0
        %v8883 = vunpack.c.l.b16 %v8714
        %v8884 = vunpack.c.l.b16 %v8715
        %v8885 = vunpack.c.l.b16 %v8716
        %v8886 = vunpack.c.l.b16 %v8717
        %v8887 = vpack.c.b16 %v8884, %v8883
        %v8888 = vpack.c.b16 %v8886, %v8885
        %8889 = vrot.lane.b32.xlu0 %v5232, 64
        %v8890 = vpop.permute.xlu0 %8889
        %8891 = vrot.lane.b32.xlu0 %v5233, 64
        %v8892 = vpop.permute.xlu0 %8891
        %v8896 = vsel %vm7301, %v8887, 0
        %v8899 = vsel %vm7301, %v8888, 0
        %8901 = vmatpush.bf16.msra.mxu0 0
        %8902 = vmatpush.bf16.msra.mxu0 0
        %8903 = vmatpush.bf16.msra.mxu0 0
        %8904 = vmatpush.bf16.msra.mxu0 0
        %8905 = vmatpush.bf16.msra.mxu0 0
        %8906 = vmatpush.bf16.msra.mxu0 0
        %8907 = vmatpush.bf16.msra.mxu0 %v8892
        %8908 = vmatpush.bf16.msra.mxu0 %v8890
        %8909 = vmatmul.bf16.gmra.mxu0 %v8896
        %v8910 = vpop.f32.mrf.mxu0
        %v8911 = vadd.f32 %v4654, %v8910
        %v8912 = vpop.f32.mrf.mxu0
        %v8913 = vadd.f32 %v4656, %v8912
        %8914 = vmatmul.bf16.gmra.mxu0 %v8899
        %v8915 = vpop.f32.mrf.mxu0
        %v8916 = vadd.f32 %v4658, %v8915
        %v8917 = vpop.f32.mrf.mxu0
        %v8918 = vadd.f32 %v4660, %v8917
        %8919 = vdwg.mxu0
        %v8924 = vunpack.c.l.b16 %v8718
        %v8925 = vunpack.c.l.b16 %v8719
        %v8926 = vunpack.c.l.b16 %v8720
        %v8927 = vunpack.c.l.b16 %v8721
        %v8928 = vpack.c.b16 %v8925, %v8924
        %v8929 = vpack.c.b16 %v8927, %v8926
        %8930 = vrot.lane.b32.xlu0 %v5299, 64
        %v8931 = vpop.permute.xlu0 %8930
        %8932 = vrot.lane.b32.xlu0 %v5300, 64
        %v8933 = vpop.permute.xlu0 %8932
        %v8937 = vsel %vm7301, %v8928, 0
        %v8940 = vsel %vm7301, %v8929, 0
        %8942 = vmatpush.bf16.msra.mxu0 0
        %8943 = vmatpush.bf16.msra.mxu0 0
        %8944 = vmatpush.bf16.msra.mxu0 0
        %8945 = vmatpush.bf16.msra.mxu0 0
        %8946 = vmatpush.bf16.msra.mxu0 0
        %8947 = vmatpush.bf16.msra.mxu0 0
        %8948 = vmatpush.bf16.msra.mxu0 %v8933
        %8949 = vmatpush.bf16.msra.mxu0 %v8931
        %8950 = vmatmul.bf16.gmra.mxu0 %v8937
        %v8951 = vpop.f32.mrf.mxu0
        %v8952 = vadd.f32 %v4662, %v8951
        %v8953 = vpop.f32.mrf.mxu0
        %v8954 = vadd.f32 %v4664, %v8953
        %8955 = vmatmul.bf16.gmra.mxu0 %v8940
        %v8956 = vpop.f32.mrf.mxu0
        %v8957 = vadd.f32 %v4666, %v8956
        %v8958 = vpop.f32.mrf.mxu0
        %v8959 = vadd.f32 %v4668, %v8958
        %8960 = vdwg.mxu0
        %v8965 = vunpack.c.l.b16 %v8722
        %v8966 = vunpack.c.l.b16 %v8723
        %v8967 = vunpack.c.l.b16 %v8724
        %v8968 = vunpack.c.l.b16 %v8725
        %v8969 = vpack.c.b16 %v8966, %v8965
        %v8970 = vpack.c.b16 %v8968, %v8967
        %8971 = vrot.lane.b32.xlu0 %v5366, 64
        %v8972 = vpop.permute.xlu0 %8971
        %8973 = vrot.lane.b32.xlu0 %v5367, 64
        %v8974 = vpop.permute.xlu0 %8973
        %v8978 = vsel %vm7301, %v8969, 0
        %v8981 = vsel %vm7301, %v8970, 0
        %8983 = vmatpush.bf16.msra.mxu0 0
        %8984 = vmatpush.bf16.msra.mxu0 0
        %8985 = vmatpush.bf16.msra.mxu0 0
        %8986 = vmatpush.bf16.msra.mxu0 0
        %8987 = vmatpush.bf16.msra.mxu0 0
        %8988 = vmatpush.bf16.msra.mxu0 0
        %8989 = vmatpush.bf16.msra.mxu0 %v8974
        %8990 = vmatpush.bf16.msra.mxu0 %v8972
        %8991 = vmatmul.bf16.gmra.mxu0 %v8978
        %v8992 = vpop.f32.mrf.mxu0
        %v8993 = vadd.f32 %v4670, %v8992
        %v8994 = vpop.f32.mrf.mxu0
        %v8995 = vadd.f32 %v4672, %v8994
        %8996 = vmatmul.bf16.gmra.mxu0 %v8981
        %v8997 = vpop.f32.mrf.mxu0
        %v8998 = vadd.f32 %v4674, %v8997
        %v8999 = vpop.f32.mrf.mxu0
        %v9000 = vadd.f32 %v4676, %v8999
        %9001 = vdwg.mxu0
        %v9006 = vunpack.c.l.b16 %v8726
        %v9007 = vunpack.c.l.b16 %v8727
        %v9008 = vunpack.c.l.b16 %v8728
        %v9009 = vunpack.c.l.b16 %v8729
        %v9010 = vpack.c.b16 %v9007, %v9006
        %v9011 = vpack.c.b16 %v9009, %v9008
        %9012 = vrot.lane.b32.xlu0 %v5433, 64
        %v9013 = vpop.permute.xlu0 %9012
        %9014 = vrot.lane.b32.xlu0 %v5434, 64
        %v9015 = vpop.permute.xlu0 %9014
        %v9019 = vsel %vm7301, %v9010, 0
        %v9022 = vsel %vm7301, %v9011, 0
        %9024 = vmatpush.bf16.msra.mxu0 0
        %9025 = vmatpush.bf16.msra.mxu0 0
        %9026 = vmatpush.bf16.msra.mxu0 0
        %9027 = vmatpush.bf16.msra.mxu0 0
        %9028 = vmatpush.bf16.msra.mxu0 0
        %9029 = vmatpush.bf16.msra.mxu0 0
        %9030 = vmatpush.bf16.msra.mxu0 %v9015
        %9031 = vmatpush.bf16.msra.mxu0 %v9013
        %9032 = vmatmul.bf16.gmra.mxu0 %v9019
        %v9033 = vpop.f32.mrf.mxu0
        %v9034 = vadd.f32 %v4678, %v9033
        %v9035 = vpop.f32.mrf.mxu0
        %v9036 = vadd.f32 %v4680, %v9035
        %9037 = vmatmul.bf16.gmra.mxu0 %v9022
        %v9038 = vpop.f32.mrf.mxu0
        %v9039 = vadd.f32 %v4682, %v9038
        %v9040 = vpop.f32.mrf.mxu0
        %v9041 = vadd.f32 %v4684, %v9040
        %9042 = vdwg.mxu0
        %v9047 = vunpack.c.l.b16 %v8730
        %v9048 = vunpack.c.l.b16 %v8731
        %v9049 = vunpack.c.l.b16 %v8732
        %v9050 = vunpack.c.l.b16 %v8733
        %v9051 = vpack.c.b16 %v9048, %v9047
        %v9052 = vpack.c.b16 %v9050, %v9049
        %9053 = vrot.lane.b32.xlu0 %v5500, 64
        %v9054 = vpop.permute.xlu0 %9053
        %9055 = vrot.lane.b32.xlu0 %v5501, 64
        %v9056 = vpop.permute.xlu0 %9055
        %v9060 = vsel %vm7301, %v9051, 0
        %v9063 = vsel %vm7301, %v9052, 0
        %9065 = vmatpush.bf16.msra.mxu0 0
        %9066 = vmatpush.bf16.msra.mxu0 0
        %9067 = vmatpush.bf16.msra.mxu0 0
        %9068 = vmatpush.bf16.msra.mxu0 0
        %9069 = vmatpush.bf16.msra.mxu0 0
        %9070 = vmatpush.bf16.msra.mxu0 0
        %9071 = vmatpush.bf16.msra.mxu0 %v9056
        %9072 = vmatpush.bf16.msra.mxu0 %v9054
        %9073 = vmatmul.bf16.gmra.mxu0 %v9060
        %v9074 = vpop.f32.mrf.mxu0
        %v9075 = vadd.f32 %v4686, %v9074
        %v9076 = vpop.f32.mrf.mxu0
        %v9077 = vadd.f32 %v4688, %v9076
        %9078 = vmatmul.bf16.gmra.mxu0 %v9063
        %v9079 = vpop.f32.mrf.mxu0
        %v9080 = vadd.f32 %v4690, %v9079
        %v9081 = vpop.f32.mrf.mxu0
        %v9082 = vadd.f32 %v4692, %v9081
        %9083 = vdwg.mxu0
        %v9088 = vunpack.c.l.b16 %v8734
        %v9089 = vunpack.c.l.b16 %v8735
        %v9090 = vunpack.c.l.b16 %v8736
        %v9091 = vunpack.c.l.b16 %v8737
        %v9092 = vpack.c.b16 %v9089, %v9088
        %v9093 = vpack.c.b16 %v9091, %v9090
        %9094 = vrot.lane.b32.xlu0 %v5567, 64
        %v9095 = vpop.permute.xlu0 %9094
        %9096 = vrot.lane.b32.xlu0 %v5568, 64
        %v9097 = vpop.permute.xlu0 %9096
        %v9101 = vsel %vm7301, %v9092, 0
        %v9104 = vsel %vm7301, %v9093, 0
        %9106 = vmatpush.bf16.msra.mxu0 0
        %9107 = vmatpush.bf16.msra.mxu0 0
        %9108 = vmatpush.bf16.msra.mxu0 0
        %9109 = vmatpush.bf16.msra.mxu0 0
        %9110 = vmatpush.bf16.msra.mxu0 0
        %9111 = vmatpush.bf16.msra.mxu0 0
        %9112 = vmatpush.bf16.msra.mxu0 %v9097
        %9113 = vmatpush.bf16.msra.mxu0 %v9095
        %9114 = vmatmul.bf16.gmra.mxu0 %v9101
        %v9115 = vpop.f32.mrf.mxu0
        %v9116 = vadd.f32 %v4694, %v9115
        %v9117 = vpop.f32.mrf.mxu0
        %v9118 = vadd.f32 %v4696, %v9117
        %9119 = vmatmul.bf16.gmra.mxu0 %v9104
        %v9120 = vpop.f32.mrf.mxu0
        %v9121 = vadd.f32 %v4698, %v9120
        %v9122 = vpop.f32.mrf.mxu0
        %v9123 = vadd.f32 %v4700, %v9122
        %9124 = vdwg.mxu0
        %v9129 = vunpack.c.l.b16 %v8738
        %v9130 = vunpack.c.l.b16 %v8739
        %v9131 = vunpack.c.l.b16 %v8740
        %v9132 = vunpack.c.l.b16 %v8741
        %v9133 = vpack.c.b16 %v9130, %v9129
        %v9134 = vpack.c.b16 %v9132, %v9131
        %9135 = vrot.lane.b32.xlu0 %v5634, 64
        %v9136 = vpop.permute.xlu0 %9135
        %9137 = vrot.lane.b32.xlu0 %v5635, 64
        %v9138 = vpop.permute.xlu0 %9137
        %v9142 = vsel %vm7301, %v9133, 0
        %v9145 = vsel %vm7301, %v9134, 0
        %9147 = vmatpush.bf16.msra.mxu0 0
        %9148 = vmatpush.bf16.msra.mxu0 0
        %9149 = vmatpush.bf16.msra.mxu0 0
        %9150 = vmatpush.bf16.msra.mxu0 0
        %9151 = vmatpush.bf16.msra.mxu0 0
        %9152 = vmatpush.bf16.msra.mxu0 0
        %9153 = vmatpush.bf16.msra.mxu0 %v9138
        %9154 = vmatpush.bf16.msra.mxu0 %v9136
        %9155 = vmatmul.bf16.gmra.mxu0 %v9142
        %v9156 = vpop.f32.mrf.mxu0
        %v9157 = vadd.f32 %v4702, %v9156
        %v9158 = vpop.f32.mrf.mxu0
        %v9159 = vadd.f32 %v4704, %v9158
        %9160 = vmatmul.bf16.gmra.mxu0 %v9145
        %v9161 = vpop.f32.mrf.mxu0
        %v9162 = vadd.f32 %v4706, %v9161
        %v9163 = vpop.f32.mrf.mxu0
        %v9164 = vadd.f32 %v4708, %v9163
        %9165 = vdwg.mxu0
        %v9170 = vunpack.c.l.b16 %v8742
        %v9171 = vunpack.c.l.b16 %v8743
        %v9172 = vunpack.c.l.b16 %v8744
        %v9173 = vunpack.c.l.b16 %v8745
        %v9174 = vpack.c.b16 %v9171, %v9170
        %v9175 = vpack.c.b16 %v9173, %v9172
        %9176 = vrot.lane.b32.xlu0 %v5701, 64
        %v9177 = vpop.permute.xlu0 %9176
        %9178 = vrot.lane.b32.xlu0 %v5702, 64
        %v9179 = vpop.permute.xlu0 %9178
        %v9183 = vsel %vm7301, %v9174, 0
        %v9186 = vsel %vm7301, %v9175, 0
        %9188 = vmatpush.bf16.msra.mxu0 0
        %9189 = vmatpush.bf16.msra.mxu0 0
        %9190 = vmatpush.bf16.msra.mxu0 0
        %9191 = vmatpush.bf16.msra.mxu0 0
        %9192 = vmatpush.bf16.msra.mxu0 0
        %9193 = vmatpush.bf16.msra.mxu0 0
        %9194 = vmatpush.bf16.msra.mxu0 %v9179
        %9195 = vmatpush.bf16.msra.mxu0 %v9177
        %9196 = vmatmul.bf16.gmra.mxu0 %v9183
        %v9197 = vpop.f32.mrf.mxu0
        %v9198 = vadd.f32 %v4710, %v9197
        %v9199 = vpop.f32.mrf.mxu0
        %v9200 = vadd.f32 %v4712, %v9199
        %9201 = vmatmul.bf16.gmra.mxu0 %v9186
        %v9202 = vpop.f32.mrf.mxu0
        %v9203 = vadd.f32 %v4714, %v9202
        %v9204 = vpop.f32.mrf.mxu0
        %v9205 = vadd.f32 %v4716, %v9204
        %9206 = vdwg.mxu0
        %v9211 = vunpack.c.l.b16 %v8746
        %v9212 = vunpack.c.l.b16 %v8747
        %v9213 = vunpack.c.l.b16 %v8748
        %v9214 = vunpack.c.l.b16 %v8749
        %v9215 = vpack.c.b16 %v9212, %v9211
        %v9216 = vpack.c.b16 %v9214, %v9213
        %9217 = vrot.lane.b32.xlu0 %v5768, 64
        %v9218 = vpop.permute.xlu0 %9217
        %9219 = vrot.lane.b32.xlu0 %v5769, 64
        %v9220 = vpop.permute.xlu0 %9219
        %v9224 = vsel %vm7301, %v9215, 0
        %v9227 = vsel %vm7301, %v9216, 0
        %9229 = vmatpush.bf16.msra.mxu0 0
        %9230 = vmatpush.bf16.msra.mxu0 0
        %9231 = vmatpush.bf16.msra.mxu0 0
        %9232 = vmatpush.bf16.msra.mxu0 0
        %9233 = vmatpush.bf16.msra.mxu0 0
        %9234 = vmatpush.bf16.msra.mxu0 0
        %9235 = vmatpush.bf16.msra.mxu0 %v9220
        %9236 = vmatpush.bf16.msra.mxu0 %v9218
        %9237 = vmatmul.bf16.gmra.mxu0 %v9224
        %v9238 = vpop.f32.mrf.mxu0
        %v9239 = vadd.f32 %v4718, %v9238
        %v9240 = vpop.f32.mrf.mxu0
        %v9241 = vadd.f32 %v4720, %v9240
        %9242 = vmatmul.bf16.gmra.mxu0 %v9227
        %v9243 = vpop.f32.mrf.mxu0
        %v9244 = vadd.f32 %v4722, %v9243
        %v9245 = vpop.f32.mrf.mxu0
        %v9246 = vadd.f32 %v4724, %v9245
        %9247 = vdwg.mxu0
        %v9252 = vunpack.c.l.b16 %v8750
        %v9253 = vunpack.c.l.b16 %v8751
        %v9254 = vunpack.c.l.b16 %v8752
        %v9255 = vunpack.c.l.b16 %v8753
        %v9256 = vpack.c.b16 %v9253, %v9252
        %v9257 = vpack.c.b16 %v9255, %v9254
        %9258 = vrot.lane.b32.xlu0 %v5835, 64
        %v9259 = vpop.permute.xlu0 %9258
        %9260 = vrot.lane.b32.xlu0 %v5836, 64
        %v9261 = vpop.permute.xlu0 %9260
        %v9265 = vsel %vm7301, %v9256, 0
        %v9268 = vsel %vm7301, %v9257, 0
        %9270 = vmatpush.bf16.msra.mxu0 0
        %9271 = vmatpush.bf16.msra.mxu0 0
        %9272 = vmatpush.bf16.msra.mxu0 0
        %9273 = vmatpush.bf16.msra.mxu0 0
        %9274 = vmatpush.bf16.msra.mxu0 0
        %9275 = vmatpush.bf16.msra.mxu0 0
        %9276 = vmatpush.bf16.msra.mxu0 %v9261
        %9277 = vmatpush.bf16.msra.mxu0 %v9259
        %9278 = vmatmul.bf16.gmra.mxu0 %v9265
        %v9279 = vpop.f32.mrf.mxu0
        %v9280 = vadd.f32 %v4726, %v9279
        %v9281 = vpop.f32.mrf.mxu0
        %v9282 = vadd.f32 %v4728, %v9281
        %9283 = vmatmul.bf16.gmra.mxu0 %v9268
        %v9284 = vpop.f32.mrf.mxu0
        %v9285 = vadd.f32 %v4730, %v9284
        %v9286 = vpop.f32.mrf.mxu0
        %v9287 = vadd.f32 %v4732, %v9286
        %9288 = vdwg.mxu0
        %v9293 = vunpack.c.l.b16 %v8754
        %v9294 = vunpack.c.l.b16 %v8755
        %v9295 = vunpack.c.l.b16 %v8756
        %v9296 = vunpack.c.l.b16 %v8757
        %v9297 = vpack.c.b16 %v9294, %v9293
        %v9298 = vpack.c.b16 %v9296, %v9295
        %9299 = vrot.lane.b32.xlu0 %v5902, 64
        %v9300 = vpop.permute.xlu0 %9299
        %9301 = vrot.lane.b32.xlu0 %v5903, 64
        %v9302 = vpop.permute.xlu0 %9301
        %v9306 = vsel %vm7301, %v9297, 0
        %v9309 = vsel %vm7301, %v9298, 0
        %9311 = vmatpush.bf16.msra.mxu0 0
        %9312 = vmatpush.bf16.msra.mxu0 0
        %9313 = vmatpush.bf16.msra.mxu0 0
        %9314 = vmatpush.bf16.msra.mxu0 0
        %9315 = vmatpush.bf16.msra.mxu0 0
        %9316 = vmatpush.bf16.msra.mxu0 0
        %9317 = vmatpush.bf16.msra.mxu0 %v9302
        %9318 = vmatpush.bf16.msra.mxu0 %v9300
        %9319 = vmatmul.bf16.gmra.mxu0 %v9306
        %v9320 = vpop.f32.mrf.mxu0
        %v9321 = vadd.f32 %v4734, %v9320
        %v9322 = vpop.f32.mrf.mxu0
        %v9323 = vadd.f32 %v4736, %v9322
        %9324 = vmatmul.bf16.gmra.mxu0 %v9309
        %v9325 = vpop.f32.mrf.mxu0
        %v9326 = vadd.f32 %v4738, %v9325
        %v9327 = vpop.f32.mrf.mxu0
        %v9328 = vadd.f32 %v4740, %v9327
        %9329 = vdwg.mxu0
        %v9334 = vunpack.c.l.b16 %v8758
        %v9335 = vunpack.c.l.b16 %v8759
        %v9336 = vunpack.c.l.b16 %v8760
        %v9337 = vunpack.c.l.b16 %v8761
        %v9338 = vpack.c.b16 %v9335, %v9334
        %v9339 = vpack.c.b16 %v9337, %v9336
        %9340 = vrot.lane.b32.xlu0 %v5969, 64
        %v9341 = vpop.permute.xlu0 %9340
        %9342 = vrot.lane.b32.xlu0 %v5970, 64
        %v9343 = vpop.permute.xlu0 %9342
        %v9347 = vsel %vm7301, %v9338, 0
        %v9350 = vsel %vm7301, %v9339, 0
        %9352 = vmatpush.bf16.msra.mxu0 0
        %9353 = vmatpush.bf16.msra.mxu0 0
        %9354 = vmatpush.bf16.msra.mxu0 0
        %9355 = vmatpush.bf16.msra.mxu0 0
        %9356 = vmatpush.bf16.msra.mxu0 0
        %9357 = vmatpush.bf16.msra.mxu0 0
        %9358 = vmatpush.bf16.msra.mxu0 %v9343
        %9359 = vmatpush.bf16.msra.mxu0 %v9341
        %9360 = vmatmul.bf16.gmra.mxu0 %v9347
        %v9361 = vpop.f32.mrf.mxu0
        %v9362 = vadd.f32 %v4742, %v9361
        %v9363 = vpop.f32.mrf.mxu0
        %v9364 = vadd.f32 %v4744, %v9363
        %9365 = vmatmul.bf16.gmra.mxu0 %v9350
        %v9366 = vpop.f32.mrf.mxu0
        %v9367 = vadd.f32 %v4746, %v9366
        %v9368 = vpop.f32.mrf.mxu0
        %v9369 = vadd.f32 %v4748, %v9368
        %9370 = vdwg.mxu0
        %v9375 = vunpack.c.l.b16 %v8762
        %v9376 = vunpack.c.l.b16 %v8763
        %v9377 = vunpack.c.l.b16 %v8764
        %v9378 = vunpack.c.l.b16 %v8765
        %v9379 = vpack.c.b16 %v9376, %v9375
        %v9380 = vpack.c.b16 %v9378, %v9377
        %9381 = vrot.lane.b32.xlu0 %v6036, 64
        %v9382 = vpop.permute.xlu0 %9381
        %9383 = vrot.lane.b32.xlu0 %v6037, 64
        %v9384 = vpop.permute.xlu0 %9383
        %v9388 = vsel %vm7301, %v9379, 0
        %v9391 = vsel %vm7301, %v9380, 0
        %9393 = vmatpush.bf16.msra.mxu0 0
        %9394 = vmatpush.bf16.msra.mxu0 0
        %9395 = vmatpush.bf16.msra.mxu0 0
        %9396 = vmatpush.bf16.msra.mxu0 0
        %9397 = vmatpush.bf16.msra.mxu0 0
        %9398 = vmatpush.bf16.msra.mxu0 0
        %9399 = vmatpush.bf16.msra.mxu0 %v9384
        %9400 = vmatpush.bf16.msra.mxu0 %v9382
        %9401 = vmatmul.bf16.gmra.mxu0 %v9388
        %v9402 = vpop.f32.mrf.mxu0
        %v9403 = vadd.f32 %v4750, %v9402
        %v9404 = vpop.f32.mrf.mxu0
        %v9405 = vadd.f32 %v4752, %v9404
        %9406 = vmatmul.bf16.gmra.mxu0 %v9391
        %v9407 = vpop.f32.mrf.mxu0
        %v9408 = vadd.f32 %v4754, %v9407
        %v9409 = vpop.f32.mrf.mxu0
        %v9410 = vadd.f32 %v4756, %v9409
        %9411 = vdwg.mxu0
        %v9416 = vunpack.c.l.b16 %v8766
        %v9417 = vunpack.c.l.b16 %v8767
        %v9418 = vunpack.c.l.b16 %v8768
        %v9419 = vunpack.c.l.b16 %v8769
        %v9420 = vpack.c.b16 %v9417, %v9416
        %v9421 = vpack.c.b16 %v9419, %v9418
        %9422 = vrot.lane.b32.xlu0 %v6103, 64
        %v9423 = vpop.permute.xlu0 %9422
        %9424 = vrot.lane.b32.xlu0 %v6104, 64
        %v9425 = vpop.permute.xlu0 %9424
        %v9429 = vsel %vm7301, %v9420, 0
        %v9432 = vsel %vm7301, %v9421, 0
        %9434 = vmatpush.bf16.msra.mxu0 0
        %9435 = vmatpush.bf16.msra.mxu0 0
        %9436 = vmatpush.bf16.msra.mxu0 0
        %9437 = vmatpush.bf16.msra.mxu0 0
        %9438 = vmatpush.bf16.msra.mxu0 0
        %9439 = vmatpush.bf16.msra.mxu0 0
        %9440 = vmatpush.bf16.msra.mxu0 %v9425
        %9441 = vmatpush.bf16.msra.mxu0 %v9423
        %9442 = vmatmul.bf16.gmra.mxu0 %v9429
        %v9443 = vpop.f32.mrf.mxu0
        %v9444 = vadd.f32 %v4758, %v9443
        %v9445 = vpop.f32.mrf.mxu0
        %v9446 = vadd.f32 %v4760, %v9445
        %9447 = vmatmul.bf16.gmra.mxu0 %v9432
        %v9448 = vpop.f32.mrf.mxu0
        %v9449 = vadd.f32 %v4762, %v9448
        %v9450 = vpop.f32.mrf.mxu0
        %v9451 = vadd.f32 %v4764, %v9450
        %9452 = vdwg.mxu0
        %v9457 = vunpack.c.l.b16 %v8770
        %v9458 = vunpack.c.l.b16 %v8771
        %v9459 = vunpack.c.l.b16 %v8772
        %v9460 = vunpack.c.l.b16 %v8773
        %v9461 = vpack.c.b16 %v9458, %v9457
        %v9462 = vpack.c.b16 %v9460, %v9459
        %9463 = vrot.lane.b32.xlu0 %v6170, 64
        %v9464 = vpop.permute.xlu0 %9463
        %9465 = vrot.lane.b32.xlu0 %v6171, 64
        %v9466 = vpop.permute.xlu0 %9465
        %v9470 = vsel %vm7301, %v9461, 0
        %v9473 = vsel %vm7301, %v9462, 0
        %9475 = vmatpush.bf16.msra.mxu0 0
        %9476 = vmatpush.bf16.msra.mxu0 0
        %9477 = vmatpush.bf16.msra.mxu0 0
        %9478 = vmatpush.bf16.msra.mxu0 0
        %9479 = vmatpush.bf16.msra.mxu0 0
        %9480 = vmatpush.bf16.msra.mxu0 0
        %9481 = vmatpush.bf16.msra.mxu0 %v9466
        %9482 = vmatpush.bf16.msra.mxu0 %v9464
        %9483 = vmatmul.bf16.gmra.mxu0 %v9470
        %v9484 = vpop.f32.mrf.mxu0
        %v9485 = vadd.f32 %v4766, %v9484
        %v9486 = vpop.f32.mrf.mxu0
        %v9487 = vadd.f32 %v4768, %v9486
        %9488 = vmatmul.bf16.gmra.mxu0 %v9473
        %v9489 = vpop.f32.mrf.mxu0
        %v9490 = vadd.f32 %v4770, %v9489
        %v9491 = vpop.f32.mrf.mxu0
        %v9492 = vadd.f32 %v4772, %v9491
        %9493 = vdwg.mxu0
        %v9498 = vunpack.c.l.b16 %v8774
        %v9499 = vunpack.c.l.b16 %v8775
        %v9500 = vunpack.c.l.b16 %v8776
        %v9501 = vunpack.c.l.b16 %v8777
        %v9502 = vpack.c.b16 %v9499, %v9498
        %v9503 = vpack.c.b16 %v9501, %v9500
        %9504 = vrot.lane.b32.xlu0 %v6237, 64
        %v9505 = vpop.permute.xlu0 %9504
        %9506 = vrot.lane.b32.xlu0 %v6238, 64
        %v9507 = vpop.permute.xlu0 %9506
        %v9511 = vsel %vm7301, %v9502, 0
        %v9514 = vsel %vm7301, %v9503, 0
        %9516 = vmatpush.bf16.msra.mxu0 0
        %9517 = vmatpush.bf16.msra.mxu0 0
        %9518 = vmatpush.bf16.msra.mxu0 0
        %9519 = vmatpush.bf16.msra.mxu0 0
        %9520 = vmatpush.bf16.msra.mxu0 0
        %9521 = vmatpush.bf16.msra.mxu0 0
        %9522 = vmatpush.bf16.msra.mxu0 %v9507
        %9523 = vmatpush.bf16.msra.mxu0 %v9505
        %9524 = vmatmul.bf16.gmra.mxu0 %v9511
        %v9525 = vpop.f32.mrf.mxu0
        %v9526 = vadd.f32 %v4774, %v9525
        %v9527 = vpop.f32.mrf.mxu0
        %v9528 = vadd.f32 %v4776, %v9527
        %9529 = vmatmul.bf16.gmra.mxu0 %v9514
        %v9530 = vpop.f32.mrf.mxu0
        %v9531 = vadd.f32 %v4778, %v9530
        %v9532 = vpop.f32.mrf.mxu0
        %v9533 = vadd.f32 %v4780, %v9532
        %9534 = vdwg.mxu0
        %v9539 = vunpack.c.l.b16 %v8778
        %v9540 = vunpack.c.l.b16 %v8779
        %v9541 = vunpack.c.l.b16 %v8780
        %v9542 = vunpack.c.l.b16 %v8781
        %v9543 = vpack.c.b16 %v9540, %v9539
        %v9544 = vpack.c.b16 %v9542, %v9541
        %9545 = vrot.lane.b32.xlu0 %v6304, 64
        %v9546 = vpop.permute.xlu0 %9545
        %9547 = vrot.lane.b32.xlu0 %v6305, 64
        %v9548 = vpop.permute.xlu0 %9547
        %v9552 = vsel %vm7301, %v9543, 0
        %v9555 = vsel %vm7301, %v9544, 0
        %9557 = vmatpush.bf16.msra.mxu0 0
        %9558 = vmatpush.bf16.msra.mxu0 0
        %9559 = vmatpush.bf16.msra.mxu0 0
        %9560 = vmatpush.bf16.msra.mxu0 0
        %9561 = vmatpush.bf16.msra.mxu0 0
        %9562 = vmatpush.bf16.msra.mxu0 0
        %9563 = vmatpush.bf16.msra.mxu0 %v9548
        %9564 = vmatpush.bf16.msra.mxu0 %v9546
        %9565 = vmatmul.bf16.gmra.mxu0 %v9552
        %v9566 = vpop.f32.mrf.mxu0
        %v9567 = vadd.f32 %v4782, %v9566
        %v9568 = vpop.f32.mrf.mxu0
        %v9569 = vadd.f32 %v4784, %v9568
        %9570 = vmatmul.bf16.gmra.mxu0 %v9555
        %v9571 = vpop.f32.mrf.mxu0
        %v9572 = vadd.f32 %v4786, %v9571
        %v9573 = vpop.f32.mrf.mxu0
        %v9574 = vadd.f32 %v4788, %v9573
        %9575 = vdwg.mxu0
        %v9580 = vunpack.c.l.b16 %v8782
        %v9581 = vunpack.c.l.b16 %v8783
        %v9582 = vunpack.c.l.b16 %v8784
        %v9583 = vunpack.c.l.b16 %v8785
        %v9584 = vpack.c.b16 %v9581, %v9580
        %v9585 = vpack.c.b16 %v9583, %v9582
        %9586 = vrot.lane.b32.xlu0 %v6371, 64
        %v9587 = vpop.permute.xlu0 %9586
        %9588 = vrot.lane.b32.xlu0 %v6372, 64
        %v9589 = vpop.permute.xlu0 %9588
        %v9593 = vsel %vm7301, %v9584, 0
        %v9596 = vsel %vm7301, %v9585, 0
        %9598 = vmatpush.bf16.msra.mxu0 0
        %9599 = vmatpush.bf16.msra.mxu0 0
        %9600 = vmatpush.bf16.msra.mxu0 0
        %9601 = vmatpush.bf16.msra.mxu0 0
        %9602 = vmatpush.bf16.msra.mxu0 0
        %9603 = vmatpush.bf16.msra.mxu0 0
        %9604 = vmatpush.bf16.msra.mxu0 %v9589
        %9605 = vmatpush.bf16.msra.mxu0 %v9587
        %9606 = vmatmul.bf16.gmra.mxu0 %v9593
        %v9607 = vpop.f32.mrf.mxu0
        %v9608 = vadd.f32 %v4790, %v9607
        %v9609 = vpop.f32.mrf.mxu0
        %v9610 = vadd.f32 %v4792, %v9609
        %9611 = vmatmul.bf16.gmra.mxu0 %v9596
        %v9612 = vpop.f32.mrf.mxu0
        %v9613 = vadd.f32 %v4794, %v9612
        %v9614 = vpop.f32.mrf.mxu0
        %v9615 = vadd.f32 %v4796, %v9614
        %9616 = vdwg.mxu0
        %v9621 = vunpack.c.l.b16 %v8786
        %v9622 = vunpack.c.l.b16 %v8787
        %v9623 = vunpack.c.l.b16 %v8788
        %v9624 = vunpack.c.l.b16 %v8789
        %v9625 = vpack.c.b16 %v9622, %v9621
        %v9626 = vpack.c.b16 %v9624, %v9623
        %9627 = vrot.lane.b32.xlu0 %v6438, 64
        %v9628 = vpop.permute.xlu0 %9627
        %9629 = vrot.lane.b32.xlu0 %v6439, 64
        %v9630 = vpop.permute.xlu0 %9629
        %v9634 = vsel %vm7301, %v9625, 0
        %v9637 = vsel %vm7301, %v9626, 0
        %9639 = vmatpush.bf16.msra.mxu0 0
        %9640 = vmatpush.bf16.msra.mxu0 0
        %9641 = vmatpush.bf16.msra.mxu0 0
        %9642 = vmatpush.bf16.msra.mxu0 0
        %9643 = vmatpush.bf16.msra.mxu0 0
        %9644 = vmatpush.bf16.msra.mxu0 0
        %9645 = vmatpush.bf16.msra.mxu0 %v9630
        %9646 = vmatpush.bf16.msra.mxu0 %v9628
        %9647 = vmatmul.bf16.gmra.mxu0 %v9634
        %v9648 = vpop.f32.mrf.mxu0
        %v9649 = vadd.f32 %v4798, %v9648
        %v9650 = vpop.f32.mrf.mxu0
        %v9651 = vadd.f32 %v4800, %v9650
        %9652 = vmatmul.bf16.gmra.mxu0 %v9637
        %v9653 = vpop.f32.mrf.mxu0
        %v9654 = vadd.f32 %v4802, %v9653
        %v9655 = vpop.f32.mrf.mxu0
        %v9656 = vadd.f32 %v4804, %v9655
        %9657 = vdwg.mxu0
        %v9662 = vunpack.c.l.b16 %v8790
        %v9663 = vunpack.c.l.b16 %v8791
        %v9664 = vunpack.c.l.b16 %v8792
        %v9665 = vunpack.c.l.b16 %v8793
        %v9666 = vpack.c.b16 %v9663, %v9662
        %v9667 = vpack.c.b16 %v9665, %v9664
        %9668 = vrot.lane.b32.xlu0 %v6505, 64
        %v9669 = vpop.permute.xlu0 %9668
        %9670 = vrot.lane.b32.xlu0 %v6506, 64
        %v9671 = vpop.permute.xlu0 %9670
        %v9675 = vsel %vm7301, %v9666, 0
        %v9678 = vsel %vm7301, %v9667, 0
        %9680 = vmatpush.bf16.msra.mxu0 0
        %9681 = vmatpush.bf16.msra.mxu0 0
        %9682 = vmatpush.bf16.msra.mxu0 0
        %9683 = vmatpush.bf16.msra.mxu0 0
        %9684 = vmatpush.bf16.msra.mxu0 0
        %9685 = vmatpush.bf16.msra.mxu0 0
        %9686 = vmatpush.bf16.msra.mxu0 %v9671
        %9687 = vmatpush.bf16.msra.mxu0 %v9669
        %9688 = vmatmul.bf16.gmra.mxu0 %v9675
        %v9689 = vpop.f32.mrf.mxu0
        %v9690 = vadd.f32 %v4806, %v9689
        %v9691 = vpop.f32.mrf.mxu0
        %v9692 = vadd.f32 %v4808, %v9691
        %9693 = vmatmul.bf16.gmra.mxu0 %v9678
        %v9694 = vpop.f32.mrf.mxu0
        %v9695 = vadd.f32 %v4810, %v9694
        %v9696 = vpop.f32.mrf.mxu0
        %v9697 = vadd.f32 %v4812, %v9696
        %9698 = vdwg.mxu0
        %v9703 = vunpack.c.l.b16 %v8794
        %v9704 = vunpack.c.l.b16 %v8795
        %v9705 = vunpack.c.l.b16 %v8796
        %v9706 = vunpack.c.l.b16 %v8797
        %v9707 = vpack.c.b16 %v9704, %v9703
        %v9708 = vpack.c.b16 %v9706, %v9705
        %9709 = vrot.lane.b32.xlu0 %v6572, 64
        %v9710 = vpop.permute.xlu0 %9709
        %9711 = vrot.lane.b32.xlu0 %v6573, 64
        %v9712 = vpop.permute.xlu0 %9711
        %v9716 = vsel %vm7301, %v9707, 0
        %v9719 = vsel %vm7301, %v9708, 0
        %9721 = vmatpush.bf16.msra.mxu0 0
        %9722 = vmatpush.bf16.msra.mxu0 0
        %9723 = vmatpush.bf16.msra.mxu0 0
        %9724 = vmatpush.bf16.msra.mxu0 0
        %9725 = vmatpush.bf16.msra.mxu0 0
        %9726 = vmatpush.bf16.msra.mxu0 0
        %9727 = vmatpush.bf16.msra.mxu0 %v9712
        %9728 = vmatpush.bf16.msra.mxu0 %v9710
        %9729 = vmatmul.bf16.gmra.mxu0 %v9716
        %v9730 = vpop.f32.mrf.mxu0
        %v9731 = vadd.f32 %v4814, %v9730
        %v9732 = vpop.f32.mrf.mxu0
        %v9733 = vadd.f32 %v4816, %v9732
        %9734 = vmatmul.bf16.gmra.mxu0 %v9719
        %v9735 = vpop.f32.mrf.mxu0
        %v9736 = vadd.f32 %v4818, %v9735
        %v9737 = vpop.f32.mrf.mxu0
        %v9738 = vadd.f32 %v4820, %v9737
        %9739 = vdwg.mxu0
        %v9744 = vunpack.c.l.b16 %v8798
        %v9745 = vunpack.c.l.b16 %v8799
        %v9746 = vunpack.c.l.b16 %v8800
        %v9747 = vunpack.c.l.b16 %v8801
        %v9748 = vpack.c.b16 %v9745, %v9744
        %v9749 = vpack.c.b16 %v9747, %v9746
        %9750 = vrot.lane.b32.xlu0 %v6639, 64
        %v9751 = vpop.permute.xlu0 %9750
        %9752 = vrot.lane.b32.xlu0 %v6640, 64
        %v9753 = vpop.permute.xlu0 %9752
        %v9757 = vsel %vm7301, %v9748, 0
        %v9760 = vsel %vm7301, %v9749, 0
        %9762 = vmatpush.bf16.msra.mxu0 0
        %9763 = vmatpush.bf16.msra.mxu0 0
        %9764 = vmatpush.bf16.msra.mxu0 0
        %9765 = vmatpush.bf16.msra.mxu0 0
        %9766 = vmatpush.bf16.msra.mxu0 0
        %9767 = vmatpush.bf16.msra.mxu0 0
        %9768 = vmatpush.bf16.msra.mxu0 %v9753
        %9769 = vmatpush.bf16.msra.mxu0 %v9751
        %9770 = vmatmul.bf16.gmra.mxu0 %v9757
        %v9771 = vpop.f32.mrf.mxu0
        %v9772 = vadd.f32 %v4822, %v9771
        %v9773 = vpop.f32.mrf.mxu0
        %v9774 = vadd.f32 %v4824, %v9773
        %9775 = vmatmul.bf16.gmra.mxu0 %v9760
        %v9776 = vpop.f32.mrf.mxu0
        %v9777 = vadd.f32 %v4826, %v9776
        %v9778 = vpop.f32.mrf.mxu0
        %v9779 = vadd.f32 %v4828, %v9778
        %9780 = vdwg.mxu0
        %v9785 = vunpack.c.l.b16 %v8802
        %v9786 = vunpack.c.l.b16 %v8803
        %v9787 = vunpack.c.l.b16 %v8804
        %v9788 = vunpack.c.l.b16 %v8805
        %v9789 = vpack.c.b16 %v9786, %v9785
        %v9790 = vpack.c.b16 %v9788, %v9787
        %9791 = vrot.lane.b32.xlu0 %v6706, 64
        %v9792 = vpop.permute.xlu0 %9791
        %9793 = vrot.lane.b32.xlu0 %v6707, 64
        %v9794 = vpop.permute.xlu0 %9793
        %v9798 = vsel %vm7301, %v9789, 0
        %v9801 = vsel %vm7301, %v9790, 0
        %9803 = vmatpush.bf16.msra.mxu0 0
        %9804 = vmatpush.bf16.msra.mxu0 0
        %9805 = vmatpush.bf16.msra.mxu0 0
        %9806 = vmatpush.bf16.msra.mxu0 0
        %9807 = vmatpush.bf16.msra.mxu0 0
        %9808 = vmatpush.bf16.msra.mxu0 0
        %9809 = vmatpush.bf16.msra.mxu0 %v9794
        %9810 = vmatpush.bf16.msra.mxu0 %v9792
        %9811 = vmatmul.bf16.gmra.mxu0 %v9798
        %v9812 = vpop.f32.mrf.mxu0
        %v9813 = vadd.f32 %v4830, %v9812
        %v9814 = vpop.f32.mrf.mxu0
        %v9815 = vadd.f32 %v4832, %v9814
        %9816 = vmatmul.bf16.gmra.mxu0 %v9801
        %v9817 = vpop.f32.mrf.mxu0
        %v9818 = vadd.f32 %v4834, %v9817
        %v9819 = vpop.f32.mrf.mxu0
        %v9820 = vadd.f32 %v4836, %v9819
        %9821 = vdwg.mxu0
        %v9826 = vunpack.c.l.b16 %v8806
        %v9827 = vunpack.c.l.b16 %v8807
        %v9828 = vunpack.c.l.b16 %v8808
        %v9829 = vunpack.c.l.b16 %v8809
        %v9830 = vpack.c.b16 %v9827, %v9826
        %v9831 = vpack.c.b16 %v9829, %v9828
        %9832 = vrot.lane.b32.xlu0 %v6773, 64
        %v9833 = vpop.permute.xlu0 %9832
        %9834 = vrot.lane.b32.xlu0 %v6774, 64
        %v9835 = vpop.permute.xlu0 %9834
        %v9839 = vsel %vm7301, %v9830, 0
        %v9842 = vsel %vm7301, %v9831, 0
        %9844 = vmatpush.bf16.msra.mxu0 0
        %9845 = vmatpush.bf16.msra.mxu0 0
        %9846 = vmatpush.bf16.msra.mxu0 0
        %9847 = vmatpush.bf16.msra.mxu0 0
        %9848 = vmatpush.bf16.msra.mxu0 0
        %9849 = vmatpush.bf16.msra.mxu0 0
        %9850 = vmatpush.bf16.msra.mxu0 %v9835
        %9851 = vmatpush.bf16.msra.mxu0 %v9833
        %9852 = vmatmul.bf16.gmra.mxu0 %v9839
        %v9853 = vpop.f32.mrf.mxu0
        %v9854 = vadd.f32 %v4838, %v9853
        %v9855 = vpop.f32.mrf.mxu0
        %v9856 = vadd.f32 %v4840, %v9855
        %9857 = vmatmul.bf16.gmra.mxu0 %v9842
        %v9858 = vpop.f32.mrf.mxu0
        %v9859 = vadd.f32 %v4842, %v9858
        %v9860 = vpop.f32.mrf.mxu0
        %v9861 = vadd.f32 %v4844, %v9860
        %9862 = vdwg.mxu0
        %v9867 = vunpack.c.l.b16 %v8810
        %v9868 = vunpack.c.l.b16 %v8811
        %v9869 = vunpack.c.l.b16 %v8812
        %v9870 = vunpack.c.l.b16 %v8813
        %v9871 = vpack.c.b16 %v9868, %v9867
        %v9872 = vpack.c.b16 %v9870, %v9869
        %9873 = vrot.lane.b32.xlu0 %v6840, 64
        %v9874 = vpop.permute.xlu0 %9873
        %9875 = vrot.lane.b32.xlu0 %v6841, 64
        %v9876 = vpop.permute.xlu0 %9875
        %v9880 = vsel %vm7301, %v9871, 0
        %v9883 = vsel %vm7301, %v9872, 0
        %9885 = vmatpush.bf16.msra.mxu0 0
        %9886 = vmatpush.bf16.msra.mxu0 0
        %9887 = vmatpush.bf16.msra.mxu0 0
        %9888 = vmatpush.bf16.msra.mxu0 0
        %9889 = vmatpush.bf16.msra.mxu0 0
        %9890 = vmatpush.bf16.msra.mxu0 0
        %9891 = vmatpush.bf16.msra.mxu0 %v9876
        %9892 = vmatpush.bf16.msra.mxu0 %v9874
        %9893 = vmatmul.bf16.gmra.mxu0 %v9880
        %v9894 = vpop.f32.mrf.mxu0
        %v9895 = vadd.f32 %v4846, %v9894
        %v9896 = vpop.f32.mrf.mxu0
        %v9897 = vadd.f32 %v4848, %v9896
        %9898 = vmatmul.bf16.gmra.mxu0 %v9883
        %v9899 = vpop.f32.mrf.mxu0
        %v9900 = vadd.f32 %v4850, %v9899
        %v9901 = vpop.f32.mrf.mxu0
        %v9902 = vadd.f32 %v4852, %v9901
        %9903 = vdwg.mxu0
        %v9908 = vunpack.c.l.b16 %v8814
        %v9909 = vunpack.c.l.b16 %v8815
        %v9910 = vunpack.c.l.b16 %v8816
        %v9911 = vunpack.c.l.b16 %v8817
        %v9912 = vpack.c.b16 %v9909, %v9908
        %v9913 = vpack.c.b16 %v9911, %v9910
        %9914 = vrot.lane.b32.xlu0 %v6907, 64
        %v9915 = vpop.permute.xlu0 %9914
        %9916 = vrot.lane.b32.xlu0 %v6908, 64
        %v9917 = vpop.permute.xlu0 %9916
        %v9921 = vsel %vm7301, %v9912, 0
        %v9924 = vsel %vm7301, %v9913, 0
        %9926 = vmatpush.bf16.msra.mxu0 0
        %9927 = vmatpush.bf16.msra.mxu0 0
        %9928 = vmatpush.bf16.msra.mxu0 0
        %9929 = vmatpush.bf16.msra.mxu0 0
        %9930 = vmatpush.bf16.msra.mxu0 0
        %9931 = vmatpush.bf16.msra.mxu0 0
        %9932 = vmatpush.bf16.msra.mxu0 %v9917
        %9933 = vmatpush.bf16.msra.mxu0 %v9915
        %9934 = vmatmul.bf16.gmra.mxu0 %v9921
        %v9935 = vpop.f32.mrf.mxu0
        %v9936 = vadd.f32 %v4854, %v9935
        %v9937 = vpop.f32.mrf.mxu0
        %v9938 = vadd.f32 %v4856, %v9937
        %9939 = vmatmul.bf16.gmra.mxu0 %v9924
        %v9940 = vpop.f32.mrf.mxu0
        %v9941 = vadd.f32 %v4858, %v9940
        %v9942 = vpop.f32.mrf.mxu0
        %v9943 = vadd.f32 %v4860, %v9942
        %9944 = vdwg.mxu0
        %v9949 = vunpack.c.l.b16 %v8818
        %v9950 = vunpack.c.l.b16 %v8819
        %v9951 = vunpack.c.l.b16 %v8820
        %v9952 = vunpack.c.l.b16 %v8821
        %v9953 = vpack.c.b16 %v9950, %v9949
        %v9954 = vpack.c.b16 %v9952, %v9951
        %9955 = vrot.lane.b32.xlu0 %v6974, 64
        %v9956 = vpop.permute.xlu0 %9955
        %9957 = vrot.lane.b32.xlu0 %v6975, 64
        %v9958 = vpop.permute.xlu0 %9957
        %v9962 = vsel %vm7301, %v9953, 0
        %v9965 = vsel %vm7301, %v9954, 0
        %9967 = vmatpush.bf16.msra.mxu0 0
        %9968 = vmatpush.bf16.msra.mxu0 0
        %9969 = vmatpush.bf16.msra.mxu0 0
        %9970 = vmatpush.bf16.msra.mxu0 0
        %9971 = vmatpush.bf16.msra.mxu0 0
        %9972 = vmatpush.bf16.msra.mxu0 0
        %9973 = vmatpush.bf16.msra.mxu0 %v9958
        %9974 = vmatpush.bf16.msra.mxu0 %v9956
        %9975 = vmatmul.bf16.gmra.mxu0 %v9962
        %v9976 = vpop.f32.mrf.mxu0
        %v9977 = vadd.f32 %v4862, %v9976
        %v9978 = vpop.f32.mrf.mxu0
        %v9979 = vadd.f32 %v4864, %v9978
        %9980 = vmatmul.bf16.gmra.mxu0 %v9965
        %v9981 = vpop.f32.mrf.mxu0
        %v9982 = vadd.f32 %v4866, %v9981
        %v9983 = vpop.f32.mrf.mxu0
        %v9984 = vadd.f32 %v4868, %v9983
        %9985 = vdwg.mxu0
        %v9990 = vunpack.c.l.b16 %v8822
        %v9991 = vunpack.c.l.b16 %v8823
        %v9992 = vunpack.c.l.b16 %v8824
        %v9993 = vunpack.c.l.b16 %v8825
        %v9994 = vpack.c.b16 %v9991, %v9990
        %v9995 = vpack.c.b16 %v9993, %v9992
        %9996 = vrot.lane.b32.xlu0 %v7041, 64
        %v9997 = vpop.permute.xlu0 %9996
        %9998 = vrot.lane.b32.xlu0 %v7042, 64
        %v9999 = vpop.permute.xlu0 %9998
        %v10003 = vsel %vm7301, %v9994, 0
        %v10006 = vsel %vm7301, %v9995, 0
        %10008 = vmatpush.bf16.msra.mxu0 0
        %10009 = vmatpush.bf16.msra.mxu0 0
        %10010 = vmatpush.bf16.msra.mxu0 0
        %10011 = vmatpush.bf16.msra.mxu0 0
        %10012 = vmatpush.bf16.msra.mxu0 0
        %10013 = vmatpush.bf16.msra.mxu0 0
        %10014 = vmatpush.bf16.msra.mxu0 %v9999
        %10015 = vmatpush.bf16.msra.mxu0 %v9997
        %10016 = vmatmul.bf16.gmra.mxu0 %v10003
        %v10017 = vpop.f32.mrf.mxu0
        %v10018 = vadd.f32 %v4870, %v10017
        %v10019 = vpop.f32.mrf.mxu0
        %v10020 = vadd.f32 %v4872, %v10019
        %10021 = vmatmul.bf16.gmra.mxu0 %v10006
        %v10022 = vpop.f32.mrf.mxu0
        %v10023 = vadd.f32 %v4874, %v10022
        %v10024 = vpop.f32.mrf.mxu0
        %v10025 = vadd.f32 %v4876, %v10024
        %10026 = vdwg.mxu0
        %v10031 = vunpack.c.l.b16 %v8826
        %v10032 = vunpack.c.l.b16 %v8827
        %v10033 = vunpack.c.l.b16 %v8828
        %v10034 = vunpack.c.l.b16 %v8829
        %v10035 = vpack.c.b16 %v10032, %v10031
        %v10036 = vpack.c.b16 %v10034, %v10033
        %10037 = vrot.lane.b32.xlu0 %v7108, 64
        %v10038 = vpop.permute.xlu0 %10037
        %10039 = vrot.lane.b32.xlu0 %v7109, 64
        %v10040 = vpop.permute.xlu0 %10039
        %v10044 = vsel %vm7301, %v10035, 0
        %v10047 = vsel %vm7301, %v10036, 0
        %10049 = vmatpush.bf16.msra.mxu0 0
        %10050 = vmatpush.bf16.msra.mxu0 0
        %10051 = vmatpush.bf16.msra.mxu0 0
        %10052 = vmatpush.bf16.msra.mxu0 0
        %10053 = vmatpush.bf16.msra.mxu0 0
        %10054 = vmatpush.bf16.msra.mxu0 0
        %10055 = vmatpush.bf16.msra.mxu0 %v10040
        %10056 = vmatpush.bf16.msra.mxu0 %v10038
        %10057 = vmatmul.bf16.gmra.mxu0 %v10044
        %v10058 = vpop.f32.mrf.mxu0
        %v10059 = vadd.f32 %v4878, %v10058
        %v10060 = vpop.f32.mrf.mxu0
        %v10061 = vadd.f32 %v4880, %v10060
        %10062 = vmatmul.bf16.gmra.mxu0 %v10047
        %v10063 = vpop.f32.mrf.mxu0
        %v10064 = vadd.f32 %v4882, %v10063
        %v10065 = vpop.f32.mrf.mxu0
        %v10066 = vadd.f32 %v4884, %v10065
        %10067 = vdwg.mxu0
        %v10072 = vunpack.c.l.b16 %v8830
        %v10073 = vunpack.c.l.b16 %v8831
        %v10074 = vunpack.c.l.b16 %v8832
        %v10075 = vunpack.c.l.b16 %v8833
        %v10076 = vpack.c.b16 %v10073, %v10072
        %v10077 = vpack.c.b16 %v10075, %v10074
        %10078 = vrot.lane.b32.xlu0 %v7175, 64
        %v10079 = vpop.permute.xlu0 %10078
        %10080 = vrot.lane.b32.xlu0 %v7176, 64
        %v10081 = vpop.permute.xlu0 %10080
        %v10085 = vsel %vm7301, %v10076, 0
        %v10088 = vsel %vm7301, %v10077, 0
        %10090 = vmatpush.bf16.msra.mxu0 0
        %10091 = vmatpush.bf16.msra.mxu0 0
        %10092 = vmatpush.bf16.msra.mxu0 0
        %10093 = vmatpush.bf16.msra.mxu0 0
        %10094 = vmatpush.bf16.msra.mxu0 0
        %10095 = vmatpush.bf16.msra.mxu0 0
        %10096 = vmatpush.bf16.msra.mxu0 %v10081
        %10097 = vmatpush.bf16.msra.mxu0 %v10079
        %10098 = vmatmul.bf16.gmra.mxu0 %v10085
        %v10099 = vpop.f32.mrf.mxu0
        %v10100 = vadd.f32 %v4886, %v10099
        %v10101 = vpop.f32.mrf.mxu0
        %v10102 = vadd.f32 %v4888, %v10101
        %10103 = vmatmul.bf16.gmra.mxu0 %v10088
        %v10104 = vpop.f32.mrf.mxu0
        %v10105 = vadd.f32 %v4890, %v10104
        %v10106 = vpop.f32.mrf.mxu0
        %v10107 = vadd.f32 %v4892, %v10106
        %10108 = vdwg.mxu0
        %v10113 = vunpack.c.l.b16 %v8834
        %v10114 = vunpack.c.l.b16 %v8835
        %v10115 = vunpack.c.l.b16 %v8836
        %v10116 = vunpack.c.l.b16 %v8837
        %v10117 = vpack.c.b16 %v10114, %v10113
        %v10118 = vpack.c.b16 %v10116, %v10115
        %10119 = vrot.lane.b32.xlu0 %v7242, 64
        %v10120 = vpop.permute.xlu0 %10119
        %10121 = vrot.lane.b32.xlu0 %v7243, 64
        %v10122 = vpop.permute.xlu0 %10121
        %v10126 = vsel %vm7301, %v10117, 0
        %v10129 = vsel %vm7301, %v10118, 0
        %10131 = vmatpush.bf16.msra.mxu0 0
        %10132 = vmatpush.bf16.msra.mxu0 0
        %10133 = vmatpush.bf16.msra.mxu0 0
        %10134 = vmatpush.bf16.msra.mxu0 0
        %10135 = vmatpush.bf16.msra.mxu0 0
        %10136 = vmatpush.bf16.msra.mxu0 0
        %10137 = vmatpush.bf16.msra.mxu0 %v10122
        %10138 = vmatpush.bf16.msra.mxu0 %v10120
        %10139 = vmatmul.bf16.gmra.mxu0 %v10126
        %v10140 = vpop.f32.mrf.mxu0
        %v10141 = vadd.f32 %v4894, %v10140
        %v10142 = vpop.f32.mrf.mxu0
        %v10143 = vadd.f32 %v4896, %v10142
        %10144 = vmatmul.bf16.gmra.mxu0 %v10129
        %v10145 = vpop.f32.mrf.mxu0
        %v10146 = vadd.f32 %v4898, %v10145
        %v10147 = vpop.f32.mrf.mxu0
        %v10148 = vadd.f32 %v4900, %v10147
        %10149 = vdwg.mxu0
        %10214 = vrot.lane.b32.xlu0 %v8875, 64
        %v10215 = vpop.permute.xlu0 %10214
        %10216 = vrot.lane.b32.xlu0 %v8877, 64
        %v10217 = vpop.permute.xlu0 %10216
        %10218 = vrot.lane.b32.xlu0 %v8916, 64
        %v10219 = vpop.permute.xlu0 %10218
        %10220 = vrot.lane.b32.xlu0 %v8918, 64
        %v10221 = vpop.permute.xlu0 %10220
        %10222 = vrot.lane.b32.xlu0 %v8957, 64
        %v10223 = vpop.permute.xlu0 %10222
        %10224 = vrot.lane.b32.xlu0 %v8959, 64
        %v10225 = vpop.permute.xlu0 %10224
        %10226 = vrot.lane.b32.xlu0 %v8998, 64
        %v10227 = vpop.permute.xlu0 %10226
        %10228 = vrot.lane.b32.xlu0 %v9000, 64
        %v10229 = vpop.permute.xlu0 %10228
        %10230 = vrot.lane.b32.xlu0 %v9039, 64
        %v10231 = vpop.permute.xlu0 %10230
        %10232 = vrot.lane.b32.xlu0 %v9041, 64
        %v10233 = vpop.permute.xlu0 %10232
        %10234 = vrot.lane.b32.xlu0 %v9080, 64
        %v10235 = vpop.permute.xlu0 %10234
        %10236 = vrot.lane.b32.xlu0 %v9082, 64
        %v10237 = vpop.permute.xlu0 %10236
        %10238 = vrot.lane.b32.xlu0 %v9121, 64
        %v10239 = vpop.permute.xlu0 %10238
        %10240 = vrot.lane.b32.xlu0 %v9123, 64
        %v10241 = vpop.permute.xlu0 %10240
        %10242 = vrot.lane.b32.xlu0 %v9162, 64
        %v10243 = vpop.permute.xlu0 %10242
        %10244 = vrot.lane.b32.xlu0 %v9164, 64
        %v10245 = vpop.permute.xlu0 %10244
        %10246 = vrot.lane.b32.xlu0 %v9203, 64
        %v10247 = vpop.permute.xlu0 %10246
        %10248 = vrot.lane.b32.xlu0 %v9205, 64
        %v10249 = vpop.permute.xlu0 %10248
        %10250 = vrot.lane.b32.xlu0 %v9244, 64
        %v10251 = vpop.permute.xlu0 %10250
        %10252 = vrot.lane.b32.xlu0 %v9246, 64
        %v10253 = vpop.permute.xlu0 %10252
        %10254 = vrot.lane.b32.xlu0 %v9285, 64
        %v10255 = vpop.permute.xlu0 %10254
        %10256 = vrot.lane.b32.xlu0 %v9287, 64
        %v10257 = vpop.permute.xlu0 %10256
        %10258 = vrot.lane.b32.xlu0 %v9326, 64
        %v10259 = vpop.permute.xlu0 %10258
        %10260 = vrot.lane.b32.xlu0 %v9328, 64
        %v10261 = vpop.permute.xlu0 %10260
        %10262 = vrot.lane.b32.xlu0 %v9367, 64
        %v10263 = vpop.permute.xlu0 %10262
        %10264 = vrot.lane.b32.xlu0 %v9369, 64
        %v10265 = vpop.permute.xlu0 %10264
        %10266 = vrot.lane.b32.xlu0 %v9408, 64
        %v10267 = vpop.permute.xlu0 %10266
        %10268 = vrot.lane.b32.xlu0 %v9410, 64
        %v10269 = vpop.permute.xlu0 %10268
        %10270 = vrot.lane.b32.xlu0 %v9449, 64
        %v10271 = vpop.permute.xlu0 %10270
        %10272 = vrot.lane.b32.xlu0 %v9451, 64
        %v10273 = vpop.permute.xlu0 %10272
        %10274 = vrot.lane.b32.xlu0 %v9490, 64
        %v10275 = vpop.permute.xlu0 %10274
        %10276 = vrot.lane.b32.xlu0 %v9492, 64
        %v10277 = vpop.permute.xlu0 %10276
        %10278 = vrot.lane.b32.xlu0 %v9531, 64
        %v10279 = vpop.permute.xlu0 %10278
        %10280 = vrot.lane.b32.xlu0 %v9533, 64
        %v10281 = vpop.permute.xlu0 %10280
        %10282 = vrot.lane.b32.xlu0 %v9572, 64
        %v10283 = vpop.permute.xlu0 %10282
        %10284 = vrot.lane.b32.xlu0 %v9574, 64
        %v10285 = vpop.permute.xlu0 %10284
        %10286 = vrot.lane.b32.xlu0 %v9613, 64
        %v10287 = vpop.permute.xlu0 %10286
        %10288 = vrot.lane.b32.xlu0 %v9615, 64
        %v10289 = vpop.permute.xlu0 %10288
        %10290 = vrot.lane.b32.xlu0 %v9654, 64
        %v10291 = vpop.permute.xlu0 %10290
        %10292 = vrot.lane.b32.xlu0 %v9656, 64
        %v10293 = vpop.permute.xlu0 %10292
        %10294 = vrot.lane.b32.xlu0 %v9695, 64
        %v10295 = vpop.permute.xlu0 %10294
        %10296 = vrot.lane.b32.xlu0 %v9697, 64
        %v10297 = vpop.permute.xlu0 %10296
        %10298 = vrot.lane.b32.xlu0 %v9736, 64
        %v10299 = vpop.permute.xlu0 %10298
        %10300 = vrot.lane.b32.xlu0 %v9738, 64
        %v10301 = vpop.permute.xlu0 %10300
        %10302 = vrot.lane.b32.xlu0 %v9777, 64
        %v10303 = vpop.permute.xlu0 %10302
        %10304 = vrot.lane.b32.xlu0 %v9779, 64
        %v10305 = vpop.permute.xlu0 %10304
        %10306 = vrot.lane.b32.xlu0 %v9818, 64
        %v10307 = vpop.permute.xlu0 %10306
        %10308 = vrot.lane.b32.xlu0 %v9820, 64
        %v10309 = vpop.permute.xlu0 %10308
        %10310 = vrot.lane.b32.xlu0 %v9859, 64
        %v10311 = vpop.permute.xlu0 %10310
        %10312 = vrot.lane.b32.xlu0 %v9861, 64
        %v10313 = vpop.permute.xlu0 %10312
        %10314 = vrot.lane.b32.xlu0 %v9900, 64
        %v10315 = vpop.permute.xlu0 %10314
        %10316 = vrot.lane.b32.xlu0 %v9902, 64
        %v10317 = vpop.permute.xlu0 %10316
        %10318 = vrot.lane.b32.xlu0 %v9941, 64
        %v10319 = vpop.permute.xlu0 %10318
        %10320 = vrot.lane.b32.xlu0 %v9943, 64
        %v10321 = vpop.permute.xlu0 %10320
        %10322 = vrot.lane.b32.xlu0 %v9982, 64
        %v10323 = vpop.permute.xlu0 %10322
        %10324 = vrot.lane.b32.xlu0 %v9984, 64
        %v10325 = vpop.permute.xlu0 %10324
        %10326 = vrot.lane.b32.xlu0 %v10023, 64
        %v10327 = vpop.permute.xlu0 %10326
        %10328 = vrot.lane.b32.xlu0 %v10025, 64
        %v10329 = vpop.permute.xlu0 %10328
        %10330 = vrot.lane.b32.xlu0 %v10064, 64
        %v10331 = vpop.permute.xlu0 %10330
        %10332 = vrot.lane.b32.xlu0 %v10066, 64
        %v10333 = vpop.permute.xlu0 %10332
        %10334 = vrot.lane.b32.xlu0 %v10105, 64
        %v10335 = vpop.permute.xlu0 %10334
        %10336 = vrot.lane.b32.xlu0 %v10107, 64
        %v10337 = vpop.permute.xlu0 %10336
        %10338 = vrot.lane.b32.xlu0 %v10146, 64
        %v10339 = vpop.permute.xlu0 %10338
        %10340 = vrot.lane.b32.xlu0 %v10148, 64
        %v10341 = vpop.permute.xlu0 %10340
        %v10406 = vsel %vm1429, %v8870, %v10215
        %v10407 = vsel %vm1429, %v8872, %v10217
        %v10408 = vsel %vm1429, %v8911, %v10219
        %v10409 = vsel %vm1429, %v8913, %v10221
        %v10410 = vsel %vm1429, %v8952, %v10223
        %v10411 = vsel %vm1429, %v8954, %v10225
        %v10412 = vsel %vm1429, %v8993, %v10227
        %v10413 = vsel %vm1429, %v8995, %v10229
        %v10414 = vsel %vm1429, %v9034, %v10231
        %v10415 = vsel %vm1429, %v9036, %v10233
        %v10416 = vsel %vm1429, %v9075, %v10235
        %v10417 = vsel %vm1429, %v9077, %v10237
        %v10418 = vsel %vm1429, %v9116, %v10239
        %v10419 = vsel %vm1429, %v9118, %v10241
        %v10420 = vsel %vm1429, %v9157, %v10243
        %v10421 = vsel %vm1429, %v9159, %v10245
        %v10422 = vsel %vm1429, %v9198, %v10247
        %v10423 = vsel %vm1429, %v9200, %v10249
        %v10424 = vsel %vm1429, %v9239, %v10251
        %v10425 = vsel %vm1429, %v9241, %v10253
        %v10426 = vsel %vm1429, %v9280, %v10255
        %v10427 = vsel %vm1429, %v9282, %v10257
        %v10428 = vsel %vm1429, %v9321, %v10259
        %v10429 = vsel %vm1429, %v9323, %v10261
        %v10430 = vsel %vm1429, %v9362, %v10263
        %v10431 = vsel %vm1429, %v9364, %v10265
        %v10432 = vsel %vm1429, %v9403, %v10267
        %v10433 = vsel %vm1429, %v9405, %v10269
        %v10434 = vsel %vm1429, %v9444, %v10271
        %v10435 = vsel %vm1429, %v9446, %v10273
        %v10436 = vsel %vm1429, %v9485, %v10275
        %v10437 = vsel %vm1429, %v9487, %v10277
        %v10438 = vsel %vm1429, %v9526, %v10279
        %v10439 = vsel %vm1429, %v9528, %v10281
        %v10440 = vsel %vm1429, %v9567, %v10283
        %v10441 = vsel %vm1429, %v9569, %v10285
        %v10442 = vsel %vm1429, %v9608, %v10287
        %v10443 = vsel %vm1429, %v9610, %v10289
        %v10444 = vsel %vm1429, %v9649, %v10291
        %v10445 = vsel %vm1429, %v9651, %v10293
        %v10446 = vsel %vm1429, %v9690, %v10295
        %v10447 = vsel %vm1429, %v9692, %v10297
        %v10448 = vsel %vm1429, %v9731, %v10299
        %v10449 = vsel %vm1429, %v9733, %v10301
        %v10450 = vsel %vm1429, %v9772, %v10303
        %v10451 = vsel %vm1429, %v9774, %v10305
        %v10452 = vsel %vm1429, %v9813, %v10307
        %v10453 = vsel %vm1429, %v9815, %v10309
        %v10454 = vsel %vm1429, %v9854, %v10311
        %v10455 = vsel %vm1429, %v9856, %v10313
        %v10456 = vsel %vm1429, %v9895, %v10315
        %v10457 = vsel %vm1429, %v9897, %v10317
        %v10458 = vsel %vm1429, %v9936, %v10319
        %v10459 = vsel %vm1429, %v9938, %v10321
        %v10460 = vsel %vm1429, %v9977, %v10323
        %v10461 = vsel %vm1429, %v9979, %v10325
        %v10462 = vsel %vm1429, %v10018, %v10327
        %v10463 = vsel %vm1429, %v10020, %v10329
        %v10464 = vsel %vm1429, %v10059, %v10331
        %v10465 = vsel %vm1429, %v10061, %v10333
        %v10466 = vsel %vm1429, %v10100, %v10335
        %v10467 = vsel %vm1429, %v10102, %v10337
        %v10468 = vsel %vm1429, %v10141, %v10339
        %v10469 = vsel %vm1429, %v10143, %v10341
        %10470 = vst [vmem:[%s326] sm:$0xff] %v10406
        %10471 = vst [vmem:[%s326 + $0x8] sm:$0xff] %v10407
        %10472 = vst [vmem:[%s326 + $0x10] sm:$0xff] %v10408
        %10473 = vst [vmem:[%s326 + $0x18] sm:$0xff] %v10409
        %10474 = vst [vmem:[%s326 + $0x20] sm:$0xff] %v10410
        %10475 = vst [vmem:[%s326 + $0x28] sm:$0xff] %v10411
        %10476 = vst [vmem:[%s326 + $0x30] sm:$0xff] %v10412
        %10477 = vst [vmem:[%s326 + $0x38] sm:$0xff] %v10413
        %10478 = vst [vmem:[%s326 + $0x40] sm:$0xff] %v10414
        %10479 = vst [vmem:[%s326 + $0x48] sm:$0xff] %v10415
        %10480 = vst [vmem:[%s326 + $0x50] sm:$0xff] %v10416
        %10481 = vst [vmem:[%s326 + $0x58] sm:$0xff] %v10417
        %10482 = vst [vmem:[%s326 + $0x60] sm:$0xff] %v10418
        %10483 = vst [vmem:[%s326 + $0x68] sm:$0xff] %v10419
        %10484 = vst [vmem:[%s326 + $0x70] sm:$0xff] %v10420
        %10485 = vst [vmem:[%s326 + $0x78] sm:$0xff] %v10421
        %10486 = vst [vmem:[%s326 + $0x80] sm:$0xff] %v10422
        %10487 = vst [vmem:[%s326 + $0x88] sm:$0xff] %v10423
        %10488 = vst [vmem:[%s326 + $0x90] sm:$0xff] %v10424
        %10489 = vst [vmem:[%s326 + $0x98] sm:$0xff] %v10425
        %10490 = vst [vmem:[%s326 + $0xa0] sm:$0xff] %v10426
        %10491 = vst [vmem:[%s326 + $0xa8] sm:$0xff] %v10427
        %10492 = vst [vmem:[%s326 + $0xb0] sm:$0xff] %v10428
        %10493 = vst [vmem:[%s326 + $0xb8] sm:$0xff] %v10429
        %10494 = vst [vmem:[%s326 + $0xc0] sm:$0xff] %v10430
        %10495 = vst [vmem:[%s326 + $0xc8] sm:$0xff] %v10431
        %10496 = vst [vmem:[%s326 + $0xd0] sm:$0xff] %v10432
        %10497 = vst [vmem:[%s326 + $0xd8] sm:$0xff] %v10433
        %10498 = vst [vmem:[%s326 + $0xe0] sm:$0xff] %v10434
        %10499 = vst [vmem:[%s326 + $0xe8] sm:$0xff] %v10435
        %10500 = vst [vmem:[%s326 + $0xf0] sm:$0xff] %v10436
        %10501 = vst [vmem:[%s326 + $0xf8] sm:$0xff] %v10437
        %10502 = vst [vmem:[%s326 + $0x100] sm:$0xff] %v10438
        %10503 = vst [vmem:[%s326 + $0x108] sm:$0xff] %v10439
        %10504 = vst [vmem:[%s326 + $0x110] sm:$0xff] %v10440
        %10505 = vst [vmem:[%s326 + $0x118] sm:$0xff] %v10441
        %10506 = vst [vmem:[%s326 + $0x120] sm:$0xff] %v10442
        %10507 = vst [vmem:[%s326 + $0x128] sm:$0xff] %v10443
        %10508 = vst [vmem:[%s326 + $0x130] sm:$0xff] %v10444
        %10509 = vst [vmem:[%s326 + $0x138] sm:$0xff] %v10445
        %10510 = vst [vmem:[%s326 + $0x140] sm:$0xff] %v10446
        %10511 = vst [vmem:[%s326 + $0x148] sm:$0xff] %v10447
        %10512 = vst [vmem:[%s326 + $0x150] sm:$0xff] %v10448
        %10513 = vst [vmem:[%s326 + $0x158] sm:$0xff] %v10449
        %10514 = vst [vmem:[%s326 + $0x160] sm:$0xff] %v10450
        %10515 = vst [vmem:[%s326 + $0x168] sm:$0xff] %v10451
        %10516 = vst [vmem:[%s326 + $0x170] sm:$0xff] %v10452
        %10517 = vst [vmem:[%s326 + $0x178] sm:$0xff] %v10453
        %10518 = vst [vmem:[%s326 + $0x180] sm:$0xff] %v10454
        %10519 = vst [vmem:[%s326 + $0x188] sm:$0xff] %v10455
        %10520 = vst [vmem:[%s326 + $0x190] sm:$0xff] %v10456
        %10521 = vst [vmem:[%s326 + $0x198] sm:$0xff] %v10457
        %10522 = vst [vmem:[%s326 + $0x1a0] sm:$0xff] %v10458
        %10523 = vst [vmem:[%s326 + $0x1a8] sm:$0xff] %v10459
        %10524 = vst [vmem:[%s326 + $0x1b0] sm:$0xff] %v10460
        %10525 = vst [vmem:[%s326 + $0x1b8] sm:$0xff] %v10461
        %10526 = vst [vmem:[%s326 + $0x1c0] sm:$0xff] %v10462
        %10527 = vst [vmem:[%s326 + $0x1c8] sm:$0xff] %v10463
        %10528 = vst [vmem:[%s326 + $0x1d0] sm:$0xff] %v10464
        %10529 = vst [vmem:[%s326 + $0x1d8] sm:$0xff] %v10465
        %10530 = vst [vmem:[%s326 + $0x1e0] sm:$0xff] %v10466
        %10531 = vst [vmem:[%s326 + $0x1e8] sm:$0xff] %v10467
        %10532 = vst [vmem:[%s326 + $0x1f0] sm:$0xff] %v10468
        %10533 = vst [vmem:[%s326 + $0x1f8] sm:$0xff] %v10469
        %s10534 = sand.u32 %s204, 1
        %s10535 = scalar_lea.sflag [#allocation3], %s10534
        %s10536 = sand.u32 %s204, 1
        %s10537 = smul.addr %s10536, 512
        %s10538 = scalar_lea.vmem [#allocation2], %s10537
        // Predicated region
        $region49: #{tpu_custom_call.1} parent=47 // pred_check
          %p10539 = pneg %p214
        $region50: #{tpu_custom_call.1} parent=47 // pred_check_branch
          %10541 = sbr.rel (%p10539) target = $region52
        $region51: #{tpu_custom_call.1} parent=47 // pred_region
          %s10542 = smul.u32 32, %s26
          %10544 = vsyncadd %s10535, 0
          %s10545 = smul.addr %s10542, 2
          %s10546 = smul.addr %s25, 64
          %s10547 = sadd.s32 %s10545, %s10546
          %s10548 = smul.addr %s10547, 8
          %s10549 = scalar_lea.hbm %s7, %s10548
          %s10550 = sshll.u32 %s10538, 4
          %s10551 = int_to_ptr.vmem [resolvable:$true] %s10550
          %s10552 = sshll.u32 %s10549, 4
          %s10553 = int_to_ptr.hbm [resolvable:$true] %s10552
          %10558 = dma.vmem_to_hbm [thread:$0]  %s10551, 8192, %s10553, %s10535, 128, 128, 8
        $region52: #{tpu_custom_call.1} parent=47 // pred_fallthru
          _
      $region48: #{tpu_custom_call.1} parent=5 // pred_fallthru
        _
      %p10559 = scmp.le.s32.totalorder 2, %s16
      // Predicated region
      $region53: #{tpu_custom_call.1} parent=5 // pred_check
        %p10560 = pneg %p10559
      $region54: #{tpu_custom_call.1} parent=5 // pred_check_branch
        %10562 = sbr.rel (%p10560) target = $region56
      $region55: #{tpu_custom_call.1} parent=5 // pred_region
        %s10563 = ssub.s32 %s16, 2
        // Predicated region
        $region57: #{tpu_custom_call.1} parent=55 // pred_check
          %p10564 = pneg %p220
        $region58: #{tpu_custom_call.1} parent=55 // pred_check_branch
          %10566 = sbr.rel (%p10564) target = $region60
        $region59: #{tpu_custom_call.1} parent=55 // pred_region
          %s10567 = sand.u32 %s205, 1
          %s10568 = scalar_lea.sflag [#allocation3], %s10567
          %s10569 = sand.u32 %s205, 1
          %s10570 = smul.addr %s10569, 512
          %s10571 = scalar_lea.vmem [#allocation2], %s10570
          %10573 = dma.done %s10568, 8192
        $region60: #{tpu_custom_call.1} parent=55 // pred_fallthru
          _
      $region56: #{tpu_custom_call.1} parent=5 // pred_fallthru
        _
    $region6: #{tpu_custom_call.1} parent=1 // loop_footer
      %s20 = sadd.s32 1, %s16
    $region7: #{tpu_custom_call.1} parent=1 // loop_footer_branch
      %15 = sbr.rel target = $region3
    $region8: #{tpu_custom_call.1} parent=1 // loop_exit
      _
    %10574 = vsyncpa [#allocation3], 1
    %s10575 = scalar_lea.sflag [#allocation3], 1
    %10576 = vsyncpa %s10575, 1

</llo_original>
